<compile_context>
chip_gen: v7x
topology: tpu7x:2x2x1
jax: 0.10.0
libtpu: 0.0.40
codegen_flags: <defaults>
</compile_context>

<pallas_src>
from functools import partial

import jax
import jax.numpy as jnp
from jax.experimental import pallas as pl
from jax.experimental.pallas import tpu as pltpu


def _temporal_attention_kernel(x_ref, wqkv_ref, wout_ref, o_ref, *,
                               frames, heads, dim_head):
    # x_ref:    (C*F, G)           rows ordered (c, f), pixels G on lanes
    # wqkv_ref: (3*hidden*F, C*F)  frame-block-diagonal, scale folded into q
    # wout_ref: (C*F, hidden*F)    frame-block-diagonal output projection
    # o_ref:    (C*F, G)
    F = frames
    hidden = heads * dim_head
    G = x_ref.shape[-1]

    x = x_ref[...]
    if x.dtype != wqkv_ref.dtype:
        x = x.astype(wqkv_ref.dtype)

    # Fused QKV projection: one MXU dot, K = C*F, N = G (lane-dense output).
    qkv = jnp.dot(wqkv_ref[...], x, preferred_element_type=jnp.float32)
    # (3*hidden*F, G) -> (3, heads, dim_head, F, G): major-dim split only
    # (row groups of F=8 align with sublane tiles), i.e. a free reshape.
    qkv = qkv.reshape(3, heads, dim_head, F, G)
    q, k, v = qkv[0], qkv[1], qkv[2]          # each (heads, dim_head, F, G)

    # Attention core on VPU/XLU with G on lanes (f32 math).
    # sim[h,i,j,g] = sum_d q[h,d,i,g] * k[h,d,j,g]
    sim = jnp.sum(q[:, :, :, None, :] * k[:, :, None, :, :], axis=1)
    sim = sim - jnp.max(sim, axis=2, keepdims=True)       # (heads, i, j, G)
    p = jnp.exp(sim)
    denom = jnp.sum(p, axis=2, keepdims=True)
    attn = p * pl.reciprocal(denom, approx=True)

    # out[h,d,i,g] = sum_j attn[h,i,j,g] * v[h,d,j,g]
    out = jnp.sum(attn[:, None, :, :, :] * v[:, :, None, :, :], axis=3)
    out2d = out.reshape(hidden * F, G)                     # free major merge
    if out2d.dtype != wout_ref.dtype:
        out2d = out2d.astype(wout_ref.dtype)

    # Output projection lands directly in the stored (C*F, G) layout.
    y = jnp.dot(wout_ref[...], out2d, preferred_element_type=jnp.float32)
    o_ref[...] = y.astype(o_ref.dtype)


def _pick_pixel_tile(hw, target):
    """Largest legal lane tile of the pixel axis: multiple of 128 dividing hw,
    capped at `target`; full extent otherwise."""
    if hw <= target:
        return hw
    if hw % 128 == 0:
        best = 128
        t = 256
        while t <= target:
            if hw % t == 0:
                best = t
            t += 128
        return best
    return hw   # fallback: single full-extent block (see TODO above)


def einops_to_and_from_attention(x, wqkv, wout, *, heads, dim_head,
                                 pixel_tile=512, mxu_dtype=None):
    """EinopsToAndFrom('b c f h w', 'b (h w) f c', Attention) forward pass."""
    B, C, Fr, H, W = x.shape
    hidden = heads * dim_head
    assert wqkv.shape == (C, 3 * hidden)
    assert wout.shape == (hidden, C)
    assert (C * Fr) % 8 == 0 or B == 1, "C*frames must be a multiple of 8"

    HW = H * W
    wdtype = jnp.dtype(mxu_dtype) if mxu_dtype is not None else x.dtype

    # ---- host-side weight prep (tiny, one-time) ---------------------------
    scale = dim_head ** -0.5
    w = wqkv.astype(jnp.float32)
    w = jnp.concatenate([w[:, :hidden] * scale, w[:, hidden:]], axis=1)
    eye = jnp.eye(Fr, dtype=jnp.float32)
    # Frame-block-diagonal expansions (rows of x are ordered (c, f)):
    #   wqkv_bd[kq*F+f1, c*F+f2] = w[c, kq] * delta(f1, f2)
    #   wout_bd[c*F+f1,  k*F+f2] = wout[k, c] * delta(f1, f2)
    wqkv_bd = jnp.einsum('ck,fe->kfce', w, eye)
    wqkv_bd = wqkv_bd.reshape(3 * hidden * Fr, C * Fr).astype(wdtype)
    wout_bd = jnp.einsum('kc,fe->cfke', wout.astype(jnp.float32), eye)
    wout_bd = wout_bd.reshape(C * Fr, hidden * Fr).astype(wdtype)

    # Zero-cost reshape: contiguous-dim merge, no transpose, no HBM pass.
    x2 = x.reshape(B * C * Fr, HW)

    tg = _pick_pixel_tile(HW, pixel_tile)
    if B * (HW // tg) < 2 and tg % 256 == 0:
        tg //= 2            # keep >=2 grid steps so both v7x cores get work
    grid = (B, HW // tg)

    # ---- VMEM budget (per-tile footprint with headroom, capped per-chip) --
    itemsize = jnp.dtype(x.dtype).itemsize
    wsize = jnp.dtype(wdtype).itemsize
    cf, hf = C * Fr, hidden * Fr
    block_io = 2 * 2 * cf * tg * itemsize                   # dbl-buffered x/o
    weights_b = 2 * (3 * hf * cf + cf * hf) * wsize          # resident weights
    interm = (3 * hf + 2 * heads * dim_head * Fr * Fr
              + 4 * heads * Fr * Fr + 2 * hf) * tg * 4       # f32 temporaries
    est = block_io + weights_b + interm
    try:
        phys = int(pltpu.get_tpu_info().vmem_capacity_bytes)
    except Exception:
        phys = 64 * 2 ** 20
    vmem_limit = int(min(phys * 7 // 8, max(32 * 2 ** 20, 2 * est)))

    kernel = partial(_temporal_attention_kernel, frames=Fr, heads=heads,
                     dim_head=dim_head)
    out = pl.pallas_call(
        kernel,
        out_shape=jax.ShapeDtypeStruct((B * C * Fr, HW), x.dtype),
        grid_spec=pltpu.PrefetchScalarGridSpec(
            num_scalar_prefetch=0,
            grid=grid,
            in_specs=[
                pl.BlockSpec((C * Fr, tg), lambda b, g: (b, g)),
                # grid-invariant weight blocks (index -> (0,0)): hoisted to a
                # single DMA / single resident buffer by the pipeline.
                pl.BlockSpec((3 * hidden * Fr, C * Fr), lambda b, g: (0, 0)),
                pl.BlockSpec((C * Fr, hidden * Fr), lambda b, g: (0, 0)),
            ],
            out_specs=pl.BlockSpec((C * Fr, tg), lambda b, g: (b, g)),
        ),
        compiler_params=pltpu.CompilerParams(
            dimension_semantics=("parallel", "parallel"),
            vmem_limit_bytes=vmem_limit,
        ),
    )(x2, wqkv_bd, wout_bd)

    # Zero-cost inverse reshape back to 'b c f h w'.
    return out.reshape(B, C, Fr, H, W)


def _reference(x, wqkv, wout, *, heads, dim_head):
    """Pure-JAX reference mirroring the PyTorch module semantics."""
    B, C, F, H, W = x.shape
    hidden = heads * dim_head
    scale = dim_head ** -0.5
    xt = jnp.transpose(x, (0, 3, 4, 2, 1)).reshape(B, H * W, F, C)
    qkv = jnp.einsum("bnfc,ck->bnfk", xt, wqkv)
    q, k, v = jnp.split(qkv, 3, axis=-1)
    q = q.reshape(B, H * W, F, heads, dim_head) * scale
    k = k.reshape(B, H * W, F, heads, dim_head)
    v = v.reshape(B, H * W, F, heads, dim_head)
    sim = jnp.einsum("bnihd,bnjhd->bnhij", q, k)
    sim = sim - jnp.max(sim, axis=-1, keepdims=True)
    attn = jax.nn.softmax(sim, axis=-1)
    out = jnp.einsum("bnhij,bnjhd->bnihd", attn, v)
    out = out.reshape(B, H * W, F, hidden)
    o = jnp.einsum("bnfk,kc->bnfc", out, wout)
    return o.reshape(B, H, W, F, C).transpose(0, 4, 3, 1, 2)


if __name__ == "__main__":
    HEADS = 4
    DIM_HEAD = 8
    DIM = HEADS * DIM_HEAD        # channel dim C = 32
    B, F, H, W = 2, 8, 16, 16     # batch, frames, spatial (H*W = 256 lanes)

    key = jax.random.PRNGKey(0)
    kx, kq, ko = jax.random.split(key, 3)

    x = jax.random.normal(kx, (B, DIM, F, H, W), dtype=jnp.float32)
    # deterministic synthetic weights (nn.Linear(..., bias=False))
    wqkv = jax.random.normal(kq, (DIM, 3 * HEADS * DIM_HEAD),
                             dtype=jnp.float32) * (DIM ** -0.5)
    wout = jax.random.normal(ko, (HEADS * DIM_HEAD, DIM),
                             dtype=jnp.float32) * ((HEADS * DIM_HEAD) ** -0.5)

    y = einops_to_and_from_attention(x, wqkv, wout,
                                     heads=HEADS, dim_head=DIM_HEAD)
    y = jax.block_until_ready(y)

    y_ref = _reference(x, wqkv, wout, heads=HEADS, dim_head=DIM_HEAD)
    assert y.shape == x.shape
    # Slightly loose tolerance: softmax denominator uses the EUP approximate
    # reciprocal (pl.reciprocal(approx=True)).
    assert jnp.allclose(y, y_ref, atol=5e-3, rtol=5e-3), "mismatch vs reference"

    print("KERNEL_OK")
</pallas_src>

<mosaic_0001>
module attributes {stable_mosaic.version = 11 : i64} {
  func.func @_temporal_attention_kernel(%arg0: i32, %arg1: i32, %arg2: memref<256x256xf32, #tpu.memory_space<vmem>>, %arg3: memref<768x256xf32, #tpu.memory_space<vmem>>, %arg4: memref<256x256xf32, #tpu.memory_space<vmem>>, %arg5: memref<256x256xf32, #tpu.memory_space<vmem>>) attributes {dimension_semantics = [#tpu.dimension_semantics<parallel>, #tpu.dimension_semantics<parallel>], iteration_bounds = array<i64: 2, 1>, scalar_prefetch = 0 : i64, scratch_operands = 0 : i64, tpu.core_type = #tpu.core_type<tc>, window_params = [{transform_indices = @transform_0, window_bounds = array<i64: 256, 256>}, {pipeline_mode = #tpu.pipeline_mode<synchronous>, transform_indices = @transform_1, window_bounds = array<i64: 768, 256>}, {pipeline_mode = #tpu.pipeline_mode<synchronous>, transform_indices = @transform_2, window_bounds = array<i64: 256, 256>}, {transform_indices = @transform_3, window_bounds = array<i64: 256, 256>}]} {
    %c0 = arith.constant 0 : index
    %c0_0 = arith.constant 0 : index
    %0 = vector.load %arg2[%c0, %c0_0] : memref<256x256xf32, #tpu.memory_space<vmem>>, vector<256x256xf32>
    %c0_1 = arith.constant 0 : index
    %c0_2 = arith.constant 0 : index
    %1 = vector.load %arg3[%c0_1, %c0_2] : memref<768x256xf32, #tpu.memory_space<vmem>>, vector<768x256xf32>
    %cst = arith.constant dense<0.000000e+00> : vector<768x256xf32>
    %2 = tpu.matmul %1, %0, %cst {dimension_numbers = #tpu.dot_dimension_numbers<[1], [0], [0], [1], [0, 0, 1, 1], [], []>} : vector<768x256xf32>, vector<256x256xf32>, vector<768x256xf32> -> vector<768x256xf32>
    %3 = vector.shape_cast %2 : vector<768x256xf32> to vector<3x4x8x8x256xf32>
    %4 = vector.extract_strided_slice %3 {offsets = [0, 0, 0, 0, 0], sizes = [1, 4, 8, 8, 256], strides = [1, 1, 1, 1, 1]} : vector<3x4x8x8x256xf32> to vector<1x4x8x8x256xf32>
    %5 = vector.shape_cast %4 : vector<1x4x8x8x256xf32> to vector<4x8x8x256xf32>
    %6 = vector.extract_strided_slice %3 {offsets = [1, 0, 0, 0, 0], sizes = [1, 4, 8, 8, 256], strides = [1, 1, 1, 1, 1]} : vector<3x4x8x8x256xf32> to vector<1x4x8x8x256xf32>
    %7 = vector.shape_cast %6 : vector<1x4x8x8x256xf32> to vector<4x8x8x256xf32>
    %8 = vector.extract_strided_slice %3 {offsets = [2, 0, 0, 0, 0], sizes = [1, 4, 8, 8, 256], strides = [1, 1, 1, 1, 1]} : vector<3x4x8x8x256xf32> to vector<1x4x8x8x256xf32>
    %9 = vector.shape_cast %8 : vector<1x4x8x8x256xf32> to vector<4x8x8x256xf32>
    %10 = vector.shape_cast %5 : vector<4x8x8x256xf32> to vector<4x8x8x1x256xf32>
    %11 = vector.shape_cast %7 : vector<4x8x8x256xf32> to vector<4x8x1x8x256xf32>
    %12 = vector.broadcast %10 : vector<4x8x8x1x256xf32> to vector<4x8x8x8x256xf32>
    %13 = vector.broadcast %11 : vector<4x8x1x8x256xf32> to vector<4x8x8x8x256xf32>
    %14 = arith.mulf %12, %13 : vector<4x8x8x8x256xf32>
    %cst_3 = arith.constant dense<0.000000e+00> : vector<4x8x8x256xf32>
    %15 = vector.multi_reduction <add>, %14, %cst_3 [1] : vector<4x8x8x8x256xf32> to vector<4x8x8x256xf32>
    %cst_4 = arith.constant dense<0xFF800000> : vector<4x8x256xf32>
    %16 = vector.multi_reduction <maximumf>, %15, %cst_4 [2] : vector<4x8x8x256xf32> to vector<4x8x256xf32>
    %17 = vector.shape_cast %16 : vector<4x8x256xf32> to vector<4x8x1x256xf32>
    %18 = vector.broadcast %17 : vector<4x8x1x256xf32> to vector<4x8x8x256xf32>
    %19 = arith.subf %15, %18 : vector<4x8x8x256xf32>
    %20 = math.exp %19 : vector<4x8x8x256xf32>
    %cst_5 = arith.constant dense<0.000000e+00> : vector<4x8x256xf32>
    %21 = vector.multi_reduction <add>, %20, %cst_5 [2] : vector<4x8x8x256xf32> to vector<4x8x256xf32>
    %22 = vector.shape_cast %21 : vector<4x8x256xf32> to vector<4x8x1x256xf32>
    %23 = tpu.reciprocal %22 {approx = true} : vector<4x8x1x256xf32> -> vector<4x8x1x256xf32>
    %24 = vector.broadcast %23 : vector<4x8x1x256xf32> to vector<4x8x8x256xf32>
    %25 = arith.mulf %20, %24 : vector<4x8x8x256xf32>
    %26 = vector.shape_cast %25 : vector<4x8x8x256xf32> to vector<4x1x8x8x256xf32>
    %27 = vector.shape_cast %9 : vector<4x8x8x256xf32> to vector<4x8x1x8x256xf32>
    %28 = vector.broadcast %26 : vector<4x1x8x8x256xf32> to vector<4x8x8x8x256xf32>
    %29 = vector.broadcast %27 : vector<4x8x1x8x256xf32> to vector<4x8x8x8x256xf32>
    %30 = arith.mulf %28, %29 : vector<4x8x8x8x256xf32>
    %cst_6 = arith.constant dense<0.000000e+00> : vector<4x8x8x256xf32>
    %31 = vector.multi_reduction <add>, %30, %cst_6 [3] : vector<4x8x8x8x256xf32> to vector<4x8x8x256xf32>
    %32 = vector.shape_cast %31 : vector<4x8x8x256xf32> to vector<256x256xf32>
    %c0_7 = arith.constant 0 : index
    %c0_8 = arith.constant 0 : index
    %33 = vector.load %arg4[%c0_7, %c0_8] : memref<256x256xf32, #tpu.memory_space<vmem>>, vector<256x256xf32>
    %cst_9 = arith.constant dense<0.000000e+00> : vector<256x256xf32>
    %34 = tpu.matmul %33, %32, %cst_9 {dimension_numbers = #tpu.dot_dimension_numbers<[1], [0], [0], [1], [0, 0, 1, 1], [], []>} : vector<256x256xf32>, vector<256x256xf32>, vector<256x256xf32> -> vector<256x256xf32>
    %c0_10 = arith.constant 0 : index
    %c0_11 = arith.constant 0 : index
    %35 = vector.load %arg5[%c0_10, %c0_11] : memref<256x256xf32, #tpu.memory_space<vmem>>, vector<256x256xf32>
    tpu.vector_store %arg5[%c0_10, %c0_11], %34 {strides = array<i32>} : memref<256x256xf32, #tpu.memory_space<vmem>>, vector<256x256xf32>,
    return
  }
  func.func @transform_0(%arg0: i32, %arg1: i32) -> (i32, i32) {
    %c0_i32 = arith.constant 0 : i32
    return %arg0, %arg1 : i32, i32
  }
  func.func @transform_1(%arg0: i32, %arg1: i32) -> (i32, i32) {
    %c0_i32 = arith.constant 0 : i32
    %c0_i32_0 = arith.constant 0 : i32
    %c0_i32_1 = arith.constant 0 : i32
    return %c0_i32, %c0_i32_0 : i32, i32
  }
  func.func @transform_2(%arg0: i32, %arg1: i32) -> (i32, i32) {
    %c0_i32 = arith.constant 0 : i32
    %c0_i32_0 = arith.constant 0 : i32
    %c0_i32_1 = arith.constant 0 : i32
    return %c0_i32, %c0_i32_0 : i32, i32
  }
  func.func @transform_3(%arg0: i32, %arg1: i32) -> (i32, i32) {
    %c0_i32 = arith.constant 0 : i32
    return %arg0, %arg1 : i32, i32
  }
}

</mosaic_0001>

<llo_original>
// kernel: tpu_custom_call.1
$region0: #{tpu_custom_call.1}
  #allocation0 [shape = 'u32[]', space=smem, size = 0x4, offset = 0x4, fixed_abs, tag = 'smem constant byte address 0x4 - core index']
  #allocation1 [shape = 'u32[144,128]{1,0:T(1,128)}', space=vmem, size = 0x12000, scoped, tag = 'internal scratch']
  %s0 = inlined_call_operand.hbm [shape: f32[512,256], index: 0, kind: input, shape index: {}]
  %s1 = inlined_call_operand.hbm [shape: f32[768,256], index: 1, kind: input, shape index: {}]
  %s2 = inlined_call_operand.hbm [shape: f32[256,256], index: 2, kind: input, shape index: {}]
  %s3 = inlined_call_operand.hbm [shape: f32[512,256], index: 3, kind: output, shape index: {}]
  %s4 = sld [smem:[#allocation0]]
  $region57: #{tpu_custom_call.1} parent=0
    _
  %s6 = ssub.s32 1, %s4
  %s7 = scalar_select 0, %s6, %s4
  $region1: #{tpu_custom_call.1} parent=0
    #allocation2 [shape = 'u8[524288]{0}', space=vmem, size = 0x80000, scoped, tag = 'input window, operand 0']
    #allocation3 [shape = 's32[2]{0}', space=sflag, size = 0x8, scoped, tag = 'scoped memory for tpu_custom_call.1']
    #allocation4 [shape = 's32[2]{0}', space=sflag, size = 0x8, scoped, tag = 'scoped memory for tpu_custom_call.1']
    #allocation5 [shape = 'u8[786432]{0}', space=vmem, size = 0xc0000, scoped, tag = 'input window, operand 1, single buffered']
    #allocation6 [shape = 's32[1]{0}', space=sflag, size = 0x4, scoped, tag = 'scoped memory for tpu_custom_call.1']
    #allocation7 [shape = 'u8[262144]{0}', space=vmem, size = 0x40000, scoped, tag = 'input window, operand 2, single buffered']
    #allocation8 [shape = 'u8[524288]{0}', space=vmem, size = 0x80000, scoped, tag = 'output window, operand 0']
    %8 = vsyncpa [#allocation3], 0
    %s9 = scalar_lea.sflag [#allocation3], 1
    %10 = vsyncpa %s9, 0
    %11 = vsyncpa [#allocation6], 0
    %12 = vsyncpa [#allocation4], 0
    %s13 = scalar_lea.sflag [#allocation4], 1
    %14 = vsyncpa %s13, 0
    loop: start=0, step=1, limit=4
    $region2: #{tpu_custom_call.1} parent=1 // loop_pre_header
      _
    $region3: #{tpu_custom_call.1} parent=1 // loop_header
      %s16 = sphi 0, %s20
      %p17 = scmp.ge.s32.totalorder %s16, 4
      %s23 = sphi 0, %s35
      %s24 = sphi 0, %s31
      %s25 = sphi 0, %s23
      %s26 = sphi 0, %s24
      %s27 = sphi 0, %s25
      %s28 = sphi 0, %s26
      %s40 = sphi 0, %s42
      %s43 = sphi 0, %s40
      %s44 = sphi 0, %s43
      %s60 = sphi 0, %s44
      %s64 = sphi 0, %s64
      %s66 = sphi 0, %s64
      %s67 = sphi 0, %s66
      %s81 = sphi 0, %s67
      %s85 = sphi 0, %s85
      %s87 = sphi 0, %s85
      %s88 = sphi 0, %s87
      %s102 = sphi 0, %s88
      %s110 = sphi 0, %s112
      %s113 = sphi 0, %s110
      %s114 = sphi 0, %s113
      %s130 = sphi 0, %s114
    $region4: #{tpu_custom_call.1} parent=1 // loop_header_branch
      %19 = sbr.rel (%p17) target = $region8
    $region5: #{tpu_custom_call.1} parent=1 // loop_body
      %s21 = ssub.s32 %s16, 1
      %s22 = ssub.s32 %s16, 2
      %s29 = sadd.s32 1, %s24
      %p30 = scmp.ge.s32.totalorder %s29, 1
      %s31 = scalar_select %p30, 0, %s29
      %s32 = sadd.s32 1, %s23
      %s33 = scalar_select %p30, %s32, %s23
      %p34 = scmp.ge.s32.totalorder %s33, 2
      %s35 = scalar_select %p34, 0, %s33
      %s36 = ssub.s32 %s23, %s35
      %s37 = ssub.s32 %s24, %s31
      %s38 = sor.u32 %s36, %s37
      %p39 = scmp.eq.s32.totalorder %s38, 0
      %s41 = sadd.s32 %s40, 1
      %s42 = scalar_select %p39, %s40, %s41
      %p45 = pneg %p39
      %p46 = scmp.eq.s32.totalorder %s16, 1
      %p47 = por %p45, %p46
      %p48 = scmp.ne.s32.totalorder %s40, %s43
      %p49 = scmp.eq.s32.totalorder %s16, 0
      %p50 = por %p48, %p49
      %p51 = scmp.ne.s32.totalorder %s40, %s43
      %p52 = scmp.eq.s32.totalorder %s21, 1
      %p53 = por %p51, %p52
      %p54 = scmp.ne.s32.totalorder %s43, %s44
      %p55 = scmp.eq.s32.totalorder %s21, 0
      %p56 = por %p54, %p55
      %p57 = scmp.ne.s32.totalorder %s43, %s44
      %p58 = scmp.eq.s32.totalorder %s22, 1
      %p59 = por %p57, %p58
      %p61 = scmp.ne.s32.totalorder %s44, %s60
      %p62 = scmp.eq.s32.totalorder %s22, 0
      %p63 = por %p61, %p62
      %s65 = sadd.s32 %s64, 1
      %p68 = scmp.eq.s32.totalorder %s16, 1
      %p69 = scmp.ne.s32.totalorder %s64, %s66
      %p70 = scmp.eq.s32.totalorder %s16, 0
      %p71 = por %p69, %p70
      %p72 = scmp.ne.s32.totalorder %s64, %s66
      %p73 = scmp.eq.s32.totalorder %s21, 1
      %p74 = por %p72, %p73
      %p75 = scmp.ne.s32.totalorder %s66, %s67
      %p76 = scmp.eq.s32.totalorder %s21, 0
      %p77 = por %p75, %p76
      %p78 = scmp.ne.s32.totalorder %s66, %s67
      %p79 = scmp.eq.s32.totalorder %s22, 1
      %p80 = por %p78, %p79
      %p82 = scmp.ne.s32.totalorder %s67, %s81
      %p83 = scmp.eq.s32.totalorder %s22, 0
      %p84 = por %p82, %p83
      %s86 = sadd.s32 %s85, 1
      %p89 = scmp.eq.s32.totalorder %s16, 1
      %p90 = scmp.ne.s32.totalorder %s85, %s87
      %p91 = scmp.eq.s32.totalorder %s16, 0
      %p92 = por %p90, %p91
      %p93 = scmp.ne.s32.totalorder %s85, %s87
      %p94 = scmp.eq.s32.totalorder %s21, 1
      %p95 = por %p93, %p94
      %p96 = scmp.ne.s32.totalorder %s87, %s88
      %p97 = scmp.eq.s32.totalorder %s21, 0
      %p98 = por %p96, %p97
      %p99 = scmp.ne.s32.totalorder %s87, %s88
      %p100 = scmp.eq.s32.totalorder %s22, 1
      %p101 = por %p99, %p100
      %p103 = scmp.ne.s32.totalorder %s88, %s102
      %p104 = scmp.eq.s32.totalorder %s22, 0
      %p105 = por %p103, %p104
      %s106 = ssub.s32 %s23, %s35
      %s107 = ssub.s32 %s24, %s31
      %s108 = sor.u32 %s106, %s107
      %p109 = scmp.eq.s32.totalorder %s108, 0
      %s111 = sadd.s32 %s110, 1
      %s112 = scalar_select %p109, %s110, %s111
      %p115 = pneg %p109
      %p116 = scmp.eq.s32.totalorder %s16, 1
      %p117 = por %p115, %p116
      %p118 = scmp.ne.s32.totalorder %s110, %s113
      %p119 = scmp.eq.s32.totalorder %s16, 0
      %p120 = por %p118, %p119
      %p121 = scmp.ne.s32.totalorder %s110, %s113
      %p122 = scmp.eq.s32.totalorder %s21, 1
      %p123 = por %p121, %p122
      %p124 = scmp.ne.s32.totalorder %s113, %s114
      %p125 = scmp.eq.s32.totalorder %s21, 0
      %p126 = por %p124, %p125
      %p127 = scmp.ne.s32.totalorder %s113, %s114
      %p128 = scmp.eq.s32.totalorder %s22, 1
      %p129 = por %p127, %p128
      %p131 = scmp.ne.s32.totalorder %s114, %s130
      %p132 = scmp.eq.s32.totalorder %s22, 0
      %p133 = por %p131, %p132
      %p134 = scmp.le.s32.totalorder 1, %s16
      %p135 = scmp.lt.s32.totalorder %s16, 3
      %p136 = pnand %p134, %p135
      %p137 = pneg %p136
      // Predicated region
      $region9: #{tpu_custom_call.1} parent=5 // pred_check
        _
      $region10: #{tpu_custom_call.1} parent=5 // pred_check_branch
        %139 = sbr.rel (%p136) target = $region12
      $region11: #{tpu_custom_call.1} parent=5 // pred_region
        %s140 = ssub.s32 %s16, 1
        // Predicated region
        $region13: #{tpu_custom_call.1} parent=11 // pred_check
          %p141 = pneg %p77
        $region14: #{tpu_custom_call.1} parent=11 // pred_check_branch
          %143 = sbr.rel (%p141) target = $region16
        $region15: #{tpu_custom_call.1} parent=11 // pred_region
          %s145 = ssub.s32 24576, 24576
          %146 = vsyncadd [#allocation6], %s145
          %s147 = sshll.u32 [#allocation5], 4
          %s148 = int_to_ptr.vmem [resolvable:$true] %s147
          %153 = dma.hbm_to_vmem [thread:$0]  %s1, 24576, %s148, [#allocation6], 256, 256, 16
        $region16: #{tpu_custom_call.1} parent=11 // pred_fallthru
          _
        // Predicated region
        $region17: #{tpu_custom_call.1} parent=11 // pred_check
          %p154 = pneg %p98
        $region18: #{tpu_custom_call.1} parent=11 // pred_check_branch
          %156 = sbr.rel (%p154) target = $region20
        $region19: #{tpu_custom_call.1} parent=11 // pred_region
          %s158 = ssub.s32 8192, 8192
          %159 = vsyncadd [#allocation6], %s158
          %s160 = sshll.u32 [#allocation7], 4
          %s161 = int_to_ptr.vmem [resolvable:$true] %s160
          %166 = dma.hbm_to_vmem [thread:$0]  %s2, 8192, %s161, [#allocation6], 256, 256, 16
        $region20: #{tpu_custom_call.1} parent=11 // pred_fallthru
          _
      $region12: #{tpu_custom_call.1} parent=5 // pred_fallthru
        _
      %p167 = scmp.lt.s32.totalorder %s16, 2
      // Predicated region
      $region21: #{tpu_custom_call.1} parent=5 // pred_check
        %p168 = pneg %p167
      $region22: #{tpu_custom_call.1} parent=5 // pred_check_branch
        %170 = sbr.rel (%p168) target = $region24
      $region23: #{tpu_custom_call.1} parent=5 // pred_region
        // Predicated region
        $region25: #{tpu_custom_call.1} parent=23 // pred_check
          %p171 = pneg %p50
        $region26: #{tpu_custom_call.1} parent=23 // pred_check_branch
          %173 = sbr.rel (%p171) target = $region28
        $region27: #{tpu_custom_call.1} parent=23 // pred_region
          %s174 = sand.u32 %s40, 1
          %s175 = scalar_lea.sflag [#allocation3], %s174
          %s176 = sand.u32 %s40, 1
          %s177 = smul.addr %s176, 512
          %s178 = scalar_lea.vmem [#allocation2], %s177
          %s179 = smul.u32 32, %s23
          %s180 = smul.u32 2, %s24
          %s182 = ssub.s32 8192, 8192
          %183 = vsyncadd %s175, %s182
          %s184 = smul.addr %s179, 2
          %s185 = sadd.s32 %s180, %s184
          %s186 = smul.addr %s185, 128
          %s187 = scalar_lea.hbm %s0, %s186
          %s188 = sshll.u32 %s178, 4
          %s189 = int_to_ptr.vmem [resolvable:$true] %s188
          %194 = dma.hbm_to_vmem [thread:$0]  %s187, 8192, %s189, %s175, 256, 256, 16
        $region28: #{tpu_custom_call.1} parent=23 // pred_fallthru
          _
      $region24: #{tpu_custom_call.1} parent=5 // pred_fallthru
        _
      %p195 = scmp.le.s32.totalorder 1, %s16
      %p196 = scmp.lt.s32.totalorder %s16, 3
      %p197 = pnand %p195, %p196
      %p198 = pneg %p197
      // Predicated region
      $region29: #{tpu_custom_call.1} parent=5 // pred_check
        _
      $region30: #{tpu_custom_call.1} parent=5 // pred_check_branch
        %200 = sbr.rel (%p197) target = $region32
      $region31: #{tpu_custom_call.1} parent=5 // pred_region
        %s201 = ssub.s32 %s16, 1
        %s202 = sand.u32 %s43, 1
        %s203 = scalar_lea.sflag [#allocation3], %s202
        %s204 = sand.u32 %s43, 1
        %s205 = smul.addr %s204, 512
        %s206 = scalar_lea.vmem [#allocation2], %s205
        // Predicated region
        $region33: #{tpu_custom_call.1} parent=31 // pred_check
          %p207 = pneg %p56
        $region34: #{tpu_custom_call.1} parent=31 // pred_check_branch
          %209 = sbr.rel (%p207) target = $region36
        $region35: #{tpu_custom_call.1} parent=31 // pred_region
          %210 = dma.done %s203, 8192
        $region36: #{tpu_custom_call.1} parent=31 // pred_fallthru
          _
        // Predicated region
        $region37: #{tpu_custom_call.1} parent=31 // pred_check
          %p211 = pneg %p77
        $region38: #{tpu_custom_call.1} parent=31 // pred_check_branch
          %213 = sbr.rel (%p211) target = $region40
        $region39: #{tpu_custom_call.1} parent=31 // pred_region
          %214 = dma.done [#allocation6], 24576
        $region40: #{tpu_custom_call.1} parent=31 // pred_fallthru
          _
        // Predicated region
        $region41: #{tpu_custom_call.1} parent=31 // pred_check
          %p215 = pneg %p98
        $region42: #{tpu_custom_call.1} parent=31 // pred_check_branch
          %217 = sbr.rel (%p215) target = $region44
        $region43: #{tpu_custom_call.1} parent=31 // pred_region
          %218 = dma.done [#allocation6], 8192
        $region44: #{tpu_custom_call.1} parent=31 // pred_fallthru
          _
        %s219 = sand.u32 %s43, 1
        %s220 = scalar_lea.sflag [#allocation3], %s219
        %s221 = sand.u32 %s43, 1
        %s222 = smul.addr %s221, 512
        %s223 = scalar_lea.vmem [#allocation2], %s222
        %p224 = pneg %p56
        %p225 = pneg %p53
        %p226 = pneg %p77
        %p227 = pneg %p74
        %p228 = pneg %p98
        %p229 = pneg %p95
        %p230 = pneg %p126
        %p231 = pneg %p123
        %s232 = sand.u32 %s113, 1
        %s233 = scalar_lea.sflag [#allocation4], %s232
        %s234 = sand.u32 %s113, 1
        %s235 = smul.addr %s234, 512
        %s236 = scalar_lea.vmem [#allocation8], %s235
        %s237 = smul.u32 32, %s25
        %s238 = smul.u32 2, %s26
        %s239 = smul.u32 32, %s25
        %s240 = smul.u32 2, %s26
        %v241 = vld [vmem:[%s206] sm:$0xff]
        %v242 = vld [vmem:[%s206 + $0x8] sm:$0xff]
        %v243 = vld [vmem:[%s206 + $0x10] sm:$0xff]
        %v244 = vld [vmem:[%s206 + $0x18] sm:$0xff]
        %v245 = vld [vmem:[%s206 + $0x20] sm:$0xff]
        %v246 = vld [vmem:[%s206 + $0x28] sm:$0xff]
        %v247 = vld [vmem:[%s206 + $0x30] sm:$0xff]
        %v248 = vld [vmem:[%s206 + $0x38] sm:$0xff]
        %v249 = vld [vmem:[%s206 + $0x40] sm:$0xff]
        %v250 = vld [vmem:[%s206 + $0x48] sm:$0xff]
        %v251 = vld [vmem:[%s206 + $0x50] sm:$0xff]
        %v252 = vld [vmem:[%s206 + $0x58] sm:$0xff]
        %v253 = vld [vmem:[%s206 + $0x60] sm:$0xff]
        %v254 = vld [vmem:[%s206 + $0x68] sm:$0xff]
        %v255 = vld [vmem:[%s206 + $0x70] sm:$0xff]
        %v256 = vld [vmem:[%s206 + $0x78] sm:$0xff]
        %v257 = vld [vmem:[%s206 + $0x80] sm:$0xff]
        %v258 = vld [vmem:[%s206 + $0x88] sm:$0xff]
        %v259 = vld [vmem:[%s206 + $0x90] sm:$0xff]
        %v260 = vld [vmem:[%s206 + $0x98] sm:$0xff]
        %v261 = vld [vmem:[%s206 + $0xa0] sm:$0xff]
        %v262 = vld [vmem:[%s206 + $0xa8] sm:$0xff]
        %v263 = vld [vmem:[%s206 + $0xb0] sm:$0xff]
        %v264 = vld [vmem:[%s206 + $0xb8] sm:$0xff]
        %v265 = vld [vmem:[%s206 + $0xc0] sm:$0xff]
        %v266 = vld [vmem:[%s206 + $0xc8] sm:$0xff]
        %v267 = vld [vmem:[%s206 + $0xd0] sm:$0xff]
        %v268 = vld [vmem:[%s206 + $0xd8] sm:$0xff]
        %v269 = vld [vmem:[%s206 + $0xe0] sm:$0xff]
        %v270 = vld [vmem:[%s206 + $0xe8] sm:$0xff]
        %v271 = vld [vmem:[%s206 + $0xf0] sm:$0xff]
        %v272 = vld [vmem:[%s206 + $0xf8] sm:$0xff]
        %v273 = vld [vmem:[%s206 + $0x100] sm:$0xff]
        %v274 = vld [vmem:[%s206 + $0x108] sm:$0xff]
        %v275 = vld [vmem:[%s206 + $0x110] sm:$0xff]
        %v276 = vld [vmem:[%s206 + $0x118] sm:$0xff]
        %v277 = vld [vmem:[%s206 + $0x120] sm:$0xff]
        %v278 = vld [vmem:[%s206 + $0x128] sm:$0xff]
        %v279 = vld [vmem:[%s206 + $0x130] sm:$0xff]
        %v280 = vld [vmem:[%s206 + $0x138] sm:$0xff]
        %v281 = vld [vmem:[%s206 + $0x140] sm:$0xff]
        %v282 = vld [vmem:[%s206 + $0x148] sm:$0xff]
        %v283 = vld [vmem:[%s206 + $0x150] sm:$0xff]
        %v284 = vld [vmem:[%s206 + $0x158] sm:$0xff]
        %v285 = vld [vmem:[%s206 + $0x160] sm:$0xff]
        %v286 = vld [vmem:[%s206 + $0x168] sm:$0xff]
        %v287 = vld [vmem:[%s206 + $0x170] sm:$0xff]
        %v288 = vld [vmem:[%s206 + $0x178] sm:$0xff]
        %v289 = vld [vmem:[%s206 + $0x180] sm:$0xff]
        %v290 = vld [vmem:[%s206 + $0x188] sm:$0xff]
        %v291 = vld [vmem:[%s206 + $0x190] sm:$0xff]
        %v292 = vld [vmem:[%s206 + $0x198] sm:$0xff]
        %v293 = vld [vmem:[%s206 + $0x1a0] sm:$0xff]
        %v294 = vld [vmem:[%s206 + $0x1a8] sm:$0xff]
        %v295 = vld [vmem:[%s206 + $0x1b0] sm:$0xff]
        %v296 = vld [vmem:[%s206 + $0x1b8] sm:$0xff]
        %v297 = vld [vmem:[%s206 + $0x1c0] sm:$0xff]
        %v298 = vld [vmem:[%s206 + $0x1c8] sm:$0xff]
        %v299 = vld [vmem:[%s206 + $0x1d0] sm:$0xff]
        %v300 = vld [vmem:[%s206 + $0x1d8] sm:$0xff]
        %v301 = vld [vmem:[%s206 + $0x1e0] sm:$0xff]
        %v302 = vld [vmem:[%s206 + $0x1e8] sm:$0xff]
        %v303 = vld [vmem:[%s206 + $0x1f0] sm:$0xff]
        %v304 = vld [vmem:[%s206 + $0x1f8] sm:$0xff]
        %v305 = vld [vmem:[#allocation5] sm:$0xff]
        %v306 = vld [vmem:[#allocation5 + $0x8] sm:$0xff]
        %v307 = vld [vmem:[#allocation5 + $0x10] sm:$0xff]
        %v308 = vld [vmem:[#allocation5 + $0x18] sm:$0xff]
        %v309 = vld [vmem:[#allocation5 + $0x20] sm:$0xff]
        %v310 = vld [vmem:[#allocation5 + $0x28] sm:$0xff]
        %v311 = vld [vmem:[#allocation5 + $0x30] sm:$0xff]
        %v312 = vld [vmem:[#allocation5 + $0x38] sm:$0xff]
        %v313 = vld [vmem:[#allocation5 + $0x40] sm:$0xff]
        %v314 = vld [vmem:[#allocation5 + $0x48] sm:$0xff]
        %v315 = vld [vmem:[#allocation5 + $0x50] sm:$0xff]
        %v316 = vld [vmem:[#allocation5 + $0x58] sm:$0xff]
        %v317 = vld [vmem:[#allocation5 + $0x60] sm:$0xff]
        %v318 = vld [vmem:[#allocation5 + $0x68] sm:$0xff]
        %v319 = vld [vmem:[#allocation5 + $0x70] sm:$0xff]
        %v320 = vld [vmem:[#allocation5 + $0x78] sm:$0xff]
        %v321 = vld [vmem:[#allocation5 + $0x80] sm:$0xff]
        %v322 = vld [vmem:[#allocation5 + $0x88] sm:$0xff]
        %v323 = vld [vmem:[#allocation5 + $0x90] sm:$0xff]
        %v324 = vld [vmem:[#allocation5 + $0x98] sm:$0xff]
        %v325 = vld [vmem:[#allocation5 + $0xa0] sm:$0xff]
        %v326 = vld [vmem:[#allocation5 + $0xa8] sm:$0xff]
        %v327 = vld [vmem:[#allocation5 + $0xb0] sm:$0xff]
        %v328 = vld [vmem:[#allocation5 + $0xb8] sm:$0xff]
        %v329 = vld [vmem:[#allocation5 + $0xc0] sm:$0xff]
        %v330 = vld [vmem:[#allocation5 + $0xc8] sm:$0xff]
        %v331 = vld [vmem:[#allocation5 + $0xd0] sm:$0xff]
        %v332 = vld [vmem:[#allocation5 + $0xd8] sm:$0xff]
        %v333 = vld [vmem:[#allocation5 + $0xe0] sm:$0xff]
        %v334 = vld [vmem:[#allocation5 + $0xe8] sm:$0xff]
        %v335 = vld [vmem:[#allocation5 + $0xf0] sm:$0xff]
        %v336 = vld [vmem:[#allocation5 + $0xf8] sm:$0xff]
        %v337 = vld [vmem:[#allocation5 + $0x100] sm:$0xff]
        %v338 = vld [vmem:[#allocation5 + $0x108] sm:$0xff]
        %v339 = vld [vmem:[#allocation5 + $0x110] sm:$0xff]
        %v340 = vld [vmem:[#allocation5 + $0x118] sm:$0xff]
        %v341 = vld [vmem:[#allocation5 + $0x120] sm:$0xff]
        %v342 = vld [vmem:[#allocation5 + $0x128] sm:$0xff]
        %v343 = vld [vmem:[#allocation5 + $0x130] sm:$0xff]
        %v344 = vld [vmem:[#allocation5 + $0x138] sm:$0xff]
        %v345 = vld [vmem:[#allocation5 + $0x140] sm:$0xff]
        %v346 = vld [vmem:[#allocation5 + $0x148] sm:$0xff]
        %v347 = vld [vmem:[#allocation5 + $0x150] sm:$0xff]
        %v348 = vld [vmem:[#allocation5 + $0x158] sm:$0xff]
        %v349 = vld [vmem:[#allocation5 + $0x160] sm:$0xff]
        %v350 = vld [vmem:[#allocation5 + $0x168] sm:$0xff]
        %v351 = vld [vmem:[#allocation5 + $0x170] sm:$0xff]
        %v352 = vld [vmem:[#allocation5 + $0x178] sm:$0xff]
        %v353 = vld [vmem:[#allocation5 + $0x180] sm:$0xff]
        %v354 = vld [vmem:[#allocation5 + $0x188] sm:$0xff]
        %v355 = vld [vmem:[#allocation5 + $0x190] sm:$0xff]
        %v356 = vld [vmem:[#allocation5 + $0x198] sm:$0xff]
        %v357 = vld [vmem:[#allocation5 + $0x1a0] sm:$0xff]
        %v358 = vld [vmem:[#allocation5 + $0x1a8] sm:$0xff]
        %v359 = vld [vmem:[#allocation5 + $0x1b0] sm:$0xff]
        %v360 = vld [vmem:[#allocation5 + $0x1b8] sm:$0xff]
        %v361 = vld [vmem:[#allocation5 + $0x1c0] sm:$0xff]
        %v362 = vld [vmem:[#allocation5 + $0x1c8] sm:$0xff]
        %v363 = vld [vmem:[#allocation5 + $0x1d0] sm:$0xff]
        %v364 = vld [vmem:[#allocation5 + $0x1d8] sm:$0xff]
        %v365 = vld [vmem:[#allocation5 + $0x1e0] sm:$0xff]
        %v366 = vld [vmem:[#allocation5 + $0x1e8] sm:$0xff]
        %v367 = vld [vmem:[#allocation5 + $0x1f0] sm:$0xff]
        %v368 = vld [vmem:[#allocation5 + $0x1f8] sm:$0xff]
        %v369 = vld [vmem:[#allocation5 + $0x200] sm:$0xff]
        %v370 = vld [vmem:[#allocation5 + $0x208] sm:$0xff]
        %v371 = vld [vmem:[#allocation5 + $0x210] sm:$0xff]
        %v372 = vld [vmem:[#allocation5 + $0x218] sm:$0xff]
        %v373 = vld [vmem:[#allocation5 + $0x220] sm:$0xff]
        %v374 = vld [vmem:[#allocation5 + $0x228] sm:$0xff]
        %v375 = vld [vmem:[#allocation5 + $0x230] sm:$0xff]
        %v376 = vld [vmem:[#allocation5 + $0x238] sm:$0xff]
        %v377 = vld [vmem:[#allocation5 + $0x240] sm:$0xff]
        %v378 = vld [vmem:[#allocation5 + $0x248] sm:$0xff]
        %v379 = vld [vmem:[#allocation5 + $0x250] sm:$0xff]
        %v380 = vld [vmem:[#allocation5 + $0x258] sm:$0xff]
        %v381 = vld [vmem:[#allocation5 + $0x260] sm:$0xff]
        %v382 = vld [vmem:[#allocation5 + $0x268] sm:$0xff]
        %v383 = vld [vmem:[#allocation5 + $0x270] sm:$0xff]
        %v384 = vld [vmem:[#allocation5 + $0x278] sm:$0xff]
        %v385 = vld [vmem:[#allocation5 + $0x280] sm:$0xff]
        %v386 = vld [vmem:[#allocation5 + $0x288] sm:$0xff]
        %v387 = vld [vmem:[#allocation5 + $0x290] sm:$0xff]
        %v388 = vld [vmem:[#allocation5 + $0x298] sm:$0xff]
        %v389 = vld [vmem:[#allocation5 + $0x2a0] sm:$0xff]
        %v390 = vld [vmem:[#allocation5 + $0x2a8] sm:$0xff]
        %v391 = vld [vmem:[#allocation5 + $0x2b0] sm:$0xff]
        %v392 = vld [vmem:[#allocation5 + $0x2b8] sm:$0xff]
        %v393 = vld [vmem:[#allocation5 + $0x2c0] sm:$0xff]
        %v394 = vld [vmem:[#allocation5 + $0x2c8] sm:$0xff]
        %v395 = vld [vmem:[#allocation5 + $0x2d0] sm:$0xff]
        %v396 = vld [vmem:[#allocation5 + $0x2d8] sm:$0xff]
        %v397 = vld [vmem:[#allocation5 + $0x2e0] sm:$0xff]
        %v398 = vld [vmem:[#allocation5 + $0x2e8] sm:$0xff]
        %v399 = vld [vmem:[#allocation5 + $0x2f0] sm:$0xff]
        %v400 = vld [vmem:[#allocation5 + $0x2f8] sm:$0xff]
        %v401 = vld [vmem:[#allocation5 + $0x300] sm:$0xff]
        %v402 = vld [vmem:[#allocation5 + $0x308] sm:$0xff]
        %v403 = vld [vmem:[#allocation5 + $0x310] sm:$0xff]
        %v404 = vld [vmem:[#allocation5 + $0x318] sm:$0xff]
        %v405 = vld [vmem:[#allocation5 + $0x320] sm:$0xff]
        %v406 = vld [vmem:[#allocation5 + $0x328] sm:$0xff]
        %v407 = vld [vmem:[#allocation5 + $0x330] sm:$0xff]
        %v408 = vld [vmem:[#allocation5 + $0x338] sm:$0xff]
        %v409 = vld [vmem:[#allocation5 + $0x340] sm:$0xff]
        %v410 = vld [vmem:[#allocation5 + $0x348] sm:$0xff]
        %v411 = vld [vmem:[#allocation5 + $0x350] sm:$0xff]
        %v412 = vld [vmem:[#allocation5 + $0x358] sm:$0xff]
        %v413 = vld [vmem:[#allocation5 + $0x360] sm:$0xff]
        %v414 = vld [vmem:[#allocation5 + $0x368] sm:$0xff]
        %v415 = vld [vmem:[#allocation5 + $0x370] sm:$0xff]
        %v416 = vld [vmem:[#allocation5 + $0x378] sm:$0xff]
        %v417 = vld [vmem:[#allocation5 + $0x380] sm:$0xff]
        %v418 = vld [vmem:[#allocation5 + $0x388] sm:$0xff]
        %v419 = vld [vmem:[#allocation5 + $0x390] sm:$0xff]
        %v420 = vld [vmem:[#allocation5 + $0x398] sm:$0xff]
        %v421 = vld [vmem:[#allocation5 + $0x3a0] sm:$0xff]
        %v422 = vld [vmem:[#allocation5 + $0x3a8] sm:$0xff]
        %v423 = vld [vmem:[#allocation5 + $0x3b0] sm:$0xff]
        %v424 = vld [vmem:[#allocation5 + $0x3b8] sm:$0xff]
        %v425 = vld [vmem:[#allocation5 + $0x3c0] sm:$0xff]
        %v426 = vld [vmem:[#allocation5 + $0x3c8] sm:$0xff]
        %v427 = vld [vmem:[#allocation5 + $0x3d0] sm:$0xff]
        %v428 = vld [vmem:[#allocation5 + $0x3d8] sm:$0xff]
        %v429 = vld [vmem:[#allocation5 + $0x3e0] sm:$0xff]
        %v430 = vld [vmem:[#allocation5 + $0x3e8] sm:$0xff]
        %v431 = vld [vmem:[#allocation5 + $0x3f0] sm:$0xff]
        %v432 = vld [vmem:[#allocation5 + $0x3f8] sm:$0xff]
        %v433 = vld [vmem:[#allocation5 + $0x400] sm:$0xff]
        %v434 = vld [vmem:[#allocation5 + $0x408] sm:$0xff]
        %v435 = vld [vmem:[#allocation5 + $0x410] sm:$0xff]
        %v436 = vld [vmem:[#allocation5 + $0x418] sm:$0xff]
        %v437 = vld [vmem:[#allocation5 + $0x420] sm:$0xff]
        %v438 = vld [vmem:[#allocation5 + $0x428] sm:$0xff]
        %v439 = vld [vmem:[#allocation5 + $0x430] sm:$0xff]
        %v440 = vld [vmem:[#allocation5 + $0x438] sm:$0xff]
        %v441 = vld [vmem:[#allocation5 + $0x440] sm:$0xff]
        %v442 = vld [vmem:[#allocation5 + $0x448] sm:$0xff]
        %v443 = vld [vmem:[#allocation5 + $0x450] sm:$0xff]
        %v444 = vld [vmem:[#allocation5 + $0x458] sm:$0xff]
        %v445 = vld [vmem:[#allocation5 + $0x460] sm:$0xff]
        %v446 = vld [vmem:[#allocation5 + $0x468] sm:$0xff]
        %v447 = vld [vmem:[#allocation5 + $0x470] sm:$0xff]
        %v448 = vld [vmem:[#allocation5 + $0x478] sm:$0xff]
        %v449 = vld [vmem:[#allocation5 + $0x480] sm:$0xff]
        %v450 = vld [vmem:[#allocation5 + $0x488] sm:$0xff]
        %v451 = vld [vmem:[#allocation5 + $0x490] sm:$0xff]
        %v452 = vld [vmem:[#allocation5 + $0x498] sm:$0xff]
        %v453 = vld [vmem:[#allocation5 + $0x4a0] sm:$0xff]
        %v454 = vld [vmem:[#allocation5 + $0x4a8] sm:$0xff]
        %v455 = vld [vmem:[#allocation5 + $0x4b0] sm:$0xff]
        %v456 = vld [vmem:[#allocation5 + $0x4b8] sm:$0xff]
        %v457 = vld [vmem:[#allocation5 + $0x4c0] sm:$0xff]
        %v458 = vld [vmem:[#allocation5 + $0x4c8] sm:$0xff]
        %v459 = vld [vmem:[#allocation5 + $0x4d0] sm:$0xff]
        %v460 = vld [vmem:[#allocation5 + $0x4d8] sm:$0xff]
        %v461 = vld [vmem:[#allocation5 + $0x4e0] sm:$0xff]
        %v462 = vld [vmem:[#allocation5 + $0x4e8] sm:$0xff]
        %v463 = vld [vmem:[#allocation5 + $0x4f0] sm:$0xff]
        %v464 = vld [vmem:[#allocation5 + $0x4f8] sm:$0xff]
        %v465 = vld [vmem:[#allocation5 + $0x500] sm:$0xff]
        %v466 = vld [vmem:[#allocation5 + $0x508] sm:$0xff]
        %v467 = vld [vmem:[#allocation5 + $0x510] sm:$0xff]
        %v468 = vld [vmem:[#allocation5 + $0x518] sm:$0xff]
        %v469 = vld [vmem:[#allocation5 + $0x520] sm:$0xff]
        %v470 = vld [vmem:[#allocation5 + $0x528] sm:$0xff]
        %v471 = vld [vmem:[#allocation5 + $0x530] sm:$0xff]
        %v472 = vld [vmem:[#allocation5 + $0x538] sm:$0xff]
        %v473 = vld [vmem:[#allocation5 + $0x540] sm:$0xff]
        %v474 = vld [vmem:[#allocation5 + $0x548] sm:$0xff]
        %v475 = vld [vmem:[#allocation5 + $0x550] sm:$0xff]
        %v476 = vld [vmem:[#allocation5 + $0x558] sm:$0xff]
        %v477 = vld [vmem:[#allocation5 + $0x560] sm:$0xff]
        %v478 = vld [vmem:[#allocation5 + $0x568] sm:$0xff]
        %v479 = vld [vmem:[#allocation5 + $0x570] sm:$0xff]
        %v480 = vld [vmem:[#allocation5 + $0x578] sm:$0xff]
        %v481 = vld [vmem:[#allocation5 + $0x580] sm:$0xff]
        %v482 = vld [vmem:[#allocation5 + $0x588] sm:$0xff]
        %v483 = vld [vmem:[#allocation5 + $0x590] sm:$0xff]
        %v484 = vld [vmem:[#allocation5 + $0x598] sm:$0xff]
        %v485 = vld [vmem:[#allocation5 + $0x5a0] sm:$0xff]
        %v486 = vld [vmem:[#allocation5 + $0x5a8] sm:$0xff]
        %v487 = vld [vmem:[#allocation5 + $0x5b0] sm:$0xff]
        %v488 = vld [vmem:[#allocation5 + $0x5b8] sm:$0xff]
        %v489 = vld [vmem:[#allocation5 + $0x5c0] sm:$0xff]
        %v490 = vld [vmem:[#allocation5 + $0x5c8] sm:$0xff]
        %v491 = vld [vmem:[#allocation5 + $0x5d0] sm:$0xff]
        %v492 = vld [vmem:[#allocation5 + $0x5d8] sm:$0xff]
        %v493 = vld [vmem:[#allocation5 + $0x5e0] sm:$0xff]
        %v494 = vld [vmem:[#allocation5 + $0x5e8] sm:$0xff]
        %v495 = vld [vmem:[#allocation5 + $0x5f0] sm:$0xff]
        %v496 = vld [vmem:[#allocation5 + $0x5f8] sm:$0xff]
        %497 = vmatprep.subr.mxu0 %v242
        %498 = vmatpush1.msra.mxu0 %v241
        %499 = vmatprep.subr.mxu0 %v244
        %500 = vmatpush1.msra.mxu0 %v243
        %501 = vmatprep.subr.mxu0 %v246
        %502 = vmatpush1.msra.mxu0 %v245
        %503 = vmatprep.subr.mxu0 %v248
        %504 = vmatpush1.msra.mxu0 %v247
        %505 = vmatprep.subr.mxu0 %v250
        %506 = vmatpush1.msra.mxu0 %v249
        %507 = vmatprep.subr.mxu0 %v252
        %508 = vmatpush1.msra.mxu0 %v251
        %509 = vmatprep.subr.mxu0 %v254
        %510 = vmatpush1.msra.mxu0 %v253
        %511 = vmatprep.subr.mxu0 %v256
        %512 = vmatpush1.msra.mxu0 %v255
        %513 = vmatprep.subr.mxu0 %v258
        %514 = vmatpush1.msra.mxu0 %v257
        %515 = vmatprep.subr.mxu0 %v260
        %516 = vmatpush1.msra.mxu0 %v259
        %517 = vmatprep.subr.mxu0 %v262
        %518 = vmatpush1.msra.mxu0 %v261
        %519 = vmatprep.subr.mxu0 %v264
        %520 = vmatpush1.msra.mxu0 %v263
        %521 = vmatprep.subr.mxu0 %v266
        %522 = vmatpush1.msra.mxu0 %v265
        %523 = vmatprep.subr.mxu0 %v268
        %524 = vmatpush1.msra.mxu0 %v267
        %525 = vmatprep.subr.mxu0 %v270
        %526 = vmatpush1.msra.mxu0 %v269
        %527 = vmatprep.subr.mxu0 %v272
        %528 = vmatpush1.msra.mxu0 %v271
        %529 = vmatprep.subr.mxu0 %v274
        %530 = vmatpush1.msra.mxu0 %v273
        %531 = vmatprep.subr.mxu0 %v276
        %532 = vmatpush1.msra.mxu0 %v275
        %533 = vmatprep.subr.mxu0 %v278
        %534 = vmatpush1.msra.mxu0 %v277
        %535 = vmatprep.subr.mxu0 %v280
        %536 = vmatpush1.msra.mxu0 %v279
        %537 = vmatprep.subr.mxu0 %v282
        %538 = vmatpush1.msra.mxu0 %v281
        %539 = vmatprep.subr.mxu0 %v284
        %540 = vmatpush1.msra.mxu0 %v283
        %541 = vmatprep.subr.mxu0 %v286
        %542 = vmatpush1.msra.mxu0 %v285
        %543 = vmatprep.subr.mxu0 %v288
        %544 = vmatpush1.msra.mxu0 %v287
        %545 = vmatprep.subr.mxu0 %v290
        %546 = vmatpush1.msra.mxu0 %v289
        %547 = vmatprep.subr.mxu0 %v292
        %548 = vmatpush1.msra.mxu0 %v291
        %549 = vmatprep.subr.mxu0 %v294
        %550 = vmatpush1.msra.mxu0 %v293
        %551 = vmatprep.subr.mxu0 %v296
        %552 = vmatpush1.msra.mxu0 %v295
        %553 = vmatprep.subr.mxu0 %v298
        %554 = vmatpush1.msra.mxu0 %v297
        %555 = vmatprep.subr.mxu0 %v300
        %556 = vmatpush1.msra.mxu0 %v299
        %557 = vmatprep.subr.mxu0 %v302
        %558 = vmatpush1.msra.mxu0 %v301
        %559 = vmatprep.subr.mxu0 %v304
        %560 = vmatpush1.msra.mxu0 %v303
        %561 = vmatprep.mubr.f32.mxu0 %v306
        %562 = vmatmul.mubr.f32.gmra.mrb[0].mxu0 %v305
        %v563 = vpop.f32.mrb[0].mxu0
        %v564 = vadd.f32 0.0, %v563
        %v565 = vpop.f32.mrb[0].mxu0
        %v566 = vadd.f32 0.0, %v565
        %567 = vmatprep.mubr.f32.mxu0 %v308
        %568 = vmatmul.mubr.f32.gmra.mrb[0].mxu0 %v307
        %v569 = vpop.f32.mrb[0].mxu0
        %v570 = vadd.f32 0.0, %v569
        %v571 = vpop.f32.mrb[0].mxu0
        %v572 = vadd.f32 0.0, %v571
        %573 = vmatprep.mubr.f32.mxu0 %v310
        %574 = vmatmul.mubr.f32.gmra.mrb[0].mxu0 %v309
        %v575 = vpop.f32.mrb[0].mxu0
        %v576 = vadd.f32 0.0, %v575
        %v577 = vpop.f32.mrb[0].mxu0
        %v578 = vadd.f32 0.0, %v577
        %579 = vmatprep.mubr.f32.mxu0 %v312
        %580 = vmatmul.mubr.f32.gmra.mrb[0].mxu0 %v311
        %v581 = vpop.f32.mrb[0].mxu0
        %v582 = vadd.f32 0.0, %v581
        %v583 = vpop.f32.mrb[0].mxu0
        %v584 = vadd.f32 0.0, %v583
        %585 = vmatprep.mubr.f32.mxu0 %v314
        %586 = vmatmul.mubr.f32.gmra.mrb[0].mxu0 %v313
        %v587 = vpop.f32.mrb[0].mxu0
        %v588 = vadd.f32 0.0, %v587
        %v589 = vpop.f32.mrb[0].mxu0
        %v590 = vadd.f32 0.0, %v589
        %591 = vmatprep.mubr.f32.mxu0 %v316
        %592 = vmatmul.mubr.f32.gmra.mrb[0].mxu0 %v315
        %v593 = vpop.f32.mrb[0].mxu0
        %v594 = vadd.f32 0.0, %v593
        %v595 = vpop.f32.mrb[0].mxu0
        %v596 = vadd.f32 0.0, %v595
        %597 = vmatprep.mubr.f32.mxu0 %v318
        %598 = vmatmul.mubr.f32.gmra.mrb[0].mxu0 %v317
        %v599 = vpop.f32.mrb[0].mxu0
        %v600 = vadd.f32 0.0, %v599
        %v601 = vpop.f32.mrb[0].mxu0
        %v602 = vadd.f32 0.0, %v601
        %603 = vmatprep.mubr.f32.mxu0 %v320
        %604 = vmatmul.mubr.f32.gmra.mrb[0].mxu0 %v319
        %v605 = vpop.f32.mrb[0].mxu0
        %v606 = vadd.f32 0.0, %v605
        %v607 = vpop.f32.mrb[0].mxu0
        %v608 = vadd.f32 0.0, %v607
        %609 = vmatprep.mubr.f32.mxu0 %v322
        %610 = vmatmul.mubr.f32.gmra.mrb[0].mxu0 %v321
        %v611 = vpop.f32.mrb[0].mxu0
        %v612 = vadd.f32 0.0, %v611
        %v613 = vpop.f32.mrb[0].mxu0
        %v614 = vadd.f32 0.0, %v613
        %615 = vmatprep.mubr.f32.mxu0 %v324
        %616 = vmatmul.mubr.f32.gmra.mrb[0].mxu0 %v323
        %v617 = vpop.f32.mrb[0].mxu0
        %v618 = vadd.f32 0.0, %v617
        %v619 = vpop.f32.mrb[0].mxu0
        %v620 = vadd.f32 0.0, %v619
        %621 = vmatprep.mubr.f32.mxu0 %v326
        %622 = vmatmul.mubr.f32.gmra.mrb[0].mxu0 %v325
        %v623 = vpop.f32.mrb[0].mxu0
        %v624 = vadd.f32 0.0, %v623
        %v625 = vpop.f32.mrb[0].mxu0
        %v626 = vadd.f32 0.0, %v625
        %627 = vmatprep.mubr.f32.mxu0 %v328
        %628 = vmatmul.mubr.f32.gmra.mrb[0].mxu0 %v327
        %v629 = vpop.f32.mrb[0].mxu0
        %v630 = vadd.f32 0.0, %v629
        %v631 = vpop.f32.mrb[0].mxu0
        %v632 = vadd.f32 0.0, %v631
        %633 = vmatprep.mubr.f32.mxu0 %v330
        %634 = vmatmul.mubr.f32.gmra.mrb[0].mxu0 %v329
        %v635 = vpop.f32.mrb[0].mxu0
        %v636 = vadd.f32 0.0, %v635
        %v637 = vpop.f32.mrb[0].mxu0
        %v638 = vadd.f32 0.0, %v637
        %639 = vmatprep.mubr.f32.mxu0 %v332
        %640 = vmatmul.mubr.f32.gmra.mrb[0].mxu0 %v331
        %v641 = vpop.f32.mrb[0].mxu0
        %v642 = vadd.f32 0.0, %v641
        %v643 = vpop.f32.mrb[0].mxu0
        %v644 = vadd.f32 0.0, %v643
        %645 = vmatprep.mubr.f32.mxu0 %v334
        %646 = vmatmul.mubr.f32.gmra.mrb[0].mxu0 %v333
        %v647 = vpop.f32.mrb[0].mxu0
        %v648 = vadd.f32 0.0, %v647
        %v649 = vpop.f32.mrb[0].mxu0
        %v650 = vadd.f32 0.0, %v649
        %651 = vmatprep.mubr.f32.mxu0 %v336
        %652 = vmatmul.mubr.f32.gmra.mrb[0].mxu0 %v335
        %v653 = vpop.f32.mrb[0].mxu0
        %v654 = vadd.f32 0.0, %v653
        %v655 = vpop.f32.mrb[0].mxu0
        %v656 = vadd.f32 0.0, %v655
        %657 = vmatprep.mubr.f32.mxu0 %v338
        %658 = vmatmul.mubr.f32.gmra.mrb[0].mxu0 %v337
        %v659 = vpop.f32.mrb[0].mxu0
        %v660 = vadd.f32 0.0, %v659
        %v661 = vpop.f32.mrb[0].mxu0
        %v662 = vadd.f32 0.0, %v661
        %663 = vmatprep.mubr.f32.mxu0 %v340
        %664 = vmatmul.mubr.f32.gmra.mrb[0].mxu0 %v339
        %v665 = vpop.f32.mrb[0].mxu0
        %v666 = vadd.f32 0.0, %v665
        %v667 = vpop.f32.mrb[0].mxu0
        %v668 = vadd.f32 0.0, %v667
        %669 = vmatprep.mubr.f32.mxu0 %v342
        %670 = vmatmul.mubr.f32.gmra.mrb[0].mxu0 %v341
        %v671 = vpop.f32.mrb[0].mxu0
        %v672 = vadd.f32 0.0, %v671
        %v673 = vpop.f32.mrb[0].mxu0
        %v674 = vadd.f32 0.0, %v673
        %675 = vmatprep.mubr.f32.mxu0 %v344
        %676 = vmatmul.mubr.f32.gmra.mrb[0].mxu0 %v343
        %v677 = vpop.f32.mrb[0].mxu0
        %v678 = vadd.f32 0.0, %v677
        %v679 = vpop.f32.mrb[0].mxu0
        %v680 = vadd.f32 0.0, %v679
        %681 = vmatprep.mubr.f32.mxu0 %v346
        %682 = vmatmul.mubr.f32.gmra.mrb[0].mxu0 %v345
        %v683 = vpop.f32.mrb[0].mxu0
        %v684 = vadd.f32 0.0, %v683
        %v685 = vpop.f32.mrb[0].mxu0
        %v686 = vadd.f32 0.0, %v685
        %687 = vmatprep.mubr.f32.mxu0 %v348
        %688 = vmatmul.mubr.f32.gmra.mrb[0].mxu0 %v347
        %v689 = vpop.f32.mrb[0].mxu0
        %v690 = vadd.f32 0.0, %v689
        %v691 = vpop.f32.mrb[0].mxu0
        %v692 = vadd.f32 0.0, %v691
        %693 = vmatprep.mubr.f32.mxu0 %v350
        %694 = vmatmul.mubr.f32.gmra.mrb[0].mxu0 %v349
        %v695 = vpop.f32.mrb[0].mxu0
        %v696 = vadd.f32 0.0, %v695
        %v697 = vpop.f32.mrb[0].mxu0
        %v698 = vadd.f32 0.0, %v697
        %699 = vmatprep.mubr.f32.mxu0 %v352
        %700 = vmatmul.mubr.f32.gmra.mrb[0].mxu0 %v351
        %v701 = vpop.f32.mrb[0].mxu0
        %v702 = vadd.f32 0.0, %v701
        %v703 = vpop.f32.mrb[0].mxu0
        %v704 = vadd.f32 0.0, %v703
        %705 = vmatprep.mubr.f32.mxu0 %v354
        %706 = vmatmul.mubr.f32.gmra.mrb[0].mxu0 %v353
        %v707 = vpop.f32.mrb[0].mxu0
        %v708 = vadd.f32 0.0, %v707
        %v709 = vpop.f32.mrb[0].mxu0
        %v710 = vadd.f32 0.0, %v709
        %711 = vmatprep.mubr.f32.mxu0 %v356
        %712 = vmatmul.mubr.f32.gmra.mrb[0].mxu0 %v355
        %v713 = vpop.f32.mrb[0].mxu0
        %v714 = vadd.f32 0.0, %v713
        %v715 = vpop.f32.mrb[0].mxu0
        %v716 = vadd.f32 0.0, %v715
        %717 = vmatprep.mubr.f32.mxu0 %v358
        %718 = vmatmul.mubr.f32.gmra.mrb[0].mxu0 %v357
        %v719 = vpop.f32.mrb[0].mxu0
        %v720 = vadd.f32 0.0, %v719
        %v721 = vpop.f32.mrb[0].mxu0
        %v722 = vadd.f32 0.0, %v721
        %723 = vmatprep.mubr.f32.mxu0 %v360
        %724 = vmatmul.mubr.f32.gmra.mrb[0].mxu0 %v359
        %v725 = vpop.f32.mrb[0].mxu0
        %v726 = vadd.f32 0.0, %v725
        %v727 = vpop.f32.mrb[0].mxu0
        %v728 = vadd.f32 0.0, %v727
        %729 = vmatprep.mubr.f32.mxu0 %v362
        %730 = vmatmul.mubr.f32.gmra.mrb[0].mxu0 %v361
        %v731 = vpop.f32.mrb[0].mxu0
        %v732 = vadd.f32 0.0, %v731
        %v733 = vpop.f32.mrb[0].mxu0
        %v734 = vadd.f32 0.0, %v733
        %735 = vmatprep.mubr.f32.mxu0 %v364
        %736 = vmatmul.mubr.f32.gmra.mrb[0].mxu0 %v363
        %v737 = vpop.f32.mrb[0].mxu0
        %v738 = vadd.f32 0.0, %v737
        %v739 = vpop.f32.mrb[0].mxu0
        %v740 = vadd.f32 0.0, %v739
        %741 = vmatprep.mubr.f32.mxu0 %v366
        %742 = vmatmul.mubr.f32.gmra.mrb[0].mxu0 %v365
        %v743 = vpop.f32.mrb[0].mxu0
        %v744 = vadd.f32 0.0, %v743
        %v745 = vpop.f32.mrb[0].mxu0
        %v746 = vadd.f32 0.0, %v745
        %747 = vmatprep.mubr.f32.mxu0 %v368
        %748 = vmatmul.mubr.f32.gmra.mrb[0].mxu0 %v367
        %v749 = vpop.f32.mrb[0].mxu0
        %v750 = vadd.f32 0.0, %v749
        %v751 = vpop.f32.mrb[0].mxu0
        %v752 = vadd.f32 0.0, %v751
        %753 = vmatprep.mubr.f32.mxu0 %v370
        %754 = vmatmul.mubr.f32.gmra.mrb[0].mxu0 %v369
        %v755 = vpop.f32.mrb[0].mxu0
        %v756 = vadd.f32 0.0, %v755
        %v757 = vpop.f32.mrb[0].mxu0
        %v758 = vadd.f32 0.0, %v757
        %759 = vmatprep.mubr.f32.mxu0 %v372
        %760 = vmatmul.mubr.f32.gmra.mrb[0].mxu0 %v371
        %v761 = vpop.f32.mrb[0].mxu0
        %v762 = vadd.f32 0.0, %v761
        %v763 = vpop.f32.mrb[0].mxu0
        %v764 = vadd.f32 0.0, %v763
        %765 = vmatprep.mubr.f32.mxu0 %v374
        %766 = vmatmul.mubr.f32.gmra.mrb[0].mxu0 %v373
        %v767 = vpop.f32.mrb[0].mxu0
        %v768 = vadd.f32 0.0, %v767
        %v769 = vpop.f32.mrb[0].mxu0
        %v770 = vadd.f32 0.0, %v769
        %771 = vmatprep.mubr.f32.mxu0 %v376
        %772 = vmatmul.mubr.f32.gmra.mrb[0].mxu0 %v375
        %v773 = vpop.f32.mrb[0].mxu0
        %v774 = vadd.f32 0.0, %v773
        %v775 = vpop.f32.mrb[0].mxu0
        %v776 = vadd.f32 0.0, %v775
        %777 = vmatprep.mubr.f32.mxu0 %v378
        %778 = vmatmul.mubr.f32.gmra.mrb[0].mxu0 %v377
        %v779 = vpop.f32.mrb[0].mxu0
        %v780 = vadd.f32 0.0, %v779
        %v781 = vpop.f32.mrb[0].mxu0
        %v782 = vadd.f32 0.0, %v781
        %783 = vmatprep.mubr.f32.mxu0 %v380
        %784 = vmatmul.mubr.f32.gmra.mrb[0].mxu0 %v379
        %v785 = vpop.f32.mrb[0].mxu0
        %v786 = vadd.f32 0.0, %v785
        %v787 = vpop.f32.mrb[0].mxu0
        %v788 = vadd.f32 0.0, %v787
        %789 = vmatprep.mubr.f32.mxu0 %v382
        %790 = vmatmul.mubr.f32.gmra.mrb[0].mxu0 %v381
        %v791 = vpop.f32.mrb[0].mxu0
        %v792 = vadd.f32 0.0, %v791
        %v793 = vpop.f32.mrb[0].mxu0
        %v794 = vadd.f32 0.0, %v793
        %795 = vmatprep.mubr.f32.mxu0 %v384
        %796 = vmatmul.mubr.f32.gmra.mrb[0].mxu0 %v383
        %v797 = vpop.f32.mrb[0].mxu0
        %v798 = vadd.f32 0.0, %v797
        %v799 = vpop.f32.mrb[0].mxu0
        %v800 = vadd.f32 0.0, %v799
        %801 = vmatprep.mubr.f32.mxu0 %v386
        %802 = vmatmul.mubr.f32.gmra.mrb[0].mxu0 %v385
        %v803 = vpop.f32.mrb[0].mxu0
        %v804 = vadd.f32 0.0, %v803
        %v805 = vpop.f32.mrb[0].mxu0
        %v806 = vadd.f32 0.0, %v805
        %807 = vmatprep.mubr.f32.mxu0 %v388
        %808 = vmatmul.mubr.f32.gmra.mrb[0].mxu0 %v387
        %v809 = vpop.f32.mrb[0].mxu0
        %v810 = vadd.f32 0.0, %v809
        %v811 = vpop.f32.mrb[0].mxu0
        %v812 = vadd.f32 0.0, %v811
        %813 = vmatprep.mubr.f32.mxu0 %v390
        %814 = vmatmul.mubr.f32.gmra.mrb[0].mxu0 %v389
        %v815 = vpop.f32.mrb[0].mxu0
        %v816 = vadd.f32 0.0, %v815
        %v817 = vpop.f32.mrb[0].mxu0
        %v818 = vadd.f32 0.0, %v817
        %819 = vmatprep.mubr.f32.mxu0 %v392
        %820 = vmatmul.mubr.f32.gmra.mrb[0].mxu0 %v391
        %v821 = vpop.f32.mrb[0].mxu0
        %v822 = vadd.f32 0.0, %v821
        %v823 = vpop.f32.mrb[0].mxu0
        %v824 = vadd.f32 0.0, %v823
        %825 = vmatprep.mubr.f32.mxu0 %v394
        %826 = vmatmul.mubr.f32.gmra.mrb[0].mxu0 %v393
        %v827 = vpop.f32.mrb[0].mxu0
        %v828 = vadd.f32 0.0, %v827
        %v829 = vpop.f32.mrb[0].mxu0
        %v830 = vadd.f32 0.0, %v829
        %831 = vmatprep.mubr.f32.mxu0 %v396
        %832 = vmatmul.mubr.f32.gmra.mrb[0].mxu0 %v395
        %v833 = vpop.f32.mrb[0].mxu0
        %v834 = vadd.f32 0.0, %v833
        %v835 = vpop.f32.mrb[0].mxu0
        %v836 = vadd.f32 0.0, %v835
        %837 = vmatprep.mubr.f32.mxu0 %v398
        %838 = vmatmul.mubr.f32.gmra.mrb[0].mxu0 %v397
        %v839 = vpop.f32.mrb[0].mxu0
        %v840 = vadd.f32 0.0, %v839
        %v841 = vpop.f32.mrb[0].mxu0
        %v842 = vadd.f32 0.0, %v841
        %843 = vmatprep.mubr.f32.mxu0 %v400
        %844 = vmatmul.mubr.f32.gmra.mrb[0].mxu0 %v399
        %v845 = vpop.f32.mrb[0].mxu0
        %v846 = vadd.f32 0.0, %v845
        %v847 = vpop.f32.mrb[0].mxu0
        %v848 = vadd.f32 0.0, %v847
        %849 = vmatprep.mubr.f32.mxu0 %v402
        %850 = vmatmul.mubr.f32.gmra.mrb[0].mxu0 %v401
        %v851 = vpop.f32.mrb[0].mxu0
        %v852 = vadd.f32 0.0, %v851
        %v853 = vpop.f32.mrb[0].mxu0
        %v854 = vadd.f32 0.0, %v853
        %855 = vmatprep.mubr.f32.mxu0 %v404
        %856 = vmatmul.mubr.f32.gmra.mrb[0].mxu0 %v403
        %v857 = vpop.f32.mrb[0].mxu0
        %v858 = vadd.f32 0.0, %v857
        %v859 = vpop.f32.mrb[0].mxu0
        %v860 = vadd.f32 0.0, %v859
        %861 = vmatprep.mubr.f32.mxu0 %v406
        %862 = vmatmul.mubr.f32.gmra.mrb[0].mxu0 %v405
        %v863 = vpop.f32.mrb[0].mxu0
        %v864 = vadd.f32 0.0, %v863
        %v865 = vpop.f32.mrb[0].mxu0
        %v866 = vadd.f32 0.0, %v865
        %867 = vmatprep.mubr.f32.mxu0 %v408
        %868 = vmatmul.mubr.f32.gmra.mrb[0].mxu0 %v407
        %v869 = vpop.f32.mrb[0].mxu0
        %v870 = vadd.f32 0.0, %v869
        %v871 = vpop.f32.mrb[0].mxu0
        %v872 = vadd.f32 0.0, %v871
        %873 = vmatprep.mubr.f32.mxu0 %v410
        %874 = vmatmul.mubr.f32.gmra.mrb[0].mxu0 %v409
        %v875 = vpop.f32.mrb[0].mxu0
        %v876 = vadd.f32 0.0, %v875
        %v877 = vpop.f32.mrb[0].mxu0
        %v878 = vadd.f32 0.0, %v877
        %879 = vmatprep.mubr.f32.mxu0 %v412
        %880 = vmatmul.mubr.f32.gmra.mrb[0].mxu0 %v411
        %v881 = vpop.f32.mrb[0].mxu0
        %v882 = vadd.f32 0.0, %v881
        %v883 = vpop.f32.mrb[0].mxu0
        %v884 = vadd.f32 0.0, %v883
        %885 = vmatprep.mubr.f32.mxu0 %v414
        %886 = vmatmul.mubr.f32.gmra.mrb[0].mxu0 %v413
        %v887 = vpop.f32.mrb[0].mxu0
        %v888 = vadd.f32 0.0, %v887
        %v889 = vpop.f32.mrb[0].mxu0
        %v890 = vadd.f32 0.0, %v889
        %891 = vmatprep.mubr.f32.mxu0 %v416
        %892 = vmatmul.mubr.f32.gmra.mrb[0].mxu0 %v415
        %v893 = vpop.f32.mrb[0].mxu0
        %v894 = vadd.f32 0.0, %v893
        %v895 = vpop.f32.mrb[0].mxu0
        %v896 = vadd.f32 0.0, %v895
        %897 = vmatprep.mubr.f32.mxu0 %v418
        %898 = vmatmul.mubr.f32.gmra.mrb[0].mxu0 %v417
        %v899 = vpop.f32.mrb[0].mxu0
        %v900 = vadd.f32 0.0, %v899
        %v901 = vpop.f32.mrb[0].mxu0
        %v902 = vadd.f32 0.0, %v901
        %903 = vmatprep.mubr.f32.mxu0 %v420
        %904 = vmatmul.mubr.f32.gmra.mrb[0].mxu0 %v419
        %v905 = vpop.f32.mrb[0].mxu0
        %v906 = vadd.f32 0.0, %v905
        %v907 = vpop.f32.mrb[0].mxu0
        %v908 = vadd.f32 0.0, %v907
        %909 = vmatprep.mubr.f32.mxu0 %v422
        %910 = vmatmul.mubr.f32.gmra.mrb[0].mxu0 %v421
        %v911 = vpop.f32.mrb[0].mxu0
        %v912 = vadd.f32 0.0, %v911
        %v913 = vpop.f32.mrb[0].mxu0
        %v914 = vadd.f32 0.0, %v913
        %915 = vmatprep.mubr.f32.mxu0 %v424
        %916 = vmatmul.mubr.f32.gmra.mrb[0].mxu0 %v423
        %v917 = vpop.f32.mrb[0].mxu0
        %v918 = vadd.f32 0.0, %v917
        %v919 = vpop.f32.mrb[0].mxu0
        %v920 = vadd.f32 0.0, %v919
        %921 = vmatprep.mubr.f32.mxu0 %v426
        %922 = vmatmul.mubr.f32.gmra.mrb[0].mxu0 %v425
        %v923 = vpop.f32.mrb[0].mxu0
        %v924 = vadd.f32 0.0, %v923
        %v925 = vpop.f32.mrb[0].mxu0
        %v926 = vadd.f32 0.0, %v925
        %927 = vmatprep.mubr.f32.mxu0 %v428
        %928 = vmatmul.mubr.f32.gmra.mrb[0].mxu0 %v427
        %v929 = vpop.f32.mrb[0].mxu0
        %v930 = vadd.f32 0.0, %v929
        %v931 = vpop.f32.mrb[0].mxu0
        %v932 = vadd.f32 0.0, %v931
        %933 = vmatprep.mubr.f32.mxu0 %v430
        %934 = vmatmul.mubr.f32.gmra.mrb[0].mxu0 %v429
        %v935 = vpop.f32.mrb[0].mxu0
        %v936 = vadd.f32 0.0, %v935
        %v937 = vpop.f32.mrb[0].mxu0
        %v938 = vadd.f32 0.0, %v937
        %939 = vmatprep.mubr.f32.mxu0 %v432
        %940 = vmatmul.mubr.f32.gmra.mrb[0].mxu0 %v431
        %v941 = vpop.f32.mrb[0].mxu0
        %v942 = vadd.f32 0.0, %v941
        %v943 = vpop.f32.mrb[0].mxu0
        %v944 = vadd.f32 0.0, %v943
        %945 = vmatprep.mubr.f32.mxu0 %v434
        %946 = vmatmul.mubr.f32.gmra.mrb[0].mxu0 %v433
        %v947 = vpop.f32.mrb[0].mxu0
        %v948 = vadd.f32 0.0, %v947
        %v949 = vpop.f32.mrb[0].mxu0
        %v950 = vadd.f32 0.0, %v949
        %951 = vmatprep.mubr.f32.mxu0 %v436
        %952 = vmatmul.mubr.f32.gmra.mrb[0].mxu0 %v435
        %v953 = vpop.f32.mrb[0].mxu0
        %v954 = vadd.f32 0.0, %v953
        %v955 = vpop.f32.mrb[0].mxu0
        %v956 = vadd.f32 0.0, %v955
        %957 = vmatprep.mubr.f32.mxu0 %v438
        %958 = vmatmul.mubr.f32.gmra.mrb[0].mxu0 %v437
        %v959 = vpop.f32.mrb[0].mxu0
        %v960 = vadd.f32 0.0, %v959
        %v961 = vpop.f32.mrb[0].mxu0
        %v962 = vadd.f32 0.0, %v961
        %963 = vmatprep.mubr.f32.mxu0 %v440
        %964 = vmatmul.mubr.f32.gmra.mrb[0].mxu0 %v439
        %v965 = vpop.f32.mrb[0].mxu0
        %v966 = vadd.f32 0.0, %v965
        %v967 = vpop.f32.mrb[0].mxu0
        %v968 = vadd.f32 0.0, %v967
        %969 = vmatprep.mubr.f32.mxu0 %v442
        %970 = vmatmul.mubr.f32.gmra.mrb[0].mxu0 %v441
        %v971 = vpop.f32.mrb[0].mxu0
        %v972 = vadd.f32 0.0, %v971
        %v973 = vpop.f32.mrb[0].mxu0
        %v974 = vadd.f32 0.0, %v973
        %975 = vmatprep.mubr.f32.mxu0 %v444
        %976 = vmatmul.mubr.f32.gmra.mrb[0].mxu0 %v443
        %v977 = vpop.f32.mrb[0].mxu0
        %v978 = vadd.f32 0.0, %v977
        %v979 = vpop.f32.mrb[0].mxu0
        %v980 = vadd.f32 0.0, %v979
        %981 = vmatprep.mubr.f32.mxu0 %v446
        %982 = vmatmul.mubr.f32.gmra.mrb[0].mxu0 %v445
        %v983 = vpop.f32.mrb[0].mxu0
        %v984 = vadd.f32 0.0, %v983
        %v985 = vpop.f32.mrb[0].mxu0
        %v986 = vadd.f32 0.0, %v985
        %987 = vmatprep.mubr.f32.mxu0 %v448
        %988 = vmatmul.mubr.f32.gmra.mrb[0].mxu0 %v447
        %v989 = vpop.f32.mrb[0].mxu0
        %v990 = vadd.f32 0.0, %v989
        %v991 = vpop.f32.mrb[0].mxu0
        %v992 = vadd.f32 0.0, %v991
        %993 = vmatprep.mubr.f32.mxu0 %v450
        %994 = vmatmul.mubr.f32.gmra.mrb[0].mxu0 %v449
        %v995 = vpop.f32.mrb[0].mxu0
        %v996 = vadd.f32 0.0, %v995
        %v997 = vpop.f32.mrb[0].mxu0
        %v998 = vadd.f32 0.0, %v997
        %999 = vmatprep.mubr.f32.mxu0 %v452
        %1000 = vmatmul.mubr.f32.gmra.mrb[0].mxu0 %v451
        %v1001 = vpop.f32.mrb[0].mxu0
        %v1002 = vadd.f32 0.0, %v1001
        %v1003 = vpop.f32.mrb[0].mxu0
        %v1004 = vadd.f32 0.0, %v1003
        %1005 = vmatprep.mubr.f32.mxu0 %v454
        %1006 = vmatmul.mubr.f32.gmra.mrb[0].mxu0 %v453
        %v1007 = vpop.f32.mrb[0].mxu0
        %v1008 = vadd.f32 0.0, %v1007
        %v1009 = vpop.f32.mrb[0].mxu0
        %v1010 = vadd.f32 0.0, %v1009
        %1011 = vmatprep.mubr.f32.mxu0 %v456
        %1012 = vmatmul.mubr.f32.gmra.mrb[0].mxu0 %v455
        %v1013 = vpop.f32.mrb[0].mxu0
        %v1014 = vadd.f32 0.0, %v1013
        %v1015 = vpop.f32.mrb[0].mxu0
        %v1016 = vadd.f32 0.0, %v1015
        %1017 = vmatprep.mubr.f32.mxu0 %v458
        %1018 = vmatmul.mubr.f32.gmra.mrb[0].mxu0 %v457
        %v1019 = vpop.f32.mrb[0].mxu0
        %v1020 = vadd.f32 0.0, %v1019
        %v1021 = vpop.f32.mrb[0].mxu0
        %v1022 = vadd.f32 0.0, %v1021
        %1023 = vmatprep.mubr.f32.mxu0 %v460
        %1024 = vmatmul.mubr.f32.gmra.mrb[0].mxu0 %v459
        %v1025 = vpop.f32.mrb[0].mxu0
        %v1026 = vadd.f32 0.0, %v1025
        %v1027 = vpop.f32.mrb[0].mxu0
        %v1028 = vadd.f32 0.0, %v1027
        %1029 = vmatprep.mubr.f32.mxu0 %v462
        %1030 = vmatmul.mubr.f32.gmra.mrb[0].mxu0 %v461
        %v1031 = vpop.f32.mrb[0].mxu0
        %v1032 = vadd.f32 0.0, %v1031
        %v1033 = vpop.f32.mrb[0].mxu0
        %v1034 = vadd.f32 0.0, %v1033
        %1035 = vmatprep.mubr.f32.mxu0 %v464
        %1036 = vmatmul.mubr.f32.gmra.mrb[0].mxu0 %v463
        %v1037 = vpop.f32.mrb[0].mxu0
        %v1038 = vadd.f32 0.0, %v1037
        %v1039 = vpop.f32.mrb[0].mxu0
        %v1040 = vadd.f32 0.0, %v1039
        %1041 = vmatprep.mubr.f32.mxu0 %v466
        %1042 = vmatmul.mubr.f32.gmra.mrb[0].mxu0 %v465
        %v1043 = vpop.f32.mrb[0].mxu0
        %v1044 = vadd.f32 0.0, %v1043
        %v1045 = vpop.f32.mrb[0].mxu0
        %v1046 = vadd.f32 0.0, %v1045
        %1047 = vmatprep.mubr.f32.mxu0 %v468
        %1048 = vmatmul.mubr.f32.gmra.mrb[0].mxu0 %v467
        %v1049 = vpop.f32.mrb[0].mxu0
        %v1050 = vadd.f32 0.0, %v1049
        %v1051 = vpop.f32.mrb[0].mxu0
        %v1052 = vadd.f32 0.0, %v1051
        %1053 = vmatprep.mubr.f32.mxu0 %v470
        %1054 = vmatmul.mubr.f32.gmra.mrb[0].mxu0 %v469
        %v1055 = vpop.f32.mrb[0].mxu0
        %v1056 = vadd.f32 0.0, %v1055
        %v1057 = vpop.f32.mrb[0].mxu0
        %v1058 = vadd.f32 0.0, %v1057
        %1059 = vmatprep.mubr.f32.mxu0 %v472
        %1060 = vmatmul.mubr.f32.gmra.mrb[0].mxu0 %v471
        %v1061 = vpop.f32.mrb[0].mxu0
        %v1062 = vadd.f32 0.0, %v1061
        %v1063 = vpop.f32.mrb[0].mxu0
        %v1064 = vadd.f32 0.0, %v1063
        %1065 = vmatprep.mubr.f32.mxu0 %v474
        %1066 = vmatmul.mubr.f32.gmra.mrb[0].mxu0 %v473
        %v1067 = vpop.f32.mrb[0].mxu0
        %v1068 = vadd.f32 0.0, %v1067
        %v1069 = vpop.f32.mrb[0].mxu0
        %v1070 = vadd.f32 0.0, %v1069
        %1071 = vmatprep.mubr.f32.mxu0 %v476
        %1072 = vmatmul.mubr.f32.gmra.mrb[0].mxu0 %v475
        %v1073 = vpop.f32.mrb[0].mxu0
        %v1074 = vadd.f32 0.0, %v1073
        %v1075 = vpop.f32.mrb[0].mxu0
        %v1076 = vadd.f32 0.0, %v1075
        %1077 = vmatprep.mubr.f32.mxu0 %v478
        %1078 = vmatmul.mubr.f32.gmra.mrb[0].mxu0 %v477
        %v1079 = vpop.f32.mrb[0].mxu0
        %v1080 = vadd.f32 0.0, %v1079
        %v1081 = vpop.f32.mrb[0].mxu0
        %v1082 = vadd.f32 0.0, %v1081
        %1083 = vmatprep.mubr.f32.mxu0 %v480
        %1084 = vmatmul.mubr.f32.gmra.mrb[0].mxu0 %v479
        %v1085 = vpop.f32.mrb[0].mxu0
        %v1086 = vadd.f32 0.0, %v1085
        %v1087 = vpop.f32.mrb[0].mxu0
        %v1088 = vadd.f32 0.0, %v1087
        %1089 = vmatprep.mubr.f32.mxu0 %v482
        %1090 = vmatmul.mubr.f32.gmra.mrb[0].mxu0 %v481
        %v1091 = vpop.f32.mrb[0].mxu0
        %v1092 = vadd.f32 0.0, %v1091
        %v1093 = vpop.f32.mrb[0].mxu0
        %v1094 = vadd.f32 0.0, %v1093
        %1095 = vmatprep.mubr.f32.mxu0 %v484
        %1096 = vmatmul.mubr.f32.gmra.mrb[0].mxu0 %v483
        %v1097 = vpop.f32.mrb[0].mxu0
        %v1098 = vadd.f32 0.0, %v1097
        %v1099 = vpop.f32.mrb[0].mxu0
        %v1100 = vadd.f32 0.0, %v1099
        %1101 = vmatprep.mubr.f32.mxu0 %v486
        %1102 = vmatmul.mubr.f32.gmra.mrb[0].mxu0 %v485
        %v1103 = vpop.f32.mrb[0].mxu0
        %v1104 = vadd.f32 0.0, %v1103
        %v1105 = vpop.f32.mrb[0].mxu0
        %v1106 = vadd.f32 0.0, %v1105
        %1107 = vmatprep.mubr.f32.mxu0 %v488
        %1108 = vmatmul.mubr.f32.gmra.mrb[0].mxu0 %v487
        %v1109 = vpop.f32.mrb[0].mxu0
        %v1110 = vadd.f32 0.0, %v1109
        %v1111 = vpop.f32.mrb[0].mxu0
        %v1112 = vadd.f32 0.0, %v1111
        %1113 = vmatprep.mubr.f32.mxu0 %v490
        %1114 = vmatmul.mubr.f32.gmra.mrb[0].mxu0 %v489
        %v1115 = vpop.f32.mrb[0].mxu0
        %v1116 = vadd.f32 0.0, %v1115
        %v1117 = vpop.f32.mrb[0].mxu0
        %v1118 = vadd.f32 0.0, %v1117
        %1119 = vmatprep.mubr.f32.mxu0 %v492
        %1120 = vmatmul.mubr.f32.gmra.mrb[0].mxu0 %v491
        %v1121 = vpop.f32.mrb[0].mxu0
        %v1122 = vadd.f32 0.0, %v1121
        %v1123 = vpop.f32.mrb[0].mxu0
        %v1124 = vadd.f32 0.0, %v1123
        %1125 = vmatprep.mubr.f32.mxu0 %v494
        %1126 = vmatmul.mubr.f32.gmra.mrb[0].mxu0 %v493
        %v1127 = vpop.f32.mrb[0].mxu0
        %v1128 = vadd.f32 0.0, %v1127
        %v1129 = vpop.f32.mrb[0].mxu0
        %v1130 = vadd.f32 0.0, %v1129
        %1131 = vmatprep.mubr.f32.mxu0 %v496
        %1132 = vmatmul.mubr.f32.gmra.mrb[0].mxu0 %v495
        %v1133 = vpop.f32.mrb[0].mxu0
        %v1134 = vadd.f32 0.0, %v1133
        %v1135 = vpop.f32.mrb[0].mxu0
        %v1136 = vadd.f32 0.0, %v1135
        %1137 = vdwg.mxu0
        %v1202 = vcombine.low %v564, %v566
        %v1203 = vcombine.high %v564, %v566
        %v1205 = vunpack.c.l.s4 1966171168
        %v1206 = vunpack.c.0.s8 %v1205
        %v1207 = vlaneseq
        %v1208 = vshrl.u32 %v1207, 7
        %v1209 = vsub.s32 %v1206, %v1208
        %v1210 = vrot.slane %v1202, %v1209
        %v1212 = vunpack.c.l.s4 1966171168
        %v1213 = vunpack.c.0.s8 %v1212
        %v1214 = vlaneseq
        %v1215 = vshrl.u32 %v1214, 7
        %v1216 = vsub.s32 %v1213, %v1215
        %v1217 = vrot.slane %v1203, %v1216
        %v1218 = vcombine.high %v1210, %v1210
        %v1219 = vcombine.high %v1217, %v1217
        %v1221 = vunpack.c.l.s4 1966171168
        %v1222 = vunpack.c.0.s8 %v1221
        %v1223 = vlaneseq
        %v1224 = vshrl.u32 %v1223, 7
        %v1225 = vsub.s32 %v1222, %v1224
        %v1226 = vrot.slane %v1210, %v1225
        %v1228 = vunpack.c.l.s4 1966171168
        %v1229 = vunpack.c.0.s8 %v1228
        %v1230 = vlaneseq
        %v1231 = vshrl.u32 %v1230, 7
        %v1232 = vsub.s32 %v1229, %v1231
        %v1233 = vrot.slane %v1217, %v1232
        %v1235 = vunpack.c.l.s4 1966171168
        %v1236 = vunpack.c.0.s8 %v1235
        %v1237 = vlaneseq
        %v1238 = vshrl.u32 %v1237, 7
        %v1239 = vsub.s32 %v1236, %v1238
        %v1240 = vrot.slane %v1218, %v1239
        %v1242 = vunpack.c.l.s4 1966171168
        %v1243 = vunpack.c.0.s8 %v1242
        %v1244 = vlaneseq
        %v1245 = vshrl.u32 %v1244, 7
        %v1246 = vsub.s32 %v1243, %v1245
        %v1247 = vrot.slane %v1219, %v1246
        %v1248 = vcombine.high %v1226, %v1226
        %v1249 = vcombine.high %v1233, %v1233
        %v1250 = vcombine.high %v1240, %v1240
        %v1251 = vcombine.high %v1247, %v1247
        %v1252 = vcombine.low %v570, %v572
        %v1253 = vcombine.high %v570, %v572
        %v1255 = vunpack.c.l.s4 1966171168
        %v1256 = vunpack.c.0.s8 %v1255
        %v1257 = vlaneseq
        %v1258 = vshrl.u32 %v1257, 7
        %v1259 = vsub.s32 %v1256, %v1258
        %v1260 = vrot.slane %v1252, %v1259
        %v1262 = vunpack.c.l.s4 1966171168
        %v1263 = vunpack.c.0.s8 %v1262
        %v1264 = vlaneseq
        %v1265 = vshrl.u32 %v1264, 7
        %v1266 = vsub.s32 %v1263, %v1265
        %v1267 = vrot.slane %v1253, %v1266
        %v1268 = vcombine.high %v1260, %v1260
        %v1269 = vcombine.high %v1267, %v1267
        %v1271 = vunpack.c.l.s4 1966171168
        %v1272 = vunpack.c.0.s8 %v1271
        %v1273 = vlaneseq
        %v1274 = vshrl.u32 %v1273, 7
        %v1275 = vsub.s32 %v1272, %v1274
        %v1276 = vrot.slane %v1260, %v1275
        %v1278 = vunpack.c.l.s4 1966171168
        %v1279 = vunpack.c.0.s8 %v1278
        %v1280 = vlaneseq
        %v1281 = vshrl.u32 %v1280, 7
        %v1282 = vsub.s32 %v1279, %v1281
        %v1283 = vrot.slane %v1267, %v1282
        %v1285 = vunpack.c.l.s4 1966171168
        %v1286 = vunpack.c.0.s8 %v1285
        %v1287 = vlaneseq
        %v1288 = vshrl.u32 %v1287, 7
        %v1289 = vsub.s32 %v1286, %v1288
        %v1290 = vrot.slane %v1268, %v1289
        %v1292 = vunpack.c.l.s4 1966171168
        %v1293 = vunpack.c.0.s8 %v1292
        %v1294 = vlaneseq
        %v1295 = vshrl.u32 %v1294, 7
        %v1296 = vsub.s32 %v1293, %v1295
        %v1297 = vrot.slane %v1269, %v1296
        %v1298 = vcombine.high %v1276, %v1276
        %v1299 = vcombine.high %v1283, %v1283
        %v1300 = vcombine.high %v1290, %v1290
        %v1301 = vcombine.high %v1297, %v1297
        %v1302 = vcombine.low %v576, %v578
        %v1303 = vcombine.high %v576, %v578
        %v1305 = vunpack.c.l.s4 1966171168
        %v1306 = vunpack.c.0.s8 %v1305
        %v1307 = vlaneseq
        %v1308 = vshrl.u32 %v1307, 7
        %v1309 = vsub.s32 %v1306, %v1308
        %v1310 = vrot.slane %v1302, %v1309
        %v1312 = vunpack.c.l.s4 1966171168
        %v1313 = vunpack.c.0.s8 %v1312
        %v1314 = vlaneseq
        %v1315 = vshrl.u32 %v1314, 7
        %v1316 = vsub.s32 %v1313, %v1315
        %v1317 = vrot.slane %v1303, %v1316
        %v1318 = vcombine.high %v1310, %v1310
        %v1319 = vcombine.high %v1317, %v1317
        %v1321 = vunpack.c.l.s4 1966171168
        %v1322 = vunpack.c.0.s8 %v1321
        %v1323 = vlaneseq
        %v1324 = vshrl.u32 %v1323, 7
        %v1325 = vsub.s32 %v1322, %v1324
        %v1326 = vrot.slane %v1310, %v1325
        %v1328 = vunpack.c.l.s4 1966171168
        %v1329 = vunpack.c.0.s8 %v1328
        %v1330 = vlaneseq
        %v1331 = vshrl.u32 %v1330, 7
        %v1332 = vsub.s32 %v1329, %v1331
        %v1333 = vrot.slane %v1317, %v1332
        %v1335 = vunpack.c.l.s4 1966171168
        %v1336 = vunpack.c.0.s8 %v1335
        %v1337 = vlaneseq
        %v1338 = vshrl.u32 %v1337, 7
        %v1339 = vsub.s32 %v1336, %v1338
        %v1340 = vrot.slane %v1318, %v1339
        %v1342 = vunpack.c.l.s4 1966171168
        %v1343 = vunpack.c.0.s8 %v1342
        %v1344 = vlaneseq
        %v1345 = vshrl.u32 %v1344, 7
        %v1346 = vsub.s32 %v1343, %v1345
        %v1347 = vrot.slane %v1319, %v1346
        %v1348 = vcombine.high %v1326, %v1326
        %v1349 = vcombine.high %v1333, %v1333
        %v1350 = vcombine.high %v1340, %v1340
        %v1351 = vcombine.high %v1347, %v1347
        %v1352 = vcombine.low %v582, %v584
        %v1353 = vcombine.high %v582, %v584
        %v1355 = vunpack.c.l.s4 1966171168
        %v1356 = vunpack.c.0.s8 %v1355
        %v1357 = vlaneseq
        %v1358 = vshrl.u32 %v1357, 7
        %v1359 = vsub.s32 %v1356, %v1358
        %v1360 = vrot.slane %v1352, %v1359
        %v1362 = vunpack.c.l.s4 1966171168
        %v1363 = vunpack.c.0.s8 %v1362
        %v1364 = vlaneseq
        %v1365 = vshrl.u32 %v1364, 7
        %v1366 = vsub.s32 %v1363, %v1365
        %v1367 = vrot.slane %v1353, %v1366
        %v1368 = vcombine.high %v1360, %v1360
        %v1369 = vcombine.high %v1367, %v1367
        %v1371 = vunpack.c.l.s4 1966171168
        %v1372 = vunpack.c.0.s8 %v1371
        %v1373 = vlaneseq
        %v1374 = vshrl.u32 %v1373, 7
        %v1375 = vsub.s32 %v1372, %v1374
        %v1376 = vrot.slane %v1360, %v1375
        %v1378 = vunpack.c.l.s4 1966171168
        %v1379 = vunpack.c.0.s8 %v1378
        %v1380 = vlaneseq
        %v1381 = vshrl.u32 %v1380, 7
        %v1382 = vsub.s32 %v1379, %v1381
        %v1383 = vrot.slane %v1367, %v1382
        %v1385 = vunpack.c.l.s4 1966171168
        %v1386 = vunpack.c.0.s8 %v1385
        %v1387 = vlaneseq
        %v1388 = vshrl.u32 %v1387, 7
        %v1389 = vsub.s32 %v1386, %v1388
        %v1390 = vrot.slane %v1368, %v1389
        %v1392 = vunpack.c.l.s4 1966171168
        %v1393 = vunpack.c.0.s8 %v1392
        %v1394 = vlaneseq
        %v1395 = vshrl.u32 %v1394, 7
        %v1396 = vsub.s32 %v1393, %v1395
        %v1397 = vrot.slane %v1369, %v1396
        %v1398 = vcombine.high %v1376, %v1376
        %v1399 = vcombine.high %v1383, %v1383
        %v1400 = vcombine.high %v1390, %v1390
        %v1401 = vcombine.high %v1397, %v1397
        %v1402 = vcombine.low %v588, %v590
        %v1403 = vcombine.high %v588, %v590
        %v1405 = vunpack.c.l.s4 1966171168
        %v1406 = vunpack.c.0.s8 %v1405
        %v1407 = vlaneseq
        %v1408 = vshrl.u32 %v1407, 7
        %v1409 = vsub.s32 %v1406, %v1408
        %v1410 = vrot.slane %v1402, %v1409
        %v1412 = vunpack.c.l.s4 1966171168
        %v1413 = vunpack.c.0.s8 %v1412
        %v1414 = vlaneseq
        %v1415 = vshrl.u32 %v1414, 7
        %v1416 = vsub.s32 %v1413, %v1415
        %v1417 = vrot.slane %v1403, %v1416
        %v1418 = vcombine.high %v1410, %v1410
        %v1419 = vcombine.high %v1417, %v1417
        %v1421 = vunpack.c.l.s4 1966171168
        %v1422 = vunpack.c.0.s8 %v1421
        %v1423 = vlaneseq
        %v1424 = vshrl.u32 %v1423, 7
        %v1425 = vsub.s32 %v1422, %v1424
        %v1426 = vrot.slane %v1410, %v1425
        %v1428 = vunpack.c.l.s4 1966171168
        %v1429 = vunpack.c.0.s8 %v1428
        %v1430 = vlaneseq
        %v1431 = vshrl.u32 %v1430, 7
        %v1432 = vsub.s32 %v1429, %v1431
        %v1433 = vrot.slane %v1417, %v1432
        %v1435 = vunpack.c.l.s4 1966171168
        %v1436 = vunpack.c.0.s8 %v1435
        %v1437 = vlaneseq
        %v1438 = vshrl.u32 %v1437, 7
        %v1439 = vsub.s32 %v1436, %v1438
        %v1440 = vrot.slane %v1418, %v1439
        %v1442 = vunpack.c.l.s4 1966171168
        %v1443 = vunpack.c.0.s8 %v1442
        %v1444 = vlaneseq
        %v1445 = vshrl.u32 %v1444, 7
        %v1446 = vsub.s32 %v1443, %v1445
        %v1447 = vrot.slane %v1419, %v1446
        %v1448 = vcombine.high %v1426, %v1426
        %v1449 = vcombine.high %v1433, %v1433
        %v1450 = vcombine.high %v1440, %v1440
        %v1451 = vcombine.high %v1447, %v1447
        %v1452 = vcombine.low %v594, %v596
        %v1453 = vcombine.high %v594, %v596
        %v1455 = vunpack.c.l.s4 1966171168
        %v1456 = vunpack.c.0.s8 %v1455
        %v1457 = vlaneseq
        %v1458 = vshrl.u32 %v1457, 7
        %v1459 = vsub.s32 %v1456, %v1458
        %v1460 = vrot.slane %v1452, %v1459
        %v1462 = vunpack.c.l.s4 1966171168
        %v1463 = vunpack.c.0.s8 %v1462
        %v1464 = vlaneseq
        %v1465 = vshrl.u32 %v1464, 7
        %v1466 = vsub.s32 %v1463, %v1465
        %v1467 = vrot.slane %v1453, %v1466
        %v1468 = vcombine.high %v1460, %v1460
        %v1469 = vcombine.high %v1467, %v1467
        %v1471 = vunpack.c.l.s4 1966171168
        %v1472 = vunpack.c.0.s8 %v1471
        %v1473 = vlaneseq
        %v1474 = vshrl.u32 %v1473, 7
        %v1475 = vsub.s32 %v1472, %v1474
        %v1476 = vrot.slane %v1460, %v1475
        %v1478 = vunpack.c.l.s4 1966171168
        %v1479 = vunpack.c.0.s8 %v1478
        %v1480 = vlaneseq
        %v1481 = vshrl.u32 %v1480, 7
        %v1482 = vsub.s32 %v1479, %v1481
        %v1483 = vrot.slane %v1467, %v1482
        %v1485 = vunpack.c.l.s4 1966171168
        %v1486 = vunpack.c.0.s8 %v1485
        %v1487 = vlaneseq
        %v1488 = vshrl.u32 %v1487, 7
        %v1489 = vsub.s32 %v1486, %v1488
        %v1490 = vrot.slane %v1468, %v1489
        %v1492 = vunpack.c.l.s4 1966171168
        %v1493 = vunpack.c.0.s8 %v1492
        %v1494 = vlaneseq
        %v1495 = vshrl.u32 %v1494, 7
        %v1496 = vsub.s32 %v1493, %v1495
        %v1497 = vrot.slane %v1469, %v1496
        %v1498 = vcombine.high %v1476, %v1476
        %v1499 = vcombine.high %v1483, %v1483
        %v1500 = vcombine.high %v1490, %v1490
        %v1501 = vcombine.high %v1497, %v1497
        %v1502 = vcombine.low %v600, %v602
        %v1503 = vcombine.high %v600, %v602
        %v1505 = vunpack.c.l.s4 1966171168
        %v1506 = vunpack.c.0.s8 %v1505
        %v1507 = vlaneseq
        %v1508 = vshrl.u32 %v1507, 7
        %v1509 = vsub.s32 %v1506, %v1508
        %v1510 = vrot.slane %v1502, %v1509
        %v1512 = vunpack.c.l.s4 1966171168
        %v1513 = vunpack.c.0.s8 %v1512
        %v1514 = vlaneseq
        %v1515 = vshrl.u32 %v1514, 7
        %v1516 = vsub.s32 %v1513, %v1515
        %v1517 = vrot.slane %v1503, %v1516
        %v1518 = vcombine.high %v1510, %v1510
        %v1519 = vcombine.high %v1517, %v1517
        %v1521 = vunpack.c.l.s4 1966171168
        %v1522 = vunpack.c.0.s8 %v1521
        %v1523 = vlaneseq
        %v1524 = vshrl.u32 %v1523, 7
        %v1525 = vsub.s32 %v1522, %v1524
        %v1526 = vrot.slane %v1510, %v1525
        %v1528 = vunpack.c.l.s4 1966171168
        %v1529 = vunpack.c.0.s8 %v1528
        %v1530 = vlaneseq
        %v1531 = vshrl.u32 %v1530, 7
        %v1532 = vsub.s32 %v1529, %v1531
        %v1533 = vrot.slane %v1517, %v1532
        %v1535 = vunpack.c.l.s4 1966171168
        %v1536 = vunpack.c.0.s8 %v1535
        %v1537 = vlaneseq
        %v1538 = vshrl.u32 %v1537, 7
        %v1539 = vsub.s32 %v1536, %v1538
        %v1540 = vrot.slane %v1518, %v1539
        %v1542 = vunpack.c.l.s4 1966171168
        %v1543 = vunpack.c.0.s8 %v1542
        %v1544 = vlaneseq
        %v1545 = vshrl.u32 %v1544, 7
        %v1546 = vsub.s32 %v1543, %v1545
        %v1547 = vrot.slane %v1519, %v1546
        %v1548 = vcombine.high %v1526, %v1526
        %v1549 = vcombine.high %v1533, %v1533
        %v1550 = vcombine.high %v1540, %v1540
        %v1551 = vcombine.high %v1547, %v1547
        %v1552 = vcombine.low %v606, %v608
        %v1553 = vcombine.high %v606, %v608
        %v1555 = vunpack.c.l.s4 1966171168
        %v1556 = vunpack.c.0.s8 %v1555
        %v1557 = vlaneseq
        %v1558 = vshrl.u32 %v1557, 7
        %v1559 = vsub.s32 %v1556, %v1558
        %v1560 = vrot.slane %v1552, %v1559
        %v1562 = vunpack.c.l.s4 1966171168
        %v1563 = vunpack.c.0.s8 %v1562
        %v1564 = vlaneseq
        %v1565 = vshrl.u32 %v1564, 7
        %v1566 = vsub.s32 %v1563, %v1565
        %v1567 = vrot.slane %v1553, %v1566
        %v1568 = vcombine.high %v1560, %v1560
        %v1569 = vcombine.high %v1567, %v1567
        %v1571 = vunpack.c.l.s4 1966171168
        %v1572 = vunpack.c.0.s8 %v1571
        %v1573 = vlaneseq
        %v1574 = vshrl.u32 %v1573, 7
        %v1575 = vsub.s32 %v1572, %v1574
        %v1576 = vrot.slane %v1560, %v1575
        %v1578 = vunpack.c.l.s4 1966171168
        %v1579 = vunpack.c.0.s8 %v1578
        %v1580 = vlaneseq
        %v1581 = vshrl.u32 %v1580, 7
        %v1582 = vsub.s32 %v1579, %v1581
        %v1583 = vrot.slane %v1567, %v1582
        %v1585 = vunpack.c.l.s4 1966171168
        %v1586 = vunpack.c.0.s8 %v1585
        %v1587 = vlaneseq
        %v1588 = vshrl.u32 %v1587, 7
        %v1589 = vsub.s32 %v1586, %v1588
        %v1590 = vrot.slane %v1568, %v1589
        %v1592 = vunpack.c.l.s4 1966171168
        %v1593 = vunpack.c.0.s8 %v1592
        %v1594 = vlaneseq
        %v1595 = vshrl.u32 %v1594, 7
        %v1596 = vsub.s32 %v1593, %v1595
        %v1597 = vrot.slane %v1569, %v1596
        %v1598 = vcombine.high %v1576, %v1576
        %v1599 = vcombine.high %v1583, %v1583
        %v1600 = vcombine.high %v1590, %v1590
        %v1601 = vcombine.high %v1597, %v1597
        %v1602 = vcombine.low %v612, %v614
        %v1603 = vcombine.high %v612, %v614
        %v1605 = vunpack.c.l.s4 1966171168
        %v1606 = vunpack.c.0.s8 %v1605
        %v1607 = vlaneseq
        %v1608 = vshrl.u32 %v1607, 7
        %v1609 = vsub.s32 %v1606, %v1608
        %v1610 = vrot.slane %v1602, %v1609
        %v1612 = vunpack.c.l.s4 1966171168
        %v1613 = vunpack.c.0.s8 %v1612
        %v1614 = vlaneseq
        %v1615 = vshrl.u32 %v1614, 7
        %v1616 = vsub.s32 %v1613, %v1615
        %v1617 = vrot.slane %v1603, %v1616
        %v1618 = vcombine.high %v1610, %v1610
        %v1619 = vcombine.high %v1617, %v1617
        %v1621 = vunpack.c.l.s4 1966171168
        %v1622 = vunpack.c.0.s8 %v1621
        %v1623 = vlaneseq
        %v1624 = vshrl.u32 %v1623, 7
        %v1625 = vsub.s32 %v1622, %v1624
        %v1626 = vrot.slane %v1610, %v1625
        %v1628 = vunpack.c.l.s4 1966171168
        %v1629 = vunpack.c.0.s8 %v1628
        %v1630 = vlaneseq
        %v1631 = vshrl.u32 %v1630, 7
        %v1632 = vsub.s32 %v1629, %v1631
        %v1633 = vrot.slane %v1617, %v1632
        %v1635 = vunpack.c.l.s4 1966171168
        %v1636 = vunpack.c.0.s8 %v1635
        %v1637 = vlaneseq
        %v1638 = vshrl.u32 %v1637, 7
        %v1639 = vsub.s32 %v1636, %v1638
        %v1640 = vrot.slane %v1618, %v1639
        %v1642 = vunpack.c.l.s4 1966171168
        %v1643 = vunpack.c.0.s8 %v1642
        %v1644 = vlaneseq
        %v1645 = vshrl.u32 %v1644, 7
        %v1646 = vsub.s32 %v1643, %v1645
        %v1647 = vrot.slane %v1619, %v1646
        %v1648 = vcombine.high %v1626, %v1626
        %v1649 = vcombine.high %v1633, %v1633
        %v1650 = vcombine.high %v1640, %v1640
        %v1651 = vcombine.high %v1647, %v1647
        %v1652 = vcombine.low %v618, %v620
        %v1653 = vcombine.high %v618, %v620
        %v1655 = vunpack.c.l.s4 1966171168
        %v1656 = vunpack.c.0.s8 %v1655
        %v1657 = vlaneseq
        %v1658 = vshrl.u32 %v1657, 7
        %v1659 = vsub.s32 %v1656, %v1658
        %v1660 = vrot.slane %v1652, %v1659
        %v1662 = vunpack.c.l.s4 1966171168
        %v1663 = vunpack.c.0.s8 %v1662
        %v1664 = vlaneseq
        %v1665 = vshrl.u32 %v1664, 7
        %v1666 = vsub.s32 %v1663, %v1665
        %v1667 = vrot.slane %v1653, %v1666
        %v1668 = vcombine.high %v1660, %v1660
        %v1669 = vcombine.high %v1667, %v1667
        %v1671 = vunpack.c.l.s4 1966171168
        %v1672 = vunpack.c.0.s8 %v1671
        %v1673 = vlaneseq
        %v1674 = vshrl.u32 %v1673, 7
        %v1675 = vsub.s32 %v1672, %v1674
        %v1676 = vrot.slane %v1660, %v1675
        %v1678 = vunpack.c.l.s4 1966171168
        %v1679 = vunpack.c.0.s8 %v1678
        %v1680 = vlaneseq
        %v1681 = vshrl.u32 %v1680, 7
        %v1682 = vsub.s32 %v1679, %v1681
        %v1683 = vrot.slane %v1667, %v1682
        %v1685 = vunpack.c.l.s4 1966171168
        %v1686 = vunpack.c.0.s8 %v1685
        %v1687 = vlaneseq
        %v1688 = vshrl.u32 %v1687, 7
        %v1689 = vsub.s32 %v1686, %v1688
        %v1690 = vrot.slane %v1668, %v1689
        %v1692 = vunpack.c.l.s4 1966171168
        %v1693 = vunpack.c.0.s8 %v1692
        %v1694 = vlaneseq
        %v1695 = vshrl.u32 %v1694, 7
        %v1696 = vsub.s32 %v1693, %v1695
        %v1697 = vrot.slane %v1669, %v1696
        %v1698 = vcombine.high %v1676, %v1676
        %v1699 = vcombine.high %v1683, %v1683
        %v1700 = vcombine.high %v1690, %v1690
        %v1701 = vcombine.high %v1697, %v1697
        %v1702 = vcombine.low %v624, %v626
        %v1703 = vcombine.high %v624, %v626
        %v1705 = vunpack.c.l.s4 1966171168
        %v1706 = vunpack.c.0.s8 %v1705
        %v1707 = vlaneseq
        %v1708 = vshrl.u32 %v1707, 7
        %v1709 = vsub.s32 %v1706, %v1708
        %v1710 = vrot.slane %v1702, %v1709
        %v1712 = vunpack.c.l.s4 1966171168
        %v1713 = vunpack.c.0.s8 %v1712
        %v1714 = vlaneseq
        %v1715 = vshrl.u32 %v1714, 7
        %v1716 = vsub.s32 %v1713, %v1715
        %v1717 = vrot.slane %v1703, %v1716
        %v1718 = vcombine.high %v1710, %v1710
        %v1719 = vcombine.high %v1717, %v1717
        %v1721 = vunpack.c.l.s4 1966171168
        %v1722 = vunpack.c.0.s8 %v1721
        %v1723 = vlaneseq
        %v1724 = vshrl.u32 %v1723, 7
        %v1725 = vsub.s32 %v1722, %v1724
        %v1726 = vrot.slane %v1710, %v1725
        %v1728 = vunpack.c.l.s4 1966171168
        %v1729 = vunpack.c.0.s8 %v1728
        %v1730 = vlaneseq
        %v1731 = vshrl.u32 %v1730, 7
        %v1732 = vsub.s32 %v1729, %v1731
        %v1733 = vrot.slane %v1717, %v1732
        %v1735 = vunpack.c.l.s4 1966171168
        %v1736 = vunpack.c.0.s8 %v1735
        %v1737 = vlaneseq
        %v1738 = vshrl.u32 %v1737, 7
        %v1739 = vsub.s32 %v1736, %v1738
        %v1740 = vrot.slane %v1718, %v1739
        %v1742 = vunpack.c.l.s4 1966171168
        %v1743 = vunpack.c.0.s8 %v1742
        %v1744 = vlaneseq
        %v1745 = vshrl.u32 %v1744, 7
        %v1746 = vsub.s32 %v1743, %v1745
        %v1747 = vrot.slane %v1719, %v1746
        %v1748 = vcombine.high %v1726, %v1726
        %v1749 = vcombine.high %v1733, %v1733
        %v1750 = vcombine.high %v1740, %v1740
        %v1751 = vcombine.high %v1747, %v1747
        %v1752 = vcombine.low %v630, %v632
        %v1753 = vcombine.high %v630, %v632
        %v1755 = vunpack.c.l.s4 1966171168
        %v1756 = vunpack.c.0.s8 %v1755
        %v1757 = vlaneseq
        %v1758 = vshrl.u32 %v1757, 7
        %v1759 = vsub.s32 %v1756, %v1758
        %v1760 = vrot.slane %v1752, %v1759
        %v1762 = vunpack.c.l.s4 1966171168
        %v1763 = vunpack.c.0.s8 %v1762
        %v1764 = vlaneseq
        %v1765 = vshrl.u32 %v1764, 7
        %v1766 = vsub.s32 %v1763, %v1765
        %v1767 = vrot.slane %v1753, %v1766
        %v1768 = vcombine.high %v1760, %v1760
        %v1769 = vcombine.high %v1767, %v1767
        %v1771 = vunpack.c.l.s4 1966171168
        %v1772 = vunpack.c.0.s8 %v1771
        %v1773 = vlaneseq
        %v1774 = vshrl.u32 %v1773, 7
        %v1775 = vsub.s32 %v1772, %v1774
        %v1776 = vrot.slane %v1760, %v1775
        %v1778 = vunpack.c.l.s4 1966171168
        %v1779 = vunpack.c.0.s8 %v1778
        %v1780 = vlaneseq
        %v1781 = vshrl.u32 %v1780, 7
        %v1782 = vsub.s32 %v1779, %v1781
        %v1783 = vrot.slane %v1767, %v1782
        %v1785 = vunpack.c.l.s4 1966171168
        %v1786 = vunpack.c.0.s8 %v1785
        %v1787 = vlaneseq
        %v1788 = vshrl.u32 %v1787, 7
        %v1789 = vsub.s32 %v1786, %v1788
        %v1790 = vrot.slane %v1768, %v1789
        %v1792 = vunpack.c.l.s4 1966171168
        %v1793 = vunpack.c.0.s8 %v1792
        %v1794 = vlaneseq
        %v1795 = vshrl.u32 %v1794, 7
        %v1796 = vsub.s32 %v1793, %v1795
        %v1797 = vrot.slane %v1769, %v1796
        %v1798 = vcombine.high %v1776, %v1776
        %v1799 = vcombine.high %v1783, %v1783
        %v1800 = vcombine.high %v1790, %v1790
        %v1801 = vcombine.high %v1797, %v1797
        %v1802 = vcombine.low %v636, %v638
        %v1803 = vcombine.high %v636, %v638
        %v1805 = vunpack.c.l.s4 1966171168
        %v1806 = vunpack.c.0.s8 %v1805
        %v1807 = vlaneseq
        %v1808 = vshrl.u32 %v1807, 7
        %v1809 = vsub.s32 %v1806, %v1808
        %v1810 = vrot.slane %v1802, %v1809
        %v1812 = vunpack.c.l.s4 1966171168
        %v1813 = vunpack.c.0.s8 %v1812
        %v1814 = vlaneseq
        %v1815 = vshrl.u32 %v1814, 7
        %v1816 = vsub.s32 %v1813, %v1815
        %v1817 = vrot.slane %v1803, %v1816
        %v1818 = vcombine.high %v1810, %v1810
        %v1819 = vcombine.high %v1817, %v1817
        %v1821 = vunpack.c.l.s4 1966171168
        %v1822 = vunpack.c.0.s8 %v1821
        %v1823 = vlaneseq
        %v1824 = vshrl.u32 %v1823, 7
        %v1825 = vsub.s32 %v1822, %v1824
        %v1826 = vrot.slane %v1810, %v1825
        %v1828 = vunpack.c.l.s4 1966171168
        %v1829 = vunpack.c.0.s8 %v1828
        %v1830 = vlaneseq
        %v1831 = vshrl.u32 %v1830, 7
        %v1832 = vsub.s32 %v1829, %v1831
        %v1833 = vrot.slane %v1817, %v1832
        %v1835 = vunpack.c.l.s4 1966171168
        %v1836 = vunpack.c.0.s8 %v1835
        %v1837 = vlaneseq
        %v1838 = vshrl.u32 %v1837, 7
        %v1839 = vsub.s32 %v1836, %v1838
        %v1840 = vrot.slane %v1818, %v1839
        %v1842 = vunpack.c.l.s4 1966171168
        %v1843 = vunpack.c.0.s8 %v1842
        %v1844 = vlaneseq
        %v1845 = vshrl.u32 %v1844, 7
        %v1846 = vsub.s32 %v1843, %v1845
        %v1847 = vrot.slane %v1819, %v1846
        %v1848 = vcombine.high %v1826, %v1826
        %v1849 = vcombine.high %v1833, %v1833
        %v1850 = vcombine.high %v1840, %v1840
        %v1851 = vcombine.high %v1847, %v1847
        %v1852 = vcombine.low %v642, %v644
        %v1853 = vcombine.high %v642, %v644
        %v1855 = vunpack.c.l.s4 1966171168
        %v1856 = vunpack.c.0.s8 %v1855
        %v1857 = vlaneseq
        %v1858 = vshrl.u32 %v1857, 7
        %v1859 = vsub.s32 %v1856, %v1858
        %v1860 = vrot.slane %v1852, %v1859
        %v1862 = vunpack.c.l.s4 1966171168
        %v1863 = vunpack.c.0.s8 %v1862
        %v1864 = vlaneseq
        %v1865 = vshrl.u32 %v1864, 7
        %v1866 = vsub.s32 %v1863, %v1865
        %v1867 = vrot.slane %v1853, %v1866
        %v1868 = vcombine.high %v1860, %v1860
        %v1869 = vcombine.high %v1867, %v1867
        %v1871 = vunpack.c.l.s4 1966171168
        %v1872 = vunpack.c.0.s8 %v1871
        %v1873 = vlaneseq
        %v1874 = vshrl.u32 %v1873, 7
        %v1875 = vsub.s32 %v1872, %v1874
        %v1876 = vrot.slane %v1860, %v1875
        %v1878 = vunpack.c.l.s4 1966171168
        %v1879 = vunpack.c.0.s8 %v1878
        %v1880 = vlaneseq
        %v1881 = vshrl.u32 %v1880, 7
        %v1882 = vsub.s32 %v1879, %v1881
        %v1883 = vrot.slane %v1867, %v1882
        %v1885 = vunpack.c.l.s4 1966171168
        %v1886 = vunpack.c.0.s8 %v1885
        %v1887 = vlaneseq
        %v1888 = vshrl.u32 %v1887, 7
        %v1889 = vsub.s32 %v1886, %v1888
        %v1890 = vrot.slane %v1868, %v1889
        %v1892 = vunpack.c.l.s4 1966171168
        %v1893 = vunpack.c.0.s8 %v1892
        %v1894 = vlaneseq
        %v1895 = vshrl.u32 %v1894, 7
        %v1896 = vsub.s32 %v1893, %v1895
        %v1897 = vrot.slane %v1869, %v1896
        %v1898 = vcombine.high %v1876, %v1876
        %v1899 = vcombine.high %v1883, %v1883
        %v1900 = vcombine.high %v1890, %v1890
        %v1901 = vcombine.high %v1897, %v1897
        %v1902 = vcombine.low %v648, %v650
        %v1903 = vcombine.high %v648, %v650
        %v1905 = vunpack.c.l.s4 1966171168
        %v1906 = vunpack.c.0.s8 %v1905
        %v1907 = vlaneseq
        %v1908 = vshrl.u32 %v1907, 7
        %v1909 = vsub.s32 %v1906, %v1908
        %v1910 = vrot.slane %v1902, %v1909
        %v1912 = vunpack.c.l.s4 1966171168
        %v1913 = vunpack.c.0.s8 %v1912
        %v1914 = vlaneseq
        %v1915 = vshrl.u32 %v1914, 7
        %v1916 = vsub.s32 %v1913, %v1915
        %v1917 = vrot.slane %v1903, %v1916
        %v1918 = vcombine.high %v1910, %v1910
        %v1919 = vcombine.high %v1917, %v1917
        %v1921 = vunpack.c.l.s4 1966171168
        %v1922 = vunpack.c.0.s8 %v1921
        %v1923 = vlaneseq
        %v1924 = vshrl.u32 %v1923, 7
        %v1925 = vsub.s32 %v1922, %v1924
        %v1926 = vrot.slane %v1910, %v1925
        %v1928 = vunpack.c.l.s4 1966171168
        %v1929 = vunpack.c.0.s8 %v1928
        %v1930 = vlaneseq
        %v1931 = vshrl.u32 %v1930, 7
        %v1932 = vsub.s32 %v1929, %v1931
        %v1933 = vrot.slane %v1917, %v1932
        %v1935 = vunpack.c.l.s4 1966171168
        %v1936 = vunpack.c.0.s8 %v1935
        %v1937 = vlaneseq
        %v1938 = vshrl.u32 %v1937, 7
        %v1939 = vsub.s32 %v1936, %v1938
        %v1940 = vrot.slane %v1918, %v1939
        %v1942 = vunpack.c.l.s4 1966171168
        %v1943 = vunpack.c.0.s8 %v1942
        %v1944 = vlaneseq
        %v1945 = vshrl.u32 %v1944, 7
        %v1946 = vsub.s32 %v1943, %v1945
        %v1947 = vrot.slane %v1919, %v1946
        %v1948 = vcombine.high %v1926, %v1926
        %v1949 = vcombine.high %v1933, %v1933
        %v1950 = vcombine.high %v1940, %v1940
        %v1951 = vcombine.high %v1947, %v1947
        %v1952 = vcombine.low %v654, %v656
        %v1953 = vcombine.high %v654, %v656
        %v1955 = vunpack.c.l.s4 1966171168
        %v1956 = vunpack.c.0.s8 %v1955
        %v1957 = vlaneseq
        %v1958 = vshrl.u32 %v1957, 7
        %v1959 = vsub.s32 %v1956, %v1958
        %v1960 = vrot.slane %v1952, %v1959
        %v1962 = vunpack.c.l.s4 1966171168
        %v1963 = vunpack.c.0.s8 %v1962
        %v1964 = vlaneseq
        %v1965 = vshrl.u32 %v1964, 7
        %v1966 = vsub.s32 %v1963, %v1965
        %v1967 = vrot.slane %v1953, %v1966
        %v1968 = vcombine.high %v1960, %v1960
        %v1969 = vcombine.high %v1967, %v1967
        %v1971 = vunpack.c.l.s4 1966171168
        %v1972 = vunpack.c.0.s8 %v1971
        %v1973 = vlaneseq
        %v1974 = vshrl.u32 %v1973, 7
        %v1975 = vsub.s32 %v1972, %v1974
        %v1976 = vrot.slane %v1960, %v1975
        %v1978 = vunpack.c.l.s4 1966171168
        %v1979 = vunpack.c.0.s8 %v1978
        %v1980 = vlaneseq
        %v1981 = vshrl.u32 %v1980, 7
        %v1982 = vsub.s32 %v1979, %v1981
        %v1983 = vrot.slane %v1967, %v1982
        %v1985 = vunpack.c.l.s4 1966171168
        %v1986 = vunpack.c.0.s8 %v1985
        %v1987 = vlaneseq
        %v1988 = vshrl.u32 %v1987, 7
        %v1989 = vsub.s32 %v1986, %v1988
        %v1990 = vrot.slane %v1968, %v1989
        %v1992 = vunpack.c.l.s4 1966171168
        %v1993 = vunpack.c.0.s8 %v1992
        %v1994 = vlaneseq
        %v1995 = vshrl.u32 %v1994, 7
        %v1996 = vsub.s32 %v1993, %v1995
        %v1997 = vrot.slane %v1969, %v1996
        %v1998 = vcombine.high %v1976, %v1976
        %v1999 = vcombine.high %v1983, %v1983
        %v2000 = vcombine.high %v1990, %v1990
        %v2001 = vcombine.high %v1997, %v1997
        %v2002 = vcombine.low %v660, %v662
        %v2003 = vcombine.high %v660, %v662
        %v2005 = vunpack.c.l.s4 1966171168
        %v2006 = vunpack.c.0.s8 %v2005
        %v2007 = vlaneseq
        %v2008 = vshrl.u32 %v2007, 7
        %v2009 = vsub.s32 %v2006, %v2008
        %v2010 = vrot.slane %v2002, %v2009
        %v2012 = vunpack.c.l.s4 1966171168
        %v2013 = vunpack.c.0.s8 %v2012
        %v2014 = vlaneseq
        %v2015 = vshrl.u32 %v2014, 7
        %v2016 = vsub.s32 %v2013, %v2015
        %v2017 = vrot.slane %v2003, %v2016
        %v2018 = vcombine.high %v2010, %v2010
        %v2019 = vcombine.high %v2017, %v2017
        %v2021 = vunpack.c.l.s4 1966171168
        %v2022 = vunpack.c.0.s8 %v2021
        %v2023 = vlaneseq
        %v2024 = vshrl.u32 %v2023, 7
        %v2025 = vsub.s32 %v2022, %v2024
        %v2026 = vrot.slane %v2010, %v2025
        %v2028 = vunpack.c.l.s4 1966171168
        %v2029 = vunpack.c.0.s8 %v2028
        %v2030 = vlaneseq
        %v2031 = vshrl.u32 %v2030, 7
        %v2032 = vsub.s32 %v2029, %v2031
        %v2033 = vrot.slane %v2017, %v2032
        %v2035 = vunpack.c.l.s4 1966171168
        %v2036 = vunpack.c.0.s8 %v2035
        %v2037 = vlaneseq
        %v2038 = vshrl.u32 %v2037, 7
        %v2039 = vsub.s32 %v2036, %v2038
        %v2040 = vrot.slane %v2018, %v2039
        %v2042 = vunpack.c.l.s4 1966171168
        %v2043 = vunpack.c.0.s8 %v2042
        %v2044 = vlaneseq
        %v2045 = vshrl.u32 %v2044, 7
        %v2046 = vsub.s32 %v2043, %v2045
        %v2047 = vrot.slane %v2019, %v2046
        %v2048 = vcombine.high %v2026, %v2026
        %v2049 = vcombine.high %v2033, %v2033
        %v2050 = vcombine.high %v2040, %v2040
        %v2051 = vcombine.high %v2047, %v2047
        %v2052 = vcombine.low %v666, %v668
        %v2053 = vcombine.high %v666, %v668
        %v2055 = vunpack.c.l.s4 1966171168
        %v2056 = vunpack.c.0.s8 %v2055
        %v2057 = vlaneseq
        %v2058 = vshrl.u32 %v2057, 7
        %v2059 = vsub.s32 %v2056, %v2058
        %v2060 = vrot.slane %v2052, %v2059
        %v2062 = vunpack.c.l.s4 1966171168
        %v2063 = vunpack.c.0.s8 %v2062
        %v2064 = vlaneseq
        %v2065 = vshrl.u32 %v2064, 7
        %v2066 = vsub.s32 %v2063, %v2065
        %v2067 = vrot.slane %v2053, %v2066
        %v2068 = vcombine.high %v2060, %v2060
        %v2069 = vcombine.high %v2067, %v2067
        %v2071 = vunpack.c.l.s4 1966171168
        %v2072 = vunpack.c.0.s8 %v2071
        %v2073 = vlaneseq
        %v2074 = vshrl.u32 %v2073, 7
        %v2075 = vsub.s32 %v2072, %v2074
        %v2076 = vrot.slane %v2060, %v2075
        %v2078 = vunpack.c.l.s4 1966171168
        %v2079 = vunpack.c.0.s8 %v2078
        %v2080 = vlaneseq
        %v2081 = vshrl.u32 %v2080, 7
        %v2082 = vsub.s32 %v2079, %v2081
        %v2083 = vrot.slane %v2067, %v2082
        %v2085 = vunpack.c.l.s4 1966171168
        %v2086 = vunpack.c.0.s8 %v2085
        %v2087 = vlaneseq
        %v2088 = vshrl.u32 %v2087, 7
        %v2089 = vsub.s32 %v2086, %v2088
        %v2090 = vrot.slane %v2068, %v2089
        %v2092 = vunpack.c.l.s4 1966171168
        %v2093 = vunpack.c.0.s8 %v2092
        %v2094 = vlaneseq
        %v2095 = vshrl.u32 %v2094, 7
        %v2096 = vsub.s32 %v2093, %v2095
        %v2097 = vrot.slane %v2069, %v2096
        %v2098 = vcombine.high %v2076, %v2076
        %v2099 = vcombine.high %v2083, %v2083
        %v2100 = vcombine.high %v2090, %v2090
        %v2101 = vcombine.high %v2097, %v2097
        %v2102 = vcombine.low %v672, %v674
        %v2103 = vcombine.high %v672, %v674
        %v2105 = vunpack.c.l.s4 1966171168
        %v2106 = vunpack.c.0.s8 %v2105
        %v2107 = vlaneseq
        %v2108 = vshrl.u32 %v2107, 7
        %v2109 = vsub.s32 %v2106, %v2108
        %v2110 = vrot.slane %v2102, %v2109
        %v2112 = vunpack.c.l.s4 1966171168
        %v2113 = vunpack.c.0.s8 %v2112
        %v2114 = vlaneseq
        %v2115 = vshrl.u32 %v2114, 7
        %v2116 = vsub.s32 %v2113, %v2115
        %v2117 = vrot.slane %v2103, %v2116
        %v2118 = vcombine.high %v2110, %v2110
        %v2119 = vcombine.high %v2117, %v2117
        %v2121 = vunpack.c.l.s4 1966171168
        %v2122 = vunpack.c.0.s8 %v2121
        %v2123 = vlaneseq
        %v2124 = vshrl.u32 %v2123, 7
        %v2125 = vsub.s32 %v2122, %v2124
        %v2126 = vrot.slane %v2110, %v2125
        %v2128 = vunpack.c.l.s4 1966171168
        %v2129 = vunpack.c.0.s8 %v2128
        %v2130 = vlaneseq
        %v2131 = vshrl.u32 %v2130, 7
        %v2132 = vsub.s32 %v2129, %v2131
        %v2133 = vrot.slane %v2117, %v2132
        %v2135 = vunpack.c.l.s4 1966171168
        %v2136 = vunpack.c.0.s8 %v2135
        %v2137 = vlaneseq
        %v2138 = vshrl.u32 %v2137, 7
        %v2139 = vsub.s32 %v2136, %v2138
        %v2140 = vrot.slane %v2118, %v2139
        %v2142 = vunpack.c.l.s4 1966171168
        %v2143 = vunpack.c.0.s8 %v2142
        %v2144 = vlaneseq
        %v2145 = vshrl.u32 %v2144, 7
        %v2146 = vsub.s32 %v2143, %v2145
        %v2147 = vrot.slane %v2119, %v2146
        %v2148 = vcombine.high %v2126, %v2126
        %v2149 = vcombine.high %v2133, %v2133
        %v2150 = vcombine.high %v2140, %v2140
        %v2151 = vcombine.high %v2147, %v2147
        %v2152 = vcombine.low %v678, %v680
        %v2153 = vcombine.high %v678, %v680
        %v2155 = vunpack.c.l.s4 1966171168
        %v2156 = vunpack.c.0.s8 %v2155
        %v2157 = vlaneseq
        %v2158 = vshrl.u32 %v2157, 7
        %v2159 = vsub.s32 %v2156, %v2158
        %v2160 = vrot.slane %v2152, %v2159
        %v2162 = vunpack.c.l.s4 1966171168
        %v2163 = vunpack.c.0.s8 %v2162
        %v2164 = vlaneseq
        %v2165 = vshrl.u32 %v2164, 7
        %v2166 = vsub.s32 %v2163, %v2165
        %v2167 = vrot.slane %v2153, %v2166
        %v2168 = vcombine.high %v2160, %v2160
        %v2169 = vcombine.high %v2167, %v2167
        %v2171 = vunpack.c.l.s4 1966171168
        %v2172 = vunpack.c.0.s8 %v2171
        %v2173 = vlaneseq
        %v2174 = vshrl.u32 %v2173, 7
        %v2175 = vsub.s32 %v2172, %v2174
        %v2176 = vrot.slane %v2160, %v2175
        %v2178 = vunpack.c.l.s4 1966171168
        %v2179 = vunpack.c.0.s8 %v2178
        %v2180 = vlaneseq
        %v2181 = vshrl.u32 %v2180, 7
        %v2182 = vsub.s32 %v2179, %v2181
        %v2183 = vrot.slane %v2167, %v2182
        %v2185 = vunpack.c.l.s4 1966171168
        %v2186 = vunpack.c.0.s8 %v2185
        %v2187 = vlaneseq
        %v2188 = vshrl.u32 %v2187, 7
        %v2189 = vsub.s32 %v2186, %v2188
        %v2190 = vrot.slane %v2168, %v2189
        %v2192 = vunpack.c.l.s4 1966171168
        %v2193 = vunpack.c.0.s8 %v2192
        %v2194 = vlaneseq
        %v2195 = vshrl.u32 %v2194, 7
        %v2196 = vsub.s32 %v2193, %v2195
        %v2197 = vrot.slane %v2169, %v2196
        %v2198 = vcombine.high %v2176, %v2176
        %v2199 = vcombine.high %v2183, %v2183
        %v2200 = vcombine.high %v2190, %v2190
        %v2201 = vcombine.high %v2197, %v2197
        %v2202 = vcombine.low %v684, %v686
        %v2203 = vcombine.high %v684, %v686
        %v2205 = vunpack.c.l.s4 1966171168
        %v2206 = vunpack.c.0.s8 %v2205
        %v2207 = vlaneseq
        %v2208 = vshrl.u32 %v2207, 7
        %v2209 = vsub.s32 %v2206, %v2208
        %v2210 = vrot.slane %v2202, %v2209
        %v2212 = vunpack.c.l.s4 1966171168
        %v2213 = vunpack.c.0.s8 %v2212
        %v2214 = vlaneseq
        %v2215 = vshrl.u32 %v2214, 7
        %v2216 = vsub.s32 %v2213, %v2215
        %v2217 = vrot.slane %v2203, %v2216
        %v2218 = vcombine.high %v2210, %v2210
        %v2219 = vcombine.high %v2217, %v2217
        %v2221 = vunpack.c.l.s4 1966171168
        %v2222 = vunpack.c.0.s8 %v2221
        %v2223 = vlaneseq
        %v2224 = vshrl.u32 %v2223, 7
        %v2225 = vsub.s32 %v2222, %v2224
        %v2226 = vrot.slane %v2210, %v2225
        %v2228 = vunpack.c.l.s4 1966171168
        %v2229 = vunpack.c.0.s8 %v2228
        %v2230 = vlaneseq
        %v2231 = vshrl.u32 %v2230, 7
        %v2232 = vsub.s32 %v2229, %v2231
        %v2233 = vrot.slane %v2217, %v2232
        %v2235 = vunpack.c.l.s4 1966171168
        %v2236 = vunpack.c.0.s8 %v2235
        %v2237 = vlaneseq
        %v2238 = vshrl.u32 %v2237, 7
        %v2239 = vsub.s32 %v2236, %v2238
        %v2240 = vrot.slane %v2218, %v2239
        %v2242 = vunpack.c.l.s4 1966171168
        %v2243 = vunpack.c.0.s8 %v2242
        %v2244 = vlaneseq
        %v2245 = vshrl.u32 %v2244, 7
        %v2246 = vsub.s32 %v2243, %v2245
        %v2247 = vrot.slane %v2219, %v2246
        %v2248 = vcombine.high %v2226, %v2226
        %v2249 = vcombine.high %v2233, %v2233
        %v2250 = vcombine.high %v2240, %v2240
        %v2251 = vcombine.high %v2247, %v2247
        %v2252 = vcombine.low %v690, %v692
        %v2253 = vcombine.high %v690, %v692
        %v2255 = vunpack.c.l.s4 1966171168
        %v2256 = vunpack.c.0.s8 %v2255
        %v2257 = vlaneseq
        %v2258 = vshrl.u32 %v2257, 7
        %v2259 = vsub.s32 %v2256, %v2258
        %v2260 = vrot.slane %v2252, %v2259
        %v2262 = vunpack.c.l.s4 1966171168
        %v2263 = vunpack.c.0.s8 %v2262
        %v2264 = vlaneseq
        %v2265 = vshrl.u32 %v2264, 7
        %v2266 = vsub.s32 %v2263, %v2265
        %v2267 = vrot.slane %v2253, %v2266
        %v2268 = vcombine.high %v2260, %v2260
        %v2269 = vcombine.high %v2267, %v2267
        %v2271 = vunpack.c.l.s4 1966171168
        %v2272 = vunpack.c.0.s8 %v2271
        %v2273 = vlaneseq
        %v2274 = vshrl.u32 %v2273, 7
        %v2275 = vsub.s32 %v2272, %v2274
        %v2276 = vrot.slane %v2260, %v2275
        %v2278 = vunpack.c.l.s4 1966171168
        %v2279 = vunpack.c.0.s8 %v2278
        %v2280 = vlaneseq
        %v2281 = vshrl.u32 %v2280, 7
        %v2282 = vsub.s32 %v2279, %v2281
        %v2283 = vrot.slane %v2267, %v2282
        %v2285 = vunpack.c.l.s4 1966171168
        %v2286 = vunpack.c.0.s8 %v2285
        %v2287 = vlaneseq
        %v2288 = vshrl.u32 %v2287, 7
        %v2289 = vsub.s32 %v2286, %v2288
        %v2290 = vrot.slane %v2268, %v2289
        %v2292 = vunpack.c.l.s4 1966171168
        %v2293 = vunpack.c.0.s8 %v2292
        %v2294 = vlaneseq
        %v2295 = vshrl.u32 %v2294, 7
        %v2296 = vsub.s32 %v2293, %v2295
        %v2297 = vrot.slane %v2269, %v2296
        %v2298 = vcombine.high %v2276, %v2276
        %v2299 = vcombine.high %v2283, %v2283
        %v2300 = vcombine.high %v2290, %v2290
        %v2301 = vcombine.high %v2297, %v2297
        %v2302 = vcombine.low %v696, %v698
        %v2303 = vcombine.high %v696, %v698
        %v2305 = vunpack.c.l.s4 1966171168
        %v2306 = vunpack.c.0.s8 %v2305
        %v2307 = vlaneseq
        %v2308 = vshrl.u32 %v2307, 7
        %v2309 = vsub.s32 %v2306, %v2308
        %v2310 = vrot.slane %v2302, %v2309
        %v2312 = vunpack.c.l.s4 1966171168
        %v2313 = vunpack.c.0.s8 %v2312
        %v2314 = vlaneseq
        %v2315 = vshrl.u32 %v2314, 7
        %v2316 = vsub.s32 %v2313, %v2315
        %v2317 = vrot.slane %v2303, %v2316
        %v2318 = vcombine.high %v2310, %v2310
        %v2319 = vcombine.high %v2317, %v2317
        %v2321 = vunpack.c.l.s4 1966171168
        %v2322 = vunpack.c.0.s8 %v2321
        %v2323 = vlaneseq
        %v2324 = vshrl.u32 %v2323, 7
        %v2325 = vsub.s32 %v2322, %v2324
        %v2326 = vrot.slane %v2310, %v2325
        %v2328 = vunpack.c.l.s4 1966171168
        %v2329 = vunpack.c.0.s8 %v2328
        %v2330 = vlaneseq
        %v2331 = vshrl.u32 %v2330, 7
        %v2332 = vsub.s32 %v2329, %v2331
        %v2333 = vrot.slane %v2317, %v2332
        %v2335 = vunpack.c.l.s4 1966171168
        %v2336 = vunpack.c.0.s8 %v2335
        %v2337 = vlaneseq
        %v2338 = vshrl.u32 %v2337, 7
        %v2339 = vsub.s32 %v2336, %v2338
        %v2340 = vrot.slane %v2318, %v2339
        %v2342 = vunpack.c.l.s4 1966171168
        %v2343 = vunpack.c.0.s8 %v2342
        %v2344 = vlaneseq
        %v2345 = vshrl.u32 %v2344, 7
        %v2346 = vsub.s32 %v2343, %v2345
        %v2347 = vrot.slane %v2319, %v2346
        %v2348 = vcombine.high %v2326, %v2326
        %v2349 = vcombine.high %v2333, %v2333
        %v2350 = vcombine.high %v2340, %v2340
        %v2351 = vcombine.high %v2347, %v2347
        %v2352 = vcombine.low %v702, %v704
        %v2353 = vcombine.high %v702, %v704
        %v2355 = vunpack.c.l.s4 1966171168
        %v2356 = vunpack.c.0.s8 %v2355
        %v2357 = vlaneseq
        %v2358 = vshrl.u32 %v2357, 7
        %v2359 = vsub.s32 %v2356, %v2358
        %v2360 = vrot.slane %v2352, %v2359
        %v2362 = vunpack.c.l.s4 1966171168
        %v2363 = vunpack.c.0.s8 %v2362
        %v2364 = vlaneseq
        %v2365 = vshrl.u32 %v2364, 7
        %v2366 = vsub.s32 %v2363, %v2365
        %v2367 = vrot.slane %v2353, %v2366
        %v2368 = vcombine.high %v2360, %v2360
        %v2369 = vcombine.high %v2367, %v2367
        %v2371 = vunpack.c.l.s4 1966171168
        %v2372 = vunpack.c.0.s8 %v2371
        %v2373 = vlaneseq
        %v2374 = vshrl.u32 %v2373, 7
        %v2375 = vsub.s32 %v2372, %v2374
        %v2376 = vrot.slane %v2360, %v2375
        %v2378 = vunpack.c.l.s4 1966171168
        %v2379 = vunpack.c.0.s8 %v2378
        %v2380 = vlaneseq
        %v2381 = vshrl.u32 %v2380, 7
        %v2382 = vsub.s32 %v2379, %v2381
        %v2383 = vrot.slane %v2367, %v2382
        %v2385 = vunpack.c.l.s4 1966171168
        %v2386 = vunpack.c.0.s8 %v2385
        %v2387 = vlaneseq
        %v2388 = vshrl.u32 %v2387, 7
        %v2389 = vsub.s32 %v2386, %v2388
        %v2390 = vrot.slane %v2368, %v2389
        %v2392 = vunpack.c.l.s4 1966171168
        %v2393 = vunpack.c.0.s8 %v2392
        %v2394 = vlaneseq
        %v2395 = vshrl.u32 %v2394, 7
        %v2396 = vsub.s32 %v2393, %v2395
        %v2397 = vrot.slane %v2369, %v2396
        %v2398 = vcombine.high %v2376, %v2376
        %v2399 = vcombine.high %v2383, %v2383
        %v2400 = vcombine.high %v2390, %v2390
        %v2401 = vcombine.high %v2397, %v2397
        %v2402 = vcombine.low %v708, %v710
        %v2403 = vcombine.high %v708, %v710
        %v2405 = vunpack.c.l.s4 1966171168
        %v2406 = vunpack.c.0.s8 %v2405
        %v2407 = vlaneseq
        %v2408 = vshrl.u32 %v2407, 7
        %v2409 = vsub.s32 %v2406, %v2408
        %v2410 = vrot.slane %v2402, %v2409
        %v2412 = vunpack.c.l.s4 1966171168
        %v2413 = vunpack.c.0.s8 %v2412
        %v2414 = vlaneseq
        %v2415 = vshrl.u32 %v2414, 7
        %v2416 = vsub.s32 %v2413, %v2415
        %v2417 = vrot.slane %v2403, %v2416
        %v2418 = vcombine.high %v2410, %v2410
        %v2419 = vcombine.high %v2417, %v2417
        %v2421 = vunpack.c.l.s4 1966171168
        %v2422 = vunpack.c.0.s8 %v2421
        %v2423 = vlaneseq
        %v2424 = vshrl.u32 %v2423, 7
        %v2425 = vsub.s32 %v2422, %v2424
        %v2426 = vrot.slane %v2410, %v2425
        %v2428 = vunpack.c.l.s4 1966171168
        %v2429 = vunpack.c.0.s8 %v2428
        %v2430 = vlaneseq
        %v2431 = vshrl.u32 %v2430, 7
        %v2432 = vsub.s32 %v2429, %v2431
        %v2433 = vrot.slane %v2417, %v2432
        %v2435 = vunpack.c.l.s4 1966171168
        %v2436 = vunpack.c.0.s8 %v2435
        %v2437 = vlaneseq
        %v2438 = vshrl.u32 %v2437, 7
        %v2439 = vsub.s32 %v2436, %v2438
        %v2440 = vrot.slane %v2418, %v2439
        %v2442 = vunpack.c.l.s4 1966171168
        %v2443 = vunpack.c.0.s8 %v2442
        %v2444 = vlaneseq
        %v2445 = vshrl.u32 %v2444, 7
        %v2446 = vsub.s32 %v2443, %v2445
        %v2447 = vrot.slane %v2419, %v2446
        %v2448 = vcombine.high %v2426, %v2426
        %v2449 = vcombine.high %v2433, %v2433
        %v2450 = vcombine.high %v2440, %v2440
        %v2451 = vcombine.high %v2447, %v2447
        %v2452 = vcombine.low %v714, %v716
        %v2453 = vcombine.high %v714, %v716
        %v2455 = vunpack.c.l.s4 1966171168
        %v2456 = vunpack.c.0.s8 %v2455
        %v2457 = vlaneseq
        %v2458 = vshrl.u32 %v2457, 7
        %v2459 = vsub.s32 %v2456, %v2458
        %v2460 = vrot.slane %v2452, %v2459
        %v2462 = vunpack.c.l.s4 1966171168
        %v2463 = vunpack.c.0.s8 %v2462
        %v2464 = vlaneseq
        %v2465 = vshrl.u32 %v2464, 7
        %v2466 = vsub.s32 %v2463, %v2465
        %v2467 = vrot.slane %v2453, %v2466
        %v2468 = vcombine.high %v2460, %v2460
        %v2469 = vcombine.high %v2467, %v2467
        %v2471 = vunpack.c.l.s4 1966171168
        %v2472 = vunpack.c.0.s8 %v2471
        %v2473 = vlaneseq
        %v2474 = vshrl.u32 %v2473, 7
        %v2475 = vsub.s32 %v2472, %v2474
        %v2476 = vrot.slane %v2460, %v2475
        %v2478 = vunpack.c.l.s4 1966171168
        %v2479 = vunpack.c.0.s8 %v2478
        %v2480 = vlaneseq
        %v2481 = vshrl.u32 %v2480, 7
        %v2482 = vsub.s32 %v2479, %v2481
        %v2483 = vrot.slane %v2467, %v2482
        %v2485 = vunpack.c.l.s4 1966171168
        %v2486 = vunpack.c.0.s8 %v2485
        %v2487 = vlaneseq
        %v2488 = vshrl.u32 %v2487, 7
        %v2489 = vsub.s32 %v2486, %v2488
        %v2490 = vrot.slane %v2468, %v2489
        %v2492 = vunpack.c.l.s4 1966171168
        %v2493 = vunpack.c.0.s8 %v2492
        %v2494 = vlaneseq
        %v2495 = vshrl.u32 %v2494, 7
        %v2496 = vsub.s32 %v2493, %v2495
        %v2497 = vrot.slane %v2469, %v2496
        %v2498 = vcombine.high %v2476, %v2476
        %v2499 = vcombine.high %v2483, %v2483
        %v2500 = vcombine.high %v2490, %v2490
        %v2501 = vcombine.high %v2497, %v2497
        %v2502 = vcombine.low %v720, %v722
        %v2503 = vcombine.high %v720, %v722
        %v2505 = vunpack.c.l.s4 1966171168
        %v2506 = vunpack.c.0.s8 %v2505
        %v2507 = vlaneseq
        %v2508 = vshrl.u32 %v2507, 7
        %v2509 = vsub.s32 %v2506, %v2508
        %v2510 = vrot.slane %v2502, %v2509
        %v2512 = vunpack.c.l.s4 1966171168
        %v2513 = vunpack.c.0.s8 %v2512
        %v2514 = vlaneseq
        %v2515 = vshrl.u32 %v2514, 7
        %v2516 = vsub.s32 %v2513, %v2515
        %v2517 = vrot.slane %v2503, %v2516
        %v2518 = vcombine.high %v2510, %v2510
        %v2519 = vcombine.high %v2517, %v2517
        %v2521 = vunpack.c.l.s4 1966171168
        %v2522 = vunpack.c.0.s8 %v2521
        %v2523 = vlaneseq
        %v2524 = vshrl.u32 %v2523, 7
        %v2525 = vsub.s32 %v2522, %v2524
        %v2526 = vrot.slane %v2510, %v2525
        %v2528 = vunpack.c.l.s4 1966171168
        %v2529 = vunpack.c.0.s8 %v2528
        %v2530 = vlaneseq
        %v2531 = vshrl.u32 %v2530, 7
        %v2532 = vsub.s32 %v2529, %v2531
        %v2533 = vrot.slane %v2517, %v2532
        %v2535 = vunpack.c.l.s4 1966171168
        %v2536 = vunpack.c.0.s8 %v2535
        %v2537 = vlaneseq
        %v2538 = vshrl.u32 %v2537, 7
        %v2539 = vsub.s32 %v2536, %v2538
        %v2540 = vrot.slane %v2518, %v2539
        %v2542 = vunpack.c.l.s4 1966171168
        %v2543 = vunpack.c.0.s8 %v2542
        %v2544 = vlaneseq
        %v2545 = vshrl.u32 %v2544, 7
        %v2546 = vsub.s32 %v2543, %v2545
        %v2547 = vrot.slane %v2519, %v2546
        %v2548 = vcombine.high %v2526, %v2526
        %v2549 = vcombine.high %v2533, %v2533
        %v2550 = vcombine.high %v2540, %v2540
        %v2551 = vcombine.high %v2547, %v2547
        %v2552 = vcombine.low %v726, %v728
        %v2553 = vcombine.high %v726, %v728
        %v2555 = vunpack.c.l.s4 1966171168
        %v2556 = vunpack.c.0.s8 %v2555
        %v2557 = vlaneseq
        %v2558 = vshrl.u32 %v2557, 7
        %v2559 = vsub.s32 %v2556, %v2558
        %v2560 = vrot.slane %v2552, %v2559
        %v2562 = vunpack.c.l.s4 1966171168
        %v2563 = vunpack.c.0.s8 %v2562
        %v2564 = vlaneseq
        %v2565 = vshrl.u32 %v2564, 7
        %v2566 = vsub.s32 %v2563, %v2565
        %v2567 = vrot.slane %v2553, %v2566
        %v2568 = vcombine.high %v2560, %v2560
        %v2569 = vcombine.high %v2567, %v2567
        %v2571 = vunpack.c.l.s4 1966171168
        %v2572 = vunpack.c.0.s8 %v2571
        %v2573 = vlaneseq
        %v2574 = vshrl.u32 %v2573, 7
        %v2575 = vsub.s32 %v2572, %v2574
        %v2576 = vrot.slane %v2560, %v2575
        %v2578 = vunpack.c.l.s4 1966171168
        %v2579 = vunpack.c.0.s8 %v2578
        %v2580 = vlaneseq
        %v2581 = vshrl.u32 %v2580, 7
        %v2582 = vsub.s32 %v2579, %v2581
        %v2583 = vrot.slane %v2567, %v2582
        %v2585 = vunpack.c.l.s4 1966171168
        %v2586 = vunpack.c.0.s8 %v2585
        %v2587 = vlaneseq
        %v2588 = vshrl.u32 %v2587, 7
        %v2589 = vsub.s32 %v2586, %v2588
        %v2590 = vrot.slane %v2568, %v2589
        %v2592 = vunpack.c.l.s4 1966171168
        %v2593 = vunpack.c.0.s8 %v2592
        %v2594 = vlaneseq
        %v2595 = vshrl.u32 %v2594, 7
        %v2596 = vsub.s32 %v2593, %v2595
        %v2597 = vrot.slane %v2569, %v2596
        %v2598 = vcombine.high %v2576, %v2576
        %v2599 = vcombine.high %v2583, %v2583
        %v2600 = vcombine.high %v2590, %v2590
        %v2601 = vcombine.high %v2597, %v2597
        %v2602 = vcombine.low %v732, %v734
        %v2603 = vcombine.high %v732, %v734
        %v2605 = vunpack.c.l.s4 1966171168
        %v2606 = vunpack.c.0.s8 %v2605
        %v2607 = vlaneseq
        %v2608 = vshrl.u32 %v2607, 7
        %v2609 = vsub.s32 %v2606, %v2608
        %v2610 = vrot.slane %v2602, %v2609
        %v2612 = vunpack.c.l.s4 1966171168
        %v2613 = vunpack.c.0.s8 %v2612
        %v2614 = vlaneseq
        %v2615 = vshrl.u32 %v2614, 7
        %v2616 = vsub.s32 %v2613, %v2615
        %v2617 = vrot.slane %v2603, %v2616
        %v2618 = vcombine.high %v2610, %v2610
        %v2619 = vcombine.high %v2617, %v2617
        %v2621 = vunpack.c.l.s4 1966171168
        %v2622 = vunpack.c.0.s8 %v2621
        %v2623 = vlaneseq
        %v2624 = vshrl.u32 %v2623, 7
        %v2625 = vsub.s32 %v2622, %v2624
        %v2626 = vrot.slane %v2610, %v2625
        %v2628 = vunpack.c.l.s4 1966171168
        %v2629 = vunpack.c.0.s8 %v2628
        %v2630 = vlaneseq
        %v2631 = vshrl.u32 %v2630, 7
        %v2632 = vsub.s32 %v2629, %v2631
        %v2633 = vrot.slane %v2617, %v2632
        %v2635 = vunpack.c.l.s4 1966171168
        %v2636 = vunpack.c.0.s8 %v2635
        %v2637 = vlaneseq
        %v2638 = vshrl.u32 %v2637, 7
        %v2639 = vsub.s32 %v2636, %v2638
        %v2640 = vrot.slane %v2618, %v2639
        %v2642 = vunpack.c.l.s4 1966171168
        %v2643 = vunpack.c.0.s8 %v2642
        %v2644 = vlaneseq
        %v2645 = vshrl.u32 %v2644, 7
        %v2646 = vsub.s32 %v2643, %v2645
        %v2647 = vrot.slane %v2619, %v2646
        %v2648 = vcombine.high %v2626, %v2626
        %v2649 = vcombine.high %v2633, %v2633
        %v2650 = vcombine.high %v2640, %v2640
        %v2651 = vcombine.high %v2647, %v2647
        %v2652 = vcombine.low %v738, %v740
        %v2653 = vcombine.high %v738, %v740
        %v2655 = vunpack.c.l.s4 1966171168
        %v2656 = vunpack.c.0.s8 %v2655
        %v2657 = vlaneseq
        %v2658 = vshrl.u32 %v2657, 7
        %v2659 = vsub.s32 %v2656, %v2658
        %v2660 = vrot.slane %v2652, %v2659
        %v2662 = vunpack.c.l.s4 1966171168
        %v2663 = vunpack.c.0.s8 %v2662
        %v2664 = vlaneseq
        %v2665 = vshrl.u32 %v2664, 7
        %v2666 = vsub.s32 %v2663, %v2665
        %v2667 = vrot.slane %v2653, %v2666
        %v2668 = vcombine.high %v2660, %v2660
        %v2669 = vcombine.high %v2667, %v2667
        %v2671 = vunpack.c.l.s4 1966171168
        %v2672 = vunpack.c.0.s8 %v2671
        %v2673 = vlaneseq
        %v2674 = vshrl.u32 %v2673, 7
        %v2675 = vsub.s32 %v2672, %v2674
        %v2676 = vrot.slane %v2660, %v2675
        %v2678 = vunpack.c.l.s4 1966171168
        %v2679 = vunpack.c.0.s8 %v2678
        %v2680 = vlaneseq
        %v2681 = vshrl.u32 %v2680, 7
        %v2682 = vsub.s32 %v2679, %v2681
        %v2683 = vrot.slane %v2667, %v2682
        %v2685 = vunpack.c.l.s4 1966171168
        %v2686 = vunpack.c.0.s8 %v2685
        %v2687 = vlaneseq
        %v2688 = vshrl.u32 %v2687, 7
        %v2689 = vsub.s32 %v2686, %v2688
        %v2690 = vrot.slane %v2668, %v2689
        %v2692 = vunpack.c.l.s4 1966171168
        %v2693 = vunpack.c.0.s8 %v2692
        %v2694 = vlaneseq
        %v2695 = vshrl.u32 %v2694, 7
        %v2696 = vsub.s32 %v2693, %v2695
        %v2697 = vrot.slane %v2669, %v2696
        %v2698 = vcombine.high %v2676, %v2676
        %v2699 = vcombine.high %v2683, %v2683
        %v2700 = vcombine.high %v2690, %v2690
        %v2701 = vcombine.high %v2697, %v2697
        %v2702 = vcombine.low %v744, %v746
        %v2703 = vcombine.high %v744, %v746
        %v2705 = vunpack.c.l.s4 1966171168
        %v2706 = vunpack.c.0.s8 %v2705
        %v2707 = vlaneseq
        %v2708 = vshrl.u32 %v2707, 7
        %v2709 = vsub.s32 %v2706, %v2708
        %v2710 = vrot.slane %v2702, %v2709
        %v2712 = vunpack.c.l.s4 1966171168
        %v2713 = vunpack.c.0.s8 %v2712
        %v2714 = vlaneseq
        %v2715 = vshrl.u32 %v2714, 7
        %v2716 = vsub.s32 %v2713, %v2715
        %v2717 = vrot.slane %v2703, %v2716
        %v2718 = vcombine.high %v2710, %v2710
        %v2719 = vcombine.high %v2717, %v2717
        %v2721 = vunpack.c.l.s4 1966171168
        %v2722 = vunpack.c.0.s8 %v2721
        %v2723 = vlaneseq
        %v2724 = vshrl.u32 %v2723, 7
        %v2725 = vsub.s32 %v2722, %v2724
        %v2726 = vrot.slane %v2710, %v2725
        %v2728 = vunpack.c.l.s4 1966171168
        %v2729 = vunpack.c.0.s8 %v2728
        %v2730 = vlaneseq
        %v2731 = vshrl.u32 %v2730, 7
        %v2732 = vsub.s32 %v2729, %v2731
        %v2733 = vrot.slane %v2717, %v2732
        %v2735 = vunpack.c.l.s4 1966171168
        %v2736 = vunpack.c.0.s8 %v2735
        %v2737 = vlaneseq
        %v2738 = vshrl.u32 %v2737, 7
        %v2739 = vsub.s32 %v2736, %v2738
        %v2740 = vrot.slane %v2718, %v2739
        %v2742 = vunpack.c.l.s4 1966171168
        %v2743 = vunpack.c.0.s8 %v2742
        %v2744 = vlaneseq
        %v2745 = vshrl.u32 %v2744, 7
        %v2746 = vsub.s32 %v2743, %v2745
        %v2747 = vrot.slane %v2719, %v2746
        %v2748 = vcombine.high %v2726, %v2726
        %v2749 = vcombine.high %v2733, %v2733
        %v2750 = vcombine.high %v2740, %v2740
        %v2751 = vcombine.high %v2747, %v2747
        %v2752 = vcombine.low %v750, %v752
        %v2753 = vcombine.high %v750, %v752
        %v2755 = vunpack.c.l.s4 1966171168
        %v2756 = vunpack.c.0.s8 %v2755
        %v2757 = vlaneseq
        %v2758 = vshrl.u32 %v2757, 7
        %v2759 = vsub.s32 %v2756, %v2758
        %v2760 = vrot.slane %v2752, %v2759
        %v2762 = vunpack.c.l.s4 1966171168
        %v2763 = vunpack.c.0.s8 %v2762
        %v2764 = vlaneseq
        %v2765 = vshrl.u32 %v2764, 7
        %v2766 = vsub.s32 %v2763, %v2765
        %v2767 = vrot.slane %v2753, %v2766
        %v2768 = vcombine.high %v2760, %v2760
        %v2769 = vcombine.high %v2767, %v2767
        %v2771 = vunpack.c.l.s4 1966171168
        %v2772 = vunpack.c.0.s8 %v2771
        %v2773 = vlaneseq
        %v2774 = vshrl.u32 %v2773, 7
        %v2775 = vsub.s32 %v2772, %v2774
        %v2776 = vrot.slane %v2760, %v2775
        %v2778 = vunpack.c.l.s4 1966171168
        %v2779 = vunpack.c.0.s8 %v2778
        %v2780 = vlaneseq
        %v2781 = vshrl.u32 %v2780, 7
        %v2782 = vsub.s32 %v2779, %v2781
        %v2783 = vrot.slane %v2767, %v2782
        %v2785 = vunpack.c.l.s4 1966171168
        %v2786 = vunpack.c.0.s8 %v2785
        %v2787 = vlaneseq
        %v2788 = vshrl.u32 %v2787, 7
        %v2789 = vsub.s32 %v2786, %v2788
        %v2790 = vrot.slane %v2768, %v2789
        %v2792 = vunpack.c.l.s4 1966171168
        %v2793 = vunpack.c.0.s8 %v2792
        %v2794 = vlaneseq
        %v2795 = vshrl.u32 %v2794, 7
        %v2796 = vsub.s32 %v2793, %v2795
        %v2797 = vrot.slane %v2769, %v2796
        %v2798 = vcombine.high %v2776, %v2776
        %v2799 = vcombine.high %v2783, %v2783
        %v2800 = vcombine.high %v2790, %v2790
        %v2801 = vcombine.high %v2797, %v2797
        %v2802 = vlaneseq
        %v2803 = vshrl.u32 %v2802, 7
        %v2804 = vsub.s32 0, %v2803
        %v2805 = vrot.slane %v1226, %v2804
        %v2806 = vlaneseq
        %v2807 = vshrl.u32 %v2806, 7
        %v2808 = vsub.s32 1, %v2807
        %v2809 = vrot.slane %v1226, %v2808
        %v2810 = vlaneseq
        %v2811 = vshrl.u32 %v2810, 7
        %v2812 = vsub.s32 0, %v2811
        %v2813 = vrot.slane %v1240, %v2812
        %v2814 = vlaneseq
        %v2815 = vshrl.u32 %v2814, 7
        %v2816 = vsub.s32 1, %v2815
        %v2817 = vrot.slane %v1240, %v2816
        %v2818 = vlaneseq
        %v2819 = vshrl.u32 %v2818, 7
        %v2820 = vsub.s32 0, %v2819
        %v2821 = vrot.slane %v1248, %v2820
        %v2822 = vlaneseq
        %v2823 = vshrl.u32 %v2822, 7
        %v2824 = vsub.s32 1, %v2823
        %v2825 = vrot.slane %v1248, %v2824
        %v2826 = vlaneseq
        %v2827 = vshrl.u32 %v2826, 7
        %v2828 = vsub.s32 0, %v2827
        %v2829 = vrot.slane %v1250, %v2828
        %v2830 = vlaneseq
        %v2831 = vshrl.u32 %v2830, 7
        %v2832 = vsub.s32 1, %v2831
        %v2833 = vrot.slane %v1250, %v2832
        %v2834 = vlaneseq
        %v2835 = vshrl.u32 %v2834, 7
        %v2836 = vsub.s32 0, %v2835
        %v2837 = vrot.slane %v1233, %v2836
        %v2838 = vlaneseq
        %v2839 = vshrl.u32 %v2838, 7
        %v2840 = vsub.s32 1, %v2839
        %v2841 = vrot.slane %v1233, %v2840
        %v2842 = vlaneseq
        %v2843 = vshrl.u32 %v2842, 7
        %v2844 = vsub.s32 0, %v2843
        %v2845 = vrot.slane %v1247, %v2844
        %v2846 = vlaneseq
        %v2847 = vshrl.u32 %v2846, 7
        %v2848 = vsub.s32 1, %v2847
        %v2849 = vrot.slane %v1247, %v2848
        %v2850 = vlaneseq
        %v2851 = vshrl.u32 %v2850, 7
        %v2852 = vsub.s32 0, %v2851
        %v2853 = vrot.slane %v1249, %v2852
        %v2854 = vlaneseq
        %v2855 = vshrl.u32 %v2854, 7
        %v2856 = vsub.s32 1, %v2855
        %v2857 = vrot.slane %v1249, %v2856
        %v2858 = vlaneseq
        %v2859 = vshrl.u32 %v2858, 7
        %v2860 = vsub.s32 0, %v2859
        %v2861 = vrot.slane %v1251, %v2860
        %v2862 = vlaneseq
        %v2863 = vshrl.u32 %v2862, 7
        %v2864 = vsub.s32 1, %v2863
        %v2865 = vrot.slane %v1251, %v2864
        %v2866 = vlaneseq
        %v2867 = vshrl.u32 %v2866, 7
        %v2868 = vsub.s32 0, %v2867
        %v2869 = vrot.slane %v1276, %v2868
        %v2870 = vlaneseq
        %v2871 = vshrl.u32 %v2870, 7
        %v2872 = vsub.s32 1, %v2871
        %v2873 = vrot.slane %v1276, %v2872
        %v2874 = vlaneseq
        %v2875 = vshrl.u32 %v2874, 7
        %v2876 = vsub.s32 0, %v2875
        %v2877 = vrot.slane %v1290, %v2876
        %v2878 = vlaneseq
        %v2879 = vshrl.u32 %v2878, 7
        %v2880 = vsub.s32 1, %v2879
        %v2881 = vrot.slane %v1290, %v2880
        %v2882 = vlaneseq
        %v2883 = vshrl.u32 %v2882, 7
        %v2884 = vsub.s32 0, %v2883
        %v2885 = vrot.slane %v1298, %v2884
        %v2886 = vlaneseq
        %v2887 = vshrl.u32 %v2886, 7
        %v2888 = vsub.s32 1, %v2887
        %v2889 = vrot.slane %v1298, %v2888
        %v2890 = vlaneseq
        %v2891 = vshrl.u32 %v2890, 7
        %v2892 = vsub.s32 0, %v2891
        %v2893 = vrot.slane %v1300, %v2892
        %v2894 = vlaneseq
        %v2895 = vshrl.u32 %v2894, 7
        %v2896 = vsub.s32 1, %v2895
        %v2897 = vrot.slane %v1300, %v2896
        %v2898 = vlaneseq
        %v2899 = vshrl.u32 %v2898, 7
        %v2900 = vsub.s32 0, %v2899
        %v2901 = vrot.slane %v1283, %v2900
        %v2902 = vlaneseq
        %v2903 = vshrl.u32 %v2902, 7
        %v2904 = vsub.s32 1, %v2903
        %v2905 = vrot.slane %v1283, %v2904
        %v2906 = vlaneseq
        %v2907 = vshrl.u32 %v2906, 7
        %v2908 = vsub.s32 0, %v2907
        %v2909 = vrot.slane %v1297, %v2908
        %v2910 = vlaneseq
        %v2911 = vshrl.u32 %v2910, 7
        %v2912 = vsub.s32 1, %v2911
        %v2913 = vrot.slane %v1297, %v2912
        %v2914 = vlaneseq
        %v2915 = vshrl.u32 %v2914, 7
        %v2916 = vsub.s32 0, %v2915
        %v2917 = vrot.slane %v1299, %v2916
        %v2918 = vlaneseq
        %v2919 = vshrl.u32 %v2918, 7
        %v2920 = vsub.s32 1, %v2919
        %v2921 = vrot.slane %v1299, %v2920
        %v2922 = vlaneseq
        %v2923 = vshrl.u32 %v2922, 7
        %v2924 = vsub.s32 0, %v2923
        %v2925 = vrot.slane %v1301, %v2924
        %v2926 = vlaneseq
        %v2927 = vshrl.u32 %v2926, 7
        %v2928 = vsub.s32 1, %v2927
        %v2929 = vrot.slane %v1301, %v2928
        %v2930 = vlaneseq
        %v2931 = vshrl.u32 %v2930, 7
        %v2932 = vsub.s32 0, %v2931
        %v2933 = vrot.slane %v1326, %v2932
        %v2934 = vlaneseq
        %v2935 = vshrl.u32 %v2934, 7
        %v2936 = vsub.s32 1, %v2935
        %v2937 = vrot.slane %v1326, %v2936
        %v2938 = vlaneseq
        %v2939 = vshrl.u32 %v2938, 7
        %v2940 = vsub.s32 0, %v2939
        %v2941 = vrot.slane %v1340, %v2940
        %v2942 = vlaneseq
        %v2943 = vshrl.u32 %v2942, 7
        %v2944 = vsub.s32 1, %v2943
        %v2945 = vrot.slane %v1340, %v2944
        %v2946 = vlaneseq
        %v2947 = vshrl.u32 %v2946, 7
        %v2948 = vsub.s32 0, %v2947
        %v2949 = vrot.slane %v1348, %v2948
        %v2950 = vlaneseq
        %v2951 = vshrl.u32 %v2950, 7
        %v2952 = vsub.s32 1, %v2951
        %v2953 = vrot.slane %v1348, %v2952
        %v2954 = vlaneseq
        %v2955 = vshrl.u32 %v2954, 7
        %v2956 = vsub.s32 0, %v2955
        %v2957 = vrot.slane %v1350, %v2956
        %v2958 = vlaneseq
        %v2959 = vshrl.u32 %v2958, 7
        %v2960 = vsub.s32 1, %v2959
        %v2961 = vrot.slane %v1350, %v2960
        %v2962 = vlaneseq
        %v2963 = vshrl.u32 %v2962, 7
        %v2964 = vsub.s32 0, %v2963
        %v2965 = vrot.slane %v1333, %v2964
        %v2966 = vlaneseq
        %v2967 = vshrl.u32 %v2966, 7
        %v2968 = vsub.s32 1, %v2967
        %v2969 = vrot.slane %v1333, %v2968
        %v2970 = vlaneseq
        %v2971 = vshrl.u32 %v2970, 7
        %v2972 = vsub.s32 0, %v2971
        %v2973 = vrot.slane %v1347, %v2972
        %v2974 = vlaneseq
        %v2975 = vshrl.u32 %v2974, 7
        %v2976 = vsub.s32 1, %v2975
        %v2977 = vrot.slane %v1347, %v2976
        %v2978 = vlaneseq
        %v2979 = vshrl.u32 %v2978, 7
        %v2980 = vsub.s32 0, %v2979
        %v2981 = vrot.slane %v1349, %v2980
        %v2982 = vlaneseq
        %v2983 = vshrl.u32 %v2982, 7
        %v2984 = vsub.s32 1, %v2983
        %v2985 = vrot.slane %v1349, %v2984
        %v2986 = vlaneseq
        %v2987 = vshrl.u32 %v2986, 7
        %v2988 = vsub.s32 0, %v2987
        %v2989 = vrot.slane %v1351, %v2988
        %v2990 = vlaneseq
        %v2991 = vshrl.u32 %v2990, 7
        %v2992 = vsub.s32 1, %v2991
        %v2993 = vrot.slane %v1351, %v2992
        %v2994 = vlaneseq
        %v2995 = vshrl.u32 %v2994, 7
        %v2996 = vsub.s32 0, %v2995
        %v2997 = vrot.slane %v1376, %v2996
        %v2998 = vlaneseq
        %v2999 = vshrl.u32 %v2998, 7
        %v3000 = vsub.s32 1, %v2999
        %v3001 = vrot.slane %v1376, %v3000
        %v3002 = vlaneseq
        %v3003 = vshrl.u32 %v3002, 7
        %v3004 = vsub.s32 0, %v3003
        %v3005 = vrot.slane %v1390, %v3004
        %v3006 = vlaneseq
        %v3007 = vshrl.u32 %v3006, 7
        %v3008 = vsub.s32 1, %v3007
        %v3009 = vrot.slane %v1390, %v3008
        %v3010 = vlaneseq
        %v3011 = vshrl.u32 %v3010, 7
        %v3012 = vsub.s32 0, %v3011
        %v3013 = vrot.slane %v1398, %v3012
        %v3014 = vlaneseq
        %v3015 = vshrl.u32 %v3014, 7
        %v3016 = vsub.s32 1, %v3015
        %v3017 = vrot.slane %v1398, %v3016
        %v3018 = vlaneseq
        %v3019 = vshrl.u32 %v3018, 7
        %v3020 = vsub.s32 0, %v3019
        %v3021 = vrot.slane %v1400, %v3020
        %v3022 = vlaneseq
        %v3023 = vshrl.u32 %v3022, 7
        %v3024 = vsub.s32 1, %v3023
        %v3025 = vrot.slane %v1400, %v3024
        %v3026 = vlaneseq
        %v3027 = vshrl.u32 %v3026, 7
        %v3028 = vsub.s32 0, %v3027
        %v3029 = vrot.slane %v1383, %v3028
        %v3030 = vlaneseq
        %v3031 = vshrl.u32 %v3030, 7
        %v3032 = vsub.s32 1, %v3031
        %v3033 = vrot.slane %v1383, %v3032
        %v3034 = vlaneseq
        %v3035 = vshrl.u32 %v3034, 7
        %v3036 = vsub.s32 0, %v3035
        %v3037 = vrot.slane %v1397, %v3036
        %v3038 = vlaneseq
        %v3039 = vshrl.u32 %v3038, 7
        %v3040 = vsub.s32 1, %v3039
        %v3041 = vrot.slane %v1397, %v3040
        %v3042 = vlaneseq
        %v3043 = vshrl.u32 %v3042, 7
        %v3044 = vsub.s32 0, %v3043
        %v3045 = vrot.slane %v1399, %v3044
        %v3046 = vlaneseq
        %v3047 = vshrl.u32 %v3046, 7
        %v3048 = vsub.s32 1, %v3047
        %v3049 = vrot.slane %v1399, %v3048
        %v3050 = vlaneseq
        %v3051 = vshrl.u32 %v3050, 7
        %v3052 = vsub.s32 0, %v3051
        %v3053 = vrot.slane %v1401, %v3052
        %v3054 = vlaneseq
        %v3055 = vshrl.u32 %v3054, 7
        %v3056 = vsub.s32 1, %v3055
        %v3057 = vrot.slane %v1401, %v3056
        %v3058 = vlaneseq
        %v3059 = vshrl.u32 %v3058, 7
        %v3060 = vsub.s32 0, %v3059
        %v3061 = vrot.slane %v1426, %v3060
        %v3062 = vlaneseq
        %v3063 = vshrl.u32 %v3062, 7
        %v3064 = vsub.s32 1, %v3063
        %v3065 = vrot.slane %v1426, %v3064
        %v3066 = vlaneseq
        %v3067 = vshrl.u32 %v3066, 7
        %v3068 = vsub.s32 0, %v3067
        %v3069 = vrot.slane %v1440, %v3068
        %v3070 = vlaneseq
        %v3071 = vshrl.u32 %v3070, 7
        %v3072 = vsub.s32 1, %v3071
        %v3073 = vrot.slane %v1440, %v3072
        %v3074 = vlaneseq
        %v3075 = vshrl.u32 %v3074, 7
        %v3076 = vsub.s32 0, %v3075
        %v3077 = vrot.slane %v1448, %v3076
        %v3078 = vlaneseq
        %v3079 = vshrl.u32 %v3078, 7
        %v3080 = vsub.s32 1, %v3079
        %v3081 = vrot.slane %v1448, %v3080
        %v3082 = vlaneseq
        %v3083 = vshrl.u32 %v3082, 7
        %v3084 = vsub.s32 0, %v3083
        %v3085 = vrot.slane %v1450, %v3084
        %v3086 = vlaneseq
        %v3087 = vshrl.u32 %v3086, 7
        %v3088 = vsub.s32 1, %v3087
        %v3089 = vrot.slane %v1450, %v3088
        %v3090 = vlaneseq
        %v3091 = vshrl.u32 %v3090, 7
        %v3092 = vsub.s32 0, %v3091
        %v3093 = vrot.slane %v1433, %v3092
        %v3094 = vlaneseq
        %v3095 = vshrl.u32 %v3094, 7
        %v3096 = vsub.s32 1, %v3095
        %v3097 = vrot.slane %v1433, %v3096
        %v3098 = vlaneseq
        %v3099 = vshrl.u32 %v3098, 7
        %v3100 = vsub.s32 0, %v3099
        %v3101 = vrot.slane %v1447, %v3100
        %v3102 = vlaneseq
        %v3103 = vshrl.u32 %v3102, 7
        %v3104 = vsub.s32 1, %v3103
        %v3105 = vrot.slane %v1447, %v3104
        %v3106 = vlaneseq
        %v3107 = vshrl.u32 %v3106, 7
        %v3108 = vsub.s32 0, %v3107
        %v3109 = vrot.slane %v1449, %v3108
        %v3110 = vlaneseq
        %v3111 = vshrl.u32 %v3110, 7
        %v3112 = vsub.s32 1, %v3111
        %v3113 = vrot.slane %v1449, %v3112
        %v3114 = vlaneseq
        %v3115 = vshrl.u32 %v3114, 7
        %v3116 = vsub.s32 0, %v3115
        %v3117 = vrot.slane %v1451, %v3116
        %v3118 = vlaneseq
        %v3119 = vshrl.u32 %v3118, 7
        %v3120 = vsub.s32 1, %v3119
        %v3121 = vrot.slane %v1451, %v3120
        %v3122 = vlaneseq
        %v3123 = vshrl.u32 %v3122, 7
        %v3124 = vsub.s32 0, %v3123
        %v3125 = vrot.slane %v1476, %v3124
        %v3126 = vlaneseq
        %v3127 = vshrl.u32 %v3126, 7
        %v3128 = vsub.s32 1, %v3127
        %v3129 = vrot.slane %v1476, %v3128
        %v3130 = vlaneseq
        %v3131 = vshrl.u32 %v3130, 7
        %v3132 = vsub.s32 0, %v3131
        %v3133 = vrot.slane %v1490, %v3132
        %v3134 = vlaneseq
        %v3135 = vshrl.u32 %v3134, 7
        %v3136 = vsub.s32 1, %v3135
        %v3137 = vrot.slane %v1490, %v3136
        %v3138 = vlaneseq
        %v3139 = vshrl.u32 %v3138, 7
        %v3140 = vsub.s32 0, %v3139
        %v3141 = vrot.slane %v1498, %v3140
        %v3142 = vlaneseq
        %v3143 = vshrl.u32 %v3142, 7
        %v3144 = vsub.s32 1, %v3143
        %v3145 = vrot.slane %v1498, %v3144
        %v3146 = vlaneseq
        %v3147 = vshrl.u32 %v3146, 7
        %v3148 = vsub.s32 0, %v3147
        %v3149 = vrot.slane %v1500, %v3148
        %v3150 = vlaneseq
        %v3151 = vshrl.u32 %v3150, 7
        %v3152 = vsub.s32 1, %v3151
        %v3153 = vrot.slane %v1500, %v3152
        %v3154 = vlaneseq
        %v3155 = vshrl.u32 %v3154, 7
        %v3156 = vsub.s32 0, %v3155
        %v3157 = vrot.slane %v1483, %v3156
        %v3158 = vlaneseq
        %v3159 = vshrl.u32 %v3158, 7
        %v3160 = vsub.s32 1, %v3159
        %v3161 = vrot.slane %v1483, %v3160
        %v3162 = vlaneseq
        %v3163 = vshrl.u32 %v3162, 7
        %v3164 = vsub.s32 0, %v3163
        %v3165 = vrot.slane %v1497, %v3164
        %v3166 = vlaneseq
        %v3167 = vshrl.u32 %v3166, 7
        %v3168 = vsub.s32 1, %v3167
        %v3169 = vrot.slane %v1497, %v3168
        %v3170 = vlaneseq
        %v3171 = vshrl.u32 %v3170, 7
        %v3172 = vsub.s32 0, %v3171
        %v3173 = vrot.slane %v1499, %v3172
        %v3174 = vlaneseq
        %v3175 = vshrl.u32 %v3174, 7
        %v3176 = vsub.s32 1, %v3175
        %v3177 = vrot.slane %v1499, %v3176
        %v3178 = vlaneseq
        %v3179 = vshrl.u32 %v3178, 7
        %v3180 = vsub.s32 0, %v3179
        %v3181 = vrot.slane %v1501, %v3180
        %v3182 = vlaneseq
        %v3183 = vshrl.u32 %v3182, 7
        %v3184 = vsub.s32 1, %v3183
        %v3185 = vrot.slane %v1501, %v3184
        %v3186 = vlaneseq
        %v3187 = vshrl.u32 %v3186, 7
        %v3188 = vsub.s32 0, %v3187
        %v3189 = vrot.slane %v1526, %v3188
        %v3190 = vlaneseq
        %v3191 = vshrl.u32 %v3190, 7
        %v3192 = vsub.s32 1, %v3191
        %v3193 = vrot.slane %v1526, %v3192
        %v3194 = vlaneseq
        %v3195 = vshrl.u32 %v3194, 7
        %v3196 = vsub.s32 0, %v3195
        %v3197 = vrot.slane %v1540, %v3196
        %v3198 = vlaneseq
        %v3199 = vshrl.u32 %v3198, 7
        %v3200 = vsub.s32 1, %v3199
        %v3201 = vrot.slane %v1540, %v3200
        %v3202 = vlaneseq
        %v3203 = vshrl.u32 %v3202, 7
        %v3204 = vsub.s32 0, %v3203
        %v3205 = vrot.slane %v1548, %v3204
        %v3206 = vlaneseq
        %v3207 = vshrl.u32 %v3206, 7
        %v3208 = vsub.s32 1, %v3207
        %v3209 = vrot.slane %v1548, %v3208
        %v3210 = vlaneseq
        %v3211 = vshrl.u32 %v3210, 7
        %v3212 = vsub.s32 0, %v3211
        %v3213 = vrot.slane %v1550, %v3212
        %v3214 = vlaneseq
        %v3215 = vshrl.u32 %v3214, 7
        %v3216 = vsub.s32 1, %v3215
        %v3217 = vrot.slane %v1550, %v3216
        %v3218 = vlaneseq
        %v3219 = vshrl.u32 %v3218, 7
        %v3220 = vsub.s32 0, %v3219
        %v3221 = vrot.slane %v1533, %v3220
        %v3222 = vlaneseq
        %v3223 = vshrl.u32 %v3222, 7
        %v3224 = vsub.s32 1, %v3223
        %v3225 = vrot.slane %v1533, %v3224
        %v3226 = vlaneseq
        %v3227 = vshrl.u32 %v3226, 7
        %v3228 = vsub.s32 0, %v3227
        %v3229 = vrot.slane %v1547, %v3228
        %v3230 = vlaneseq
        %v3231 = vshrl.u32 %v3230, 7
        %v3232 = vsub.s32 1, %v3231
        %v3233 = vrot.slane %v1547, %v3232
        %v3234 = vlaneseq
        %v3235 = vshrl.u32 %v3234, 7
        %v3236 = vsub.s32 0, %v3235
        %v3237 = vrot.slane %v1549, %v3236
        %v3238 = vlaneseq
        %v3239 = vshrl.u32 %v3238, 7
        %v3240 = vsub.s32 1, %v3239
        %v3241 = vrot.slane %v1549, %v3240
        %v3242 = vlaneseq
        %v3243 = vshrl.u32 %v3242, 7
        %v3244 = vsub.s32 0, %v3243
        %v3245 = vrot.slane %v1551, %v3244
        %v3246 = vlaneseq
        %v3247 = vshrl.u32 %v3246, 7
        %v3248 = vsub.s32 1, %v3247
        %v3249 = vrot.slane %v1551, %v3248
        %v3250 = vlaneseq
        %v3251 = vshrl.u32 %v3250, 7
        %v3252 = vsub.s32 0, %v3251
        %v3253 = vrot.slane %v1576, %v3252
        %v3254 = vlaneseq
        %v3255 = vshrl.u32 %v3254, 7
        %v3256 = vsub.s32 1, %v3255
        %v3257 = vrot.slane %v1576, %v3256
        %v3258 = vlaneseq
        %v3259 = vshrl.u32 %v3258, 7
        %v3260 = vsub.s32 0, %v3259
        %v3261 = vrot.slane %v1590, %v3260
        %v3262 = vlaneseq
        %v3263 = vshrl.u32 %v3262, 7
        %v3264 = vsub.s32 1, %v3263
        %v3265 = vrot.slane %v1590, %v3264
        %v3266 = vlaneseq
        %v3267 = vshrl.u32 %v3266, 7
        %v3268 = vsub.s32 0, %v3267
        %v3269 = vrot.slane %v1598, %v3268
        %v3270 = vlaneseq
        %v3271 = vshrl.u32 %v3270, 7
        %v3272 = vsub.s32 1, %v3271
        %v3273 = vrot.slane %v1598, %v3272
        %v3274 = vlaneseq
        %v3275 = vshrl.u32 %v3274, 7
        %v3276 = vsub.s32 0, %v3275
        %v3277 = vrot.slane %v1600, %v3276
        %v3278 = vlaneseq
        %v3279 = vshrl.u32 %v3278, 7
        %v3280 = vsub.s32 1, %v3279
        %v3281 = vrot.slane %v1600, %v3280
        %v3282 = vlaneseq
        %v3283 = vshrl.u32 %v3282, 7
        %v3284 = vsub.s32 0, %v3283
        %v3285 = vrot.slane %v1583, %v3284
        %v3286 = vlaneseq
        %v3287 = vshrl.u32 %v3286, 7
        %v3288 = vsub.s32 1, %v3287
        %v3289 = vrot.slane %v1583, %v3288
        %v3290 = vlaneseq
        %v3291 = vshrl.u32 %v3290, 7
        %v3292 = vsub.s32 0, %v3291
        %v3293 = vrot.slane %v1597, %v3292
        %v3294 = vlaneseq
        %v3295 = vshrl.u32 %v3294, 7
        %v3296 = vsub.s32 1, %v3295
        %v3297 = vrot.slane %v1597, %v3296
        %v3298 = vlaneseq
        %v3299 = vshrl.u32 %v3298, 7
        %v3300 = vsub.s32 0, %v3299
        %v3301 = vrot.slane %v1599, %v3300
        %v3302 = vlaneseq
        %v3303 = vshrl.u32 %v3302, 7
        %v3304 = vsub.s32 1, %v3303
        %v3305 = vrot.slane %v1599, %v3304
        %v3306 = vlaneseq
        %v3307 = vshrl.u32 %v3306, 7
        %v3308 = vsub.s32 0, %v3307
        %v3309 = vrot.slane %v1601, %v3308
        %v3310 = vlaneseq
        %v3311 = vshrl.u32 %v3310, 7
        %v3312 = vsub.s32 1, %v3311
        %v3313 = vrot.slane %v1601, %v3312
        %v3314 = vlaneseq
        %v3315 = vshrl.u32 %v3314, 7
        %v3316 = vsub.s32 0, %v3315
        %v3317 = vrot.slane %v1626, %v3316
        %v3318 = vlaneseq
        %v3319 = vshrl.u32 %v3318, 7
        %v3320 = vsub.s32 1, %v3319
        %v3321 = vrot.slane %v1626, %v3320
        %v3322 = vlaneseq
        %v3323 = vshrl.u32 %v3322, 7
        %v3324 = vsub.s32 0, %v3323
        %v3325 = vrot.slane %v1640, %v3324
        %v3326 = vlaneseq
        %v3327 = vshrl.u32 %v3326, 7
        %v3328 = vsub.s32 1, %v3327
        %v3329 = vrot.slane %v1640, %v3328
        %v3330 = vlaneseq
        %v3331 = vshrl.u32 %v3330, 7
        %v3332 = vsub.s32 0, %v3331
        %v3333 = vrot.slane %v1648, %v3332
        %v3334 = vlaneseq
        %v3335 = vshrl.u32 %v3334, 7
        %v3336 = vsub.s32 1, %v3335
        %v3337 = vrot.slane %v1648, %v3336
        %v3338 = vlaneseq
        %v3339 = vshrl.u32 %v3338, 7
        %v3340 = vsub.s32 0, %v3339
        %v3341 = vrot.slane %v1650, %v3340
        %v3342 = vlaneseq
        %v3343 = vshrl.u32 %v3342, 7
        %v3344 = vsub.s32 1, %v3343
        %v3345 = vrot.slane %v1650, %v3344
        %v3346 = vlaneseq
        %v3347 = vshrl.u32 %v3346, 7
        %v3348 = vsub.s32 0, %v3347
        %v3349 = vrot.slane %v1633, %v3348
        %v3350 = vlaneseq
        %v3351 = vshrl.u32 %v3350, 7
        %v3352 = vsub.s32 1, %v3351
        %v3353 = vrot.slane %v1633, %v3352
        %v3354 = vlaneseq
        %v3355 = vshrl.u32 %v3354, 7
        %v3356 = vsub.s32 0, %v3355
        %v3357 = vrot.slane %v1647, %v3356
        %v3358 = vlaneseq
        %v3359 = vshrl.u32 %v3358, 7
        %v3360 = vsub.s32 1, %v3359
        %v3361 = vrot.slane %v1647, %v3360
        %v3362 = vlaneseq
        %v3363 = vshrl.u32 %v3362, 7
        %v3364 = vsub.s32 0, %v3363
        %v3365 = vrot.slane %v1649, %v3364
        %v3366 = vlaneseq
        %v3367 = vshrl.u32 %v3366, 7
        %v3368 = vsub.s32 1, %v3367
        %v3369 = vrot.slane %v1649, %v3368
        %v3370 = vlaneseq
        %v3371 = vshrl.u32 %v3370, 7
        %v3372 = vsub.s32 0, %v3371
        %v3373 = vrot.slane %v1651, %v3372
        %v3374 = vlaneseq
        %v3375 = vshrl.u32 %v3374, 7
        %v3376 = vsub.s32 1, %v3375
        %v3377 = vrot.slane %v1651, %v3376
        %v3378 = vlaneseq
        %v3379 = vshrl.u32 %v3378, 7
        %v3380 = vsub.s32 0, %v3379
        %v3381 = vrot.slane %v1676, %v3380
        %v3382 = vlaneseq
        %v3383 = vshrl.u32 %v3382, 7
        %v3384 = vsub.s32 1, %v3383
        %v3385 = vrot.slane %v1676, %v3384
        %v3386 = vlaneseq
        %v3387 = vshrl.u32 %v3386, 7
        %v3388 = vsub.s32 0, %v3387
        %v3389 = vrot.slane %v1690, %v3388
        %v3390 = vlaneseq
        %v3391 = vshrl.u32 %v3390, 7
        %v3392 = vsub.s32 1, %v3391
        %v3393 = vrot.slane %v1690, %v3392
        %v3394 = vlaneseq
        %v3395 = vshrl.u32 %v3394, 7
        %v3396 = vsub.s32 0, %v3395
        %v3397 = vrot.slane %v1698, %v3396
        %v3398 = vlaneseq
        %v3399 = vshrl.u32 %v3398, 7
        %v3400 = vsub.s32 1, %v3399
        %v3401 = vrot.slane %v1698, %v3400
        %v3402 = vlaneseq
        %v3403 = vshrl.u32 %v3402, 7
        %v3404 = vsub.s32 0, %v3403
        %v3405 = vrot.slane %v1700, %v3404
        %v3406 = vlaneseq
        %v3407 = vshrl.u32 %v3406, 7
        %v3408 = vsub.s32 1, %v3407
        %v3409 = vrot.slane %v1700, %v3408
        %v3410 = vlaneseq
        %v3411 = vshrl.u32 %v3410, 7
        %v3412 = vsub.s32 0, %v3411
        %v3413 = vrot.slane %v1683, %v3412
        %v3414 = vlaneseq
        %v3415 = vshrl.u32 %v3414, 7
        %v3416 = vsub.s32 1, %v3415
        %v3417 = vrot.slane %v1683, %v3416
        %v3418 = vlaneseq
        %v3419 = vshrl.u32 %v3418, 7
        %v3420 = vsub.s32 0, %v3419
        %v3421 = vrot.slane %v1697, %v3420
        %v3422 = vlaneseq
        %v3423 = vshrl.u32 %v3422, 7
        %v3424 = vsub.s32 1, %v3423
        %v3425 = vrot.slane %v1697, %v3424
        %v3426 = vlaneseq
        %v3427 = vshrl.u32 %v3426, 7
        %v3428 = vsub.s32 0, %v3427
        %v3429 = vrot.slane %v1699, %v3428
        %v3430 = vlaneseq
        %v3431 = vshrl.u32 %v3430, 7
        %v3432 = vsub.s32 1, %v3431
        %v3433 = vrot.slane %v1699, %v3432
        %v3434 = vlaneseq
        %v3435 = vshrl.u32 %v3434, 7
        %v3436 = vsub.s32 0, %v3435
        %v3437 = vrot.slane %v1701, %v3436
        %v3438 = vlaneseq
        %v3439 = vshrl.u32 %v3438, 7
        %v3440 = vsub.s32 1, %v3439
        %v3441 = vrot.slane %v1701, %v3440
        %v3442 = vlaneseq
        %v3443 = vshrl.u32 %v3442, 7
        %v3444 = vsub.s32 0, %v3443
        %v3445 = vrot.slane %v1726, %v3444
        %v3446 = vlaneseq
        %v3447 = vshrl.u32 %v3446, 7
        %v3448 = vsub.s32 1, %v3447
        %v3449 = vrot.slane %v1726, %v3448
        %v3450 = vlaneseq
        %v3451 = vshrl.u32 %v3450, 7
        %v3452 = vsub.s32 0, %v3451
        %v3453 = vrot.slane %v1740, %v3452
        %v3454 = vlaneseq
        %v3455 = vshrl.u32 %v3454, 7
        %v3456 = vsub.s32 1, %v3455
        %v3457 = vrot.slane %v1740, %v3456
        %v3458 = vlaneseq
        %v3459 = vshrl.u32 %v3458, 7
        %v3460 = vsub.s32 0, %v3459
        %v3461 = vrot.slane %v1748, %v3460
        %v3462 = vlaneseq
        %v3463 = vshrl.u32 %v3462, 7
        %v3464 = vsub.s32 1, %v3463
        %v3465 = vrot.slane %v1748, %v3464
        %v3466 = vlaneseq
        %v3467 = vshrl.u32 %v3466, 7
        %v3468 = vsub.s32 0, %v3467
        %v3469 = vrot.slane %v1750, %v3468
        %v3470 = vlaneseq
        %v3471 = vshrl.u32 %v3470, 7
        %v3472 = vsub.s32 1, %v3471
        %v3473 = vrot.slane %v1750, %v3472
        %v3474 = vlaneseq
        %v3475 = vshrl.u32 %v3474, 7
        %v3476 = vsub.s32 0, %v3475
        %v3477 = vrot.slane %v1733, %v3476
        %v3478 = vlaneseq
        %v3479 = vshrl.u32 %v3478, 7
        %v3480 = vsub.s32 1, %v3479
        %v3481 = vrot.slane %v1733, %v3480
        %v3482 = vlaneseq
        %v3483 = vshrl.u32 %v3482, 7
        %v3484 = vsub.s32 0, %v3483
        %v3485 = vrot.slane %v1747, %v3484
        %v3486 = vlaneseq
        %v3487 = vshrl.u32 %v3486, 7
        %v3488 = vsub.s32 1, %v3487
        %v3489 = vrot.slane %v1747, %v3488
        %v3490 = vlaneseq
        %v3491 = vshrl.u32 %v3490, 7
        %v3492 = vsub.s32 0, %v3491
        %v3493 = vrot.slane %v1749, %v3492
        %v3494 = vlaneseq
        %v3495 = vshrl.u32 %v3494, 7
        %v3496 = vsub.s32 1, %v3495
        %v3497 = vrot.slane %v1749, %v3496
        %v3498 = vlaneseq
        %v3499 = vshrl.u32 %v3498, 7
        %v3500 = vsub.s32 0, %v3499
        %v3501 = vrot.slane %v1751, %v3500
        %v3502 = vlaneseq
        %v3503 = vshrl.u32 %v3502, 7
        %v3504 = vsub.s32 1, %v3503
        %v3505 = vrot.slane %v1751, %v3504
        %v3506 = vlaneseq
        %v3507 = vshrl.u32 %v3506, 7
        %v3508 = vsub.s32 0, %v3507
        %v3509 = vrot.slane %v1776, %v3508
        %v3510 = vlaneseq
        %v3511 = vshrl.u32 %v3510, 7
        %v3512 = vsub.s32 1, %v3511
        %v3513 = vrot.slane %v1776, %v3512
        %v3514 = vlaneseq
        %v3515 = vshrl.u32 %v3514, 7
        %v3516 = vsub.s32 0, %v3515
        %v3517 = vrot.slane %v1790, %v3516
        %v3518 = vlaneseq
        %v3519 = vshrl.u32 %v3518, 7
        %v3520 = vsub.s32 1, %v3519
        %v3521 = vrot.slane %v1790, %v3520
        %v3522 = vlaneseq
        %v3523 = vshrl.u32 %v3522, 7
        %v3524 = vsub.s32 0, %v3523
        %v3525 = vrot.slane %v1798, %v3524
        %v3526 = vlaneseq
        %v3527 = vshrl.u32 %v3526, 7
        %v3528 = vsub.s32 1, %v3527
        %v3529 = vrot.slane %v1798, %v3528
        %v3530 = vlaneseq
        %v3531 = vshrl.u32 %v3530, 7
        %v3532 = vsub.s32 0, %v3531
        %v3533 = vrot.slane %v1800, %v3532
        %v3534 = vlaneseq
        %v3535 = vshrl.u32 %v3534, 7
        %v3536 = vsub.s32 1, %v3535
        %v3537 = vrot.slane %v1800, %v3536
        %v3538 = vlaneseq
        %v3539 = vshrl.u32 %v3538, 7
        %v3540 = vsub.s32 0, %v3539
        %v3541 = vrot.slane %v1783, %v3540
        %v3542 = vlaneseq
        %v3543 = vshrl.u32 %v3542, 7
        %v3544 = vsub.s32 1, %v3543
        %v3545 = vrot.slane %v1783, %v3544
        %v3546 = vlaneseq
        %v3547 = vshrl.u32 %v3546, 7
        %v3548 = vsub.s32 0, %v3547
        %v3549 = vrot.slane %v1797, %v3548
        %v3550 = vlaneseq
        %v3551 = vshrl.u32 %v3550, 7
        %v3552 = vsub.s32 1, %v3551
        %v3553 = vrot.slane %v1797, %v3552
        %v3554 = vlaneseq
        %v3555 = vshrl.u32 %v3554, 7
        %v3556 = vsub.s32 0, %v3555
        %v3557 = vrot.slane %v1799, %v3556
        %v3558 = vlaneseq
        %v3559 = vshrl.u32 %v3558, 7
        %v3560 = vsub.s32 1, %v3559
        %v3561 = vrot.slane %v1799, %v3560
        %v3562 = vlaneseq
        %v3563 = vshrl.u32 %v3562, 7
        %v3564 = vsub.s32 0, %v3563
        %v3565 = vrot.slane %v1801, %v3564
        %v3566 = vlaneseq
        %v3567 = vshrl.u32 %v3566, 7
        %v3568 = vsub.s32 1, %v3567
        %v3569 = vrot.slane %v1801, %v3568
        %v3570 = vlaneseq
        %v3571 = vshrl.u32 %v3570, 7
        %v3572 = vsub.s32 0, %v3571
        %v3573 = vrot.slane %v1826, %v3572
        %v3574 = vlaneseq
        %v3575 = vshrl.u32 %v3574, 7
        %v3576 = vsub.s32 1, %v3575
        %v3577 = vrot.slane %v1826, %v3576
        %v3578 = vlaneseq
        %v3579 = vshrl.u32 %v3578, 7
        %v3580 = vsub.s32 0, %v3579
        %v3581 = vrot.slane %v1840, %v3580
        %v3582 = vlaneseq
        %v3583 = vshrl.u32 %v3582, 7
        %v3584 = vsub.s32 1, %v3583
        %v3585 = vrot.slane %v1840, %v3584
        %v3586 = vlaneseq
        %v3587 = vshrl.u32 %v3586, 7
        %v3588 = vsub.s32 0, %v3587
        %v3589 = vrot.slane %v1848, %v3588
        %v3590 = vlaneseq
        %v3591 = vshrl.u32 %v3590, 7
        %v3592 = vsub.s32 1, %v3591
        %v3593 = vrot.slane %v1848, %v3592
        %v3594 = vlaneseq
        %v3595 = vshrl.u32 %v3594, 7
        %v3596 = vsub.s32 0, %v3595
        %v3597 = vrot.slane %v1850, %v3596
        %v3598 = vlaneseq
        %v3599 = vshrl.u32 %v3598, 7
        %v3600 = vsub.s32 1, %v3599
        %v3601 = vrot.slane %v1850, %v3600
        %v3602 = vlaneseq
        %v3603 = vshrl.u32 %v3602, 7
        %v3604 = vsub.s32 0, %v3603
        %v3605 = vrot.slane %v1833, %v3604
        %v3606 = vlaneseq
        %v3607 = vshrl.u32 %v3606, 7
        %v3608 = vsub.s32 1, %v3607
        %v3609 = vrot.slane %v1833, %v3608
        %v3610 = vlaneseq
        %v3611 = vshrl.u32 %v3610, 7
        %v3612 = vsub.s32 0, %v3611
        %v3613 = vrot.slane %v1847, %v3612
        %v3614 = vlaneseq
        %v3615 = vshrl.u32 %v3614, 7
        %v3616 = vsub.s32 1, %v3615
        %v3617 = vrot.slane %v1847, %v3616
        %v3618 = vlaneseq
        %v3619 = vshrl.u32 %v3618, 7
        %v3620 = vsub.s32 0, %v3619
        %v3621 = vrot.slane %v1849, %v3620
        %v3622 = vlaneseq
        %v3623 = vshrl.u32 %v3622, 7
        %v3624 = vsub.s32 1, %v3623
        %v3625 = vrot.slane %v1849, %v3624
        %v3626 = vlaneseq
        %v3627 = vshrl.u32 %v3626, 7
        %v3628 = vsub.s32 0, %v3627
        %v3629 = vrot.slane %v1851, %v3628
        %v3630 = vlaneseq
        %v3631 = vshrl.u32 %v3630, 7
        %v3632 = vsub.s32 1, %v3631
        %v3633 = vrot.slane %v1851, %v3632
        %v3634 = vlaneseq
        %v3635 = vshrl.u32 %v3634, 7
        %v3636 = vsub.s32 0, %v3635
        %v3637 = vrot.slane %v1876, %v3636
        %v3638 = vlaneseq
        %v3639 = vshrl.u32 %v3638, 7
        %v3640 = vsub.s32 1, %v3639
        %v3641 = vrot.slane %v1876, %v3640
        %v3642 = vlaneseq
        %v3643 = vshrl.u32 %v3642, 7
        %v3644 = vsub.s32 0, %v3643
        %v3645 = vrot.slane %v1890, %v3644
        %v3646 = vlaneseq
        %v3647 = vshrl.u32 %v3646, 7
        %v3648 = vsub.s32 1, %v3647
        %v3649 = vrot.slane %v1890, %v3648
        %v3650 = vlaneseq
        %v3651 = vshrl.u32 %v3650, 7
        %v3652 = vsub.s32 0, %v3651
        %v3653 = vrot.slane %v1898, %v3652
        %v3654 = vlaneseq
        %v3655 = vshrl.u32 %v3654, 7
        %v3656 = vsub.s32 1, %v3655
        %v3657 = vrot.slane %v1898, %v3656
        %v3658 = vlaneseq
        %v3659 = vshrl.u32 %v3658, 7
        %v3660 = vsub.s32 0, %v3659
        %v3661 = vrot.slane %v1900, %v3660
        %v3662 = vlaneseq
        %v3663 = vshrl.u32 %v3662, 7
        %v3664 = vsub.s32 1, %v3663
        %v3665 = vrot.slane %v1900, %v3664
        %v3666 = vlaneseq
        %v3667 = vshrl.u32 %v3666, 7
        %v3668 = vsub.s32 0, %v3667
        %v3669 = vrot.slane %v1883, %v3668
        %v3670 = vlaneseq
        %v3671 = vshrl.u32 %v3670, 7
        %v3672 = vsub.s32 1, %v3671
        %v3673 = vrot.slane %v1883, %v3672
        %v3674 = vlaneseq
        %v3675 = vshrl.u32 %v3674, 7
        %v3676 = vsub.s32 0, %v3675
        %v3677 = vrot.slane %v1897, %v3676
        %v3678 = vlaneseq
        %v3679 = vshrl.u32 %v3678, 7
        %v3680 = vsub.s32 1, %v3679
        %v3681 = vrot.slane %v1897, %v3680
        %v3682 = vlaneseq
        %v3683 = vshrl.u32 %v3682, 7
        %v3684 = vsub.s32 0, %v3683
        %v3685 = vrot.slane %v1899, %v3684
        %v3686 = vlaneseq
        %v3687 = vshrl.u32 %v3686, 7
        %v3688 = vsub.s32 1, %v3687
        %v3689 = vrot.slane %v1899, %v3688
        %v3690 = vlaneseq
        %v3691 = vshrl.u32 %v3690, 7
        %v3692 = vsub.s32 0, %v3691
        %v3693 = vrot.slane %v1901, %v3692
        %v3694 = vlaneseq
        %v3695 = vshrl.u32 %v3694, 7
        %v3696 = vsub.s32 1, %v3695
        %v3697 = vrot.slane %v1901, %v3696
        %v3698 = vlaneseq
        %v3699 = vshrl.u32 %v3698, 7
        %v3700 = vsub.s32 0, %v3699
        %v3701 = vrot.slane %v1926, %v3700
        %v3702 = vlaneseq
        %v3703 = vshrl.u32 %v3702, 7
        %v3704 = vsub.s32 1, %v3703
        %v3705 = vrot.slane %v1926, %v3704
        %v3706 = vlaneseq
        %v3707 = vshrl.u32 %v3706, 7
        %v3708 = vsub.s32 0, %v3707
        %v3709 = vrot.slane %v1940, %v3708
        %v3710 = vlaneseq
        %v3711 = vshrl.u32 %v3710, 7
        %v3712 = vsub.s32 1, %v3711
        %v3713 = vrot.slane %v1940, %v3712
        %v3714 = vlaneseq
        %v3715 = vshrl.u32 %v3714, 7
        %v3716 = vsub.s32 0, %v3715
        %v3717 = vrot.slane %v1948, %v3716
        %v3718 = vlaneseq
        %v3719 = vshrl.u32 %v3718, 7
        %v3720 = vsub.s32 1, %v3719
        %v3721 = vrot.slane %v1948, %v3720
        %v3722 = vlaneseq
        %v3723 = vshrl.u32 %v3722, 7
        %v3724 = vsub.s32 0, %v3723
        %v3725 = vrot.slane %v1950, %v3724
        %v3726 = vlaneseq
        %v3727 = vshrl.u32 %v3726, 7
        %v3728 = vsub.s32 1, %v3727
        %v3729 = vrot.slane %v1950, %v3728
        %v3730 = vlaneseq
        %v3731 = vshrl.u32 %v3730, 7
        %v3732 = vsub.s32 0, %v3731
        %v3733 = vrot.slane %v1933, %v3732
        %v3734 = vlaneseq
        %v3735 = vshrl.u32 %v3734, 7
        %v3736 = vsub.s32 1, %v3735
        %v3737 = vrot.slane %v1933, %v3736
        %v3738 = vlaneseq
        %v3739 = vshrl.u32 %v3738, 7
        %v3740 = vsub.s32 0, %v3739
        %v3741 = vrot.slane %v1947, %v3740
        %v3742 = vlaneseq
        %v3743 = vshrl.u32 %v3742, 7
        %v3744 = vsub.s32 1, %v3743
        %v3745 = vrot.slane %v1947, %v3744
        %v3746 = vlaneseq
        %v3747 = vshrl.u32 %v3746, 7
        %v3748 = vsub.s32 0, %v3747
        %v3749 = vrot.slane %v1949, %v3748
        %v3750 = vlaneseq
        %v3751 = vshrl.u32 %v3750, 7
        %v3752 = vsub.s32 1, %v3751
        %v3753 = vrot.slane %v1949, %v3752
        %v3754 = vlaneseq
        %v3755 = vshrl.u32 %v3754, 7
        %v3756 = vsub.s32 0, %v3755
        %v3757 = vrot.slane %v1951, %v3756
        %v3758 = vlaneseq
        %v3759 = vshrl.u32 %v3758, 7
        %v3760 = vsub.s32 1, %v3759
        %v3761 = vrot.slane %v1951, %v3760
        %v3762 = vlaneseq
        %v3763 = vshrl.u32 %v3762, 7
        %v3764 = vsub.s32 0, %v3763
        %v3765 = vrot.slane %v1976, %v3764
        %v3766 = vlaneseq
        %v3767 = vshrl.u32 %v3766, 7
        %v3768 = vsub.s32 1, %v3767
        %v3769 = vrot.slane %v1976, %v3768
        %v3770 = vlaneseq
        %v3771 = vshrl.u32 %v3770, 7
        %v3772 = vsub.s32 0, %v3771
        %v3773 = vrot.slane %v1990, %v3772
        %v3774 = vlaneseq
        %v3775 = vshrl.u32 %v3774, 7
        %v3776 = vsub.s32 1, %v3775
        %v3777 = vrot.slane %v1990, %v3776
        %v3778 = vlaneseq
        %v3779 = vshrl.u32 %v3778, 7
        %v3780 = vsub.s32 0, %v3779
        %v3781 = vrot.slane %v1998, %v3780
        %v3782 = vlaneseq
        %v3783 = vshrl.u32 %v3782, 7
        %v3784 = vsub.s32 1, %v3783
        %v3785 = vrot.slane %v1998, %v3784
        %v3786 = vlaneseq
        %v3787 = vshrl.u32 %v3786, 7
        %v3788 = vsub.s32 0, %v3787
        %v3789 = vrot.slane %v2000, %v3788
        %v3790 = vlaneseq
        %v3791 = vshrl.u32 %v3790, 7
        %v3792 = vsub.s32 1, %v3791
        %v3793 = vrot.slane %v2000, %v3792
        %v3794 = vlaneseq
        %v3795 = vshrl.u32 %v3794, 7
        %v3796 = vsub.s32 0, %v3795
        %v3797 = vrot.slane %v1983, %v3796
        %v3798 = vlaneseq
        %v3799 = vshrl.u32 %v3798, 7
        %v3800 = vsub.s32 1, %v3799
        %v3801 = vrot.slane %v1983, %v3800
        %v3802 = vlaneseq
        %v3803 = vshrl.u32 %v3802, 7
        %v3804 = vsub.s32 0, %v3803
        %v3805 = vrot.slane %v1997, %v3804
        %v3806 = vlaneseq
        %v3807 = vshrl.u32 %v3806, 7
        %v3808 = vsub.s32 1, %v3807
        %v3809 = vrot.slane %v1997, %v3808
        %v3810 = vlaneseq
        %v3811 = vshrl.u32 %v3810, 7
        %v3812 = vsub.s32 0, %v3811
        %v3813 = vrot.slane %v1999, %v3812
        %v3814 = vlaneseq
        %v3815 = vshrl.u32 %v3814, 7
        %v3816 = vsub.s32 1, %v3815
        %v3817 = vrot.slane %v1999, %v3816
        %v3818 = vlaneseq
        %v3819 = vshrl.u32 %v3818, 7
        %v3820 = vsub.s32 0, %v3819
        %v3821 = vrot.slane %v2001, %v3820
        %v3822 = vlaneseq
        %v3823 = vshrl.u32 %v3822, 7
        %v3824 = vsub.s32 1, %v3823
        %v3825 = vrot.slane %v2001, %v3824
        %v3826 = vlaneseq
        %v3827 = vshrl.u32 %v3826, 7
        %v3828 = vsub.s32 0, %v3827
        %v3829 = vrot.slane %v2026, %v3828
        %v3830 = vlaneseq
        %v3831 = vshrl.u32 %v3830, 7
        %v3832 = vsub.s32 1, %v3831
        %v3833 = vrot.slane %v2026, %v3832
        %v3834 = vlaneseq
        %v3835 = vshrl.u32 %v3834, 7
        %v3836 = vsub.s32 0, %v3835
        %v3837 = vrot.slane %v2040, %v3836
        %v3838 = vlaneseq
        %v3839 = vshrl.u32 %v3838, 7
        %v3840 = vsub.s32 1, %v3839
        %v3841 = vrot.slane %v2040, %v3840
        %v3842 = vlaneseq
        %v3843 = vshrl.u32 %v3842, 7
        %v3844 = vsub.s32 0, %v3843
        %v3845 = vrot.slane %v2048, %v3844
        %v3846 = vlaneseq
        %v3847 = vshrl.u32 %v3846, 7
        %v3848 = vsub.s32 1, %v3847
        %v3849 = vrot.slane %v2048, %v3848
        %v3850 = vlaneseq
        %v3851 = vshrl.u32 %v3850, 7
        %v3852 = vsub.s32 0, %v3851
        %v3853 = vrot.slane %v2050, %v3852
        %v3854 = vlaneseq
        %v3855 = vshrl.u32 %v3854, 7
        %v3856 = vsub.s32 1, %v3855
        %v3857 = vrot.slane %v2050, %v3856
        %v3858 = vlaneseq
        %v3859 = vshrl.u32 %v3858, 7
        %v3860 = vsub.s32 0, %v3859
        %v3861 = vrot.slane %v2033, %v3860
        %v3862 = vlaneseq
        %v3863 = vshrl.u32 %v3862, 7
        %v3864 = vsub.s32 1, %v3863
        %v3865 = vrot.slane %v2033, %v3864
        %v3866 = vlaneseq
        %v3867 = vshrl.u32 %v3866, 7
        %v3868 = vsub.s32 0, %v3867
        %v3869 = vrot.slane %v2047, %v3868
        %v3870 = vlaneseq
        %v3871 = vshrl.u32 %v3870, 7
        %v3872 = vsub.s32 1, %v3871
        %v3873 = vrot.slane %v2047, %v3872
        %v3874 = vlaneseq
        %v3875 = vshrl.u32 %v3874, 7
        %v3876 = vsub.s32 0, %v3875
        %v3877 = vrot.slane %v2049, %v3876
        %v3878 = vlaneseq
        %v3879 = vshrl.u32 %v3878, 7
        %v3880 = vsub.s32 1, %v3879
        %v3881 = vrot.slane %v2049, %v3880
        %v3882 = vlaneseq
        %v3883 = vshrl.u32 %v3882, 7
        %v3884 = vsub.s32 0, %v3883
        %v3885 = vrot.slane %v2051, %v3884
        %v3886 = vlaneseq
        %v3887 = vshrl.u32 %v3886, 7
        %v3888 = vsub.s32 1, %v3887
        %v3889 = vrot.slane %v2051, %v3888
        %v3890 = vlaneseq
        %v3891 = vshrl.u32 %v3890, 7
        %v3892 = vsub.s32 0, %v3891
        %v3893 = vrot.slane %v2076, %v3892
        %v3894 = vlaneseq
        %v3895 = vshrl.u32 %v3894, 7
        %v3896 = vsub.s32 1, %v3895
        %v3897 = vrot.slane %v2076, %v3896
        %v3898 = vlaneseq
        %v3899 = vshrl.u32 %v3898, 7
        %v3900 = vsub.s32 0, %v3899
        %v3901 = vrot.slane %v2090, %v3900
        %v3902 = vlaneseq
        %v3903 = vshrl.u32 %v3902, 7
        %v3904 = vsub.s32 1, %v3903
        %v3905 = vrot.slane %v2090, %v3904
        %v3906 = vlaneseq
        %v3907 = vshrl.u32 %v3906, 7
        %v3908 = vsub.s32 0, %v3907
        %v3909 = vrot.slane %v2098, %v3908
        %v3910 = vlaneseq
        %v3911 = vshrl.u32 %v3910, 7
        %v3912 = vsub.s32 1, %v3911
        %v3913 = vrot.slane %v2098, %v3912
        %v3914 = vlaneseq
        %v3915 = vshrl.u32 %v3914, 7
        %v3916 = vsub.s32 0, %v3915
        %v3917 = vrot.slane %v2100, %v3916
        %v3918 = vlaneseq
        %v3919 = vshrl.u32 %v3918, 7
        %v3920 = vsub.s32 1, %v3919
        %v3921 = vrot.slane %v2100, %v3920
        %v3922 = vlaneseq
        %v3923 = vshrl.u32 %v3922, 7
        %v3924 = vsub.s32 0, %v3923
        %v3925 = vrot.slane %v2083, %v3924
        %v3926 = vlaneseq
        %v3927 = vshrl.u32 %v3926, 7
        %v3928 = vsub.s32 1, %v3927
        %v3929 = vrot.slane %v2083, %v3928
        %v3930 = vlaneseq
        %v3931 = vshrl.u32 %v3930, 7
        %v3932 = vsub.s32 0, %v3931
        %v3933 = vrot.slane %v2097, %v3932
        %v3934 = vlaneseq
        %v3935 = vshrl.u32 %v3934, 7
        %v3936 = vsub.s32 1, %v3935
        %v3937 = vrot.slane %v2097, %v3936
        %v3938 = vlaneseq
        %v3939 = vshrl.u32 %v3938, 7
        %v3940 = vsub.s32 0, %v3939
        %v3941 = vrot.slane %v2099, %v3940
        %v3942 = vlaneseq
        %v3943 = vshrl.u32 %v3942, 7
        %v3944 = vsub.s32 1, %v3943
        %v3945 = vrot.slane %v2099, %v3944
        %v3946 = vlaneseq
        %v3947 = vshrl.u32 %v3946, 7
        %v3948 = vsub.s32 0, %v3947
        %v3949 = vrot.slane %v2101, %v3948
        %v3950 = vlaneseq
        %v3951 = vshrl.u32 %v3950, 7
        %v3952 = vsub.s32 1, %v3951
        %v3953 = vrot.slane %v2101, %v3952
        %v3954 = vlaneseq
        %v3955 = vshrl.u32 %v3954, 7
        %v3956 = vsub.s32 0, %v3955
        %v3957 = vrot.slane %v2126, %v3956
        %v3958 = vlaneseq
        %v3959 = vshrl.u32 %v3958, 7
        %v3960 = vsub.s32 1, %v3959
        %v3961 = vrot.slane %v2126, %v3960
        %v3962 = vlaneseq
        %v3963 = vshrl.u32 %v3962, 7
        %v3964 = vsub.s32 0, %v3963
        %v3965 = vrot.slane %v2140, %v3964
        %v3966 = vlaneseq
        %v3967 = vshrl.u32 %v3966, 7
        %v3968 = vsub.s32 1, %v3967
        %v3969 = vrot.slane %v2140, %v3968
        %v3970 = vlaneseq
        %v3971 = vshrl.u32 %v3970, 7
        %v3972 = vsub.s32 0, %v3971
        %v3973 = vrot.slane %v2148, %v3972
        %v3974 = vlaneseq
        %v3975 = vshrl.u32 %v3974, 7
        %v3976 = vsub.s32 1, %v3975
        %v3977 = vrot.slane %v2148, %v3976
        %v3978 = vlaneseq
        %v3979 = vshrl.u32 %v3978, 7
        %v3980 = vsub.s32 0, %v3979
        %v3981 = vrot.slane %v2150, %v3980
        %v3982 = vlaneseq
        %v3983 = vshrl.u32 %v3982, 7
        %v3984 = vsub.s32 1, %v3983
        %v3985 = vrot.slane %v2150, %v3984
        %v3986 = vlaneseq
        %v3987 = vshrl.u32 %v3986, 7
        %v3988 = vsub.s32 0, %v3987
        %v3989 = vrot.slane %v2133, %v3988
        %v3990 = vlaneseq
        %v3991 = vshrl.u32 %v3990, 7
        %v3992 = vsub.s32 1, %v3991
        %v3993 = vrot.slane %v2133, %v3992
        %v3994 = vlaneseq
        %v3995 = vshrl.u32 %v3994, 7
        %v3996 = vsub.s32 0, %v3995
        %v3997 = vrot.slane %v2147, %v3996
        %v3998 = vlaneseq
        %v3999 = vshrl.u32 %v3998, 7
        %v4000 = vsub.s32 1, %v3999
        %v4001 = vrot.slane %v2147, %v4000
        %v4002 = vlaneseq
        %v4003 = vshrl.u32 %v4002, 7
        %v4004 = vsub.s32 0, %v4003
        %v4005 = vrot.slane %v2149, %v4004
        %v4006 = vlaneseq
        %v4007 = vshrl.u32 %v4006, 7
        %v4008 = vsub.s32 1, %v4007
        %v4009 = vrot.slane %v2149, %v4008
        %v4010 = vlaneseq
        %v4011 = vshrl.u32 %v4010, 7
        %v4012 = vsub.s32 0, %v4011
        %v4013 = vrot.slane %v2151, %v4012
        %v4014 = vlaneseq
        %v4015 = vshrl.u32 %v4014, 7
        %v4016 = vsub.s32 1, %v4015
        %v4017 = vrot.slane %v2151, %v4016
        %v4018 = vlaneseq
        %v4019 = vshrl.u32 %v4018, 7
        %v4020 = vsub.s32 0, %v4019
        %v4021 = vrot.slane %v2176, %v4020
        %v4022 = vlaneseq
        %v4023 = vshrl.u32 %v4022, 7
        %v4024 = vsub.s32 1, %v4023
        %v4025 = vrot.slane %v2176, %v4024
        %v4026 = vlaneseq
        %v4027 = vshrl.u32 %v4026, 7
        %v4028 = vsub.s32 0, %v4027
        %v4029 = vrot.slane %v2190, %v4028
        %v4030 = vlaneseq
        %v4031 = vshrl.u32 %v4030, 7
        %v4032 = vsub.s32 1, %v4031
        %v4033 = vrot.slane %v2190, %v4032
        %v4034 = vlaneseq
        %v4035 = vshrl.u32 %v4034, 7
        %v4036 = vsub.s32 0, %v4035
        %v4037 = vrot.slane %v2198, %v4036
        %v4038 = vlaneseq
        %v4039 = vshrl.u32 %v4038, 7
        %v4040 = vsub.s32 1, %v4039
        %v4041 = vrot.slane %v2198, %v4040
        %v4042 = vlaneseq
        %v4043 = vshrl.u32 %v4042, 7
        %v4044 = vsub.s32 0, %v4043
        %v4045 = vrot.slane %v2200, %v4044
        %v4046 = vlaneseq
        %v4047 = vshrl.u32 %v4046, 7
        %v4048 = vsub.s32 1, %v4047
        %v4049 = vrot.slane %v2200, %v4048
        %v4050 = vlaneseq
        %v4051 = vshrl.u32 %v4050, 7
        %v4052 = vsub.s32 0, %v4051
        %v4053 = vrot.slane %v2183, %v4052
        %v4054 = vlaneseq
        %v4055 = vshrl.u32 %v4054, 7
        %v4056 = vsub.s32 1, %v4055
        %v4057 = vrot.slane %v2183, %v4056
        %v4058 = vlaneseq
        %v4059 = vshrl.u32 %v4058, 7
        %v4060 = vsub.s32 0, %v4059
        %v4061 = vrot.slane %v2197, %v4060
        %v4062 = vlaneseq
        %v4063 = vshrl.u32 %v4062, 7
        %v4064 = vsub.s32 1, %v4063
        %v4065 = vrot.slane %v2197, %v4064
        %v4066 = vlaneseq
        %v4067 = vshrl.u32 %v4066, 7
        %v4068 = vsub.s32 0, %v4067
        %v4069 = vrot.slane %v2199, %v4068
        %v4070 = vlaneseq
        %v4071 = vshrl.u32 %v4070, 7
        %v4072 = vsub.s32 1, %v4071
        %v4073 = vrot.slane %v2199, %v4072
        %v4074 = vlaneseq
        %v4075 = vshrl.u32 %v4074, 7
        %v4076 = vsub.s32 0, %v4075
        %v4077 = vrot.slane %v2201, %v4076
        %v4078 = vlaneseq
        %v4079 = vshrl.u32 %v4078, 7
        %v4080 = vsub.s32 1, %v4079
        %v4081 = vrot.slane %v2201, %v4080
        %v4082 = vlaneseq
        %v4083 = vshrl.u32 %v4082, 7
        %v4084 = vsub.s32 0, %v4083
        %v4085 = vrot.slane %v2226, %v4084
        %v4086 = vlaneseq
        %v4087 = vshrl.u32 %v4086, 7
        %v4088 = vsub.s32 1, %v4087
        %v4089 = vrot.slane %v2226, %v4088
        %v4090 = vlaneseq
        %v4091 = vshrl.u32 %v4090, 7
        %v4092 = vsub.s32 0, %v4091
        %v4093 = vrot.slane %v2240, %v4092
        %v4094 = vlaneseq
        %v4095 = vshrl.u32 %v4094, 7
        %v4096 = vsub.s32 1, %v4095
        %v4097 = vrot.slane %v2240, %v4096
        %v4098 = vlaneseq
        %v4099 = vshrl.u32 %v4098, 7
        %v4100 = vsub.s32 0, %v4099
        %v4101 = vrot.slane %v2248, %v4100
        %v4102 = vlaneseq
        %v4103 = vshrl.u32 %v4102, 7
        %v4104 = vsub.s32 1, %v4103
        %v4105 = vrot.slane %v2248, %v4104
        %v4106 = vlaneseq
        %v4107 = vshrl.u32 %v4106, 7
        %v4108 = vsub.s32 0, %v4107
        %v4109 = vrot.slane %v2250, %v4108
        %v4110 = vlaneseq
        %v4111 = vshrl.u32 %v4110, 7
        %v4112 = vsub.s32 1, %v4111
        %v4113 = vrot.slane %v2250, %v4112
        %v4114 = vlaneseq
        %v4115 = vshrl.u32 %v4114, 7
        %v4116 = vsub.s32 0, %v4115
        %v4117 = vrot.slane %v2233, %v4116
        %v4118 = vlaneseq
        %v4119 = vshrl.u32 %v4118, 7
        %v4120 = vsub.s32 1, %v4119
        %v4121 = vrot.slane %v2233, %v4120
        %v4122 = vlaneseq
        %v4123 = vshrl.u32 %v4122, 7
        %v4124 = vsub.s32 0, %v4123
        %v4125 = vrot.slane %v2247, %v4124
        %v4126 = vlaneseq
        %v4127 = vshrl.u32 %v4126, 7
        %v4128 = vsub.s32 1, %v4127
        %v4129 = vrot.slane %v2247, %v4128
        %v4130 = vlaneseq
        %v4131 = vshrl.u32 %v4130, 7
        %v4132 = vsub.s32 0, %v4131
        %v4133 = vrot.slane %v2249, %v4132
        %v4134 = vlaneseq
        %v4135 = vshrl.u32 %v4134, 7
        %v4136 = vsub.s32 1, %v4135
        %v4137 = vrot.slane %v2249, %v4136
        %v4138 = vlaneseq
        %v4139 = vshrl.u32 %v4138, 7
        %v4140 = vsub.s32 0, %v4139
        %v4141 = vrot.slane %v2251, %v4140
        %v4142 = vlaneseq
        %v4143 = vshrl.u32 %v4142, 7
        %v4144 = vsub.s32 1, %v4143
        %v4145 = vrot.slane %v2251, %v4144
        %v4146 = vlaneseq
        %v4147 = vshrl.u32 %v4146, 7
        %v4148 = vsub.s32 0, %v4147
        %v4149 = vrot.slane %v2276, %v4148
        %v4150 = vlaneseq
        %v4151 = vshrl.u32 %v4150, 7
        %v4152 = vsub.s32 1, %v4151
        %v4153 = vrot.slane %v2276, %v4152
        %v4154 = vlaneseq
        %v4155 = vshrl.u32 %v4154, 7
        %v4156 = vsub.s32 0, %v4155
        %v4157 = vrot.slane %v2290, %v4156
        %v4158 = vlaneseq
        %v4159 = vshrl.u32 %v4158, 7
        %v4160 = vsub.s32 1, %v4159
        %v4161 = vrot.slane %v2290, %v4160
        %v4162 = vlaneseq
        %v4163 = vshrl.u32 %v4162, 7
        %v4164 = vsub.s32 0, %v4163
        %v4165 = vrot.slane %v2298, %v4164
        %v4166 = vlaneseq
        %v4167 = vshrl.u32 %v4166, 7
        %v4168 = vsub.s32 1, %v4167
        %v4169 = vrot.slane %v2298, %v4168
        %v4170 = vlaneseq
        %v4171 = vshrl.u32 %v4170, 7
        %v4172 = vsub.s32 0, %v4171
        %v4173 = vrot.slane %v2300, %v4172
        %v4174 = vlaneseq
        %v4175 = vshrl.u32 %v4174, 7
        %v4176 = vsub.s32 1, %v4175
        %v4177 = vrot.slane %v2300, %v4176
        %v4178 = vlaneseq
        %v4179 = vshrl.u32 %v4178, 7
        %v4180 = vsub.s32 0, %v4179
        %v4181 = vrot.slane %v2283, %v4180
        %v4182 = vlaneseq
        %v4183 = vshrl.u32 %v4182, 7
        %v4184 = vsub.s32 1, %v4183
        %v4185 = vrot.slane %v2283, %v4184
        %v4186 = vlaneseq
        %v4187 = vshrl.u32 %v4186, 7
        %v4188 = vsub.s32 0, %v4187
        %v4189 = vrot.slane %v2297, %v4188
        %v4190 = vlaneseq
        %v4191 = vshrl.u32 %v4190, 7
        %v4192 = vsub.s32 1, %v4191
        %v4193 = vrot.slane %v2297, %v4192
        %v4194 = vlaneseq
        %v4195 = vshrl.u32 %v4194, 7
        %v4196 = vsub.s32 0, %v4195
        %v4197 = vrot.slane %v2299, %v4196
        %v4198 = vlaneseq
        %v4199 = vshrl.u32 %v4198, 7
        %v4200 = vsub.s32 1, %v4199
        %v4201 = vrot.slane %v2299, %v4200
        %v4202 = vlaneseq
        %v4203 = vshrl.u32 %v4202, 7
        %v4204 = vsub.s32 0, %v4203
        %v4205 = vrot.slane %v2301, %v4204
        %v4206 = vlaneseq
        %v4207 = vshrl.u32 %v4206, 7
        %v4208 = vsub.s32 1, %v4207
        %v4209 = vrot.slane %v2301, %v4208
        %v4210 = vlaneseq
        %v4211 = vshrl.u32 %v4210, 7
        %v4212 = vsub.s32 0, %v4211
        %v4213 = vrot.slane %v2326, %v4212
        %v4214 = vlaneseq
        %v4215 = vshrl.u32 %v4214, 7
        %v4216 = vsub.s32 1, %v4215
        %v4217 = vrot.slane %v2326, %v4216
        %v4218 = vlaneseq
        %v4219 = vshrl.u32 %v4218, 7
        %v4220 = vsub.s32 0, %v4219
        %v4221 = vrot.slane %v2340, %v4220
        %v4222 = vlaneseq
        %v4223 = vshrl.u32 %v4222, 7
        %v4224 = vsub.s32 1, %v4223
        %v4225 = vrot.slane %v2340, %v4224
        %v4226 = vlaneseq
        %v4227 = vshrl.u32 %v4226, 7
        %v4228 = vsub.s32 0, %v4227
        %v4229 = vrot.slane %v2348, %v4228
        %v4230 = vlaneseq
        %v4231 = vshrl.u32 %v4230, 7
        %v4232 = vsub.s32 1, %v4231
        %v4233 = vrot.slane %v2348, %v4232
        %v4234 = vlaneseq
        %v4235 = vshrl.u32 %v4234, 7
        %v4236 = vsub.s32 0, %v4235
        %v4237 = vrot.slane %v2350, %v4236
        %v4238 = vlaneseq
        %v4239 = vshrl.u32 %v4238, 7
        %v4240 = vsub.s32 1, %v4239
        %v4241 = vrot.slane %v2350, %v4240
        %v4242 = vlaneseq
        %v4243 = vshrl.u32 %v4242, 7
        %v4244 = vsub.s32 0, %v4243
        %v4245 = vrot.slane %v2333, %v4244
        %v4246 = vlaneseq
        %v4247 = vshrl.u32 %v4246, 7
        %v4248 = vsub.s32 1, %v4247
        %v4249 = vrot.slane %v2333, %v4248
        %v4250 = vlaneseq
        %v4251 = vshrl.u32 %v4250, 7
        %v4252 = vsub.s32 0, %v4251
        %v4253 = vrot.slane %v2347, %v4252
        %v4254 = vlaneseq
        %v4255 = vshrl.u32 %v4254, 7
        %v4256 = vsub.s32 1, %v4255
        %v4257 = vrot.slane %v2347, %v4256
        %v4258 = vlaneseq
        %v4259 = vshrl.u32 %v4258, 7
        %v4260 = vsub.s32 0, %v4259
        %v4261 = vrot.slane %v2349, %v4260
        %v4262 = vlaneseq
        %v4263 = vshrl.u32 %v4262, 7
        %v4264 = vsub.s32 1, %v4263
        %v4265 = vrot.slane %v2349, %v4264
        %v4266 = vlaneseq
        %v4267 = vshrl.u32 %v4266, 7
        %v4268 = vsub.s32 0, %v4267
        %v4269 = vrot.slane %v2351, %v4268
        %v4270 = vlaneseq
        %v4271 = vshrl.u32 %v4270, 7
        %v4272 = vsub.s32 1, %v4271
        %v4273 = vrot.slane %v2351, %v4272
        %v4274 = vlaneseq
        %v4275 = vshrl.u32 %v4274, 7
        %v4276 = vsub.s32 0, %v4275
        %v4277 = vrot.slane %v2376, %v4276
        %v4278 = vlaneseq
        %v4279 = vshrl.u32 %v4278, 7
        %v4280 = vsub.s32 1, %v4279
        %v4281 = vrot.slane %v2376, %v4280
        %v4282 = vlaneseq
        %v4283 = vshrl.u32 %v4282, 7
        %v4284 = vsub.s32 0, %v4283
        %v4285 = vrot.slane %v2390, %v4284
        %v4286 = vlaneseq
        %v4287 = vshrl.u32 %v4286, 7
        %v4288 = vsub.s32 1, %v4287
        %v4289 = vrot.slane %v2390, %v4288
        %v4290 = vlaneseq
        %v4291 = vshrl.u32 %v4290, 7
        %v4292 = vsub.s32 0, %v4291
        %v4293 = vrot.slane %v2398, %v4292
        %v4294 = vlaneseq
        %v4295 = vshrl.u32 %v4294, 7
        %v4296 = vsub.s32 1, %v4295
        %v4297 = vrot.slane %v2398, %v4296
        %v4298 = vlaneseq
        %v4299 = vshrl.u32 %v4298, 7
        %v4300 = vsub.s32 0, %v4299
        %v4301 = vrot.slane %v2400, %v4300
        %v4302 = vlaneseq
        %v4303 = vshrl.u32 %v4302, 7
        %v4304 = vsub.s32 1, %v4303
        %v4305 = vrot.slane %v2400, %v4304
        %v4306 = vlaneseq
        %v4307 = vshrl.u32 %v4306, 7
        %v4308 = vsub.s32 0, %v4307
        %v4309 = vrot.slane %v2383, %v4308
        %v4310 = vlaneseq
        %v4311 = vshrl.u32 %v4310, 7
        %v4312 = vsub.s32 1, %v4311
        %v4313 = vrot.slane %v2383, %v4312
        %v4314 = vlaneseq
        %v4315 = vshrl.u32 %v4314, 7
        %v4316 = vsub.s32 0, %v4315
        %v4317 = vrot.slane %v2397, %v4316
        %v4318 = vlaneseq
        %v4319 = vshrl.u32 %v4318, 7
        %v4320 = vsub.s32 1, %v4319
        %v4321 = vrot.slane %v2397, %v4320
        %v4322 = vlaneseq
        %v4323 = vshrl.u32 %v4322, 7
        %v4324 = vsub.s32 0, %v4323
        %v4325 = vrot.slane %v2399, %v4324
        %v4326 = vlaneseq
        %v4327 = vshrl.u32 %v4326, 7
        %v4328 = vsub.s32 1, %v4327
        %v4329 = vrot.slane %v2399, %v4328
        %v4330 = vlaneseq
        %v4331 = vshrl.u32 %v4330, 7
        %v4332 = vsub.s32 0, %v4331
        %v4333 = vrot.slane %v2401, %v4332
        %v4334 = vlaneseq
        %v4335 = vshrl.u32 %v4334, 7
        %v4336 = vsub.s32 1, %v4335
        %v4337 = vrot.slane %v2401, %v4336
        %v4338 = vlaneseq
        %v4339 = vshrl.u32 %v4338, 7
        %v4340 = vsub.s32 0, %v4339
        %v4341 = vrot.slane %v2426, %v4340
        %v4342 = vlaneseq
        %v4343 = vshrl.u32 %v4342, 7
        %v4344 = vsub.s32 1, %v4343
        %v4345 = vrot.slane %v2426, %v4344
        %v4346 = vlaneseq
        %v4347 = vshrl.u32 %v4346, 7
        %v4348 = vsub.s32 0, %v4347
        %v4349 = vrot.slane %v2440, %v4348
        %v4350 = vlaneseq
        %v4351 = vshrl.u32 %v4350, 7
        %v4352 = vsub.s32 1, %v4351
        %v4353 = vrot.slane %v2440, %v4352
        %v4354 = vlaneseq
        %v4355 = vshrl.u32 %v4354, 7
        %v4356 = vsub.s32 0, %v4355
        %v4357 = vrot.slane %v2448, %v4356
        %v4358 = vlaneseq
        %v4359 = vshrl.u32 %v4358, 7
        %v4360 = vsub.s32 1, %v4359
        %v4361 = vrot.slane %v2448, %v4360
        %v4362 = vlaneseq
        %v4363 = vshrl.u32 %v4362, 7
        %v4364 = vsub.s32 0, %v4363
        %v4365 = vrot.slane %v2450, %v4364
        %v4366 = vlaneseq
        %v4367 = vshrl.u32 %v4366, 7
        %v4368 = vsub.s32 1, %v4367
        %v4369 = vrot.slane %v2450, %v4368
        %v4370 = vlaneseq
        %v4371 = vshrl.u32 %v4370, 7
        %v4372 = vsub.s32 0, %v4371
        %v4373 = vrot.slane %v2433, %v4372
        %v4374 = vlaneseq
        %v4375 = vshrl.u32 %v4374, 7
        %v4376 = vsub.s32 1, %v4375
        %v4377 = vrot.slane %v2433, %v4376
        %v4378 = vlaneseq
        %v4379 = vshrl.u32 %v4378, 7
        %v4380 = vsub.s32 0, %v4379
        %v4381 = vrot.slane %v2447, %v4380
        %v4382 = vlaneseq
        %v4383 = vshrl.u32 %v4382, 7
        %v4384 = vsub.s32 1, %v4383
        %v4385 = vrot.slane %v2447, %v4384
        %v4386 = vlaneseq
        %v4387 = vshrl.u32 %v4386, 7
        %v4388 = vsub.s32 0, %v4387
        %v4389 = vrot.slane %v2449, %v4388
        %v4390 = vlaneseq
        %v4391 = vshrl.u32 %v4390, 7
        %v4392 = vsub.s32 1, %v4391
        %v4393 = vrot.slane %v2449, %v4392
        %v4394 = vlaneseq
        %v4395 = vshrl.u32 %v4394, 7
        %v4396 = vsub.s32 0, %v4395
        %v4397 = vrot.slane %v2451, %v4396
        %v4398 = vlaneseq
        %v4399 = vshrl.u32 %v4398, 7
        %v4400 = vsub.s32 1, %v4399
        %v4401 = vrot.slane %v2451, %v4400
        %v4402 = vlaneseq
        %v4403 = vshrl.u32 %v4402, 7
        %v4404 = vsub.s32 0, %v4403
        %v4405 = vrot.slane %v2476, %v4404
        %v4406 = vlaneseq
        %v4407 = vshrl.u32 %v4406, 7
        %v4408 = vsub.s32 1, %v4407
        %v4409 = vrot.slane %v2476, %v4408
        %v4410 = vlaneseq
        %v4411 = vshrl.u32 %v4410, 7
        %v4412 = vsub.s32 0, %v4411
        %v4413 = vrot.slane %v2490, %v4412
        %v4414 = vlaneseq
        %v4415 = vshrl.u32 %v4414, 7
        %v4416 = vsub.s32 1, %v4415
        %v4417 = vrot.slane %v2490, %v4416
        %v4418 = vlaneseq
        %v4419 = vshrl.u32 %v4418, 7
        %v4420 = vsub.s32 0, %v4419
        %v4421 = vrot.slane %v2498, %v4420
        %v4422 = vlaneseq
        %v4423 = vshrl.u32 %v4422, 7
        %v4424 = vsub.s32 1, %v4423
        %v4425 = vrot.slane %v2498, %v4424
        %v4426 = vlaneseq
        %v4427 = vshrl.u32 %v4426, 7
        %v4428 = vsub.s32 0, %v4427
        %v4429 = vrot.slane %v2500, %v4428
        %v4430 = vlaneseq
        %v4431 = vshrl.u32 %v4430, 7
        %v4432 = vsub.s32 1, %v4431
        %v4433 = vrot.slane %v2500, %v4432
        %v4434 = vlaneseq
        %v4435 = vshrl.u32 %v4434, 7
        %v4436 = vsub.s32 0, %v4435
        %v4437 = vrot.slane %v2483, %v4436
        %v4438 = vlaneseq
        %v4439 = vshrl.u32 %v4438, 7
        %v4440 = vsub.s32 1, %v4439
        %v4441 = vrot.slane %v2483, %v4440
        %v4442 = vlaneseq
        %v4443 = vshrl.u32 %v4442, 7
        %v4444 = vsub.s32 0, %v4443
        %v4445 = vrot.slane %v2497, %v4444
        %v4446 = vlaneseq
        %v4447 = vshrl.u32 %v4446, 7
        %v4448 = vsub.s32 1, %v4447
        %v4449 = vrot.slane %v2497, %v4448
        %v4450 = vlaneseq
        %v4451 = vshrl.u32 %v4450, 7
        %v4452 = vsub.s32 0, %v4451
        %v4453 = vrot.slane %v2499, %v4452
        %v4454 = vlaneseq
        %v4455 = vshrl.u32 %v4454, 7
        %v4456 = vsub.s32 1, %v4455
        %v4457 = vrot.slane %v2499, %v4456
        %v4458 = vlaneseq
        %v4459 = vshrl.u32 %v4458, 7
        %v4460 = vsub.s32 0, %v4459
        %v4461 = vrot.slane %v2501, %v4460
        %v4462 = vlaneseq
        %v4463 = vshrl.u32 %v4462, 7
        %v4464 = vsub.s32 1, %v4463
        %v4465 = vrot.slane %v2501, %v4464
        %v4466 = vlaneseq
        %v4467 = vshrl.u32 %v4466, 7
        %v4468 = vsub.s32 0, %v4467
        %v4469 = vrot.slane %v2526, %v4468
        %v4470 = vlaneseq
        %v4471 = vshrl.u32 %v4470, 7
        %v4472 = vsub.s32 1, %v4471
        %v4473 = vrot.slane %v2526, %v4472
        %v4474 = vlaneseq
        %v4475 = vshrl.u32 %v4474, 7
        %v4476 = vsub.s32 0, %v4475
        %v4477 = vrot.slane %v2540, %v4476
        %v4478 = vlaneseq
        %v4479 = vshrl.u32 %v4478, 7
        %v4480 = vsub.s32 1, %v4479
        %v4481 = vrot.slane %v2540, %v4480
        %v4482 = vlaneseq
        %v4483 = vshrl.u32 %v4482, 7
        %v4484 = vsub.s32 0, %v4483
        %v4485 = vrot.slane %v2548, %v4484
        %v4486 = vlaneseq
        %v4487 = vshrl.u32 %v4486, 7
        %v4488 = vsub.s32 1, %v4487
        %v4489 = vrot.slane %v2548, %v4488
        %v4490 = vlaneseq
        %v4491 = vshrl.u32 %v4490, 7
        %v4492 = vsub.s32 0, %v4491
        %v4493 = vrot.slane %v2550, %v4492
        %v4494 = vlaneseq
        %v4495 = vshrl.u32 %v4494, 7
        %v4496 = vsub.s32 1, %v4495
        %v4497 = vrot.slane %v2550, %v4496
        %v4498 = vlaneseq
        %v4499 = vshrl.u32 %v4498, 7
        %v4500 = vsub.s32 0, %v4499
        %v4501 = vrot.slane %v2533, %v4500
        %v4502 = vlaneseq
        %v4503 = vshrl.u32 %v4502, 7
        %v4504 = vsub.s32 1, %v4503
        %v4505 = vrot.slane %v2533, %v4504
        %v4506 = vlaneseq
        %v4507 = vshrl.u32 %v4506, 7
        %v4508 = vsub.s32 0, %v4507
        %v4509 = vrot.slane %v2547, %v4508
        %v4510 = vlaneseq
        %v4511 = vshrl.u32 %v4510, 7
        %v4512 = vsub.s32 1, %v4511
        %v4513 = vrot.slane %v2547, %v4512
        %v4514 = vlaneseq
        %v4515 = vshrl.u32 %v4514, 7
        %v4516 = vsub.s32 0, %v4515
        %v4517 = vrot.slane %v2549, %v4516
        %v4518 = vlaneseq
        %v4519 = vshrl.u32 %v4518, 7
        %v4520 = vsub.s32 1, %v4519
        %v4521 = vrot.slane %v2549, %v4520
        %v4522 = vlaneseq
        %v4523 = vshrl.u32 %v4522, 7
        %v4524 = vsub.s32 0, %v4523
        %v4525 = vrot.slane %v2551, %v4524
        %v4526 = vlaneseq
        %v4527 = vshrl.u32 %v4526, 7
        %v4528 = vsub.s32 1, %v4527
        %v4529 = vrot.slane %v2551, %v4528
        %v4530 = vlaneseq
        %v4531 = vshrl.u32 %v4530, 7
        %v4532 = vsub.s32 0, %v4531
        %v4533 = vrot.slane %v2576, %v4532
        %v4534 = vlaneseq
        %v4535 = vshrl.u32 %v4534, 7
        %v4536 = vsub.s32 1, %v4535
        %v4537 = vrot.slane %v2576, %v4536
        %v4538 = vlaneseq
        %v4539 = vshrl.u32 %v4538, 7
        %v4540 = vsub.s32 0, %v4539
        %v4541 = vrot.slane %v2590, %v4540
        %v4542 = vlaneseq
        %v4543 = vshrl.u32 %v4542, 7
        %v4544 = vsub.s32 1, %v4543
        %v4545 = vrot.slane %v2590, %v4544
        %v4546 = vlaneseq
        %v4547 = vshrl.u32 %v4546, 7
        %v4548 = vsub.s32 0, %v4547
        %v4549 = vrot.slane %v2598, %v4548
        %v4550 = vlaneseq
        %v4551 = vshrl.u32 %v4550, 7
        %v4552 = vsub.s32 1, %v4551
        %v4553 = vrot.slane %v2598, %v4552
        %v4554 = vlaneseq
        %v4555 = vshrl.u32 %v4554, 7
        %v4556 = vsub.s32 0, %v4555
        %v4557 = vrot.slane %v2600, %v4556
        %v4558 = vlaneseq
        %v4559 = vshrl.u32 %v4558, 7
        %v4560 = vsub.s32 1, %v4559
        %v4561 = vrot.slane %v2600, %v4560
        %v4562 = vlaneseq
        %v4563 = vshrl.u32 %v4562, 7
        %v4564 = vsub.s32 0, %v4563
        %v4565 = vrot.slane %v2583, %v4564
        %v4566 = vlaneseq
        %v4567 = vshrl.u32 %v4566, 7
        %v4568 = vsub.s32 1, %v4567
        %v4569 = vrot.slane %v2583, %v4568
        %v4570 = vlaneseq
        %v4571 = vshrl.u32 %v4570, 7
        %v4572 = vsub.s32 0, %v4571
        %v4573 = vrot.slane %v2597, %v4572
        %v4574 = vlaneseq
        %v4575 = vshrl.u32 %v4574, 7
        %v4576 = vsub.s32 1, %v4575
        %v4577 = vrot.slane %v2597, %v4576
        %v4578 = vlaneseq
        %v4579 = vshrl.u32 %v4578, 7
        %v4580 = vsub.s32 0, %v4579
        %v4581 = vrot.slane %v2599, %v4580
        %v4582 = vlaneseq
        %v4583 = vshrl.u32 %v4582, 7
        %v4584 = vsub.s32 1, %v4583
        %v4585 = vrot.slane %v2599, %v4584
        %v4586 = vlaneseq
        %v4587 = vshrl.u32 %v4586, 7
        %v4588 = vsub.s32 0, %v4587
        %v4589 = vrot.slane %v2601, %v4588
        %v4590 = vlaneseq
        %v4591 = vshrl.u32 %v4590, 7
        %v4592 = vsub.s32 1, %v4591
        %v4593 = vrot.slane %v2601, %v4592
        %v4594 = vlaneseq
        %v4595 = vshrl.u32 %v4594, 7
        %v4596 = vsub.s32 0, %v4595
        %v4597 = vrot.slane %v2626, %v4596
        %v4598 = vlaneseq
        %v4599 = vshrl.u32 %v4598, 7
        %v4600 = vsub.s32 1, %v4599
        %v4601 = vrot.slane %v2626, %v4600
        %v4602 = vlaneseq
        %v4603 = vshrl.u32 %v4602, 7
        %v4604 = vsub.s32 0, %v4603
        %v4605 = vrot.slane %v2640, %v4604
        %v4606 = vlaneseq
        %v4607 = vshrl.u32 %v4606, 7
        %v4608 = vsub.s32 1, %v4607
        %v4609 = vrot.slane %v2640, %v4608
        %v4610 = vlaneseq
        %v4611 = vshrl.u32 %v4610, 7
        %v4612 = vsub.s32 0, %v4611
        %v4613 = vrot.slane %v2648, %v4612
        %v4614 = vlaneseq
        %v4615 = vshrl.u32 %v4614, 7
        %v4616 = vsub.s32 1, %v4615
        %v4617 = vrot.slane %v2648, %v4616
        %v4618 = vlaneseq
        %v4619 = vshrl.u32 %v4618, 7
        %v4620 = vsub.s32 0, %v4619
        %v4621 = vrot.slane %v2650, %v4620
        %v4622 = vlaneseq
        %v4623 = vshrl.u32 %v4622, 7
        %v4624 = vsub.s32 1, %v4623
        %v4625 = vrot.slane %v2650, %v4624
        %v4626 = vlaneseq
        %v4627 = vshrl.u32 %v4626, 7
        %v4628 = vsub.s32 0, %v4627
        %v4629 = vrot.slane %v2633, %v4628
        %v4630 = vlaneseq
        %v4631 = vshrl.u32 %v4630, 7
        %v4632 = vsub.s32 1, %v4631
        %v4633 = vrot.slane %v2633, %v4632
        %v4634 = vlaneseq
        %v4635 = vshrl.u32 %v4634, 7
        %v4636 = vsub.s32 0, %v4635
        %v4637 = vrot.slane %v2647, %v4636
        %v4638 = vlaneseq
        %v4639 = vshrl.u32 %v4638, 7
        %v4640 = vsub.s32 1, %v4639
        %v4641 = vrot.slane %v2647, %v4640
        %v4642 = vlaneseq
        %v4643 = vshrl.u32 %v4642, 7
        %v4644 = vsub.s32 0, %v4643
        %v4645 = vrot.slane %v2649, %v4644
        %v4646 = vlaneseq
        %v4647 = vshrl.u32 %v4646, 7
        %v4648 = vsub.s32 1, %v4647
        %v4649 = vrot.slane %v2649, %v4648
        %v4650 = vlaneseq
        %v4651 = vshrl.u32 %v4650, 7
        %v4652 = vsub.s32 0, %v4651
        %v4653 = vrot.slane %v2651, %v4652
        %v4654 = vlaneseq
        %v4655 = vshrl.u32 %v4654, 7
        %v4656 = vsub.s32 1, %v4655
        %v4657 = vrot.slane %v2651, %v4656
        %v4658 = vlaneseq
        %v4659 = vshrl.u32 %v4658, 7
        %v4660 = vsub.s32 0, %v4659
        %v4661 = vrot.slane %v2676, %v4660
        %v4662 = vlaneseq
        %v4663 = vshrl.u32 %v4662, 7
        %v4664 = vsub.s32 1, %v4663
        %v4665 = vrot.slane %v2676, %v4664
        %v4666 = vlaneseq
        %v4667 = vshrl.u32 %v4666, 7
        %v4668 = vsub.s32 0, %v4667
        %v4669 = vrot.slane %v2690, %v4668
        %v4670 = vlaneseq
        %v4671 = vshrl.u32 %v4670, 7
        %v4672 = vsub.s32 1, %v4671
        %v4673 = vrot.slane %v2690, %v4672
        %v4674 = vlaneseq
        %v4675 = vshrl.u32 %v4674, 7
        %v4676 = vsub.s32 0, %v4675
        %v4677 = vrot.slane %v2698, %v4676
        %v4678 = vlaneseq
        %v4679 = vshrl.u32 %v4678, 7
        %v4680 = vsub.s32 1, %v4679
        %v4681 = vrot.slane %v2698, %v4680
        %v4682 = vlaneseq
        %v4683 = vshrl.u32 %v4682, 7
        %v4684 = vsub.s32 0, %v4683
        %v4685 = vrot.slane %v2700, %v4684
        %v4686 = vlaneseq
        %v4687 = vshrl.u32 %v4686, 7
        %v4688 = vsub.s32 1, %v4687
        %v4689 = vrot.slane %v2700, %v4688
        %v4690 = vlaneseq
        %v4691 = vshrl.u32 %v4690, 7
        %v4692 = vsub.s32 0, %v4691
        %v4693 = vrot.slane %v2683, %v4692
        %v4694 = vlaneseq
        %v4695 = vshrl.u32 %v4694, 7
        %v4696 = vsub.s32 1, %v4695
        %v4697 = vrot.slane %v2683, %v4696
        %v4698 = vlaneseq
        %v4699 = vshrl.u32 %v4698, 7
        %v4700 = vsub.s32 0, %v4699
        %v4701 = vrot.slane %v2697, %v4700
        %v4702 = vlaneseq
        %v4703 = vshrl.u32 %v4702, 7
        %v4704 = vsub.s32 1, %v4703
        %v4705 = vrot.slane %v2697, %v4704
        %v4706 = vlaneseq
        %v4707 = vshrl.u32 %v4706, 7
        %v4708 = vsub.s32 0, %v4707
        %v4709 = vrot.slane %v2699, %v4708
        %v4710 = vlaneseq
        %v4711 = vshrl.u32 %v4710, 7
        %v4712 = vsub.s32 1, %v4711
        %v4713 = vrot.slane %v2699, %v4712
        %v4714 = vlaneseq
        %v4715 = vshrl.u32 %v4714, 7
        %v4716 = vsub.s32 0, %v4715
        %v4717 = vrot.slane %v2701, %v4716
        %v4718 = vlaneseq
        %v4719 = vshrl.u32 %v4718, 7
        %v4720 = vsub.s32 1, %v4719
        %v4721 = vrot.slane %v2701, %v4720
        %v4722 = vlaneseq
        %v4723 = vshrl.u32 %v4722, 7
        %v4724 = vsub.s32 0, %v4723
        %v4725 = vrot.slane %v2726, %v4724
        %v4726 = vlaneseq
        %v4727 = vshrl.u32 %v4726, 7
        %v4728 = vsub.s32 1, %v4727
        %v4729 = vrot.slane %v2726, %v4728
        %v4730 = vlaneseq
        %v4731 = vshrl.u32 %v4730, 7
        %v4732 = vsub.s32 0, %v4731
        %v4733 = vrot.slane %v2740, %v4732
        %v4734 = vlaneseq
        %v4735 = vshrl.u32 %v4734, 7
        %v4736 = vsub.s32 1, %v4735
        %v4737 = vrot.slane %v2740, %v4736
        %v4738 = vlaneseq
        %v4739 = vshrl.u32 %v4738, 7
        %v4740 = vsub.s32 0, %v4739
        %v4741 = vrot.slane %v2748, %v4740
        %v4742 = vlaneseq
        %v4743 = vshrl.u32 %v4742, 7
        %v4744 = vsub.s32 1, %v4743
        %v4745 = vrot.slane %v2748, %v4744
        %v4746 = vlaneseq
        %v4747 = vshrl.u32 %v4746, 7
        %v4748 = vsub.s32 0, %v4747
        %v4749 = vrot.slane %v2750, %v4748
        %v4750 = vlaneseq
        %v4751 = vshrl.u32 %v4750, 7
        %v4752 = vsub.s32 1, %v4751
        %v4753 = vrot.slane %v2750, %v4752
        %v4754 = vlaneseq
        %v4755 = vshrl.u32 %v4754, 7
        %v4756 = vsub.s32 0, %v4755
        %v4757 = vrot.slane %v2733, %v4756
        %v4758 = vlaneseq
        %v4759 = vshrl.u32 %v4758, 7
        %v4760 = vsub.s32 1, %v4759
        %v4761 = vrot.slane %v2733, %v4760
        %v4762 = vlaneseq
        %v4763 = vshrl.u32 %v4762, 7
        %v4764 = vsub.s32 0, %v4763
        %v4765 = vrot.slane %v2747, %v4764
        %v4766 = vlaneseq
        %v4767 = vshrl.u32 %v4766, 7
        %v4768 = vsub.s32 1, %v4767
        %v4769 = vrot.slane %v2747, %v4768
        %v4770 = vlaneseq
        %v4771 = vshrl.u32 %v4770, 7
        %v4772 = vsub.s32 0, %v4771
        %v4773 = vrot.slane %v2749, %v4772
        %v4774 = vlaneseq
        %v4775 = vshrl.u32 %v4774, 7
        %v4776 = vsub.s32 1, %v4775
        %v4777 = vrot.slane %v2749, %v4776
        %v4778 = vlaneseq
        %v4779 = vshrl.u32 %v4778, 7
        %v4780 = vsub.s32 0, %v4779
        %v4781 = vrot.slane %v2751, %v4780
        %v4782 = vlaneseq
        %v4783 = vshrl.u32 %v4782, 7
        %v4784 = vsub.s32 1, %v4783
        %v4785 = vrot.slane %v2751, %v4784
        %v4786 = vlaneseq
        %v4787 = vshrl.u32 %v4786, 7
        %v4788 = vsub.s32 0, %v4787
        %v4789 = vrot.slane %v2776, %v4788
        %v4790 = vlaneseq
        %v4791 = vshrl.u32 %v4790, 7
        %v4792 = vsub.s32 1, %v4791
        %v4793 = vrot.slane %v2776, %v4792
        %v4794 = vlaneseq
        %v4795 = vshrl.u32 %v4794, 7
        %v4796 = vsub.s32 0, %v4795
        %v4797 = vrot.slane %v2790, %v4796
        %v4798 = vlaneseq
        %v4799 = vshrl.u32 %v4798, 7
        %v4800 = vsub.s32 1, %v4799
        %v4801 = vrot.slane %v2790, %v4800
        %v4802 = vlaneseq
        %v4803 = vshrl.u32 %v4802, 7
        %v4804 = vsub.s32 0, %v4803
        %v4805 = vrot.slane %v2798, %v4804
        %v4806 = vlaneseq
        %v4807 = vshrl.u32 %v4806, 7
        %v4808 = vsub.s32 1, %v4807
        %v4809 = vrot.slane %v2798, %v4808
        %v4810 = vlaneseq
        %v4811 = vshrl.u32 %v4810, 7
        %v4812 = vsub.s32 0, %v4811
        %v4813 = vrot.slane %v2800, %v4812
        %v4814 = vlaneseq
        %v4815 = vshrl.u32 %v4814, 7
        %v4816 = vsub.s32 1, %v4815
        %v4817 = vrot.slane %v2800, %v4816
        %v4818 = vlaneseq
        %v4819 = vshrl.u32 %v4818, 7
        %v4820 = vsub.s32 0, %v4819
        %v4821 = vrot.slane %v2783, %v4820
        %v4822 = vlaneseq
        %v4823 = vshrl.u32 %v4822, 7
        %v4824 = vsub.s32 1, %v4823
        %v4825 = vrot.slane %v2783, %v4824
        %v4826 = vlaneseq
        %v4827 = vshrl.u32 %v4826, 7
        %v4828 = vsub.s32 0, %v4827
        %v4829 = vrot.slane %v2797, %v4828
        %v4830 = vlaneseq
        %v4831 = vshrl.u32 %v4830, 7
        %v4832 = vsub.s32 1, %v4831
        %v4833 = vrot.slane %v2797, %v4832
        %v4834 = vlaneseq
        %v4835 = vshrl.u32 %v4834, 7
        %v4836 = vsub.s32 0, %v4835
        %v4837 = vrot.slane %v2799, %v4836
        %v4838 = vlaneseq
        %v4839 = vshrl.u32 %v4838, 7
        %v4840 = vsub.s32 1, %v4839
        %v4841 = vrot.slane %v2799, %v4840
        %v4842 = vlaneseq
        %v4843 = vshrl.u32 %v4842, 7
        %v4844 = vsub.s32 0, %v4843
        %v4845 = vrot.slane %v2801, %v4844
        %v4846 = vlaneseq
        %v4847 = vshrl.u32 %v4846, 7
        %v4848 = vsub.s32 1, %v4847
        %v4849 = vrot.slane %v2801, %v4848
        %v5362 = vmul.f32 %v2805, %v756
        %v5363 = vmul.f32 %v2809, %v758
        %v5364 = vmul.f32 %v2813, %v756
        %v5365 = vmul.f32 %v2817, %v758
        %v5366 = vmul.f32 %v2821, %v756
        %v5367 = vmul.f32 %v2825, %v758
        %v5368 = vmul.f32 %v2829, %v756
        %v5369 = vmul.f32 %v2833, %v758
        %v5370 = vmul.f32 %v2837, %v756
        %v5371 = vmul.f32 %v2841, %v758
        %v5372 = vmul.f32 %v2845, %v756
        %v5373 = vmul.f32 %v2849, %v758
        %v5374 = vmul.f32 %v2853, %v756
        %v5375 = vmul.f32 %v2857, %v758
        %v5376 = vmul.f32 %v2861, %v756
        %v5377 = vmul.f32 %v2865, %v758
        %v5378 = vmul.f32 %v2869, %v762
        %v5379 = vmul.f32 %v2873, %v764
        %v5380 = vmul.f32 %v2877, %v762
        %v5381 = vmul.f32 %v2881, %v764
        %v5382 = vmul.f32 %v2885, %v762
        %v5383 = vmul.f32 %v2889, %v764
        %v5384 = vmul.f32 %v2893, %v762
        %v5385 = vmul.f32 %v2897, %v764
        %v5386 = vmul.f32 %v2901, %v762
        %v5387 = vmul.f32 %v2905, %v764
        %v5388 = vmul.f32 %v2909, %v762
        %v5389 = vmul.f32 %v2913, %v764
        %v5390 = vmul.f32 %v2917, %v762
        %v5391 = vmul.f32 %v2921, %v764
        %v5392 = vmul.f32 %v2925, %v762
        %v5393 = vmul.f32 %v2929, %v764
        %v5394 = vmul.f32 %v2933, %v768
        %v5395 = vmul.f32 %v2937, %v770
        %v5396 = vmul.f32 %v2941, %v768
        %v5397 = vmul.f32 %v2945, %v770
        %v5398 = vmul.f32 %v2949, %v768
        %v5399 = vmul.f32 %v2953, %v770
        %v5400 = vmul.f32 %v2957, %v768
        %v5401 = vmul.f32 %v2961, %v770
        %v5402 = vmul.f32 %v2965, %v768
        %v5403 = vmul.f32 %v2969, %v770
        %v5404 = vmul.f32 %v2973, %v768
        %v5405 = vmul.f32 %v2977, %v770
        %v5406 = vmul.f32 %v2981, %v768
        %v5407 = vmul.f32 %v2985, %v770
        %v5408 = vmul.f32 %v2989, %v768
        %v5409 = vmul.f32 %v2993, %v770
        %v5410 = vmul.f32 %v2997, %v774
        %v5411 = vmul.f32 %v3001, %v776
        %v5412 = vmul.f32 %v3005, %v774
        %v5413 = vmul.f32 %v3009, %v776
        %v5414 = vmul.f32 %v3013, %v774
        %v5415 = vmul.f32 %v3017, %v776
        %v5416 = vmul.f32 %v3021, %v774
        %v5417 = vmul.f32 %v3025, %v776
        %v5418 = vmul.f32 %v3029, %v774
        %v5419 = vmul.f32 %v3033, %v776
        %v5420 = vmul.f32 %v3037, %v774
        %v5421 = vmul.f32 %v3041, %v776
        %v5422 = vmul.f32 %v3045, %v774
        %v5423 = vmul.f32 %v3049, %v776
        %v5424 = vmul.f32 %v3053, %v774
        %v5425 = vmul.f32 %v3057, %v776
        %v5426 = vmul.f32 %v3061, %v780
        %v5427 = vmul.f32 %v3065, %v782
        %v5428 = vmul.f32 %v3069, %v780
        %v5429 = vmul.f32 %v3073, %v782
        %v5430 = vmul.f32 %v3077, %v780
        %v5431 = vmul.f32 %v3081, %v782
        %v5432 = vmul.f32 %v3085, %v780
        %v5433 = vmul.f32 %v3089, %v782
        %v5434 = vmul.f32 %v3093, %v780
        %v5435 = vmul.f32 %v3097, %v782
        %v5436 = vmul.f32 %v3101, %v780
        %v5437 = vmul.f32 %v3105, %v782
        %v5438 = vmul.f32 %v3109, %v780
        %v5439 = vmul.f32 %v3113, %v782
        %v5440 = vmul.f32 %v3117, %v780
        %v5441 = vmul.f32 %v3121, %v782
        %v5442 = vmul.f32 %v3125, %v786
        %v5443 = vmul.f32 %v3129, %v788
        %v5444 = vmul.f32 %v3133, %v786
        %v5445 = vmul.f32 %v3137, %v788
        %v5446 = vmul.f32 %v3141, %v786
        %v5447 = vmul.f32 %v3145, %v788
        %v5448 = vmul.f32 %v3149, %v786
        %v5449 = vmul.f32 %v3153, %v788
        %v5450 = vmul.f32 %v3157, %v786
        %v5451 = vmul.f32 %v3161, %v788
        %v5452 = vmul.f32 %v3165, %v786
        %v5453 = vmul.f32 %v3169, %v788
        %v5454 = vmul.f32 %v3173, %v786
        %v5455 = vmul.f32 %v3177, %v788
        %v5456 = vmul.f32 %v3181, %v786
        %v5457 = vmul.f32 %v3185, %v788
        %v5458 = vmul.f32 %v3189, %v792
        %v5459 = vmul.f32 %v3193, %v794
        %v5460 = vmul.f32 %v3197, %v792
        %v5461 = vmul.f32 %v3201, %v794
        %v5462 = vmul.f32 %v3205, %v792
        %v5463 = vmul.f32 %v3209, %v794
        %v5464 = vmul.f32 %v3213, %v792
        %v5465 = vmul.f32 %v3217, %v794
        %v5466 = vmul.f32 %v3221, %v792
        %v5467 = vmul.f32 %v3225, %v794
        %v5468 = vmul.f32 %v3229, %v792
        %v5469 = vmul.f32 %v3233, %v794
        %v5470 = vmul.f32 %v3237, %v792
        %v5471 = vmul.f32 %v3241, %v794
        %v5472 = vmul.f32 %v3245, %v792
        %v5473 = vmul.f32 %v3249, %v794
        %v5474 = vmul.f32 %v3253, %v798
        %v5475 = vmul.f32 %v3257, %v800
        %v5476 = vmul.f32 %v3261, %v798
        %v5477 = vmul.f32 %v3265, %v800
        %v5478 = vmul.f32 %v3269, %v798
        %v5479 = vmul.f32 %v3273, %v800
        %v5480 = vmul.f32 %v3277, %v798
        %v5481 = vmul.f32 %v3281, %v800
        %v5482 = vmul.f32 %v3285, %v798
        %v5483 = vmul.f32 %v3289, %v800
        %v5484 = vmul.f32 %v3293, %v798
        %v5485 = vmul.f32 %v3297, %v800
        %v5486 = vmul.f32 %v3301, %v798
        %v5487 = vmul.f32 %v3305, %v800
        %v5488 = vmul.f32 %v3309, %v798
        %v5489 = vmul.f32 %v3313, %v800
        %v5490 = vmul.f32 %v3317, %v804
        %v5491 = vmul.f32 %v3321, %v806
        %v5492 = vmul.f32 %v3325, %v804
        %v5493 = vmul.f32 %v3329, %v806
        %v5494 = vmul.f32 %v3333, %v804
        %v5495 = vmul.f32 %v3337, %v806
        %v5496 = vmul.f32 %v3341, %v804
        %v5497 = vmul.f32 %v3345, %v806
        %v5498 = vmul.f32 %v3349, %v804
        %v5499 = vmul.f32 %v3353, %v806
        %v5500 = vmul.f32 %v3357, %v804
        %v5501 = vmul.f32 %v3361, %v806
        %v5502 = vmul.f32 %v3365, %v804
        %v5503 = vmul.f32 %v3369, %v806
        %v5504 = vmul.f32 %v3373, %v804
        %v5505 = vmul.f32 %v3377, %v806
        %v5506 = vmul.f32 %v3381, %v810
        %v5507 = vmul.f32 %v3385, %v812
        %v5508 = vmul.f32 %v3389, %v810
        %v5509 = vmul.f32 %v3393, %v812
        %v5510 = vmul.f32 %v3397, %v810
        %v5511 = vmul.f32 %v3401, %v812
        %v5512 = vmul.f32 %v3405, %v810
        %v5513 = vmul.f32 %v3409, %v812
        %v5514 = vmul.f32 %v3413, %v810
        %v5515 = vmul.f32 %v3417, %v812
        %v5516 = vmul.f32 %v3421, %v810
        %v5517 = vmul.f32 %v3425, %v812
        %v5518 = vmul.f32 %v3429, %v810
        %v5519 = vmul.f32 %v3433, %v812
        %v5520 = vmul.f32 %v3437, %v810
        %v5521 = vmul.f32 %v3441, %v812
        %v5522 = vmul.f32 %v3445, %v816
        %v5523 = vmul.f32 %v3449, %v818
        %v5524 = vmul.f32 %v3453, %v816
        %v5525 = vmul.f32 %v3457, %v818
        %v5526 = vmul.f32 %v3461, %v816
        %v5527 = vmul.f32 %v3465, %v818
        %v5528 = vmul.f32 %v3469, %v816
        %v5529 = vmul.f32 %v3473, %v818
        %v5530 = vmul.f32 %v3477, %v816
        %v5531 = vmul.f32 %v3481, %v818
        %v5532 = vmul.f32 %v3485, %v816
        %v5533 = vmul.f32 %v3489, %v818
        %v5534 = vmul.f32 %v3493, %v816
        %v5535 = vmul.f32 %v3497, %v818
        %v5536 = vmul.f32 %v3501, %v816
        %v5537 = vmul.f32 %v3505, %v818
        %v5538 = vmul.f32 %v3509, %v822
        %v5539 = vmul.f32 %v3513, %v824
        %v5540 = vmul.f32 %v3517, %v822
        %v5541 = vmul.f32 %v3521, %v824
        %v5542 = vmul.f32 %v3525, %v822
        %v5543 = vmul.f32 %v3529, %v824
        %v5544 = vmul.f32 %v3533, %v822
        %v5545 = vmul.f32 %v3537, %v824
        %v5546 = vmul.f32 %v3541, %v822
        %v5547 = vmul.f32 %v3545, %v824
        %v5548 = vmul.f32 %v3549, %v822
        %v5549 = vmul.f32 %v3553, %v824
        %v5550 = vmul.f32 %v3557, %v822
        %v5551 = vmul.f32 %v3561, %v824
        %v5552 = vmul.f32 %v3565, %v822
        %v5553 = vmul.f32 %v3569, %v824
        %v5554 = vmul.f32 %v3573, %v828
        %v5555 = vmul.f32 %v3577, %v830
        %v5556 = vmul.f32 %v3581, %v828
        %v5557 = vmul.f32 %v3585, %v830
        %v5558 = vmul.f32 %v3589, %v828
        %v5559 = vmul.f32 %v3593, %v830
        %v5560 = vmul.f32 %v3597, %v828
        %v5561 = vmul.f32 %v3601, %v830
        %v5562 = vmul.f32 %v3605, %v828
        %v5563 = vmul.f32 %v3609, %v830
        %v5564 = vmul.f32 %v3613, %v828
        %v5565 = vmul.f32 %v3617, %v830
        %v5566 = vmul.f32 %v3621, %v828
        %v5567 = vmul.f32 %v3625, %v830
        %v5568 = vmul.f32 %v3629, %v828
        %v5569 = vmul.f32 %v3633, %v830
        %v5570 = vmul.f32 %v3637, %v834
        %v5571 = vmul.f32 %v3641, %v836
        %v5572 = vmul.f32 %v3645, %v834
        %v5573 = vmul.f32 %v3649, %v836
        %v5574 = vmul.f32 %v3653, %v834
        %v5575 = vmul.f32 %v3657, %v836
        %v5576 = vmul.f32 %v3661, %v834
        %v5577 = vmul.f32 %v3665, %v836
        %v5578 = vmul.f32 %v3669, %v834
        %v5579 = vmul.f32 %v3673, %v836
        %v5580 = vmul.f32 %v3677, %v834
        %v5581 = vmul.f32 %v3681, %v836
        %v5582 = vmul.f32 %v3685, %v834
        %v5583 = vmul.f32 %v3689, %v836
        %v5584 = vmul.f32 %v3693, %v834
        %v5585 = vmul.f32 %v3697, %v836
        %v5586 = vmul.f32 %v3701, %v840
        %v5587 = vmul.f32 %v3705, %v842
        %v5588 = vmul.f32 %v3709, %v840
        %v5589 = vmul.f32 %v3713, %v842
        %v5590 = vmul.f32 %v3717, %v840
        %v5591 = vmul.f32 %v3721, %v842
        %v5592 = vmul.f32 %v3725, %v840
        %v5593 = vmul.f32 %v3729, %v842
        %v5594 = vmul.f32 %v3733, %v840
        %v5595 = vmul.f32 %v3737, %v842
        %v5596 = vmul.f32 %v3741, %v840
        %v5597 = vmul.f32 %v3745, %v842
        %v5598 = vmul.f32 %v3749, %v840
        %v5599 = vmul.f32 %v3753, %v842
        %v5600 = vmul.f32 %v3757, %v840
        %v5601 = vmul.f32 %v3761, %v842
        %v5602 = vmul.f32 %v3765, %v846
        %v5603 = vmul.f32 %v3769, %v848
        %v5604 = vmul.f32 %v3773, %v846
        %v5605 = vmul.f32 %v3777, %v848
        %v5606 = vmul.f32 %v3781, %v846
        %v5607 = vmul.f32 %v3785, %v848
        %v5608 = vmul.f32 %v3789, %v846
        %v5609 = vmul.f32 %v3793, %v848
        %v5610 = vmul.f32 %v3797, %v846
        %v5611 = vmul.f32 %v3801, %v848
        %v5612 = vmul.f32 %v3805, %v846
        %v5613 = vmul.f32 %v3809, %v848
        %v5614 = vmul.f32 %v3813, %v846
        %v5615 = vmul.f32 %v3817, %v848
        %v5616 = vmul.f32 %v3821, %v846
        %v5617 = vmul.f32 %v3825, %v848
        %v5618 = vmul.f32 %v3829, %v852
        %v5619 = vmul.f32 %v3833, %v854
        %v5620 = vmul.f32 %v3837, %v852
        %v5621 = vmul.f32 %v3841, %v854
        %v5622 = vmul.f32 %v3845, %v852
        %v5623 = vmul.f32 %v3849, %v854
        %v5624 = vmul.f32 %v3853, %v852
        %v5625 = vmul.f32 %v3857, %v854
        %v5626 = vmul.f32 %v3861, %v852
        %v5627 = vmul.f32 %v3865, %v854
        %v5628 = vmul.f32 %v3869, %v852
        %v5629 = vmul.f32 %v3873, %v854
        %v5630 = vmul.f32 %v3877, %v852
        %v5631 = vmul.f32 %v3881, %v854
        %v5632 = vmul.f32 %v3885, %v852
        %v5633 = vmul.f32 %v3889, %v854
        %v5634 = vmul.f32 %v3893, %v858
        %v5635 = vmul.f32 %v3897, %v860
        %v5636 = vmul.f32 %v3901, %v858
        %v5637 = vmul.f32 %v3905, %v860
        %v5638 = vmul.f32 %v3909, %v858
        %v5639 = vmul.f32 %v3913, %v860
        %v5640 = vmul.f32 %v3917, %v858
        %v5641 = vmul.f32 %v3921, %v860
        %v5642 = vmul.f32 %v3925, %v858
        %v5643 = vmul.f32 %v3929, %v860
        %v5644 = vmul.f32 %v3933, %v858
        %v5645 = vmul.f32 %v3937, %v860
        %v5646 = vmul.f32 %v3941, %v858
        %v5647 = vmul.f32 %v3945, %v860
        %v5648 = vmul.f32 %v3949, %v858
        %v5649 = vmul.f32 %v3953, %v860
        %v5650 = vmul.f32 %v3957, %v864
        %v5651 = vmul.f32 %v3961, %v866
        %v5652 = vmul.f32 %v3965, %v864
        %v5653 = vmul.f32 %v3969, %v866
        %v5654 = vmul.f32 %v3973, %v864
        %v5655 = vmul.f32 %v3977, %v866
        %v5656 = vmul.f32 %v3981, %v864
        %v5657 = vmul.f32 %v3985, %v866
        %v5658 = vmul.f32 %v3989, %v864
        %v5659 = vmul.f32 %v3993, %v866
        %v5660 = vmul.f32 %v3997, %v864
        %v5661 = vmul.f32 %v4001, %v866
        %v5662 = vmul.f32 %v4005, %v864
        %v5663 = vmul.f32 %v4009, %v866
        %v5664 = vmul.f32 %v4013, %v864
        %v5665 = vmul.f32 %v4017, %v866
        %v5666 = vmul.f32 %v4021, %v870
        %v5667 = vmul.f32 %v4025, %v872
        %v5668 = vmul.f32 %v4029, %v870
        %v5669 = vmul.f32 %v4033, %v872
        %v5670 = vmul.f32 %v4037, %v870
        %v5671 = vmul.f32 %v4041, %v872
        %v5672 = vmul.f32 %v4045, %v870
        %v5673 = vmul.f32 %v4049, %v872
        %v5674 = vmul.f32 %v4053, %v870
        %v5675 = vmul.f32 %v4057, %v872
        %v5676 = vmul.f32 %v4061, %v870
        %v5677 = vmul.f32 %v4065, %v872
        %v5678 = vmul.f32 %v4069, %v870
        %v5679 = vmul.f32 %v4073, %v872
        %v5680 = vmul.f32 %v4077, %v870
        %v5681 = vmul.f32 %v4081, %v872
        %v5682 = vmul.f32 %v4085, %v876
        %v5683 = vmul.f32 %v4089, %v878
        %v5684 = vmul.f32 %v4093, %v876
        %v5685 = vmul.f32 %v4097, %v878
        %v5686 = vmul.f32 %v4101, %v876
        %v5687 = vmul.f32 %v4105, %v878
        %v5688 = vmul.f32 %v4109, %v876
        %v5689 = vmul.f32 %v4113, %v878
        %v5690 = vmul.f32 %v4117, %v876
        %v5691 = vmul.f32 %v4121, %v878
        %v5692 = vmul.f32 %v4125, %v876
        %v5693 = vmul.f32 %v4129, %v878
        %v5694 = vmul.f32 %v4133, %v876
        %v5695 = vmul.f32 %v4137, %v878
        %v5696 = vmul.f32 %v4141, %v876
        %v5697 = vmul.f32 %v4145, %v878
        %v5698 = vmul.f32 %v4149, %v882
        %v5699 = vmul.f32 %v4153, %v884
        %v5700 = vmul.f32 %v4157, %v882
        %v5701 = vmul.f32 %v4161, %v884
        %v5702 = vmul.f32 %v4165, %v882
        %v5703 = vmul.f32 %v4169, %v884
        %v5704 = vmul.f32 %v4173, %v882
        %v5705 = vmul.f32 %v4177, %v884
        %v5706 = vmul.f32 %v4181, %v882
        %v5707 = vmul.f32 %v4185, %v884
        %v5708 = vmul.f32 %v4189, %v882
        %v5709 = vmul.f32 %v4193, %v884
        %v5710 = vmul.f32 %v4197, %v882
        %v5711 = vmul.f32 %v4201, %v884
        %v5712 = vmul.f32 %v4205, %v882
        %v5713 = vmul.f32 %v4209, %v884
        %v5714 = vmul.f32 %v4213, %v888
        %v5715 = vmul.f32 %v4217, %v890
        %v5716 = vmul.f32 %v4221, %v888
        %v5717 = vmul.f32 %v4225, %v890
        %v5718 = vmul.f32 %v4229, %v888
        %v5719 = vmul.f32 %v4233, %v890
        %v5720 = vmul.f32 %v4237, %v888
        %v5721 = vmul.f32 %v4241, %v890
        %v5722 = vmul.f32 %v4245, %v888
        %v5723 = vmul.f32 %v4249, %v890
        %v5724 = vmul.f32 %v4253, %v888
        %v5725 = vmul.f32 %v4257, %v890
        %v5726 = vmul.f32 %v4261, %v888
        %v5727 = vmul.f32 %v4265, %v890
        %v5728 = vmul.f32 %v4269, %v888
        %v5729 = vmul.f32 %v4273, %v890
        %v5730 = vmul.f32 %v4277, %v894
        %v5731 = vmul.f32 %v4281, %v896
        %v5732 = vmul.f32 %v4285, %v894
        %v5733 = vmul.f32 %v4289, %v896
        %v5734 = vmul.f32 %v4293, %v894
        %v5735 = vmul.f32 %v4297, %v896
        %v5736 = vmul.f32 %v4301, %v894
        %v5737 = vmul.f32 %v4305, %v896
        %v5738 = vmul.f32 %v4309, %v894
        %v5739 = vmul.f32 %v4313, %v896
        %v5740 = vmul.f32 %v4317, %v894
        %v5741 = vmul.f32 %v4321, %v896
        %v5742 = vmul.f32 %v4325, %v894
        %v5743 = vmul.f32 %v4329, %v896
        %v5744 = vmul.f32 %v4333, %v894
        %v5745 = vmul.f32 %v4337, %v896
        %v5746 = vmul.f32 %v4341, %v900
        %v5747 = vmul.f32 %v4345, %v902
        %v5748 = vmul.f32 %v4349, %v900
        %v5749 = vmul.f32 %v4353, %v902
        %v5750 = vmul.f32 %v4357, %v900
        %v5751 = vmul.f32 %v4361, %v902
        %v5752 = vmul.f32 %v4365, %v900
        %v5753 = vmul.f32 %v4369, %v902
        %v5754 = vmul.f32 %v4373, %v900
        %v5755 = vmul.f32 %v4377, %v902
        %v5756 = vmul.f32 %v4381, %v900
        %v5757 = vmul.f32 %v4385, %v902
        %v5758 = vmul.f32 %v4389, %v900
        %v5759 = vmul.f32 %v4393, %v902
        %v5760 = vmul.f32 %v4397, %v900
        %v5761 = vmul.f32 %v4401, %v902
        %v5762 = vmul.f32 %v4405, %v906
        %v5763 = vmul.f32 %v4409, %v908
        %v5764 = vmul.f32 %v4413, %v906
        %v5765 = vmul.f32 %v4417, %v908
        %v5766 = vmul.f32 %v4421, %v906
        %v5767 = vmul.f32 %v4425, %v908
        %v5768 = vmul.f32 %v4429, %v906
        %v5769 = vmul.f32 %v4433, %v908
        %v5770 = vmul.f32 %v4437, %v906
        %v5771 = vmul.f32 %v4441, %v908
        %v5772 = vmul.f32 %v4445, %v906
        %v5773 = vmul.f32 %v4449, %v908
        %v5774 = vmul.f32 %v4453, %v906
        %v5775 = vmul.f32 %v4457, %v908
        %v5776 = vmul.f32 %v4461, %v906
        %v5777 = vmul.f32 %v4465, %v908
        %v5778 = vmul.f32 %v4469, %v912
        %v5779 = vmul.f32 %v4473, %v914
        %v5780 = vmul.f32 %v4477, %v912
        %v5781 = vmul.f32 %v4481, %v914
        %v5782 = vmul.f32 %v4485, %v912
        %v5783 = vmul.f32 %v4489, %v914
        %v5784 = vmul.f32 %v4493, %v912
        %v5785 = vmul.f32 %v4497, %v914
        %v5786 = vmul.f32 %v4501, %v912
        %v5787 = vmul.f32 %v4505, %v914
        %v5788 = vmul.f32 %v4509, %v912
        %v5789 = vmul.f32 %v4513, %v914
        %v5790 = vmul.f32 %v4517, %v912
        %v5791 = vmul.f32 %v4521, %v914
        %v5792 = vmul.f32 %v4525, %v912
        %v5793 = vmul.f32 %v4529, %v914
        %v5794 = vmul.f32 %v4533, %v918
        %v5795 = vmul.f32 %v4537, %v920
        %v5796 = vmul.f32 %v4541, %v918
        %v5797 = vmul.f32 %v4545, %v920
        %v5798 = vmul.f32 %v4549, %v918
        %v5799 = vmul.f32 %v4553, %v920
        %v5800 = vmul.f32 %v4557, %v918
        %v5801 = vmul.f32 %v4561, %v920
        %v5802 = vmul.f32 %v4565, %v918
        %v5803 = vmul.f32 %v4569, %v920
        %v5804 = vmul.f32 %v4573, %v918
        %v5805 = vmul.f32 %v4577, %v920
        %v5806 = vmul.f32 %v4581, %v918
        %v5807 = vmul.f32 %v4585, %v920
        %v5808 = vmul.f32 %v4589, %v918
        %v5809 = vmul.f32 %v4593, %v920
        %v5810 = vmul.f32 %v4597, %v924
        %v5811 = vmul.f32 %v4601, %v926
        %v5812 = vmul.f32 %v4605, %v924
        %v5813 = vmul.f32 %v4609, %v926
        %v5814 = vmul.f32 %v4613, %v924
        %v5815 = vmul.f32 %v4617, %v926
        %v5816 = vmul.f32 %v4621, %v924
        %v5817 = vmul.f32 %v4625, %v926
        %v5818 = vmul.f32 %v4629, %v924
        %v5819 = vmul.f32 %v4633, %v926
        %v5820 = vmul.f32 %v4637, %v924
        %v5821 = vmul.f32 %v4641, %v926
        %v5822 = vmul.f32 %v4645, %v924
        %v5823 = vmul.f32 %v4649, %v926
        %v5824 = vmul.f32 %v4653, %v924
        %v5825 = vmul.f32 %v4657, %v926
        %v5826 = vmul.f32 %v4661, %v930
        %v5827 = vmul.f32 %v4665, %v932
        %v5828 = vmul.f32 %v4669, %v930
        %v5829 = vmul.f32 %v4673, %v932
        %v5830 = vmul.f32 %v4677, %v930
        %v5831 = vmul.f32 %v4681, %v932
        %v5832 = vmul.f32 %v4685, %v930
        %v5833 = vmul.f32 %v4689, %v932
        %v5834 = vmul.f32 %v4693, %v930
        %v5835 = vmul.f32 %v4697, %v932
        %v5836 = vmul.f32 %v4701, %v930
        %v5837 = vmul.f32 %v4705, %v932
        %v5838 = vmul.f32 %v4709, %v930
        %v5839 = vmul.f32 %v4713, %v932
        %v5840 = vmul.f32 %v4717, %v930
        %v5841 = vmul.f32 %v4721, %v932
        %v5842 = vmul.f32 %v4725, %v936
        %v5843 = vmul.f32 %v4729, %v938
        %v5844 = vmul.f32 %v4733, %v936
        %v5845 = vmul.f32 %v4737, %v938
        %v5846 = vmul.f32 %v4741, %v936
        %v5847 = vmul.f32 %v4745, %v938
        %v5848 = vmul.f32 %v4749, %v936
        %v5849 = vmul.f32 %v4753, %v938
        %v5850 = vmul.f32 %v4757, %v936
        %v5851 = vmul.f32 %v4761, %v938
        %v5852 = vmul.f32 %v4765, %v936
        %v5853 = vmul.f32 %v4769, %v938
        %v5854 = vmul.f32 %v4773, %v936
        %v5855 = vmul.f32 %v4777, %v938
        %v5856 = vmul.f32 %v4781, %v936
        %v5857 = vmul.f32 %v4785, %v938
        %v5858 = vmul.f32 %v4789, %v942
        %v5859 = vmul.f32 %v4793, %v944
        %v5860 = vmul.f32 %v4797, %v942
        %v5861 = vmul.f32 %v4801, %v944
        %v5862 = vmul.f32 %v4805, %v942
        %v5863 = vmul.f32 %v4809, %v944
        %v5864 = vmul.f32 %v4813, %v942
        %v5865 = vmul.f32 %v4817, %v944
        %v5866 = vmul.f32 %v4821, %v942
        %v5867 = vmul.f32 %v4825, %v944
        %v5868 = vmul.f32 %v4829, %v942
        %v5869 = vmul.f32 %v4833, %v944
        %v5870 = vmul.f32 %v4837, %v942
        %v5871 = vmul.f32 %v4841, %v944
        %v5872 = vmul.f32 %v4845, %v942
        %v5873 = vmul.f32 %v4849, %v944
        %v5874 = vadd.f32 %v5362, %v5378
        %v5875 = vadd.f32 %v5874, %v5394
        %v5876 = vadd.f32 %v5875, %v5410
        %v5877 = vadd.f32 %v5876, %v5426
        %v5878 = vadd.f32 %v5877, %v5442
        %v5879 = vadd.f32 %v5878, %v5458
        %v5880 = vadd.f32 %v5879, %v5474
        %v5881 = vadd.f32 %v5363, %v5379
        %v5882 = vadd.f32 %v5881, %v5395
        %v5883 = vadd.f32 %v5882, %v5411
        %v5884 = vadd.f32 %v5883, %v5427
        %v5885 = vadd.f32 %v5884, %v5443
        %v5886 = vadd.f32 %v5885, %v5459
        %v5887 = vadd.f32 %v5886, %v5475
        %v5888 = vadd.f32 %v5364, %v5380
        %v5889 = vadd.f32 %v5888, %v5396
        %v5890 = vadd.f32 %v5889, %v5412
        %v5891 = vadd.f32 %v5890, %v5428
        %v5892 = vadd.f32 %v5891, %v5444
        %v5893 = vadd.f32 %v5892, %v5460
        %v5894 = vadd.f32 %v5893, %v5476
        %v5895 = vadd.f32 %v5365, %v5381
        %v5896 = vadd.f32 %v5895, %v5397
        %v5897 = vadd.f32 %v5896, %v5413
        %v5898 = vadd.f32 %v5897, %v5429
        %v5899 = vadd.f32 %v5898, %v5445
        %v5900 = vadd.f32 %v5899, %v5461
        %v5901 = vadd.f32 %v5900, %v5477
        %v5902 = vadd.f32 %v5366, %v5382
        %v5903 = vadd.f32 %v5902, %v5398
        %v5904 = vadd.f32 %v5903, %v5414
        %v5905 = vadd.f32 %v5904, %v5430
        %v5906 = vadd.f32 %v5905, %v5446
        %v5907 = vadd.f32 %v5906, %v5462
        %v5908 = vadd.f32 %v5907, %v5478
        %v5909 = vadd.f32 %v5367, %v5383
        %v5910 = vadd.f32 %v5909, %v5399
        %v5911 = vadd.f32 %v5910, %v5415
        %v5912 = vadd.f32 %v5911, %v5431
        %v5913 = vadd.f32 %v5912, %v5447
        %v5914 = vadd.f32 %v5913, %v5463
        %v5915 = vadd.f32 %v5914, %v5479
        %v5916 = vadd.f32 %v5368, %v5384
        %v5917 = vadd.f32 %v5916, %v5400
        %v5918 = vadd.f32 %v5917, %v5416
        %v5919 = vadd.f32 %v5918, %v5432
        %v5920 = vadd.f32 %v5919, %v5448
        %v5921 = vadd.f32 %v5920, %v5464
        %v5922 = vadd.f32 %v5921, %v5480
        %v5923 = vadd.f32 %v5369, %v5385
        %v5924 = vadd.f32 %v5923, %v5401
        %v5925 = vadd.f32 %v5924, %v5417
        %v5926 = vadd.f32 %v5925, %v5433
        %v5927 = vadd.f32 %v5926, %v5449
        %v5928 = vadd.f32 %v5927, %v5465
        %v5929 = vadd.f32 %v5928, %v5481
        %v5930 = vadd.f32 %v5370, %v5386
        %v5931 = vadd.f32 %v5930, %v5402
        %v5932 = vadd.f32 %v5931, %v5418
        %v5933 = vadd.f32 %v5932, %v5434
        %v5934 = vadd.f32 %v5933, %v5450
        %v5935 = vadd.f32 %v5934, %v5466
        %v5936 = vadd.f32 %v5935, %v5482
        %v5937 = vadd.f32 %v5371, %v5387
        %v5938 = vadd.f32 %v5937, %v5403
        %v5939 = vadd.f32 %v5938, %v5419
        %v5940 = vadd.f32 %v5939, %v5435
        %v5941 = vadd.f32 %v5940, %v5451
        %v5942 = vadd.f32 %v5941, %v5467
        %v5943 = vadd.f32 %v5942, %v5483
        %v5944 = vadd.f32 %v5372, %v5388
        %v5945 = vadd.f32 %v5944, %v5404
        %v5946 = vadd.f32 %v5945, %v5420
        %v5947 = vadd.f32 %v5946, %v5436
        %v5948 = vadd.f32 %v5947, %v5452
        %v5949 = vadd.f32 %v5948, %v5468
        %v5950 = vadd.f32 %v5949, %v5484
        %v5951 = vadd.f32 %v5373, %v5389
        %v5952 = vadd.f32 %v5951, %v5405
        %v5953 = vadd.f32 %v5952, %v5421
        %v5954 = vadd.f32 %v5953, %v5437
        %v5955 = vadd.f32 %v5954, %v5453
        %v5956 = vadd.f32 %v5955, %v5469
        %v5957 = vadd.f32 %v5956, %v5485
        %v5958 = vadd.f32 %v5374, %v5390
        %v5959 = vadd.f32 %v5958, %v5406
        %v5960 = vadd.f32 %v5959, %v5422
        %v5961 = vadd.f32 %v5960, %v5438
        %v5962 = vadd.f32 %v5961, %v5454
        %v5963 = vadd.f32 %v5962, %v5470
        %v5964 = vadd.f32 %v5963, %v5486
        %v5965 = vadd.f32 %v5375, %v5391
        %v5966 = vadd.f32 %v5965, %v5407
        %v5967 = vadd.f32 %v5966, %v5423
        %v5968 = vadd.f32 %v5967, %v5439
        %v5969 = vadd.f32 %v5968, %v5455
        %v5970 = vadd.f32 %v5969, %v5471
        %v5971 = vadd.f32 %v5970, %v5487
        %v5972 = vadd.f32 %v5376, %v5392
        %v5973 = vadd.f32 %v5972, %v5408
        %v5974 = vadd.f32 %v5973, %v5424
        %v5975 = vadd.f32 %v5974, %v5440
        %v5976 = vadd.f32 %v5975, %v5456
        %v5977 = vadd.f32 %v5976, %v5472
        %v5978 = vadd.f32 %v5977, %v5488
        %v5979 = vadd.f32 %v5377, %v5393
        %v5980 = vadd.f32 %v5979, %v5409
        %v5981 = vadd.f32 %v5980, %v5425
        %v5982 = vadd.f32 %v5981, %v5441
        %v5983 = vadd.f32 %v5982, %v5457
        %v5984 = vadd.f32 %v5983, %v5473
        %v5985 = vadd.f32 %v5984, %v5489
        %v5986 = vadd.f32 %v5490, %v5506
        %v5987 = vadd.f32 %v5986, %v5522
        %v5988 = vadd.f32 %v5987, %v5538
        %v5989 = vadd.f32 %v5988, %v5554
        %v5990 = vadd.f32 %v5989, %v5570
        %v5991 = vadd.f32 %v5990, %v5586
        %v5992 = vadd.f32 %v5991, %v5602
        %v5993 = vadd.f32 %v5491, %v5507
        %v5994 = vadd.f32 %v5993, %v5523
        %v5995 = vadd.f32 %v5994, %v5539
        %v5996 = vadd.f32 %v5995, %v5555
        %v5997 = vadd.f32 %v5996, %v5571
        %v5998 = vadd.f32 %v5997, %v5587
        %v5999 = vadd.f32 %v5998, %v5603
        %v6000 = vadd.f32 %v5492, %v5508
        %v6001 = vadd.f32 %v6000, %v5524
        %v6002 = vadd.f32 %v6001, %v5540
        %v6003 = vadd.f32 %v6002, %v5556
        %v6004 = vadd.f32 %v6003, %v5572
        %v6005 = vadd.f32 %v6004, %v5588
        %v6006 = vadd.f32 %v6005, %v5604
        %v6007 = vadd.f32 %v5493, %v5509
        %v6008 = vadd.f32 %v6007, %v5525
        %v6009 = vadd.f32 %v6008, %v5541
        %v6010 = vadd.f32 %v6009, %v5557
        %v6011 = vadd.f32 %v6010, %v5573
        %v6012 = vadd.f32 %v6011, %v5589
        %v6013 = vadd.f32 %v6012, %v5605
        %v6014 = vadd.f32 %v5494, %v5510
        %v6015 = vadd.f32 %v6014, %v5526
        %v6016 = vadd.f32 %v6015, %v5542
        %v6017 = vadd.f32 %v6016, %v5558
        %v6018 = vadd.f32 %v6017, %v5574
        %v6019 = vadd.f32 %v6018, %v5590
        %v6020 = vadd.f32 %v6019, %v5606
        %v6021 = vadd.f32 %v5495, %v5511
        %v6022 = vadd.f32 %v6021, %v5527
        %v6023 = vadd.f32 %v6022, %v5543
        %v6024 = vadd.f32 %v6023, %v5559
        %v6025 = vadd.f32 %v6024, %v5575
        %v6026 = vadd.f32 %v6025, %v5591
        %v6027 = vadd.f32 %v6026, %v5607
        %v6028 = vadd.f32 %v5496, %v5512
        %v6029 = vadd.f32 %v6028, %v5528
        %v6030 = vadd.f32 %v6029, %v5544
        %v6031 = vadd.f32 %v6030, %v5560
        %v6032 = vadd.f32 %v6031, %v5576
        %v6033 = vadd.f32 %v6032, %v5592
        %v6034 = vadd.f32 %v6033, %v5608
        %v6035 = vadd.f32 %v5497, %v5513
        %v6036 = vadd.f32 %v6035, %v5529
        %v6037 = vadd.f32 %v6036, %v5545
        %v6038 = vadd.f32 %v6037, %v5561
        %v6039 = vadd.f32 %v6038, %v5577
        %v6040 = vadd.f32 %v6039, %v5593
        %v6041 = vadd.f32 %v6040, %v5609
        %v6042 = vadd.f32 %v5498, %v5514
        %v6043 = vadd.f32 %v6042, %v5530
        %v6044 = vadd.f32 %v6043, %v5546
        %v6045 = vadd.f32 %v6044, %v5562
        %v6046 = vadd.f32 %v6045, %v5578
        %v6047 = vadd.f32 %v6046, %v5594
        %v6048 = vadd.f32 %v6047, %v5610
        %v6049 = vadd.f32 %v5499, %v5515
        %v6050 = vadd.f32 %v6049, %v5531
        %v6051 = vadd.f32 %v6050, %v5547
        %v6052 = vadd.f32 %v6051, %v5563
        %v6053 = vadd.f32 %v6052, %v5579
        %v6054 = vadd.f32 %v6053, %v5595
        %v6055 = vadd.f32 %v6054, %v5611
        %v6056 = vadd.f32 %v5500, %v5516
        %v6057 = vadd.f32 %v6056, %v5532
        %v6058 = vadd.f32 %v6057, %v5548
        %v6059 = vadd.f32 %v6058, %v5564
        %v6060 = vadd.f32 %v6059, %v5580
        %v6061 = vadd.f32 %v6060, %v5596
        %v6062 = vadd.f32 %v6061, %v5612
        %v6063 = vadd.f32 %v5501, %v5517
        %v6064 = vadd.f32 %v6063, %v5533
        %v6065 = vadd.f32 %v6064, %v5549
        %v6066 = vadd.f32 %v6065, %v5565
        %v6067 = vadd.f32 %v6066, %v5581
        %v6068 = vadd.f32 %v6067, %v5597
        %v6069 = vadd.f32 %v6068, %v5613
        %v6070 = vadd.f32 %v5502, %v5518
        %v6071 = vadd.f32 %v6070, %v5534
        %v6072 = vadd.f32 %v6071, %v5550
        %v6073 = vadd.f32 %v6072, %v5566
        %v6074 = vadd.f32 %v6073, %v5582
        %v6075 = vadd.f32 %v6074, %v5598
        %v6076 = vadd.f32 %v6075, %v5614
        %v6077 = vadd.f32 %v5503, %v5519
        %v6078 = vadd.f32 %v6077, %v5535
        %v6079 = vadd.f32 %v6078, %v5551
        %v6080 = vadd.f32 %v6079, %v5567
        %v6081 = vadd.f32 %v6080, %v5583
        %v6082 = vadd.f32 %v6081, %v5599
        %v6083 = vadd.f32 %v6082, %v5615
        %v6084 = vadd.f32 %v5504, %v5520
        %v6085 = vadd.f32 %v6084, %v5536
        %v6086 = vadd.f32 %v6085, %v5552
        %v6087 = vadd.f32 %v6086, %v5568
        %v6088 = vadd.f32 %v6087, %v5584
        %v6089 = vadd.f32 %v6088, %v5600
        %v6090 = vadd.f32 %v6089, %v5616
        %v6091 = vadd.f32 %v5505, %v5521
        %v6092 = vadd.f32 %v6091, %v5537
        %v6093 = vadd.f32 %v6092, %v5553
        %v6094 = vadd.f32 %v6093, %v5569
        %v6095 = vadd.f32 %v6094, %v5585
        %v6096 = vadd.f32 %v6095, %v5601
        %v6097 = vadd.f32 %v6096, %v5617
        %v6098 = vadd.f32 %v5618, %v5634
        %v6099 = vadd.f32 %v6098, %v5650
        %v6100 = vadd.f32 %v6099, %v5666
        %v6101 = vadd.f32 %v6100, %v5682
        %v6102 = vadd.f32 %v6101, %v5698
        %v6103 = vadd.f32 %v6102, %v5714
        %v6104 = vadd.f32 %v6103, %v5730
        %v6105 = vadd.f32 %v5619, %v5635
        %v6106 = vadd.f32 %v6105, %v5651
        %v6107 = vadd.f32 %v6106, %v5667
        %v6108 = vadd.f32 %v6107, %v5683
        %v6109 = vadd.f32 %v6108, %v5699
        %v6110 = vadd.f32 %v6109, %v5715
        %v6111 = vadd.f32 %v6110, %v5731
        %v6112 = vadd.f32 %v5620, %v5636
        %v6113 = vadd.f32 %v6112, %v5652
        %v6114 = vadd.f32 %v6113, %v5668
        %v6115 = vadd.f32 %v6114, %v5684
        %v6116 = vadd.f32 %v6115, %v5700
        %v6117 = vadd.f32 %v6116, %v5716
        %v6118 = vadd.f32 %v6117, %v5732
        %v6119 = vadd.f32 %v5621, %v5637
        %v6120 = vadd.f32 %v6119, %v5653
        %v6121 = vadd.f32 %v6120, %v5669
        %v6122 = vadd.f32 %v6121, %v5685
        %v6123 = vadd.f32 %v6122, %v5701
        %v6124 = vadd.f32 %v6123, %v5717
        %v6125 = vadd.f32 %v6124, %v5733
        %v6126 = vadd.f32 %v5622, %v5638
        %v6127 = vadd.f32 %v6126, %v5654
        %v6128 = vadd.f32 %v6127, %v5670
        %v6129 = vadd.f32 %v6128, %v5686
        %v6130 = vadd.f32 %v6129, %v5702
        %v6131 = vadd.f32 %v6130, %v5718
        %v6132 = vadd.f32 %v6131, %v5734
        %v6133 = vadd.f32 %v5623, %v5639
        %v6134 = vadd.f32 %v6133, %v5655
        %v6135 = vadd.f32 %v6134, %v5671
        %v6136 = vadd.f32 %v6135, %v5687
        %v6137 = vadd.f32 %v6136, %v5703
        %v6138 = vadd.f32 %v6137, %v5719
        %v6139 = vadd.f32 %v6138, %v5735
        %v6140 = vadd.f32 %v5624, %v5640
        %v6141 = vadd.f32 %v6140, %v5656
        %v6142 = vadd.f32 %v6141, %v5672
        %v6143 = vadd.f32 %v6142, %v5688
        %v6144 = vadd.f32 %v6143, %v5704
        %v6145 = vadd.f32 %v6144, %v5720
        %v6146 = vadd.f32 %v6145, %v5736
        %v6147 = vadd.f32 %v5625, %v5641
        %v6148 = vadd.f32 %v6147, %v5657
        %v6149 = vadd.f32 %v6148, %v5673
        %v6150 = vadd.f32 %v6149, %v5689
        %v6151 = vadd.f32 %v6150, %v5705
        %v6152 = vadd.f32 %v6151, %v5721
        %v6153 = vadd.f32 %v6152, %v5737
        %v6154 = vadd.f32 %v5626, %v5642
        %v6155 = vadd.f32 %v6154, %v5658
        %v6156 = vadd.f32 %v6155, %v5674
        %v6157 = vadd.f32 %v6156, %v5690
        %v6158 = vadd.f32 %v6157, %v5706
        %v6159 = vadd.f32 %v6158, %v5722
        %v6160 = vadd.f32 %v6159, %v5738
        %v6161 = vadd.f32 %v5627, %v5643
        %v6162 = vadd.f32 %v6161, %v5659
        %v6163 = vadd.f32 %v6162, %v5675
        %v6164 = vadd.f32 %v6163, %v5691
        %v6165 = vadd.f32 %v6164, %v5707
        %v6166 = vadd.f32 %v6165, %v5723
        %v6167 = vadd.f32 %v6166, %v5739
        %v6168 = vadd.f32 %v5628, %v5644
        %v6169 = vadd.f32 %v6168, %v5660
        %v6170 = vadd.f32 %v6169, %v5676
        %v6171 = vadd.f32 %v6170, %v5692
        %v6172 = vadd.f32 %v6171, %v5708
        %v6173 = vadd.f32 %v6172, %v5724
        %v6174 = vadd.f32 %v6173, %v5740
        %v6175 = vadd.f32 %v5629, %v5645
        %v6176 = vadd.f32 %v6175, %v5661
        %v6177 = vadd.f32 %v6176, %v5677
        %v6178 = vadd.f32 %v6177, %v5693
        %v6179 = vadd.f32 %v6178, %v5709
        %v6180 = vadd.f32 %v6179, %v5725
        %v6181 = vadd.f32 %v6180, %v5741
        %v6182 = vadd.f32 %v5630, %v5646
        %v6183 = vadd.f32 %v6182, %v5662
        %v6184 = vadd.f32 %v6183, %v5678
        %v6185 = vadd.f32 %v6184, %v5694
        %v6186 = vadd.f32 %v6185, %v5710
        %v6187 = vadd.f32 %v6186, %v5726
        %v6188 = vadd.f32 %v6187, %v5742
        %v6189 = vadd.f32 %v5631, %v5647
        %v6190 = vadd.f32 %v6189, %v5663
        %v6191 = vadd.f32 %v6190, %v5679
        %v6192 = vadd.f32 %v6191, %v5695
        %v6193 = vadd.f32 %v6192, %v5711
        %v6194 = vadd.f32 %v6193, %v5727
        %v6195 = vadd.f32 %v6194, %v5743
        %v6196 = vadd.f32 %v5632, %v5648
        %v6197 = vadd.f32 %v6196, %v5664
        %v6198 = vadd.f32 %v6197, %v5680
        %v6199 = vadd.f32 %v6198, %v5696
        %v6200 = vadd.f32 %v6199, %v5712
        %v6201 = vadd.f32 %v6200, %v5728
        %v6202 = vadd.f32 %v6201, %v5744
        %v6203 = vadd.f32 %v5633, %v5649
        %v6204 = vadd.f32 %v6203, %v5665
        %v6205 = vadd.f32 %v6204, %v5681
        %v6206 = vadd.f32 %v6205, %v5697
        %v6207 = vadd.f32 %v6206, %v5713
        %v6208 = vadd.f32 %v6207, %v5729
        %v6209 = vadd.f32 %v6208, %v5745
        %v6210 = vadd.f32 %v5746, %v5762
        %v6211 = vadd.f32 %v6210, %v5778
        %v6212 = vadd.f32 %v6211, %v5794
        %v6213 = vadd.f32 %v6212, %v5810
        %v6214 = vadd.f32 %v6213, %v5826
        %v6215 = vadd.f32 %v6214, %v5842
        %v6216 = vadd.f32 %v6215, %v5858
        %v6217 = vadd.f32 %v5747, %v5763
        %v6218 = vadd.f32 %v6217, %v5779
        %v6219 = vadd.f32 %v6218, %v5795
        %v6220 = vadd.f32 %v6219, %v5811
        %v6221 = vadd.f32 %v6220, %v5827
        %v6222 = vadd.f32 %v6221, %v5843
        %v6223 = vadd.f32 %v6222, %v5859
        %v6224 = vadd.f32 %v5748, %v5764
        %v6225 = vadd.f32 %v6224, %v5780
        %v6226 = vadd.f32 %v6225, %v5796
        %v6227 = vadd.f32 %v6226, %v5812
        %v6228 = vadd.f32 %v6227, %v5828
        %v6229 = vadd.f32 %v6228, %v5844
        %v6230 = vadd.f32 %v6229, %v5860
        %v6231 = vadd.f32 %v5749, %v5765
        %v6232 = vadd.f32 %v6231, %v5781
        %v6233 = vadd.f32 %v6232, %v5797
        %v6234 = vadd.f32 %v6233, %v5813
        %v6235 = vadd.f32 %v6234, %v5829
        %v6236 = vadd.f32 %v6235, %v5845
        %v6237 = vadd.f32 %v6236, %v5861
        %v6238 = vadd.f32 %v5750, %v5766
        %v6239 = vadd.f32 %v6238, %v5782
        %v6240 = vadd.f32 %v6239, %v5798
        %v6241 = vadd.f32 %v6240, %v5814
        %v6242 = vadd.f32 %v6241, %v5830
        %v6243 = vadd.f32 %v6242, %v5846
        %v6244 = vadd.f32 %v6243, %v5862
        %v6245 = vadd.f32 %v5751, %v5767
        %v6246 = vadd.f32 %v6245, %v5783
        %v6247 = vadd.f32 %v6246, %v5799
        %v6248 = vadd.f32 %v6247, %v5815
        %v6249 = vadd.f32 %v6248, %v5831
        %v6250 = vadd.f32 %v6249, %v5847
        %v6251 = vadd.f32 %v6250, %v5863
        %v6252 = vadd.f32 %v5752, %v5768
        %v6253 = vadd.f32 %v6252, %v5784
        %v6254 = vadd.f32 %v6253, %v5800
        %v6255 = vadd.f32 %v6254, %v5816
        %v6256 = vadd.f32 %v6255, %v5832
        %v6257 = vadd.f32 %v6256, %v5848
        %v6258 = vadd.f32 %v6257, %v5864
        %v6259 = vadd.f32 %v5753, %v5769
        %v6260 = vadd.f32 %v6259, %v5785
        %v6261 = vadd.f32 %v6260, %v5801
        %v6262 = vadd.f32 %v6261, %v5817
        %v6263 = vadd.f32 %v6262, %v5833
        %v6264 = vadd.f32 %v6263, %v5849
        %v6265 = vadd.f32 %v6264, %v5865
        %v6266 = vadd.f32 %v5754, %v5770
        %v6267 = vadd.f32 %v6266, %v5786
        %v6268 = vadd.f32 %v6267, %v5802
        %v6269 = vadd.f32 %v6268, %v5818
        %v6270 = vadd.f32 %v6269, %v5834
        %v6271 = vadd.f32 %v6270, %v5850
        %v6272 = vadd.f32 %v6271, %v5866
        %v6273 = vadd.f32 %v5755, %v5771
        %v6274 = vadd.f32 %v6273, %v5787
        %v6275 = vadd.f32 %v6274, %v5803
        %v6276 = vadd.f32 %v6275, %v5819
        %v6277 = vadd.f32 %v6276, %v5835
        %v6278 = vadd.f32 %v6277, %v5851
        %v6279 = vadd.f32 %v6278, %v5867
        %v6280 = vadd.f32 %v5756, %v5772
        %v6281 = vadd.f32 %v6280, %v5788
        %v6282 = vadd.f32 %v6281, %v5804
        %v6283 = vadd.f32 %v6282, %v5820
        %v6284 = vadd.f32 %v6283, %v5836
        %v6285 = vadd.f32 %v6284, %v5852
        %v6286 = vadd.f32 %v6285, %v5868
        %v6287 = vadd.f32 %v5757, %v5773
        %v6288 = vadd.f32 %v6287, %v5789
        %v6289 = vadd.f32 %v6288, %v5805
        %v6290 = vadd.f32 %v6289, %v5821
        %v6291 = vadd.f32 %v6290, %v5837
        %v6292 = vadd.f32 %v6291, %v5853
        %v6293 = vadd.f32 %v6292, %v5869
        %v6294 = vadd.f32 %v5758, %v5774
        %v6295 = vadd.f32 %v6294, %v5790
        %v6296 = vadd.f32 %v6295, %v5806
        %v6297 = vadd.f32 %v6296, %v5822
        %v6298 = vadd.f32 %v6297, %v5838
        %v6299 = vadd.f32 %v6298, %v5854
        %v6300 = vadd.f32 %v6299, %v5870
        %v6301 = vadd.f32 %v5759, %v5775
        %v6302 = vadd.f32 %v6301, %v5791
        %v6303 = vadd.f32 %v6302, %v5807
        %v6304 = vadd.f32 %v6303, %v5823
        %v6305 = vadd.f32 %v6304, %v5839
        %v6306 = vadd.f32 %v6305, %v5855
        %v6307 = vadd.f32 %v6306, %v5871
        %v6308 = vadd.f32 %v5760, %v5776
        %v6309 = vadd.f32 %v6308, %v5792
        %v6310 = vadd.f32 %v6309, %v5808
        %v6311 = vadd.f32 %v6310, %v5824
        %v6312 = vadd.f32 %v6311, %v5840
        %v6313 = vadd.f32 %v6312, %v5856
        %v6314 = vadd.f32 %v6313, %v5872
        %v6315 = vadd.f32 %v5761, %v5777
        %v6316 = vadd.f32 %v6315, %v5793
        %v6317 = vadd.f32 %v6316, %v5809
        %v6318 = vadd.f32 %v6317, %v5825
        %v6319 = vadd.f32 %v6318, %v5841
        %v6320 = vadd.f32 %v6319, %v5857
        %v6321 = vadd.f32 %v6320, %v5873
        %v6322 = vrot.slane %v5880, 4
        %v6323 = vmax.f32 %v5880, %v6322
        %v6324 = vrot.slane %v6323, 2
        %v6325 = vmax.f32 %v6323, %v6324
        %v6326 = vrot.slane %v6325, 1
        %v6327 = vmax.f32 %v6325, %v6326
        %v6328 = vrot.slane %v5887, 4
        %v6329 = vmax.f32 %v5887, %v6328
        %v6330 = vrot.slane %v6329, 2
        %v6331 = vmax.f32 %v6329, %v6330
        %v6332 = vrot.slane %v6331, 1
        %v6333 = vmax.f32 %v6331, %v6332
        %v6334 = vrot.slane %v5894, 4
        %v6335 = vmax.f32 %v5894, %v6334
        %v6336 = vrot.slane %v6335, 2
        %v6337 = vmax.f32 %v6335, %v6336
        %v6338 = vrot.slane %v6337, 1
        %v6339 = vmax.f32 %v6337, %v6338
        %v6340 = vrot.slane %v5901, 4
        %v6341 = vmax.f32 %v5901, %v6340
        %v6342 = vrot.slane %v6341, 2
        %v6343 = vmax.f32 %v6341, %v6342
        %v6344 = vrot.slane %v6343, 1
        %v6345 = vmax.f32 %v6343, %v6344
        %v6346 = vrot.slane %v5908, 4
        %v6347 = vmax.f32 %v5908, %v6346
        %v6348 = vrot.slane %v6347, 2
        %v6349 = vmax.f32 %v6347, %v6348
        %v6350 = vrot.slane %v6349, 1
        %v6351 = vmax.f32 %v6349, %v6350
        %v6352 = vrot.slane %v5915, 4
        %v6353 = vmax.f32 %v5915, %v6352
        %v6354 = vrot.slane %v6353, 2
        %v6355 = vmax.f32 %v6353, %v6354
        %v6356 = vrot.slane %v6355, 1
        %v6357 = vmax.f32 %v6355, %v6356
        %v6358 = vrot.slane %v5922, 4
        %v6359 = vmax.f32 %v5922, %v6358
        %v6360 = vrot.slane %v6359, 2
        %v6361 = vmax.f32 %v6359, %v6360
        %v6362 = vrot.slane %v6361, 1
        %v6363 = vmax.f32 %v6361, %v6362
        %v6364 = vrot.slane %v5929, 4
        %v6365 = vmax.f32 %v5929, %v6364
        %v6366 = vrot.slane %v6365, 2
        %v6367 = vmax.f32 %v6365, %v6366
        %v6368 = vrot.slane %v6367, 1
        %v6369 = vmax.f32 %v6367, %v6368
        %v6370 = vrot.slane %v5936, 4
        %v6371 = vmax.f32 %v5936, %v6370
        %v6372 = vrot.slane %v6371, 2
        %v6373 = vmax.f32 %v6371, %v6372
        %v6374 = vrot.slane %v6373, 1
        %v6375 = vmax.f32 %v6373, %v6374
        %v6376 = vrot.slane %v5943, 4
        %v6377 = vmax.f32 %v5943, %v6376
        %v6378 = vrot.slane %v6377, 2
        %v6379 = vmax.f32 %v6377, %v6378
        %v6380 = vrot.slane %v6379, 1
        %v6381 = vmax.f32 %v6379, %v6380
        %v6382 = vrot.slane %v5950, 4
        %v6383 = vmax.f32 %v5950, %v6382
        %v6384 = vrot.slane %v6383, 2
        %v6385 = vmax.f32 %v6383, %v6384
        %v6386 = vrot.slane %v6385, 1
        %v6387 = vmax.f32 %v6385, %v6386
        %v6388 = vrot.slane %v5957, 4
        %v6389 = vmax.f32 %v5957, %v6388
        %v6390 = vrot.slane %v6389, 2
        %v6391 = vmax.f32 %v6389, %v6390
        %v6392 = vrot.slane %v6391, 1
        %v6393 = vmax.f32 %v6391, %v6392
        %v6394 = vrot.slane %v5964, 4
        %v6395 = vmax.f32 %v5964, %v6394
        %v6396 = vrot.slane %v6395, 2
        %v6397 = vmax.f32 %v6395, %v6396
        %v6398 = vrot.slane %v6397, 1
        %v6399 = vmax.f32 %v6397, %v6398
        %v6400 = vrot.slane %v5971, 4
        %v6401 = vmax.f32 %v5971, %v6400
        %v6402 = vrot.slane %v6401, 2
        %v6403 = vmax.f32 %v6401, %v6402
        %v6404 = vrot.slane %v6403, 1
        %v6405 = vmax.f32 %v6403, %v6404
        %v6406 = vrot.slane %v5978, 4
        %v6407 = vmax.f32 %v5978, %v6406
        %v6408 = vrot.slane %v6407, 2
        %v6409 = vmax.f32 %v6407, %v6408
        %v6410 = vrot.slane %v6409, 1
        %v6411 = vmax.f32 %v6409, %v6410
        %v6412 = vrot.slane %v5985, 4
        %v6413 = vmax.f32 %v5985, %v6412
        %v6414 = vrot.slane %v6413, 2
        %v6415 = vmax.f32 %v6413, %v6414
        %v6416 = vrot.slane %v6415, 1
        %v6417 = vmax.f32 %v6415, %v6416
        %v6418 = vrot.slane %v5992, 4
        %v6419 = vmax.f32 %v5992, %v6418
        %v6420 = vrot.slane %v6419, 2
        %v6421 = vmax.f32 %v6419, %v6420
        %v6422 = vrot.slane %v6421, 1
        %v6423 = vmax.f32 %v6421, %v6422
        %v6424 = vrot.slane %v5999, 4
        %v6425 = vmax.f32 %v5999, %v6424
        %v6426 = vrot.slane %v6425, 2
        %v6427 = vmax.f32 %v6425, %v6426
        %v6428 = vrot.slane %v6427, 1
        %v6429 = vmax.f32 %v6427, %v6428
        %v6430 = vrot.slane %v6006, 4
        %v6431 = vmax.f32 %v6006, %v6430
        %v6432 = vrot.slane %v6431, 2
        %v6433 = vmax.f32 %v6431, %v6432
        %v6434 = vrot.slane %v6433, 1
        %v6435 = vmax.f32 %v6433, %v6434
        %v6436 = vrot.slane %v6013, 4
        %v6437 = vmax.f32 %v6013, %v6436
        %v6438 = vrot.slane %v6437, 2
        %v6439 = vmax.f32 %v6437, %v6438
        %v6440 = vrot.slane %v6439, 1
        %v6441 = vmax.f32 %v6439, %v6440
        %v6442 = vrot.slane %v6020, 4
        %v6443 = vmax.f32 %v6020, %v6442
        %v6444 = vrot.slane %v6443, 2
        %v6445 = vmax.f32 %v6443, %v6444
        %v6446 = vrot.slane %v6445, 1
        %v6447 = vmax.f32 %v6445, %v6446
        %v6448 = vrot.slane %v6027, 4
        %v6449 = vmax.f32 %v6027, %v6448
        %v6450 = vrot.slane %v6449, 2
        %v6451 = vmax.f32 %v6449, %v6450
        %v6452 = vrot.slane %v6451, 1
        %v6453 = vmax.f32 %v6451, %v6452
        %v6454 = vrot.slane %v6034, 4
        %v6455 = vmax.f32 %v6034, %v6454
        %v6456 = vrot.slane %v6455, 2
        %v6457 = vmax.f32 %v6455, %v6456
        %v6458 = vrot.slane %v6457, 1
        %v6459 = vmax.f32 %v6457, %v6458
        %v6460 = vrot.slane %v6041, 4
        %v6461 = vmax.f32 %v6041, %v6460
        %v6462 = vrot.slane %v6461, 2
        %v6463 = vmax.f32 %v6461, %v6462
        %v6464 = vrot.slane %v6463, 1
        %v6465 = vmax.f32 %v6463, %v6464
        %v6466 = vrot.slane %v6048, 4
        %v6467 = vmax.f32 %v6048, %v6466
        %v6468 = vrot.slane %v6467, 2
        %v6469 = vmax.f32 %v6467, %v6468
        %v6470 = vrot.slane %v6469, 1
        %v6471 = vmax.f32 %v6469, %v6470
        %v6472 = vrot.slane %v6055, 4
        %v6473 = vmax.f32 %v6055, %v6472
        %v6474 = vrot.slane %v6473, 2
        %v6475 = vmax.f32 %v6473, %v6474
        %v6476 = vrot.slane %v6475, 1
        %v6477 = vmax.f32 %v6475, %v6476
        %v6478 = vrot.slane %v6062, 4
        %v6479 = vmax.f32 %v6062, %v6478
        %v6480 = vrot.slane %v6479, 2
        %v6481 = vmax.f32 %v6479, %v6480
        %v6482 = vrot.slane %v6481, 1
        %v6483 = vmax.f32 %v6481, %v6482
        %v6484 = vrot.slane %v6069, 4
        %v6485 = vmax.f32 %v6069, %v6484
        %v6486 = vrot.slane %v6485, 2
        %v6487 = vmax.f32 %v6485, %v6486
        %v6488 = vrot.slane %v6487, 1
        %v6489 = vmax.f32 %v6487, %v6488
        %v6490 = vrot.slane %v6076, 4
        %v6491 = vmax.f32 %v6076, %v6490
        %v6492 = vrot.slane %v6491, 2
        %v6493 = vmax.f32 %v6491, %v6492
        %v6494 = vrot.slane %v6493, 1
        %v6495 = vmax.f32 %v6493, %v6494
        %v6496 = vrot.slane %v6083, 4
        %v6497 = vmax.f32 %v6083, %v6496
        %v6498 = vrot.slane %v6497, 2
        %v6499 = vmax.f32 %v6497, %v6498
        %v6500 = vrot.slane %v6499, 1
        %v6501 = vmax.f32 %v6499, %v6500
        %v6502 = vrot.slane %v6090, 4
        %v6503 = vmax.f32 %v6090, %v6502
        %v6504 = vrot.slane %v6503, 2
        %v6505 = vmax.f32 %v6503, %v6504
        %v6506 = vrot.slane %v6505, 1
        %v6507 = vmax.f32 %v6505, %v6506
        %v6508 = vrot.slane %v6097, 4
        %v6509 = vmax.f32 %v6097, %v6508
        %v6510 = vrot.slane %v6509, 2
        %v6511 = vmax.f32 %v6509, %v6510
        %v6512 = vrot.slane %v6511, 1
        %v6513 = vmax.f32 %v6511, %v6512
        %v6514 = vrot.slane %v6104, 4
        %v6515 = vmax.f32 %v6104, %v6514
        %v6516 = vrot.slane %v6515, 2
        %v6517 = vmax.f32 %v6515, %v6516
        %v6518 = vrot.slane %v6517, 1
        %v6519 = vmax.f32 %v6517, %v6518
        %v6520 = vrot.slane %v6111, 4
        %v6521 = vmax.f32 %v6111, %v6520
        %v6522 = vrot.slane %v6521, 2
        %v6523 = vmax.f32 %v6521, %v6522
        %v6524 = vrot.slane %v6523, 1
        %v6525 = vmax.f32 %v6523, %v6524
        %v6526 = vrot.slane %v6118, 4
        %v6527 = vmax.f32 %v6118, %v6526
        %v6528 = vrot.slane %v6527, 2
        %v6529 = vmax.f32 %v6527, %v6528
        %v6530 = vrot.slane %v6529, 1
        %v6531 = vmax.f32 %v6529, %v6530
        %v6532 = vrot.slane %v6125, 4
        %v6533 = vmax.f32 %v6125, %v6532
        %v6534 = vrot.slane %v6533, 2
        %v6535 = vmax.f32 %v6533, %v6534
        %v6536 = vrot.slane %v6535, 1
        %v6537 = vmax.f32 %v6535, %v6536
        %v6538 = vrot.slane %v6132, 4
        %v6539 = vmax.f32 %v6132, %v6538
        %v6540 = vrot.slane %v6539, 2
        %v6541 = vmax.f32 %v6539, %v6540
        %v6542 = vrot.slane %v6541, 1
        %v6543 = vmax.f32 %v6541, %v6542
        %v6544 = vrot.slane %v6139, 4
        %v6545 = vmax.f32 %v6139, %v6544
        %v6546 = vrot.slane %v6545, 2
        %v6547 = vmax.f32 %v6545, %v6546
        %v6548 = vrot.slane %v6547, 1
        %v6549 = vmax.f32 %v6547, %v6548
        %v6550 = vrot.slane %v6146, 4
        %v6551 = vmax.f32 %v6146, %v6550
        %v6552 = vrot.slane %v6551, 2
        %v6553 = vmax.f32 %v6551, %v6552
        %v6554 = vrot.slane %v6553, 1
        %v6555 = vmax.f32 %v6553, %v6554
        %v6556 = vrot.slane %v6153, 4
        %v6557 = vmax.f32 %v6153, %v6556
        %v6558 = vrot.slane %v6557, 2
        %v6559 = vmax.f32 %v6557, %v6558
        %v6560 = vrot.slane %v6559, 1
        %v6561 = vmax.f32 %v6559, %v6560
        %v6562 = vrot.slane %v6160, 4
        %v6563 = vmax.f32 %v6160, %v6562
        %v6564 = vrot.slane %v6563, 2
        %v6565 = vmax.f32 %v6563, %v6564
        %v6566 = vrot.slane %v6565, 1
        %v6567 = vmax.f32 %v6565, %v6566
        %v6568 = vrot.slane %v6167, 4
        %v6569 = vmax.f32 %v6167, %v6568
        %v6570 = vrot.slane %v6569, 2
        %v6571 = vmax.f32 %v6569, %v6570
        %v6572 = vrot.slane %v6571, 1
        %v6573 = vmax.f32 %v6571, %v6572
        %v6574 = vrot.slane %v6174, 4
        %v6575 = vmax.f32 %v6174, %v6574
        %v6576 = vrot.slane %v6575, 2
        %v6577 = vmax.f32 %v6575, %v6576
        %v6578 = vrot.slane %v6577, 1
        %v6579 = vmax.f32 %v6577, %v6578
        %v6580 = vrot.slane %v6181, 4
        %v6581 = vmax.f32 %v6181, %v6580
        %v6582 = vrot.slane %v6581, 2
        %v6583 = vmax.f32 %v6581, %v6582
        %v6584 = vrot.slane %v6583, 1
        %v6585 = vmax.f32 %v6583, %v6584
        %v6586 = vrot.slane %v6188, 4
        %v6587 = vmax.f32 %v6188, %v6586
        %v6588 = vrot.slane %v6587, 2
        %v6589 = vmax.f32 %v6587, %v6588
        %v6590 = vrot.slane %v6589, 1
        %v6591 = vmax.f32 %v6589, %v6590
        %v6592 = vrot.slane %v6195, 4
        %v6593 = vmax.f32 %v6195, %v6592
        %v6594 = vrot.slane %v6593, 2
        %v6595 = vmax.f32 %v6593, %v6594
        %v6596 = vrot.slane %v6595, 1
        %v6597 = vmax.f32 %v6595, %v6596
        %v6598 = vrot.slane %v6202, 4
        %v6599 = vmax.f32 %v6202, %v6598
        %v6600 = vrot.slane %v6599, 2
        %v6601 = vmax.f32 %v6599, %v6600
        %v6602 = vrot.slane %v6601, 1
        %v6603 = vmax.f32 %v6601, %v6602
        %v6604 = vrot.slane %v6209, 4
        %v6605 = vmax.f32 %v6209, %v6604
        %v6606 = vrot.slane %v6605, 2
        %v6607 = vmax.f32 %v6605, %v6606
        %v6608 = vrot.slane %v6607, 1
        %v6609 = vmax.f32 %v6607, %v6608
        %v6610 = vrot.slane %v6216, 4
        %v6611 = vmax.f32 %v6216, %v6610
        %v6612 = vrot.slane %v6611, 2
        %v6613 = vmax.f32 %v6611, %v6612
        %v6614 = vrot.slane %v6613, 1
        %v6615 = vmax.f32 %v6613, %v6614
        %v6616 = vrot.slane %v6223, 4
        %v6617 = vmax.f32 %v6223, %v6616
        %v6618 = vrot.slane %v6617, 2
        %v6619 = vmax.f32 %v6617, %v6618
        %v6620 = vrot.slane %v6619, 1
        %v6621 = vmax.f32 %v6619, %v6620
        %v6622 = vrot.slane %v6230, 4
        %v6623 = vmax.f32 %v6230, %v6622
        %v6624 = vrot.slane %v6623, 2
        %v6625 = vmax.f32 %v6623, %v6624
        %v6626 = vrot.slane %v6625, 1
        %v6627 = vmax.f32 %v6625, %v6626
        %v6628 = vrot.slane %v6237, 4
        %v6629 = vmax.f32 %v6237, %v6628
        %v6630 = vrot.slane %v6629, 2
        %v6631 = vmax.f32 %v6629, %v6630
        %v6632 = vrot.slane %v6631, 1
        %v6633 = vmax.f32 %v6631, %v6632
        %v6634 = vrot.slane %v6244, 4
        %v6635 = vmax.f32 %v6244, %v6634
        %v6636 = vrot.slane %v6635, 2
        %v6637 = vmax.f32 %v6635, %v6636
        %v6638 = vrot.slane %v6637, 1
        %v6639 = vmax.f32 %v6637, %v6638
        %v6640 = vrot.slane %v6251, 4
        %v6641 = vmax.f32 %v6251, %v6640
        %v6642 = vrot.slane %v6641, 2
        %v6643 = vmax.f32 %v6641, %v6642
        %v6644 = vrot.slane %v6643, 1
        %v6645 = vmax.f32 %v6643, %v6644
        %v6646 = vrot.slane %v6258, 4
        %v6647 = vmax.f32 %v6258, %v6646
        %v6648 = vrot.slane %v6647, 2
        %v6649 = vmax.f32 %v6647, %v6648
        %v6650 = vrot.slane %v6649, 1
        %v6651 = vmax.f32 %v6649, %v6650
        %v6652 = vrot.slane %v6265, 4
        %v6653 = vmax.f32 %v6265, %v6652
        %v6654 = vrot.slane %v6653, 2
        %v6655 = vmax.f32 %v6653, %v6654
        %v6656 = vrot.slane %v6655, 1
        %v6657 = vmax.f32 %v6655, %v6656
        %v6658 = vrot.slane %v6272, 4
        %v6659 = vmax.f32 %v6272, %v6658
        %v6660 = vrot.slane %v6659, 2
        %v6661 = vmax.f32 %v6659, %v6660
        %v6662 = vrot.slane %v6661, 1
        %v6663 = vmax.f32 %v6661, %v6662
        %v6664 = vrot.slane %v6279, 4
        %v6665 = vmax.f32 %v6279, %v6664
        %v6666 = vrot.slane %v6665, 2
        %v6667 = vmax.f32 %v6665, %v6666
        %v6668 = vrot.slane %v6667, 1
        %v6669 = vmax.f32 %v6667, %v6668
        %v6670 = vrot.slane %v6286, 4
        %v6671 = vmax.f32 %v6286, %v6670
        %v6672 = vrot.slane %v6671, 2
        %v6673 = vmax.f32 %v6671, %v6672
        %v6674 = vrot.slane %v6673, 1
        %v6675 = vmax.f32 %v6673, %v6674
        %v6676 = vrot.slane %v6293, 4
        %v6677 = vmax.f32 %v6293, %v6676
        %v6678 = vrot.slane %v6677, 2
        %v6679 = vmax.f32 %v6677, %v6678
        %v6680 = vrot.slane %v6679, 1
        %v6681 = vmax.f32 %v6679, %v6680
        %v6682 = vrot.slane %v6300, 4
        %v6683 = vmax.f32 %v6300, %v6682
        %v6684 = vrot.slane %v6683, 2
        %v6685 = vmax.f32 %v6683, %v6684
        %v6686 = vrot.slane %v6685, 1
        %v6687 = vmax.f32 %v6685, %v6686
        %v6688 = vrot.slane %v6307, 4
        %v6689 = vmax.f32 %v6307, %v6688
        %v6690 = vrot.slane %v6689, 2
        %v6691 = vmax.f32 %v6689, %v6690
        %v6692 = vrot.slane %v6691, 1
        %v6693 = vmax.f32 %v6691, %v6692
        %v6694 = vrot.slane %v6314, 4
        %v6695 = vmax.f32 %v6314, %v6694
        %v6696 = vrot.slane %v6695, 2
        %v6697 = vmax.f32 %v6695, %v6696
        %v6698 = vrot.slane %v6697, 1
        %v6699 = vmax.f32 %v6697, %v6698
        %v6700 = vrot.slane %v6321, 4
        %v6701 = vmax.f32 %v6321, %v6700
        %v6702 = vrot.slane %v6701, 2
        %v6703 = vmax.f32 %v6701, %v6702
        %v6704 = vrot.slane %v6703, 1
        %v6705 = vmax.f32 %v6703, %v6704
        %v6706 = vsub.f32 %v5880, %v6327
        %v6707 = vsub.f32 %v5887, %v6333
        %v6708 = vsub.f32 %v5894, %v6339
        %v6709 = vsub.f32 %v5901, %v6345
        %v6710 = vsub.f32 %v5908, %v6351
        %v6711 = vsub.f32 %v5915, %v6357
        %v6712 = vsub.f32 %v5922, %v6363
        %v6713 = vsub.f32 %v5929, %v6369
        %v6714 = vsub.f32 %v5936, %v6375
        %v6715 = vsub.f32 %v5943, %v6381
        %v6716 = vsub.f32 %v5950, %v6387
        %v6717 = vsub.f32 %v5957, %v6393
        %v6718 = vsub.f32 %v5964, %v6399
        %v6719 = vsub.f32 %v5971, %v6405
        %v6720 = vsub.f32 %v5978, %v6411
        %v6721 = vsub.f32 %v5985, %v6417
        %v6722 = vsub.f32 %v5992, %v6423
        %v6723 = vsub.f32 %v5999, %v6429
        %v6724 = vsub.f32 %v6006, %v6435
        %v6725 = vsub.f32 %v6013, %v6441
        %v6726 = vsub.f32 %v6020, %v6447
        %v6727 = vsub.f32 %v6027, %v6453
        %v6728 = vsub.f32 %v6034, %v6459
        %v6729 = vsub.f32 %v6041, %v6465
        %v6730 = vsub.f32 %v6048, %v6471
        %v6731 = vsub.f32 %v6055, %v6477
        %v6732 = vsub.f32 %v6062, %v6483
        %v6733 = vsub.f32 %v6069, %v6489
        %v6734 = vsub.f32 %v6076, %v6495
        %v6735 = vsub.f32 %v6083, %v6501
        %v6736 = vsub.f32 %v6090, %v6507
        %v6737 = vsub.f32 %v6097, %v6513
        %v6738 = vsub.f32 %v6104, %v6519
        %v6739 = vsub.f32 %v6111, %v6525
        %v6740 = vsub.f32 %v6118, %v6531
        %v6741 = vsub.f32 %v6125, %v6537
        %v6742 = vsub.f32 %v6132, %v6543
        %v6743 = vsub.f32 %v6139, %v6549
        %v6744 = vsub.f32 %v6146, %v6555
        %v6745 = vsub.f32 %v6153, %v6561
        %v6746 = vsub.f32 %v6160, %v6567
        %v6747 = vsub.f32 %v6167, %v6573
        %v6748 = vsub.f32 %v6174, %v6579
        %v6749 = vsub.f32 %v6181, %v6585
        %v6750 = vsub.f32 %v6188, %v6591
        %v6751 = vsub.f32 %v6195, %v6597
        %v6752 = vsub.f32 %v6202, %v6603
        %v6753 = vsub.f32 %v6209, %v6609
        %v6754 = vsub.f32 %v6216, %v6615
        %v6755 = vsub.f32 %v6223, %v6621
        %v6756 = vsub.f32 %v6230, %v6627
        %v6757 = vsub.f32 %v6237, %v6633
        %v6758 = vsub.f32 %v6244, %v6639
        %v6759 = vsub.f32 %v6251, %v6645
        %v6760 = vsub.f32 %v6258, %v6651
        %v6761 = vsub.f32 %v6265, %v6657
        %v6762 = vsub.f32 %v6272, %v6663
        %v6763 = vsub.f32 %v6279, %v6669
        %v6764 = vsub.f32 %v6286, %v6675
        %v6765 = vsub.f32 %v6293, %v6681
        %v6766 = vsub.f32 %v6300, %v6687
        %v6767 = vsub.f32 %v6307, %v6693
        %v6768 = vsub.f32 %v6314, %v6699
        %v6769 = vsub.f32 %v6321, %v6705
        %v6770 = vmul.f32 %v6706, 1.442695
        %v6771 = vpow.pop %v6770
        %v6772 = vmul.f32 %v6707, 1.442695
        %v6773 = vpow.pop %v6772
        %v6774 = vmul.f32 %v6708, 1.442695
        %v6775 = vpow.pop %v6774
        %v6776 = vmul.f32 %v6709, 1.442695
        %v6777 = vpow.pop %v6776
        %v6778 = vmul.f32 %v6710, 1.442695
        %v6779 = vpow.pop %v6778
        %v6780 = vmul.f32 %v6711, 1.442695
        %v6781 = vpow.pop %v6780
        %v6782 = vmul.f32 %v6712, 1.442695
        %v6783 = vpow.pop %v6782
        %v6784 = vmul.f32 %v6713, 1.442695
        %v6785 = vpow.pop %v6784
        %v6786 = vmul.f32 %v6714, 1.442695
        %v6787 = vpow.pop %v6786
        %v6788 = vmul.f32 %v6715, 1.442695
        %v6789 = vpow.pop %v6788
        %v6790 = vmul.f32 %v6716, 1.442695
        %v6791 = vpow.pop %v6790
        %v6792 = vmul.f32 %v6717, 1.442695
        %v6793 = vpow.pop %v6792
        %v6794 = vmul.f32 %v6718, 1.442695
        %v6795 = vpow.pop %v6794
        %v6796 = vmul.f32 %v6719, 1.442695
        %v6797 = vpow.pop %v6796
        %v6798 = vmul.f32 %v6720, 1.442695
        %v6799 = vpow.pop %v6798
        %v6800 = vmul.f32 %v6721, 1.442695
        %v6801 = vpow.pop %v6800
        %v6802 = vmul.f32 %v6722, 1.442695
        %v6803 = vpow.pop %v6802
        %v6804 = vmul.f32 %v6723, 1.442695
        %v6805 = vpow.pop %v6804
        %v6806 = vmul.f32 %v6724, 1.442695
        %v6807 = vpow.pop %v6806
        %v6808 = vmul.f32 %v6725, 1.442695
        %v6809 = vpow.pop %v6808
        %v6810 = vmul.f32 %v6726, 1.442695
        %v6811 = vpow.pop %v6810
        %v6812 = vmul.f32 %v6727, 1.442695
        %v6813 = vpow.pop %v6812
        %v6814 = vmul.f32 %v6728, 1.442695
        %v6815 = vpow.pop %v6814
        %v6816 = vmul.f32 %v6729, 1.442695
        %v6817 = vpow.pop %v6816
        %v6818 = vmul.f32 %v6730, 1.442695
        %v6819 = vpow.pop %v6818
        %v6820 = vmul.f32 %v6731, 1.442695
        %v6821 = vpow.pop %v6820
        %v6822 = vmul.f32 %v6732, 1.442695
        %v6823 = vpow.pop %v6822
        %v6824 = vmul.f32 %v6733, 1.442695
        %v6825 = vpow.pop %v6824
        %v6826 = vmul.f32 %v6734, 1.442695
        %v6827 = vpow.pop %v6826
        %v6828 = vmul.f32 %v6735, 1.442695
        %v6829 = vpow.pop %v6828
        %v6830 = vmul.f32 %v6736, 1.442695
        %v6831 = vpow.pop %v6830
        %v6832 = vmul.f32 %v6737, 1.442695
        %v6833 = vpow.pop %v6832
        %v6834 = vmul.f32 %v6738, 1.442695
        %v6835 = vpow.pop %v6834
        %v6836 = vmul.f32 %v6739, 1.442695
        %v6837 = vpow.pop %v6836
        %v6838 = vmul.f32 %v6740, 1.442695
        %v6839 = vpow.pop %v6838
        %v6840 = vmul.f32 %v6741, 1.442695
        %v6841 = vpow.pop %v6840
        %v6842 = vmul.f32 %v6742, 1.442695
        %v6843 = vpow.pop %v6842
        %v6844 = vmul.f32 %v6743, 1.442695
        %v6845 = vpow.pop %v6844
        %v6846 = vmul.f32 %v6744, 1.442695
        %v6847 = vpow.pop %v6846
        %v6848 = vmul.f32 %v6745, 1.442695
        %v6849 = vpow.pop %v6848
        %v6850 = vmul.f32 %v6746, 1.442695
        %v6851 = vpow.pop %v6850
        %v6852 = vmul.f32 %v6747, 1.442695
        %v6853 = vpow.pop %v6852
        %v6854 = vmul.f32 %v6748, 1.442695
        %v6855 = vpow.pop %v6854
        %v6856 = vmul.f32 %v6749, 1.442695
        %v6857 = vpow.pop %v6856
        %v6858 = vmul.f32 %v6750, 1.442695
        %v6859 = vpow.pop %v6858
        %v6860 = vmul.f32 %v6751, 1.442695
        %v6861 = vpow.pop %v6860
        %v6862 = vmul.f32 %v6752, 1.442695
        %v6863 = vpow.pop %v6862
        %v6864 = vmul.f32 %v6753, 1.442695
        %v6865 = vpow.pop %v6864
        %v6866 = vmul.f32 %v6754, 1.442695
        %v6867 = vpow.pop %v6866
        %v6868 = vmul.f32 %v6755, 1.442695
        %v6869 = vpow.pop %v6868
        %v6870 = vmul.f32 %v6756, 1.442695
        %v6871 = vpow.pop %v6870
        %v6872 = vmul.f32 %v6757, 1.442695
        %v6873 = vpow.pop %v6872
        %v6874 = vmul.f32 %v6758, 1.442695
        %v6875 = vpow.pop %v6874
        %v6876 = vmul.f32 %v6759, 1.442695
        %v6877 = vpow.pop %v6876
        %v6878 = vmul.f32 %v6760, 1.442695
        %v6879 = vpow.pop %v6878
        %v6880 = vmul.f32 %v6761, 1.442695
        %v6881 = vpow.pop %v6880
        %v6882 = vmul.f32 %v6762, 1.442695
        %v6883 = vpow.pop %v6882
        %v6884 = vmul.f32 %v6763, 1.442695
        %v6885 = vpow.pop %v6884
        %v6886 = vmul.f32 %v6764, 1.442695
        %v6887 = vpow.pop %v6886
        %v6888 = vmul.f32 %v6765, 1.442695
        %v6889 = vpow.pop %v6888
        %v6890 = vmul.f32 %v6766, 1.442695
        %v6891 = vpow.pop %v6890
        %v6892 = vmul.f32 %v6767, 1.442695
        %v6893 = vpow.pop %v6892
        %v6894 = vmul.f32 %v6768, 1.442695
        %v6895 = vpow.pop %v6894
        %v6896 = vmul.f32 %v6769, 1.442695
        %v6897 = vpow.pop %v6896
        %v6898 = vrot.slane %v6771, 4
        %v6899 = vadd.f32 %v6771, %v6898
        %v6900 = vrot.slane %v6899, 2
        %v6901 = vadd.f32 %v6899, %v6900
        %v6902 = vrot.slane %v6901, 1
        %v6903 = vadd.f32 %v6901, %v6902
        %v6904 = vrot.slane %v6773, 4
        %v6905 = vadd.f32 %v6773, %v6904
        %v6906 = vrot.slane %v6905, 2
        %v6907 = vadd.f32 %v6905, %v6906
        %v6908 = vrot.slane %v6907, 1
        %v6909 = vadd.f32 %v6907, %v6908
        %v6910 = vrot.slane %v6775, 4
        %v6911 = vadd.f32 %v6775, %v6910
        %v6912 = vrot.slane %v6911, 2
        %v6913 = vadd.f32 %v6911, %v6912
        %v6914 = vrot.slane %v6913, 1
        %v6915 = vadd.f32 %v6913, %v6914
        %v6916 = vrot.slane %v6777, 4
        %v6917 = vadd.f32 %v6777, %v6916
        %v6918 = vrot.slane %v6917, 2
        %v6919 = vadd.f32 %v6917, %v6918
        %v6920 = vrot.slane %v6919, 1
        %v6921 = vadd.f32 %v6919, %v6920
        %v6922 = vrot.slane %v6779, 4
        %v6923 = vadd.f32 %v6779, %v6922
        %v6924 = vrot.slane %v6923, 2
        %v6925 = vadd.f32 %v6923, %v6924
        %v6926 = vrot.slane %v6925, 1
        %v6927 = vadd.f32 %v6925, %v6926
        %v6928 = vrot.slane %v6781, 4
        %v6929 = vadd.f32 %v6781, %v6928
        %v6930 = vrot.slane %v6929, 2
        %v6931 = vadd.f32 %v6929, %v6930
        %v6932 = vrot.slane %v6931, 1
        %v6933 = vadd.f32 %v6931, %v6932
        %v6934 = vrot.slane %v6783, 4
        %v6935 = vadd.f32 %v6783, %v6934
        %v6936 = vrot.slane %v6935, 2
        %v6937 = vadd.f32 %v6935, %v6936
        %v6938 = vrot.slane %v6937, 1
        %v6939 = vadd.f32 %v6937, %v6938
        %v6940 = vrot.slane %v6785, 4
        %v6941 = vadd.f32 %v6785, %v6940
        %v6942 = vrot.slane %v6941, 2
        %v6943 = vadd.f32 %v6941, %v6942
        %v6944 = vrot.slane %v6943, 1
        %v6945 = vadd.f32 %v6943, %v6944
        %v6946 = vrot.slane %v6787, 4
        %v6947 = vadd.f32 %v6787, %v6946
        %v6948 = vrot.slane %v6947, 2
        %v6949 = vadd.f32 %v6947, %v6948
        %v6950 = vrot.slane %v6949, 1
        %v6951 = vadd.f32 %v6949, %v6950
        %v6952 = vrot.slane %v6789, 4
        %v6953 = vadd.f32 %v6789, %v6952
        %v6954 = vrot.slane %v6953, 2
        %v6955 = vadd.f32 %v6953, %v6954
        %v6956 = vrot.slane %v6955, 1
        %v6957 = vadd.f32 %v6955, %v6956
        %v6958 = vrot.slane %v6791, 4
        %v6959 = vadd.f32 %v6791, %v6958
        %v6960 = vrot.slane %v6959, 2
        %v6961 = vadd.f32 %v6959, %v6960
        %v6962 = vrot.slane %v6961, 1
        %v6963 = vadd.f32 %v6961, %v6962
        %v6964 = vrot.slane %v6793, 4
        %v6965 = vadd.f32 %v6793, %v6964
        %v6966 = vrot.slane %v6965, 2
        %v6967 = vadd.f32 %v6965, %v6966
        %v6968 = vrot.slane %v6967, 1
        %v6969 = vadd.f32 %v6967, %v6968
        %v6970 = vrot.slane %v6795, 4
        %v6971 = vadd.f32 %v6795, %v6970
        %v6972 = vrot.slane %v6971, 2
        %v6973 = vadd.f32 %v6971, %v6972
        %v6974 = vrot.slane %v6973, 1
        %v6975 = vadd.f32 %v6973, %v6974
        %v6976 = vrot.slane %v6797, 4
        %v6977 = vadd.f32 %v6797, %v6976
        %v6978 = vrot.slane %v6977, 2
        %v6979 = vadd.f32 %v6977, %v6978
        %v6980 = vrot.slane %v6979, 1
        %v6981 = vadd.f32 %v6979, %v6980
        %v6982 = vrot.slane %v6799, 4
        %v6983 = vadd.f32 %v6799, %v6982
        %v6984 = vrot.slane %v6983, 2
        %v6985 = vadd.f32 %v6983, %v6984
        %v6986 = vrot.slane %v6985, 1
        %v6987 = vadd.f32 %v6985, %v6986
        %v6988 = vrot.slane %v6801, 4
        %v6989 = vadd.f32 %v6801, %v6988
        %v6990 = vrot.slane %v6989, 2
        %v6991 = vadd.f32 %v6989, %v6990
        %v6992 = vrot.slane %v6991, 1
        %v6993 = vadd.f32 %v6991, %v6992
        %v6994 = vrot.slane %v6803, 4
        %v6995 = vadd.f32 %v6803, %v6994
        %v6996 = vrot.slane %v6995, 2
        %v6997 = vadd.f32 %v6995, %v6996
        %v6998 = vrot.slane %v6997, 1
        %v6999 = vadd.f32 %v6997, %v6998
        %v7000 = vrot.slane %v6805, 4
        %v7001 = vadd.f32 %v6805, %v7000
        %v7002 = vrot.slane %v7001, 2
        %v7003 = vadd.f32 %v7001, %v7002
        %v7004 = vrot.slane %v7003, 1
        %v7005 = vadd.f32 %v7003, %v7004
        %v7006 = vrot.slane %v6807, 4
        %v7007 = vadd.f32 %v6807, %v7006
        %v7008 = vrot.slane %v7007, 2
        %v7009 = vadd.f32 %v7007, %v7008
        %v7010 = vrot.slane %v7009, 1
        %v7011 = vadd.f32 %v7009, %v7010
        %v7012 = vrot.slane %v6809, 4
        %v7013 = vadd.f32 %v6809, %v7012
        %v7014 = vrot.slane %v7013, 2
        %v7015 = vadd.f32 %v7013, %v7014
        %v7016 = vrot.slane %v7015, 1
        %v7017 = vadd.f32 %v7015, %v7016
        %v7018 = vrot.slane %v6811, 4
        %v7019 = vadd.f32 %v6811, %v7018
        %v7020 = vrot.slane %v7019, 2
        %v7021 = vadd.f32 %v7019, %v7020
        %v7022 = vrot.slane %v7021, 1
        %v7023 = vadd.f32 %v7021, %v7022
        %v7024 = vrot.slane %v6813, 4
        %v7025 = vadd.f32 %v6813, %v7024
        %v7026 = vrot.slane %v7025, 2
        %v7027 = vadd.f32 %v7025, %v7026
        %v7028 = vrot.slane %v7027, 1
        %v7029 = vadd.f32 %v7027, %v7028
        %v7030 = vrot.slane %v6815, 4
        %v7031 = vadd.f32 %v6815, %v7030
        %v7032 = vrot.slane %v7031, 2
        %v7033 = vadd.f32 %v7031, %v7032
        %v7034 = vrot.slane %v7033, 1
        %v7035 = vadd.f32 %v7033, %v7034
        %v7036 = vrot.slane %v6817, 4
        %v7037 = vadd.f32 %v6817, %v7036
        %v7038 = vrot.slane %v7037, 2
        %v7039 = vadd.f32 %v7037, %v7038
        %v7040 = vrot.slane %v7039, 1
        %v7041 = vadd.f32 %v7039, %v7040
        %v7042 = vrot.slane %v6819, 4
        %v7043 = vadd.f32 %v6819, %v7042
        %v7044 = vrot.slane %v7043, 2
        %v7045 = vadd.f32 %v7043, %v7044
        %v7046 = vrot.slane %v7045, 1
        %v7047 = vadd.f32 %v7045, %v7046
        %v7048 = vrot.slane %v6821, 4
        %v7049 = vadd.f32 %v6821, %v7048
        %v7050 = vrot.slane %v7049, 2
        %v7051 = vadd.f32 %v7049, %v7050
        %v7052 = vrot.slane %v7051, 1
        %v7053 = vadd.f32 %v7051, %v7052
        %v7054 = vrot.slane %v6823, 4
        %v7055 = vadd.f32 %v6823, %v7054
        %v7056 = vrot.slane %v7055, 2
        %v7057 = vadd.f32 %v7055, %v7056
        %v7058 = vrot.slane %v7057, 1
        %v7059 = vadd.f32 %v7057, %v7058
        %v7060 = vrot.slane %v6825, 4
        %v7061 = vadd.f32 %v6825, %v7060
        %v7062 = vrot.slane %v7061, 2
        %v7063 = vadd.f32 %v7061, %v7062
        %v7064 = vrot.slane %v7063, 1
        %v7065 = vadd.f32 %v7063, %v7064
        %v7066 = vrot.slane %v6827, 4
        %v7067 = vadd.f32 %v6827, %v7066
        %v7068 = vrot.slane %v7067, 2
        %v7069 = vadd.f32 %v7067, %v7068
        %v7070 = vrot.slane %v7069, 1
        %v7071 = vadd.f32 %v7069, %v7070
        %v7072 = vrot.slane %v6829, 4
        %v7073 = vadd.f32 %v6829, %v7072
        %v7074 = vrot.slane %v7073, 2
        %v7075 = vadd.f32 %v7073, %v7074
        %v7076 = vrot.slane %v7075, 1
        %v7077 = vadd.f32 %v7075, %v7076
        %v7078 = vrot.slane %v6831, 4
        %v7079 = vadd.f32 %v6831, %v7078
        %v7080 = vrot.slane %v7079, 2
        %v7081 = vadd.f32 %v7079, %v7080
        %v7082 = vrot.slane %v7081, 1
        %v7083 = vadd.f32 %v7081, %v7082
        %v7084 = vrot.slane %v6833, 4
        %v7085 = vadd.f32 %v6833, %v7084
        %v7086 = vrot.slane %v7085, 2
        %v7087 = vadd.f32 %v7085, %v7086
        %v7088 = vrot.slane %v7087, 1
        %v7089 = vadd.f32 %v7087, %v7088
        %v7090 = vrot.slane %v6835, 4
        %v7091 = vadd.f32 %v6835, %v7090
        %v7092 = vrot.slane %v7091, 2
        %v7093 = vadd.f32 %v7091, %v7092
        %v7094 = vrot.slane %v7093, 1
        %v7095 = vadd.f32 %v7093, %v7094
        %v7096 = vrot.slane %v6837, 4
        %v7097 = vadd.f32 %v6837, %v7096
        %v7098 = vrot.slane %v7097, 2
        %v7099 = vadd.f32 %v7097, %v7098
        %v7100 = vrot.slane %v7099, 1
        %v7101 = vadd.f32 %v7099, %v7100
        %v7102 = vrot.slane %v6839, 4
        %v7103 = vadd.f32 %v6839, %v7102
        %v7104 = vrot.slane %v7103, 2
        %v7105 = vadd.f32 %v7103, %v7104
        %v7106 = vrot.slane %v7105, 1
        %v7107 = vadd.f32 %v7105, %v7106
        %v7108 = vrot.slane %v6841, 4
        %v7109 = vadd.f32 %v6841, %v7108
        %v7110 = vrot.slane %v7109, 2
        %v7111 = vadd.f32 %v7109, %v7110
        %v7112 = vrot.slane %v7111, 1
        %v7113 = vadd.f32 %v7111, %v7112
        %v7114 = vrot.slane %v6843, 4
        %v7115 = vadd.f32 %v6843, %v7114
        %v7116 = vrot.slane %v7115, 2
        %v7117 = vadd.f32 %v7115, %v7116
        %v7118 = vrot.slane %v7117, 1
        %v7119 = vadd.f32 %v7117, %v7118
        %v7120 = vrot.slane %v6845, 4
        %v7121 = vadd.f32 %v6845, %v7120
        %v7122 = vrot.slane %v7121, 2
        %v7123 = vadd.f32 %v7121, %v7122
        %v7124 = vrot.slane %v7123, 1
        %v7125 = vadd.f32 %v7123, %v7124
        %v7126 = vrot.slane %v6847, 4
        %v7127 = vadd.f32 %v6847, %v7126
        %v7128 = vrot.slane %v7127, 2
        %v7129 = vadd.f32 %v7127, %v7128
        %v7130 = vrot.slane %v7129, 1
        %v7131 = vadd.f32 %v7129, %v7130
        %v7132 = vrot.slane %v6849, 4
        %v7133 = vadd.f32 %v6849, %v7132
        %v7134 = vrot.slane %v7133, 2
        %v7135 = vadd.f32 %v7133, %v7134
        %v7136 = vrot.slane %v7135, 1
        %v7137 = vadd.f32 %v7135, %v7136
        %v7138 = vrot.slane %v6851, 4
        %v7139 = vadd.f32 %v6851, %v7138
        %v7140 = vrot.slane %v7139, 2
        %v7141 = vadd.f32 %v7139, %v7140
        %v7142 = vrot.slane %v7141, 1
        %v7143 = vadd.f32 %v7141, %v7142
        %v7144 = vrot.slane %v6853, 4
        %v7145 = vadd.f32 %v6853, %v7144
        %v7146 = vrot.slane %v7145, 2
        %v7147 = vadd.f32 %v7145, %v7146
        %v7148 = vrot.slane %v7147, 1
        %v7149 = vadd.f32 %v7147, %v7148
        %v7150 = vrot.slane %v6855, 4
        %v7151 = vadd.f32 %v6855, %v7150
        %v7152 = vrot.slane %v7151, 2
        %v7153 = vadd.f32 %v7151, %v7152
        %v7154 = vrot.slane %v7153, 1
        %v7155 = vadd.f32 %v7153, %v7154
        %v7156 = vrot.slane %v6857, 4
        %v7157 = vadd.f32 %v6857, %v7156
        %v7158 = vrot.slane %v7157, 2
        %v7159 = vadd.f32 %v7157, %v7158
        %v7160 = vrot.slane %v7159, 1
        %v7161 = vadd.f32 %v7159, %v7160
        %v7162 = vrot.slane %v6859, 4
        %v7163 = vadd.f32 %v6859, %v7162
        %v7164 = vrot.slane %v7163, 2
        %v7165 = vadd.f32 %v7163, %v7164
        %v7166 = vrot.slane %v7165, 1
        %v7167 = vadd.f32 %v7165, %v7166
        %v7168 = vrot.slane %v6861, 4
        %v7169 = vadd.f32 %v6861, %v7168
        %v7170 = vrot.slane %v7169, 2
        %v7171 = vadd.f32 %v7169, %v7170
        %v7172 = vrot.slane %v7171, 1
        %v7173 = vadd.f32 %v7171, %v7172
        %v7174 = vrot.slane %v6863, 4
        %v7175 = vadd.f32 %v6863, %v7174
        %v7176 = vrot.slane %v7175, 2
        %v7177 = vadd.f32 %v7175, %v7176
        %v7178 = vrot.slane %v7177, 1
        %v7179 = vadd.f32 %v7177, %v7178
        %v7180 = vrot.slane %v6865, 4
        %v7181 = vadd.f32 %v6865, %v7180
        %v7182 = vrot.slane %v7181, 2
        %v7183 = vadd.f32 %v7181, %v7182
        %v7184 = vrot.slane %v7183, 1
        %v7185 = vadd.f32 %v7183, %v7184
        %v7186 = vrot.slane %v6867, 4
        %v7187 = vadd.f32 %v6867, %v7186
        %v7188 = vrot.slane %v7187, 2
        %v7189 = vadd.f32 %v7187, %v7188
        %v7190 = vrot.slane %v7189, 1
        %v7191 = vadd.f32 %v7189, %v7190
        %v7192 = vrot.slane %v6869, 4
        %v7193 = vadd.f32 %v6869, %v7192
        %v7194 = vrot.slane %v7193, 2
        %v7195 = vadd.f32 %v7193, %v7194
        %v7196 = vrot.slane %v7195, 1
        %v7197 = vadd.f32 %v7195, %v7196
        %v7198 = vrot.slane %v6871, 4
        %v7199 = vadd.f32 %v6871, %v7198
        %v7200 = vrot.slane %v7199, 2
        %v7201 = vadd.f32 %v7199, %v7200
        %v7202 = vrot.slane %v7201, 1
        %v7203 = vadd.f32 %v7201, %v7202
        %v7204 = vrot.slane %v6873, 4
        %v7205 = vadd.f32 %v6873, %v7204
        %v7206 = vrot.slane %v7205, 2
        %v7207 = vadd.f32 %v7205, %v7206
        %v7208 = vrot.slane %v7207, 1
        %v7209 = vadd.f32 %v7207, %v7208
        %v7210 = vrot.slane %v6875, 4
        %v7211 = vadd.f32 %v6875, %v7210
        %v7212 = vrot.slane %v7211, 2
        %v7213 = vadd.f32 %v7211, %v7212
        %v7214 = vrot.slane %v7213, 1
        %v7215 = vadd.f32 %v7213, %v7214
        %v7216 = vrot.slane %v6877, 4
        %v7217 = vadd.f32 %v6877, %v7216
        %v7218 = vrot.slane %v7217, 2
        %v7219 = vadd.f32 %v7217, %v7218
        %v7220 = vrot.slane %v7219, 1
        %v7221 = vadd.f32 %v7219, %v7220
        %v7222 = vrot.slane %v6879, 4
        %v7223 = vadd.f32 %v6879, %v7222
        %v7224 = vrot.slane %v7223, 2
        %v7225 = vadd.f32 %v7223, %v7224
        %v7226 = vrot.slane %v7225, 1
        %v7227 = vadd.f32 %v7225, %v7226
        %v7228 = vrot.slane %v6881, 4
        %v7229 = vadd.f32 %v6881, %v7228
        %v7230 = vrot.slane %v7229, 2
        %v7231 = vadd.f32 %v7229, %v7230
        %v7232 = vrot.slane %v7231, 1
        %v7233 = vadd.f32 %v7231, %v7232
        %v7234 = vrot.slane %v6883, 4
        %v7235 = vadd.f32 %v6883, %v7234
        %v7236 = vrot.slane %v7235, 2
        %v7237 = vadd.f32 %v7235, %v7236
        %v7238 = vrot.slane %v7237, 1
        %v7239 = vadd.f32 %v7237, %v7238
        %v7240 = vrot.slane %v6885, 4
        %v7241 = vadd.f32 %v6885, %v7240
        %v7242 = vrot.slane %v7241, 2
        %v7243 = vadd.f32 %v7241, %v7242
        %v7244 = vrot.slane %v7243, 1
        %v7245 = vadd.f32 %v7243, %v7244
        %v7246 = vrot.slane %v6887, 4
        %v7247 = vadd.f32 %v6887, %v7246
        %v7248 = vrot.slane %v7247, 2
        %v7249 = vadd.f32 %v7247, %v7248
        %v7250 = vrot.slane %v7249, 1
        %v7251 = vadd.f32 %v7249, %v7250
        %v7252 = vrot.slane %v6889, 4
        %v7253 = vadd.f32 %v6889, %v7252
        %v7254 = vrot.slane %v7253, 2
        %v7255 = vadd.f32 %v7253, %v7254
        %v7256 = vrot.slane %v7255, 1
        %v7257 = vadd.f32 %v7255, %v7256
        %v7258 = vrot.slane %v6891, 4
        %v7259 = vadd.f32 %v6891, %v7258
        %v7260 = vrot.slane %v7259, 2
        %v7261 = vadd.f32 %v7259, %v7260
        %v7262 = vrot.slane %v7261, 1
        %v7263 = vadd.f32 %v7261, %v7262
        %v7264 = vrot.slane %v6893, 4
        %v7265 = vadd.f32 %v6893, %v7264
        %v7266 = vrot.slane %v7265, 2
        %v7267 = vadd.f32 %v7265, %v7266
        %v7268 = vrot.slane %v7267, 1
        %v7269 = vadd.f32 %v7267, %v7268
        %v7270 = vrot.slane %v6895, 4
        %v7271 = vadd.f32 %v6895, %v7270
        %v7272 = vrot.slane %v7271, 2
        %v7273 = vadd.f32 %v7271, %v7272
        %v7274 = vrot.slane %v7273, 1
        %v7275 = vadd.f32 %v7273, %v7274
        %v7276 = vrot.slane %v6897, 4
        %v7277 = vadd.f32 %v6897, %v7276
        %v7278 = vrot.slane %v7277, 2
        %v7279 = vadd.f32 %v7277, %v7278
        %v7280 = vrot.slane %v7279, 1
        %v7281 = vadd.f32 %v7279, %v7280
        %v7282 = vrcp.pop %v6903
        %v7283 = vrcp.pop %v6909
        %v7284 = vrcp.pop %v6915
        %v7285 = vrcp.pop %v6921
        %v7286 = vrcp.pop %v6927
        %v7287 = vrcp.pop %v6933
        %v7288 = vrcp.pop %v6939
        %v7289 = vrcp.pop %v6945
        %v7290 = vrcp.pop %v6951
        %v7291 = vrcp.pop %v6957
        %v7292 = vrcp.pop %v6963
        %v7293 = vrcp.pop %v6969
        %v7294 = vrcp.pop %v6975
        %v7295 = vrcp.pop %v6981
        %v7296 = vrcp.pop %v6987
        %v7297 = vrcp.pop %v6993
        %v7298 = vrcp.pop %v6999
        %v7299 = vrcp.pop %v7005
        %v7300 = vrcp.pop %v7011
        %v7301 = vrcp.pop %v7017
        %v7302 = vrcp.pop %v7023
        %v7303 = vrcp.pop %v7029
        %v7304 = vrcp.pop %v7035
        %v7305 = vrcp.pop %v7041
        %v7306 = vrcp.pop %v7047
        %v7307 = vrcp.pop %v7053
        %v7308 = vrcp.pop %v7059
        %v7309 = vrcp.pop %v7065
        %v7310 = vrcp.pop %v7071
        %v7311 = vrcp.pop %v7077
        %v7312 = vrcp.pop %v7083
        %v7313 = vrcp.pop %v7089
        %v7314 = vrcp.pop %v7095
        %v7315 = vrcp.pop %v7101
        %v7316 = vrcp.pop %v7107
        %v7317 = vrcp.pop %v7113
        %v7318 = vrcp.pop %v7119
        %v7319 = vrcp.pop %v7125
        %v7320 = vrcp.pop %v7131
        %v7321 = vrcp.pop %v7137
        %v7322 = vrcp.pop %v7143
        %v7323 = vrcp.pop %v7149
        %v7324 = vrcp.pop %v7155
        %v7325 = vrcp.pop %v7161
        %v7326 = vrcp.pop %v7167
        %v7327 = vrcp.pop %v7173
        %v7328 = vrcp.pop %v7179
        %v7329 = vrcp.pop %v7185
        %v7330 = vrcp.pop %v7191
        %v7331 = vrcp.pop %v7197
        %v7332 = vrcp.pop %v7203
        %v7333 = vrcp.pop %v7209
        %v7334 = vrcp.pop %v7215
        %v7335 = vrcp.pop %v7221
        %v7336 = vrcp.pop %v7227
        %v7337 = vrcp.pop %v7233
        %v7338 = vrcp.pop %v7239
        %v7339 = vrcp.pop %v7245
        %v7340 = vrcp.pop %v7251
        %v7341 = vrcp.pop %v7257
        %v7342 = vrcp.pop %v7263
        %v7343 = vrcp.pop %v7269
        %v7344 = vrcp.pop %v7275
        %v7345 = vrcp.pop %v7281
        %v7346 = vmul.f32 %v6771, %v7282
        %v7347 = vmul.f32 %v6773, %v7283
        %v7348 = vmul.f32 %v6775, %v7284
        %v7349 = vmul.f32 %v6777, %v7285
        %v7350 = vmul.f32 %v6779, %v7286
        %v7351 = vmul.f32 %v6781, %v7287
        %v7352 = vmul.f32 %v6783, %v7288
        %v7353 = vmul.f32 %v6785, %v7289
        %v7354 = vmul.f32 %v6787, %v7290
        %v7355 = vmul.f32 %v6789, %v7291
        %v7356 = vmul.f32 %v6791, %v7292
        %v7357 = vmul.f32 %v6793, %v7293
        %v7358 = vmul.f32 %v6795, %v7294
        %v7359 = vmul.f32 %v6797, %v7295
        %v7360 = vmul.f32 %v6799, %v7296
        %v7361 = vmul.f32 %v6801, %v7297
        %v7362 = vmul.f32 %v6803, %v7298
        %v7363 = vmul.f32 %v6805, %v7299
        %v7364 = vmul.f32 %v6807, %v7300
        %v7365 = vmul.f32 %v6809, %v7301
        %v7366 = vmul.f32 %v6811, %v7302
        %v7367 = vmul.f32 %v6813, %v7303
        %v7368 = vmul.f32 %v6815, %v7304
        %v7369 = vmul.f32 %v6817, %v7305
        %v7370 = vmul.f32 %v6819, %v7306
        %v7371 = vmul.f32 %v6821, %v7307
        %v7372 = vmul.f32 %v6823, %v7308
        %v7373 = vmul.f32 %v6825, %v7309
        %v7374 = vmul.f32 %v6827, %v7310
        %v7375 = vmul.f32 %v6829, %v7311
        %v7376 = vmul.f32 %v6831, %v7312
        %v7377 = vmul.f32 %v6833, %v7313
        %v7378 = vmul.f32 %v6835, %v7314
        %v7379 = vmul.f32 %v6837, %v7315
        %v7380 = vmul.f32 %v6839, %v7316
        %v7381 = vmul.f32 %v6841, %v7317
        %v7382 = vmul.f32 %v6843, %v7318
        %v7383 = vmul.f32 %v6845, %v7319
        %v7384 = vmul.f32 %v6847, %v7320
        %v7385 = vmul.f32 %v6849, %v7321
        %v7386 = vmul.f32 %v6851, %v7322
        %v7387 = vmul.f32 %v6853, %v7323
        %v7388 = vmul.f32 %v6855, %v7324
        %v7389 = vmul.f32 %v6857, %v7325
        %v7390 = vmul.f32 %v6859, %v7326
        %v7391 = vmul.f32 %v6861, %v7327
        %v7392 = vmul.f32 %v6863, %v7328
        %v7393 = vmul.f32 %v6865, %v7329
        %v7394 = vmul.f32 %v6867, %v7330
        %v7395 = vmul.f32 %v6869, %v7331
        %v7396 = vmul.f32 %v6871, %v7332
        %v7397 = vmul.f32 %v6873, %v7333
        %v7398 = vmul.f32 %v6875, %v7334
        %v7399 = vmul.f32 %v6877, %v7335
        %v7400 = vmul.f32 %v6879, %v7336
        %v7401 = vmul.f32 %v6881, %v7337
        %v7402 = vmul.f32 %v6883, %v7338
        %v7403 = vmul.f32 %v6885, %v7339
        %v7404 = vmul.f32 %v6887, %v7340
        %v7405 = vmul.f32 %v6889, %v7341
        %v7406 = vmul.f32 %v6891, %v7342
        %v7407 = vmul.f32 %v6893, %v7343
        %v7408 = vmul.f32 %v6895, %v7344
        %v7409 = vmul.f32 %v6897, %v7345
        %v7410 = vmul.f32 %v7346, %v948
        %v7411 = vmul.f32 %v7347, %v950
        %v7412 = vmul.f32 %v7348, %v948
        %v7413 = vmul.f32 %v7349, %v950
        %v7414 = vmul.f32 %v7350, %v948
        %v7415 = vmul.f32 %v7351, %v950
        %v7416 = vmul.f32 %v7352, %v948
        %v7417 = vmul.f32 %v7353, %v950
        %v7418 = vmul.f32 %v7354, %v948
        %v7419 = vmul.f32 %v7355, %v950
        %v7420 = vmul.f32 %v7356, %v948
        %v7421 = vmul.f32 %v7357, %v950
        %v7422 = vmul.f32 %v7358, %v948
        %v7423 = vmul.f32 %v7359, %v950
        %v7424 = vmul.f32 %v7360, %v948
        %v7425 = vmul.f32 %v7361, %v950
        %v7426 = vmul.f32 %v7346, %v954
        %v7427 = vmul.f32 %v7347, %v956
        %v7428 = vmul.f32 %v7348, %v954
        %v7429 = vmul.f32 %v7349, %v956
        %v7430 = vmul.f32 %v7350, %v954
        %v7431 = vmul.f32 %v7351, %v956
        %v7432 = vmul.f32 %v7352, %v954
        %v7433 = vmul.f32 %v7353, %v956
        %v7434 = vmul.f32 %v7354, %v954
        %v7435 = vmul.f32 %v7355, %v956
        %v7436 = vmul.f32 %v7356, %v954
        %v7437 = vmul.f32 %v7357, %v956
        %v7438 = vmul.f32 %v7358, %v954
        %v7439 = vmul.f32 %v7359, %v956
        %v7440 = vmul.f32 %v7360, %v954
        %v7441 = vmul.f32 %v7361, %v956
        %v7442 = vmul.f32 %v7346, %v960
        %v7443 = vmul.f32 %v7347, %v962
        %v7444 = vmul.f32 %v7348, %v960
        %v7445 = vmul.f32 %v7349, %v962
        %v7446 = vmul.f32 %v7350, %v960
        %v7447 = vmul.f32 %v7351, %v962
        %v7448 = vmul.f32 %v7352, %v960
        %v7449 = vmul.f32 %v7353, %v962
        %v7450 = vmul.f32 %v7354, %v960
        %v7451 = vmul.f32 %v7355, %v962
        %v7452 = vmul.f32 %v7356, %v960
        %v7453 = vmul.f32 %v7357, %v962
        %v7454 = vmul.f32 %v7358, %v960
        %v7455 = vmul.f32 %v7359, %v962
        %v7456 = vmul.f32 %v7360, %v960
        %v7457 = vmul.f32 %v7361, %v962
        %v7458 = vmul.f32 %v7346, %v966
        %v7459 = vmul.f32 %v7347, %v968
        %v7460 = vmul.f32 %v7348, %v966
        %v7461 = vmul.f32 %v7349, %v968
        %v7462 = vmul.f32 %v7350, %v966
        %v7463 = vmul.f32 %v7351, %v968
        %v7464 = vmul.f32 %v7352, %v966
        %v7465 = vmul.f32 %v7353, %v968
        %v7466 = vmul.f32 %v7354, %v966
        %v7467 = vmul.f32 %v7355, %v968
        %v7468 = vmul.f32 %v7356, %v966
        %v7469 = vmul.f32 %v7357, %v968
        %v7470 = vmul.f32 %v7358, %v966
        %v7471 = vmul.f32 %v7359, %v968
        %v7472 = vmul.f32 %v7360, %v966
        %v7473 = vmul.f32 %v7361, %v968
        %v7474 = vmul.f32 %v7346, %v972
        %v7475 = vmul.f32 %v7347, %v974
        %v7476 = vmul.f32 %v7348, %v972
        %v7477 = vmul.f32 %v7349, %v974
        %v7478 = vmul.f32 %v7350, %v972
        %v7479 = vmul.f32 %v7351, %v974
        %v7480 = vmul.f32 %v7352, %v972
        %v7481 = vmul.f32 %v7353, %v974
        %v7482 = vmul.f32 %v7354, %v972
        %v7483 = vmul.f32 %v7355, %v974
        %v7484 = vmul.f32 %v7356, %v972
        %v7485 = vmul.f32 %v7357, %v974
        %v7486 = vmul.f32 %v7358, %v972
        %v7487 = vmul.f32 %v7359, %v974
        %v7488 = vmul.f32 %v7360, %v972
        %v7489 = vmul.f32 %v7361, %v974
        %v7490 = vmul.f32 %v7346, %v978
        %v7491 = vmul.f32 %v7347, %v980
        %v7492 = vmul.f32 %v7348, %v978
        %v7493 = vmul.f32 %v7349, %v980
        %v7494 = vmul.f32 %v7350, %v978
        %v7495 = vmul.f32 %v7351, %v980
        %v7496 = vmul.f32 %v7352, %v978
        %v7497 = vmul.f32 %v7353, %v980
        %v7498 = vmul.f32 %v7354, %v978
        %v7499 = vmul.f32 %v7355, %v980
        %v7500 = vmul.f32 %v7356, %v978
        %v7501 = vmul.f32 %v7357, %v980
        %v7502 = vmul.f32 %v7358, %v978
        %v7503 = vmul.f32 %v7359, %v980
        %v7504 = vmul.f32 %v7360, %v978
        %v7505 = vmul.f32 %v7361, %v980
        %v7506 = vmul.f32 %v7346, %v984
        %v7507 = vmul.f32 %v7347, %v986
        %v7508 = vmul.f32 %v7348, %v984
        %v7509 = vmul.f32 %v7349, %v986
        %v7510 = vmul.f32 %v7350, %v984
        %v7511 = vmul.f32 %v7351, %v986
        %v7512 = vmul.f32 %v7352, %v984
        %v7513 = vmul.f32 %v7353, %v986
        %v7514 = vmul.f32 %v7354, %v984
        %v7515 = vmul.f32 %v7355, %v986
        %v7516 = vmul.f32 %v7356, %v984
        %v7517 = vmul.f32 %v7357, %v986
        %v7518 = vmul.f32 %v7358, %v984
        %v7519 = vmul.f32 %v7359, %v986
        %v7520 = vmul.f32 %v7360, %v984
        %v7521 = vmul.f32 %v7361, %v986
        %v7522 = vmul.f32 %v7346, %v990
        %v7523 = vmul.f32 %v7347, %v992
        %v7524 = vmul.f32 %v7348, %v990
        %v7525 = vmul.f32 %v7349, %v992
        %v7526 = vmul.f32 %v7350, %v990
        %v7527 = vmul.f32 %v7351, %v992
        %v7528 = vmul.f32 %v7352, %v990
        %v7529 = vmul.f32 %v7353, %v992
        %v7530 = vmul.f32 %v7354, %v990
        %v7531 = vmul.f32 %v7355, %v992
        %v7532 = vmul.f32 %v7356, %v990
        %v7533 = vmul.f32 %v7357, %v992
        %v7534 = vmul.f32 %v7358, %v990
        %v7535 = vmul.f32 %v7359, %v992
        %v7536 = vmul.f32 %v7360, %v990
        %v7537 = vmul.f32 %v7361, %v992
        %v7538 = vmul.f32 %v7362, %v996
        %v7539 = vmul.f32 %v7363, %v998
        %v7540 = vmul.f32 %v7364, %v996
        %v7541 = vmul.f32 %v7365, %v998
        %v7542 = vmul.f32 %v7366, %v996
        %v7543 = vmul.f32 %v7367, %v998
        %v7544 = vmul.f32 %v7368, %v996
        %v7545 = vmul.f32 %v7369, %v998
        %v7546 = vmul.f32 %v7370, %v996
        %v7547 = vmul.f32 %v7371, %v998
        %v7548 = vmul.f32 %v7372, %v996
        %v7549 = vmul.f32 %v7373, %v998
        %v7550 = vmul.f32 %v7374, %v996
        %v7551 = vmul.f32 %v7375, %v998
        %v7552 = vmul.f32 %v7376, %v996
        %v7553 = vmul.f32 %v7377, %v998
        %v7554 = vmul.f32 %v7362, %v1002
        %v7555 = vmul.f32 %v7363, %v1004
        %v7556 = vmul.f32 %v7364, %v1002
        %v7557 = vmul.f32 %v7365, %v1004
        %v7558 = vmul.f32 %v7366, %v1002
        %v7559 = vmul.f32 %v7367, %v1004
        %v7560 = vmul.f32 %v7368, %v1002
        %v7561 = vmul.f32 %v7369, %v1004
        %v7562 = vmul.f32 %v7370, %v1002
        %v7563 = vmul.f32 %v7371, %v1004
        %v7564 = vmul.f32 %v7372, %v1002
        %v7565 = vmul.f32 %v7373, %v1004
        %v7566 = vmul.f32 %v7374, %v1002
        %v7567 = vmul.f32 %v7375, %v1004
        %v7568 = vmul.f32 %v7376, %v1002
        %v7569 = vmul.f32 %v7377, %v1004
        %v7570 = vmul.f32 %v7362, %v1008
        %v7571 = vmul.f32 %v7363, %v1010
        %v7572 = vmul.f32 %v7364, %v1008
        %v7573 = vmul.f32 %v7365, %v1010
        %v7574 = vmul.f32 %v7366, %v1008
        %v7575 = vmul.f32 %v7367, %v1010
        %v7576 = vmul.f32 %v7368, %v1008
        %v7577 = vmul.f32 %v7369, %v1010
        %v7578 = vmul.f32 %v7370, %v1008
        %v7579 = vmul.f32 %v7371, %v1010
        %v7580 = vmul.f32 %v7372, %v1008
        %v7581 = vmul.f32 %v7373, %v1010
        %v7582 = vmul.f32 %v7374, %v1008
        %v7583 = vmul.f32 %v7375, %v1010
        %v7584 = vmul.f32 %v7376, %v1008
        %v7585 = vmul.f32 %v7377, %v1010
        %v7586 = vmul.f32 %v7362, %v1014
        %v7587 = vmul.f32 %v7363, %v1016
        %v7588 = vmul.f32 %v7364, %v1014
        %v7589 = vmul.f32 %v7365, %v1016
        %v7590 = vmul.f32 %v7366, %v1014
        %v7591 = vmul.f32 %v7367, %v1016
        %v7592 = vmul.f32 %v7368, %v1014
        %v7593 = vmul.f32 %v7369, %v1016
        %v7594 = vmul.f32 %v7370, %v1014
        %v7595 = vmul.f32 %v7371, %v1016
        %v7596 = vmul.f32 %v7372, %v1014
        %v7597 = vmul.f32 %v7373, %v1016
        %v7598 = vmul.f32 %v7374, %v1014
        %v7599 = vmul.f32 %v7375, %v1016
        %v7600 = vmul.f32 %v7376, %v1014
        %v7601 = vmul.f32 %v7377, %v1016
        %v7602 = vmul.f32 %v7362, %v1020
        %v7603 = vmul.f32 %v7363, %v1022
        %v7604 = vmul.f32 %v7364, %v1020
        %v7605 = vmul.f32 %v7365, %v1022
        %v7606 = vmul.f32 %v7366, %v1020
        %v7607 = vmul.f32 %v7367, %v1022
        %v7608 = vmul.f32 %v7368, %v1020
        %v7609 = vmul.f32 %v7369, %v1022
        %v7610 = vmul.f32 %v7370, %v1020
        %v7611 = vmul.f32 %v7371, %v1022
        %v7612 = vmul.f32 %v7372, %v1020
        %v7613 = vmul.f32 %v7373, %v1022
        %v7614 = vmul.f32 %v7374, %v1020
        %v7615 = vmul.f32 %v7375, %v1022
        %v7616 = vmul.f32 %v7376, %v1020
        %v7617 = vmul.f32 %v7377, %v1022
        %v7618 = vmul.f32 %v7362, %v1026
        %v7619 = vmul.f32 %v7363, %v1028
        %v7620 = vmul.f32 %v7364, %v1026
        %v7621 = vmul.f32 %v7365, %v1028
        %v7622 = vmul.f32 %v7366, %v1026
        %v7623 = vmul.f32 %v7367, %v1028
        %v7624 = vmul.f32 %v7368, %v1026
        %v7625 = vmul.f32 %v7369, %v1028
        %v7626 = vmul.f32 %v7370, %v1026
        %v7627 = vmul.f32 %v7371, %v1028
        %v7628 = vmul.f32 %v7372, %v1026
        %v7629 = vmul.f32 %v7373, %v1028
        %v7630 = vmul.f32 %v7374, %v1026
        %v7631 = vmul.f32 %v7375, %v1028
        %v7632 = vmul.f32 %v7376, %v1026
        %v7633 = vmul.f32 %v7377, %v1028
        %v7634 = vmul.f32 %v7362, %v1032
        %v7635 = vmul.f32 %v7363, %v1034
        %v7636 = vmul.f32 %v7364, %v1032
        %v7637 = vmul.f32 %v7365, %v1034
        %v7638 = vmul.f32 %v7366, %v1032
        %v7639 = vmul.f32 %v7367, %v1034
        %v7640 = vmul.f32 %v7368, %v1032
        %v7641 = vmul.f32 %v7369, %v1034
        %v7642 = vmul.f32 %v7370, %v1032
        %v7643 = vmul.f32 %v7371, %v1034
        %v7644 = vmul.f32 %v7372, %v1032
        %v7645 = vmul.f32 %v7373, %v1034
        %v7646 = vmul.f32 %v7374, %v1032
        %v7647 = vmul.f32 %v7375, %v1034
        %v7648 = vmul.f32 %v7376, %v1032
        %v7649 = vmul.f32 %v7377, %v1034
        %v7650 = vmul.f32 %v7362, %v1038
        %v7651 = vmul.f32 %v7363, %v1040
        %v7652 = vmul.f32 %v7364, %v1038
        %v7653 = vmul.f32 %v7365, %v1040
        %v7654 = vmul.f32 %v7366, %v1038
        %v7655 = vmul.f32 %v7367, %v1040
        %v7656 = vmul.f32 %v7368, %v1038
        %v7657 = vmul.f32 %v7369, %v1040
        %v7658 = vmul.f32 %v7370, %v1038
        %v7659 = vmul.f32 %v7371, %v1040
        %v7660 = vmul.f32 %v7372, %v1038
        %v7661 = vmul.f32 %v7373, %v1040
        %v7662 = vmul.f32 %v7374, %v1038
        %v7663 = vmul.f32 %v7375, %v1040
        %v7664 = vmul.f32 %v7376, %v1038
        %v7665 = vmul.f32 %v7377, %v1040
        %v7666 = vmul.f32 %v7378, %v1044
        %v7667 = vmul.f32 %v7379, %v1046
        %v7668 = vmul.f32 %v7380, %v1044
        %v7669 = vmul.f32 %v7381, %v1046
        %v7670 = vmul.f32 %v7382, %v1044
        %v7671 = vmul.f32 %v7383, %v1046
        %v7672 = vmul.f32 %v7384, %v1044
        %v7673 = vmul.f32 %v7385, %v1046
        %v7674 = vmul.f32 %v7386, %v1044
        %v7675 = vmul.f32 %v7387, %v1046
        %v7676 = vmul.f32 %v7388, %v1044
        %v7677 = vmul.f32 %v7389, %v1046
        %v7678 = vmul.f32 %v7390, %v1044
        %v7679 = vmul.f32 %v7391, %v1046
        %v7680 = vmul.f32 %v7392, %v1044
        %v7681 = vmul.f32 %v7393, %v1046
        %v7682 = vmul.f32 %v7378, %v1050
        %v7683 = vmul.f32 %v7379, %v1052
        %v7684 = vmul.f32 %v7380, %v1050
        %v7685 = vmul.f32 %v7381, %v1052
        %v7686 = vmul.f32 %v7382, %v1050
        %v7687 = vmul.f32 %v7383, %v1052
        %v7688 = vmul.f32 %v7384, %v1050
        %v7689 = vmul.f32 %v7385, %v1052
        %v7690 = vmul.f32 %v7386, %v1050
        %v7691 = vmul.f32 %v7387, %v1052
        %v7692 = vmul.f32 %v7388, %v1050
        %v7693 = vmul.f32 %v7389, %v1052
        %v7694 = vmul.f32 %v7390, %v1050
        %v7695 = vmul.f32 %v7391, %v1052
        %v7696 = vmul.f32 %v7392, %v1050
        %v7697 = vmul.f32 %v7393, %v1052
        %v7698 = vmul.f32 %v7378, %v1056
        %v7699 = vmul.f32 %v7379, %v1058
        %v7700 = vmul.f32 %v7380, %v1056
        %v7701 = vmul.f32 %v7381, %v1058
        %v7702 = vmul.f32 %v7382, %v1056
        %v7703 = vmul.f32 %v7383, %v1058
        %v7704 = vmul.f32 %v7384, %v1056
        %v7705 = vmul.f32 %v7385, %v1058
        %v7706 = vmul.f32 %v7386, %v1056
        %v7707 = vmul.f32 %v7387, %v1058
        %v7708 = vmul.f32 %v7388, %v1056
        %v7709 = vmul.f32 %v7389, %v1058
        %v7710 = vmul.f32 %v7390, %v1056
        %v7711 = vmul.f32 %v7391, %v1058
        %v7712 = vmul.f32 %v7392, %v1056
        %v7713 = vmul.f32 %v7393, %v1058
        %v7714 = vmul.f32 %v7378, %v1062
        %v7715 = vmul.f32 %v7379, %v1064
        %v7716 = vmul.f32 %v7380, %v1062
        %v7717 = vmul.f32 %v7381, %v1064
        %v7718 = vmul.f32 %v7382, %v1062
        %v7719 = vmul.f32 %v7383, %v1064
        %v7720 = vmul.f32 %v7384, %v1062
        %v7721 = vmul.f32 %v7385, %v1064
        %v7722 = vmul.f32 %v7386, %v1062
        %v7723 = vmul.f32 %v7387, %v1064
        %v7724 = vmul.f32 %v7388, %v1062
        %v7725 = vmul.f32 %v7389, %v1064
        %v7726 = vmul.f32 %v7390, %v1062
        %v7727 = vmul.f32 %v7391, %v1064
        %v7728 = vmul.f32 %v7392, %v1062
        %v7729 = vmul.f32 %v7393, %v1064
        %v7730 = vmul.f32 %v7378, %v1068
        %v7731 = vmul.f32 %v7379, %v1070
        %v7732 = vmul.f32 %v7380, %v1068
        %v7733 = vmul.f32 %v7381, %v1070
        %v7734 = vmul.f32 %v7382, %v1068
        %v7735 = vmul.f32 %v7383, %v1070
        %v7736 = vmul.f32 %v7384, %v1068
        %v7737 = vmul.f32 %v7385, %v1070
        %v7738 = vmul.f32 %v7386, %v1068
        %v7739 = vmul.f32 %v7387, %v1070
        %v7740 = vmul.f32 %v7388, %v1068
        %v7741 = vmul.f32 %v7389, %v1070
        %v7742 = vmul.f32 %v7390, %v1068
        %v7743 = vmul.f32 %v7391, %v1070
        %v7744 = vmul.f32 %v7392, %v1068
        %v7745 = vmul.f32 %v7393, %v1070
        %v7746 = vmul.f32 %v7378, %v1074
        %v7747 = vmul.f32 %v7379, %v1076
        %v7748 = vmul.f32 %v7380, %v1074
        %v7749 = vmul.f32 %v7381, %v1076
        %v7750 = vmul.f32 %v7382, %v1074
        %v7751 = vmul.f32 %v7383, %v1076
        %v7752 = vmul.f32 %v7384, %v1074
        %v7753 = vmul.f32 %v7385, %v1076
        %v7754 = vmul.f32 %v7386, %v1074
        %v7755 = vmul.f32 %v7387, %v1076
        %v7756 = vmul.f32 %v7388, %v1074
        %v7757 = vmul.f32 %v7389, %v1076
        %v7758 = vmul.f32 %v7390, %v1074
        %v7759 = vmul.f32 %v7391, %v1076
        %v7760 = vmul.f32 %v7392, %v1074
        %v7761 = vmul.f32 %v7393, %v1076
        %v7762 = vmul.f32 %v7378, %v1080
        %v7763 = vmul.f32 %v7379, %v1082
        %v7764 = vmul.f32 %v7380, %v1080
        %v7765 = vmul.f32 %v7381, %v1082
        %v7766 = vmul.f32 %v7382, %v1080
        %v7767 = vmul.f32 %v7383, %v1082
        %v7768 = vmul.f32 %v7384, %v1080
        %v7769 = vmul.f32 %v7385, %v1082
        %v7770 = vmul.f32 %v7386, %v1080
        %v7771 = vmul.f32 %v7387, %v1082
        %v7772 = vmul.f32 %v7388, %v1080
        %v7773 = vmul.f32 %v7389, %v1082
        %v7774 = vmul.f32 %v7390, %v1080
        %v7775 = vmul.f32 %v7391, %v1082
        %v7776 = vmul.f32 %v7392, %v1080
        %v7777 = vmul.f32 %v7393, %v1082
        %v7778 = vmul.f32 %v7378, %v1086
        %v7779 = vmul.f32 %v7379, %v1088
        %v7780 = vmul.f32 %v7380, %v1086
        %v7781 = vmul.f32 %v7381, %v1088
        %v7782 = vmul.f32 %v7382, %v1086
        %v7783 = vmul.f32 %v7383, %v1088
        %v7784 = vmul.f32 %v7384, %v1086
        %v7785 = vmul.f32 %v7385, %v1088
        %v7786 = vmul.f32 %v7386, %v1086
        %v7787 = vmul.f32 %v7387, %v1088
        %v7788 = vmul.f32 %v7388, %v1086
        %v7789 = vmul.f32 %v7389, %v1088
        %v7790 = vmul.f32 %v7390, %v1086
        %v7791 = vmul.f32 %v7391, %v1088
        %v7792 = vmul.f32 %v7392, %v1086
        %v7793 = vmul.f32 %v7393, %v1088
        %v7794 = vmul.f32 %v7394, %v1092
        %v7795 = vmul.f32 %v7395, %v1094
        %v7796 = vmul.f32 %v7396, %v1092
        %v7797 = vmul.f32 %v7397, %v1094
        %v7798 = vmul.f32 %v7398, %v1092
        %v7799 = vmul.f32 %v7399, %v1094
        %v7800 = vmul.f32 %v7400, %v1092
        %v7801 = vmul.f32 %v7401, %v1094
        %v7802 = vmul.f32 %v7402, %v1092
        %v7803 = vmul.f32 %v7403, %v1094
        %v7804 = vmul.f32 %v7404, %v1092
        %v7805 = vmul.f32 %v7405, %v1094
        %v7806 = vmul.f32 %v7406, %v1092
        %v7807 = vmul.f32 %v7407, %v1094
        %v7808 = vmul.f32 %v7408, %v1092
        %v7809 = vmul.f32 %v7409, %v1094
        %v7810 = vmul.f32 %v7394, %v1098
        %v7811 = vmul.f32 %v7395, %v1100
        %v7812 = vmul.f32 %v7396, %v1098
        %v7813 = vmul.f32 %v7397, %v1100
        %v7814 = vmul.f32 %v7398, %v1098
        %v7815 = vmul.f32 %v7399, %v1100
        %v7816 = vmul.f32 %v7400, %v1098
        %v7817 = vmul.f32 %v7401, %v1100
        %v7818 = vmul.f32 %v7402, %v1098
        %v7819 = vmul.f32 %v7403, %v1100
        %v7820 = vmul.f32 %v7404, %v1098
        %v7821 = vmul.f32 %v7405, %v1100
        %v7822 = vmul.f32 %v7406, %v1098
        %v7823 = vmul.f32 %v7407, %v1100
        %v7824 = vmul.f32 %v7408, %v1098
        %v7825 = vmul.f32 %v7409, %v1100
        %v7826 = vmul.f32 %v7394, %v1104
        %v7827 = vmul.f32 %v7395, %v1106
        %v7828 = vmul.f32 %v7396, %v1104
        %v7829 = vmul.f32 %v7397, %v1106
        %v7830 = vmul.f32 %v7398, %v1104
        %v7831 = vmul.f32 %v7399, %v1106
        %v7832 = vmul.f32 %v7400, %v1104
        %v7833 = vmul.f32 %v7401, %v1106
        %v7834 = vmul.f32 %v7402, %v1104
        %v7835 = vmul.f32 %v7403, %v1106
        %v7836 = vmul.f32 %v7404, %v1104
        %v7837 = vmul.f32 %v7405, %v1106
        %v7838 = vmul.f32 %v7406, %v1104
        %v7839 = vmul.f32 %v7407, %v1106
        %v7840 = vmul.f32 %v7408, %v1104
        %v7841 = vmul.f32 %v7409, %v1106
        %v7842 = vmul.f32 %v7394, %v1110
        %v7843 = vmul.f32 %v7395, %v1112
        %v7844 = vmul.f32 %v7396, %v1110
        %v7845 = vmul.f32 %v7397, %v1112
        %v7846 = vmul.f32 %v7398, %v1110
        %v7847 = vmul.f32 %v7399, %v1112
        %v7848 = vmul.f32 %v7400, %v1110
        %v7849 = vmul.f32 %v7401, %v1112
        %v7850 = vmul.f32 %v7402, %v1110
        %v7851 = vmul.f32 %v7403, %v1112
        %v7852 = vmul.f32 %v7404, %v1110
        %v7853 = vmul.f32 %v7405, %v1112
        %v7854 = vmul.f32 %v7406, %v1110
        %v7855 = vmul.f32 %v7407, %v1112
        %v7856 = vmul.f32 %v7408, %v1110
        %v7857 = vmul.f32 %v7409, %v1112
        %v7858 = vmul.f32 %v7394, %v1116
        %v7859 = vmul.f32 %v7395, %v1118
        %v7860 = vmul.f32 %v7396, %v1116
        %v7861 = vmul.f32 %v7397, %v1118
        %v7862 = vmul.f32 %v7398, %v1116
        %v7863 = vmul.f32 %v7399, %v1118
        %v7864 = vmul.f32 %v7400, %v1116
        %v7865 = vmul.f32 %v7401, %v1118
        %v7866 = vmul.f32 %v7402, %v1116
        %v7867 = vmul.f32 %v7403, %v1118
        %v7868 = vmul.f32 %v7404, %v1116
        %v7869 = vmul.f32 %v7405, %v1118
        %v7870 = vmul.f32 %v7406, %v1116
        %v7871 = vmul.f32 %v7407, %v1118
        %v7872 = vmul.f32 %v7408, %v1116
        %v7873 = vmul.f32 %v7409, %v1118
        %v7874 = vmul.f32 %v7394, %v1122
        %v7875 = vmul.f32 %v7395, %v1124
        %v7876 = vmul.f32 %v7396, %v1122
        %v7877 = vmul.f32 %v7397, %v1124
        %v7878 = vmul.f32 %v7398, %v1122
        %v7879 = vmul.f32 %v7399, %v1124
        %v7880 = vmul.f32 %v7400, %v1122
        %v7881 = vmul.f32 %v7401, %v1124
        %v7882 = vmul.f32 %v7402, %v1122
        %v7883 = vmul.f32 %v7403, %v1124
        %v7884 = vmul.f32 %v7404, %v1122
        %v7885 = vmul.f32 %v7405, %v1124
        %v7886 = vmul.f32 %v7406, %v1122
        %v7887 = vmul.f32 %v7407, %v1124
        %v7888 = vmul.f32 %v7408, %v1122
        %v7889 = vmul.f32 %v7409, %v1124
        %v7890 = vmul.f32 %v7394, %v1128
        %v7891 = vmul.f32 %v7395, %v1130
        %v7892 = vmul.f32 %v7396, %v1128
        %v7893 = vmul.f32 %v7397, %v1130
        %v7894 = vmul.f32 %v7398, %v1128
        %v7895 = vmul.f32 %v7399, %v1130
        %v7896 = vmul.f32 %v7400, %v1128
        %v7897 = vmul.f32 %v7401, %v1130
        %v7898 = vmul.f32 %v7402, %v1128
        %v7899 = vmul.f32 %v7403, %v1130
        %v7900 = vmul.f32 %v7404, %v1128
        %v7901 = vmul.f32 %v7405, %v1130
        %v7902 = vmul.f32 %v7406, %v1128
        %v7903 = vmul.f32 %v7407, %v1130
        %v7904 = vmul.f32 %v7408, %v1128
        %v7905 = vmul.f32 %v7409, %v1130
        %v7906 = vmul.f32 %v7394, %v1134
        %v7907 = vmul.f32 %v7395, %v1136
        %v7908 = vmul.f32 %v7396, %v1134
        %v7909 = vmul.f32 %v7397, %v1136
        %v7910 = vmul.f32 %v7398, %v1134
        %v7911 = vmul.f32 %v7399, %v1136
        %v7912 = vmul.f32 %v7400, %v1134
        %v7913 = vmul.f32 %v7401, %v1136
        %v7914 = vmul.f32 %v7402, %v1134
        %v7915 = vmul.f32 %v7403, %v1136
        %v7916 = vmul.f32 %v7404, %v1134
        %v7917 = vmul.f32 %v7405, %v1136
        %v7918 = vmul.f32 %v7406, %v1134
        %v7919 = vmul.f32 %v7407, %v1136
        %v7920 = vmul.f32 %v7408, %v1134
        %v7921 = vmul.f32 %v7409, %v1136
        %v7922 = vrot.slane %v7410, 4
        %v7923 = vadd.f32 %v7410, %v7922
        %v7924 = vrot.slane %v7923, 2
        %v7925 = vadd.f32 %v7923, %v7924
        %v7926 = vrot.slane %v7925, 1
        %v7927 = vadd.f32 %v7925, %v7926
        %v7928 = vrot.slane %v7411, 4
        %v7929 = vadd.f32 %v7411, %v7928
        %v7930 = vrot.slane %v7929, 2
        %v7931 = vadd.f32 %v7929, %v7930
        %v7932 = vrot.slane %v7931, 1
        %v7933 = vadd.f32 %v7931, %v7932
        %v7934 = vrot.slane %v7412, 4
        %v7935 = vadd.f32 %v7412, %v7934
        %v7936 = vrot.slane %v7935, 2
        %v7937 = vadd.f32 %v7935, %v7936
        %v7938 = vrot.slane %v7937, 1
        %v7939 = vadd.f32 %v7937, %v7938
        %v7940 = vrot.slane %v7413, 4
        %v7941 = vadd.f32 %v7413, %v7940
        %v7942 = vrot.slane %v7941, 2
        %v7943 = vadd.f32 %v7941, %v7942
        %v7944 = vrot.slane %v7943, 1
        %v7945 = vadd.f32 %v7943, %v7944
        %v7946 = vrot.slane %v7414, 4
        %v7947 = vadd.f32 %v7414, %v7946
        %v7948 = vrot.slane %v7947, 2
        %v7949 = vadd.f32 %v7947, %v7948
        %v7950 = vrot.slane %v7949, 1
        %v7951 = vadd.f32 %v7949, %v7950
        %v7952 = vrot.slane %v7415, 4
        %v7953 = vadd.f32 %v7415, %v7952
        %v7954 = vrot.slane %v7953, 2
        %v7955 = vadd.f32 %v7953, %v7954
        %v7956 = vrot.slane %v7955, 1
        %v7957 = vadd.f32 %v7955, %v7956
        %v7958 = vrot.slane %v7416, 4
        %v7959 = vadd.f32 %v7416, %v7958
        %v7960 = vrot.slane %v7959, 2
        %v7961 = vadd.f32 %v7959, %v7960
        %v7962 = vrot.slane %v7961, 1
        %v7963 = vadd.f32 %v7961, %v7962
        %v7964 = vrot.slane %v7417, 4
        %v7965 = vadd.f32 %v7417, %v7964
        %v7966 = vrot.slane %v7965, 2
        %v7967 = vadd.f32 %v7965, %v7966
        %v7968 = vrot.slane %v7967, 1
        %v7969 = vadd.f32 %v7967, %v7968
        %v7970 = vrot.slane %v7418, 4
        %v7971 = vadd.f32 %v7418, %v7970
        %v7972 = vrot.slane %v7971, 2
        %v7973 = vadd.f32 %v7971, %v7972
        %v7974 = vrot.slane %v7973, 1
        %v7975 = vadd.f32 %v7973, %v7974
        %v7976 = vrot.slane %v7419, 4
        %v7977 = vadd.f32 %v7419, %v7976
        %v7978 = vrot.slane %v7977, 2
        %v7979 = vadd.f32 %v7977, %v7978
        %v7980 = vrot.slane %v7979, 1
        %v7981 = vadd.f32 %v7979, %v7980
        %v7982 = vrot.slane %v7420, 4
        %v7983 = vadd.f32 %v7420, %v7982
        %v7984 = vrot.slane %v7983, 2
        %v7985 = vadd.f32 %v7983, %v7984
        %v7986 = vrot.slane %v7985, 1
        %v7987 = vadd.f32 %v7985, %v7986
        %v7988 = vrot.slane %v7421, 4
        %v7989 = vadd.f32 %v7421, %v7988
        %v7990 = vrot.slane %v7989, 2
        %v7991 = vadd.f32 %v7989, %v7990
        %v7992 = vrot.slane %v7991, 1
        %v7993 = vadd.f32 %v7991, %v7992
        %v7994 = vrot.slane %v7422, 4
        %v7995 = vadd.f32 %v7422, %v7994
        %v7996 = vrot.slane %v7995, 2
        %v7997 = vadd.f32 %v7995, %v7996
        %v7998 = vrot.slane %v7997, 1
        %v7999 = vadd.f32 %v7997, %v7998
        %v8000 = vrot.slane %v7423, 4
        %v8001 = vadd.f32 %v7423, %v8000
        %v8002 = vrot.slane %v8001, 2
        %v8003 = vadd.f32 %v8001, %v8002
        %v8004 = vrot.slane %v8003, 1
        %v8005 = vadd.f32 %v8003, %v8004
        %v8006 = vrot.slane %v7424, 4
        %v8007 = vadd.f32 %v7424, %v8006
        %v8008 = vrot.slane %v8007, 2
        %v8009 = vadd.f32 %v8007, %v8008
        %v8010 = vrot.slane %v8009, 1
        %v8011 = vadd.f32 %v8009, %v8010
        %v8012 = vrot.slane %v7425, 4
        %v8013 = vadd.f32 %v7425, %v8012
        %v8014 = vrot.slane %v8013, 2
        %v8015 = vadd.f32 %v8013, %v8014
        %v8016 = vrot.slane %v8015, 1
        %v8017 = vadd.f32 %v8015, %v8016
        %v8018 = vrot.slane %v7426, 4
        %v8019 = vadd.f32 %v7426, %v8018
        %v8020 = vrot.slane %v8019, 2
        %v8021 = vadd.f32 %v8019, %v8020
        %v8022 = vrot.slane %v8021, 1
        %v8023 = vadd.f32 %v8021, %v8022
        %v8024 = vrot.slane %v7427, 4
        %v8025 = vadd.f32 %v7427, %v8024
        %v8026 = vrot.slane %v8025, 2
        %v8027 = vadd.f32 %v8025, %v8026
        %v8028 = vrot.slane %v8027, 1
        %v8029 = vadd.f32 %v8027, %v8028
        %v8030 = vrot.slane %v7428, 4
        %v8031 = vadd.f32 %v7428, %v8030
        %v8032 = vrot.slane %v8031, 2
        %v8033 = vadd.f32 %v8031, %v8032
        %v8034 = vrot.slane %v8033, 1
        %v8035 = vadd.f32 %v8033, %v8034
        %v8036 = vrot.slane %v7429, 4
        %v8037 = vadd.f32 %v7429, %v8036
        %v8038 = vrot.slane %v8037, 2
        %v8039 = vadd.f32 %v8037, %v8038
        %v8040 = vrot.slane %v8039, 1
        %v8041 = vadd.f32 %v8039, %v8040
        %v8042 = vrot.slane %v7430, 4
        %v8043 = vadd.f32 %v7430, %v8042
        %v8044 = vrot.slane %v8043, 2
        %v8045 = vadd.f32 %v8043, %v8044
        %v8046 = vrot.slane %v8045, 1
        %v8047 = vadd.f32 %v8045, %v8046
        %v8048 = vrot.slane %v7431, 4
        %v8049 = vadd.f32 %v7431, %v8048
        %v8050 = vrot.slane %v8049, 2
        %v8051 = vadd.f32 %v8049, %v8050
        %v8052 = vrot.slane %v8051, 1
        %v8053 = vadd.f32 %v8051, %v8052
        %v8054 = vrot.slane %v7432, 4
        %v8055 = vadd.f32 %v7432, %v8054
        %v8056 = vrot.slane %v8055, 2
        %v8057 = vadd.f32 %v8055, %v8056
        %v8058 = vrot.slane %v8057, 1
        %v8059 = vadd.f32 %v8057, %v8058
        %v8060 = vrot.slane %v7433, 4
        %v8061 = vadd.f32 %v7433, %v8060
        %v8062 = vrot.slane %v8061, 2
        %v8063 = vadd.f32 %v8061, %v8062
        %v8064 = vrot.slane %v8063, 1
        %v8065 = vadd.f32 %v8063, %v8064
        %v8066 = vrot.slane %v7434, 4
        %v8067 = vadd.f32 %v7434, %v8066
        %v8068 = vrot.slane %v8067, 2
        %v8069 = vadd.f32 %v8067, %v8068
        %v8070 = vrot.slane %v8069, 1
        %v8071 = vadd.f32 %v8069, %v8070
        %v8072 = vrot.slane %v7435, 4
        %v8073 = vadd.f32 %v7435, %v8072
        %v8074 = vrot.slane %v8073, 2
        %v8075 = vadd.f32 %v8073, %v8074
        %v8076 = vrot.slane %v8075, 1
        %v8077 = vadd.f32 %v8075, %v8076
        %v8078 = vrot.slane %v7436, 4
        %v8079 = vadd.f32 %v7436, %v8078
        %v8080 = vrot.slane %v8079, 2
        %v8081 = vadd.f32 %v8079, %v8080
        %v8082 = vrot.slane %v8081, 1
        %v8083 = vadd.f32 %v8081, %v8082
        %v8084 = vrot.slane %v7437, 4
        %v8085 = vadd.f32 %v7437, %v8084
        %v8086 = vrot.slane %v8085, 2
        %v8087 = vadd.f32 %v8085, %v8086
        %v8088 = vrot.slane %v8087, 1
        %v8089 = vadd.f32 %v8087, %v8088
        %v8090 = vrot.slane %v7438, 4
        %v8091 = vadd.f32 %v7438, %v8090
        %v8092 = vrot.slane %v8091, 2
        %v8093 = vadd.f32 %v8091, %v8092
        %v8094 = vrot.slane %v8093, 1
        %v8095 = vadd.f32 %v8093, %v8094
        %v8096 = vrot.slane %v7439, 4
        %v8097 = vadd.f32 %v7439, %v8096
        %v8098 = vrot.slane %v8097, 2
        %v8099 = vadd.f32 %v8097, %v8098
        %v8100 = vrot.slane %v8099, 1
        %v8101 = vadd.f32 %v8099, %v8100
        %v8102 = vrot.slane %v7440, 4
        %v8103 = vadd.f32 %v7440, %v8102
        %v8104 = vrot.slane %v8103, 2
        %v8105 = vadd.f32 %v8103, %v8104
        %v8106 = vrot.slane %v8105, 1
        %v8107 = vadd.f32 %v8105, %v8106
        %v8108 = vrot.slane %v7441, 4
        %v8109 = vadd.f32 %v7441, %v8108
        %v8110 = vrot.slane %v8109, 2
        %v8111 = vadd.f32 %v8109, %v8110
        %v8112 = vrot.slane %v8111, 1
        %v8113 = vadd.f32 %v8111, %v8112
        %v8114 = vrot.slane %v7442, 4
        %v8115 = vadd.f32 %v7442, %v8114
        %v8116 = vrot.slane %v8115, 2
        %v8117 = vadd.f32 %v8115, %v8116
        %v8118 = vrot.slane %v8117, 1
        %v8119 = vadd.f32 %v8117, %v8118
        %v8120 = vrot.slane %v7443, 4
        %v8121 = vadd.f32 %v7443, %v8120
        %v8122 = vrot.slane %v8121, 2
        %v8123 = vadd.f32 %v8121, %v8122
        %v8124 = vrot.slane %v8123, 1
        %v8125 = vadd.f32 %v8123, %v8124
        %v8126 = vrot.slane %v7444, 4
        %v8127 = vadd.f32 %v7444, %v8126
        %v8128 = vrot.slane %v8127, 2
        %v8129 = vadd.f32 %v8127, %v8128
        %v8130 = vrot.slane %v8129, 1
        %v8131 = vadd.f32 %v8129, %v8130
        %v8132 = vrot.slane %v7445, 4
        %v8133 = vadd.f32 %v7445, %v8132
        %v8134 = vrot.slane %v8133, 2
        %v8135 = vadd.f32 %v8133, %v8134
        %v8136 = vrot.slane %v8135, 1
        %v8137 = vadd.f32 %v8135, %v8136
        %v8138 = vrot.slane %v7446, 4
        %v8139 = vadd.f32 %v7446, %v8138
        %v8140 = vrot.slane %v8139, 2
        %v8141 = vadd.f32 %v8139, %v8140
        %v8142 = vrot.slane %v8141, 1
        %v8143 = vadd.f32 %v8141, %v8142
        %v8144 = vrot.slane %v7447, 4
        %v8145 = vadd.f32 %v7447, %v8144
        %v8146 = vrot.slane %v8145, 2
        %v8147 = vadd.f32 %v8145, %v8146
        %v8148 = vrot.slane %v8147, 1
        %v8149 = vadd.f32 %v8147, %v8148
        %v8150 = vrot.slane %v7448, 4
        %v8151 = vadd.f32 %v7448, %v8150
        %v8152 = vrot.slane %v8151, 2
        %v8153 = vadd.f32 %v8151, %v8152
        %v8154 = vrot.slane %v8153, 1
        %v8155 = vadd.f32 %v8153, %v8154
        %v8156 = vrot.slane %v7449, 4
        %v8157 = vadd.f32 %v7449, %v8156
        %v8158 = vrot.slane %v8157, 2
        %v8159 = vadd.f32 %v8157, %v8158
        %v8160 = vrot.slane %v8159, 1
        %v8161 = vadd.f32 %v8159, %v8160
        %v8162 = vrot.slane %v7450, 4
        %v8163 = vadd.f32 %v7450, %v8162
        %v8164 = vrot.slane %v8163, 2
        %v8165 = vadd.f32 %v8163, %v8164
        %v8166 = vrot.slane %v8165, 1
        %v8167 = vadd.f32 %v8165, %v8166
        %v8168 = vrot.slane %v7451, 4
        %v8169 = vadd.f32 %v7451, %v8168
        %v8170 = vrot.slane %v8169, 2
        %v8171 = vadd.f32 %v8169, %v8170
        %v8172 = vrot.slane %v8171, 1
        %v8173 = vadd.f32 %v8171, %v8172
        %v8174 = vrot.slane %v7452, 4
        %v8175 = vadd.f32 %v7452, %v8174
        %v8176 = vrot.slane %v8175, 2
        %v8177 = vadd.f32 %v8175, %v8176
        %v8178 = vrot.slane %v8177, 1
        %v8179 = vadd.f32 %v8177, %v8178
        %v8180 = vrot.slane %v7453, 4
        %v8181 = vadd.f32 %v7453, %v8180
        %v8182 = vrot.slane %v8181, 2
        %v8183 = vadd.f32 %v8181, %v8182
        %v8184 = vrot.slane %v8183, 1
        %v8185 = vadd.f32 %v8183, %v8184
        %v8186 = vrot.slane %v7454, 4
        %v8187 = vadd.f32 %v7454, %v8186
        %v8188 = vrot.slane %v8187, 2
        %v8189 = vadd.f32 %v8187, %v8188
        %v8190 = vrot.slane %v8189, 1
        %v8191 = vadd.f32 %v8189, %v8190
        %v8192 = vrot.slane %v7455, 4
        %v8193 = vadd.f32 %v7455, %v8192
        %v8194 = vrot.slane %v8193, 2
        %v8195 = vadd.f32 %v8193, %v8194
        %v8196 = vrot.slane %v8195, 1
        %v8197 = vadd.f32 %v8195, %v8196
        %v8198 = vrot.slane %v7456, 4
        %v8199 = vadd.f32 %v7456, %v8198
        %v8200 = vrot.slane %v8199, 2
        %v8201 = vadd.f32 %v8199, %v8200
        %v8202 = vrot.slane %v8201, 1
        %v8203 = vadd.f32 %v8201, %v8202
        %v8204 = vrot.slane %v7457, 4
        %v8205 = vadd.f32 %v7457, %v8204
        %v8206 = vrot.slane %v8205, 2
        %v8207 = vadd.f32 %v8205, %v8206
        %v8208 = vrot.slane %v8207, 1
        %v8209 = vadd.f32 %v8207, %v8208
        %v8210 = vrot.slane %v7458, 4
        %v8211 = vadd.f32 %v7458, %v8210
        %v8212 = vrot.slane %v8211, 2
        %v8213 = vadd.f32 %v8211, %v8212
        %v8214 = vrot.slane %v8213, 1
        %v8215 = vadd.f32 %v8213, %v8214
        %v8216 = vrot.slane %v7459, 4
        %v8217 = vadd.f32 %v7459, %v8216
        %v8218 = vrot.slane %v8217, 2
        %v8219 = vadd.f32 %v8217, %v8218
        %v8220 = vrot.slane %v8219, 1
        %v8221 = vadd.f32 %v8219, %v8220
        %v8222 = vrot.slane %v7460, 4
        %v8223 = vadd.f32 %v7460, %v8222
        %v8224 = vrot.slane %v8223, 2
        %v8225 = vadd.f32 %v8223, %v8224
        %v8226 = vrot.slane %v8225, 1
        %v8227 = vadd.f32 %v8225, %v8226
        %v8228 = vrot.slane %v7461, 4
        %v8229 = vadd.f32 %v7461, %v8228
        %v8230 = vrot.slane %v8229, 2
        %v8231 = vadd.f32 %v8229, %v8230
        %v8232 = vrot.slane %v8231, 1
        %v8233 = vadd.f32 %v8231, %v8232
        %v8234 = vrot.slane %v7462, 4
        %v8235 = vadd.f32 %v7462, %v8234
        %v8236 = vrot.slane %v8235, 2
        %v8237 = vadd.f32 %v8235, %v8236
        %v8238 = vrot.slane %v8237, 1
        %v8239 = vadd.f32 %v8237, %v8238
        %v8240 = vrot.slane %v7463, 4
        %v8241 = vadd.f32 %v7463, %v8240
        %v8242 = vrot.slane %v8241, 2
        %v8243 = vadd.f32 %v8241, %v8242
        %v8244 = vrot.slane %v8243, 1
        %v8245 = vadd.f32 %v8243, %v8244
        %v8246 = vrot.slane %v7464, 4
        %v8247 = vadd.f32 %v7464, %v8246
        %v8248 = vrot.slane %v8247, 2
        %v8249 = vadd.f32 %v8247, %v8248
        %v8250 = vrot.slane %v8249, 1
        %v8251 = vadd.f32 %v8249, %v8250
        %v8252 = vrot.slane %v7465, 4
        %v8253 = vadd.f32 %v7465, %v8252
        %v8254 = vrot.slane %v8253, 2
        %v8255 = vadd.f32 %v8253, %v8254
        %v8256 = vrot.slane %v8255, 1
        %v8257 = vadd.f32 %v8255, %v8256
        %v8258 = vrot.slane %v7466, 4
        %v8259 = vadd.f32 %v7466, %v8258
        %v8260 = vrot.slane %v8259, 2
        %v8261 = vadd.f32 %v8259, %v8260
        %v8262 = vrot.slane %v8261, 1
        %v8263 = vadd.f32 %v8261, %v8262
        %v8264 = vrot.slane %v7467, 4
        %v8265 = vadd.f32 %v7467, %v8264
        %v8266 = vrot.slane %v8265, 2
        %v8267 = vadd.f32 %v8265, %v8266
        %v8268 = vrot.slane %v8267, 1
        %v8269 = vadd.f32 %v8267, %v8268
        %v8270 = vrot.slane %v7468, 4
        %v8271 = vadd.f32 %v7468, %v8270
        %v8272 = vrot.slane %v8271, 2
        %v8273 = vadd.f32 %v8271, %v8272
        %v8274 = vrot.slane %v8273, 1
        %v8275 = vadd.f32 %v8273, %v8274
        %v8276 = vrot.slane %v7469, 4
        %v8277 = vadd.f32 %v7469, %v8276
        %v8278 = vrot.slane %v8277, 2
        %v8279 = vadd.f32 %v8277, %v8278
        %v8280 = vrot.slane %v8279, 1
        %v8281 = vadd.f32 %v8279, %v8280
        %v8282 = vrot.slane %v7470, 4
        %v8283 = vadd.f32 %v7470, %v8282
        %v8284 = vrot.slane %v8283, 2
        %v8285 = vadd.f32 %v8283, %v8284
        %v8286 = vrot.slane %v8285, 1
        %v8287 = vadd.f32 %v8285, %v8286
        %v8288 = vrot.slane %v7471, 4
        %v8289 = vadd.f32 %v7471, %v8288
        %v8290 = vrot.slane %v8289, 2
        %v8291 = vadd.f32 %v8289, %v8290
        %v8292 = vrot.slane %v8291, 1
        %v8293 = vadd.f32 %v8291, %v8292
        %v8294 = vrot.slane %v7472, 4
        %v8295 = vadd.f32 %v7472, %v8294
        %v8296 = vrot.slane %v8295, 2
        %v8297 = vadd.f32 %v8295, %v8296
        %v8298 = vrot.slane %v8297, 1
        %v8299 = vadd.f32 %v8297, %v8298
        %v8300 = vrot.slane %v7473, 4
        %v8301 = vadd.f32 %v7473, %v8300
        %v8302 = vrot.slane %v8301, 2
        %v8303 = vadd.f32 %v8301, %v8302
        %v8304 = vrot.slane %v8303, 1
        %v8305 = vadd.f32 %v8303, %v8304
        %v8306 = vrot.slane %v7474, 4
        %v8307 = vadd.f32 %v7474, %v8306
        %v8308 = vrot.slane %v8307, 2
        %v8309 = vadd.f32 %v8307, %v8308
        %v8310 = vrot.slane %v8309, 1
        %v8311 = vadd.f32 %v8309, %v8310
        %v8312 = vrot.slane %v7475, 4
        %v8313 = vadd.f32 %v7475, %v8312
        %v8314 = vrot.slane %v8313, 2
        %v8315 = vadd.f32 %v8313, %v8314
        %v8316 = vrot.slane %v8315, 1
        %v8317 = vadd.f32 %v8315, %v8316
        %v8318 = vrot.slane %v7476, 4
        %v8319 = vadd.f32 %v7476, %v8318
        %v8320 = vrot.slane %v8319, 2
        %v8321 = vadd.f32 %v8319, %v8320
        %v8322 = vrot.slane %v8321, 1
        %v8323 = vadd.f32 %v8321, %v8322
        %v8324 = vrot.slane %v7477, 4
        %v8325 = vadd.f32 %v7477, %v8324
        %v8326 = vrot.slane %v8325, 2
        %v8327 = vadd.f32 %v8325, %v8326
        %v8328 = vrot.slane %v8327, 1
        %v8329 = vadd.f32 %v8327, %v8328
        %v8330 = vrot.slane %v7478, 4
        %v8331 = vadd.f32 %v7478, %v8330
        %v8332 = vrot.slane %v8331, 2
        %v8333 = vadd.f32 %v8331, %v8332
        %v8334 = vrot.slane %v8333, 1
        %v8335 = vadd.f32 %v8333, %v8334
        %v8336 = vrot.slane %v7479, 4
        %v8337 = vadd.f32 %v7479, %v8336
        %v8338 = vrot.slane %v8337, 2
        %v8339 = vadd.f32 %v8337, %v8338
        %v8340 = vrot.slane %v8339, 1
        %v8341 = vadd.f32 %v8339, %v8340
        %v8342 = vrot.slane %v7480, 4
        %v8343 = vadd.f32 %v7480, %v8342
        %v8344 = vrot.slane %v8343, 2
        %v8345 = vadd.f32 %v8343, %v8344
        %v8346 = vrot.slane %v8345, 1
        %v8347 = vadd.f32 %v8345, %v8346
        %v8348 = vrot.slane %v7481, 4
        %v8349 = vadd.f32 %v7481, %v8348
        %v8350 = vrot.slane %v8349, 2
        %v8351 = vadd.f32 %v8349, %v8350
        %v8352 = vrot.slane %v8351, 1
        %v8353 = vadd.f32 %v8351, %v8352
        %v8354 = vrot.slane %v7482, 4
        %v8355 = vadd.f32 %v7482, %v8354
        %v8356 = vrot.slane %v8355, 2
        %v8357 = vadd.f32 %v8355, %v8356
        %v8358 = vrot.slane %v8357, 1
        %v8359 = vadd.f32 %v8357, %v8358
        %v8360 = vrot.slane %v7483, 4
        %v8361 = vadd.f32 %v7483, %v8360
        %v8362 = vrot.slane %v8361, 2
        %v8363 = vadd.f32 %v8361, %v8362
        %v8364 = vrot.slane %v8363, 1
        %v8365 = vadd.f32 %v8363, %v8364
        %v8366 = vrot.slane %v7484, 4
        %v8367 = vadd.f32 %v7484, %v8366
        %v8368 = vrot.slane %v8367, 2
        %v8369 = vadd.f32 %v8367, %v8368
        %v8370 = vrot.slane %v8369, 1
        %v8371 = vadd.f32 %v8369, %v8370
        %v8372 = vrot.slane %v7485, 4
        %v8373 = vadd.f32 %v7485, %v8372
        %v8374 = vrot.slane %v8373, 2
        %v8375 = vadd.f32 %v8373, %v8374
        %v8376 = vrot.slane %v8375, 1
        %v8377 = vadd.f32 %v8375, %v8376
        %v8378 = vrot.slane %v7486, 4
        %v8379 = vadd.f32 %v7486, %v8378
        %v8380 = vrot.slane %v8379, 2
        %v8381 = vadd.f32 %v8379, %v8380
        %v8382 = vrot.slane %v8381, 1
        %v8383 = vadd.f32 %v8381, %v8382
        %v8384 = vrot.slane %v7487, 4
        %v8385 = vadd.f32 %v7487, %v8384
        %v8386 = vrot.slane %v8385, 2
        %v8387 = vadd.f32 %v8385, %v8386
        %v8388 = vrot.slane %v8387, 1
        %v8389 = vadd.f32 %v8387, %v8388
        %v8390 = vrot.slane %v7488, 4
        %v8391 = vadd.f32 %v7488, %v8390
        %v8392 = vrot.slane %v8391, 2
        %v8393 = vadd.f32 %v8391, %v8392
        %v8394 = vrot.slane %v8393, 1
        %v8395 = vadd.f32 %v8393, %v8394
        %v8396 = vrot.slane %v7489, 4
        %v8397 = vadd.f32 %v7489, %v8396
        %v8398 = vrot.slane %v8397, 2
        %v8399 = vadd.f32 %v8397, %v8398
        %v8400 = vrot.slane %v8399, 1
        %v8401 = vadd.f32 %v8399, %v8400
        %v8402 = vrot.slane %v7490, 4
        %v8403 = vadd.f32 %v7490, %v8402
        %v8404 = vrot.slane %v8403, 2
        %v8405 = vadd.f32 %v8403, %v8404
        %v8406 = vrot.slane %v8405, 1
        %v8407 = vadd.f32 %v8405, %v8406
        %v8408 = vrot.slane %v7491, 4
        %v8409 = vadd.f32 %v7491, %v8408
        %v8410 = vrot.slane %v8409, 2
        %v8411 = vadd.f32 %v8409, %v8410
        %v8412 = vrot.slane %v8411, 1
        %v8413 = vadd.f32 %v8411, %v8412
        %v8414 = vrot.slane %v7492, 4
        %v8415 = vadd.f32 %v7492, %v8414
        %v8416 = vrot.slane %v8415, 2
        %v8417 = vadd.f32 %v8415, %v8416
        %v8418 = vrot.slane %v8417, 1
        %v8419 = vadd.f32 %v8417, %v8418
        %v8420 = vrot.slane %v7493, 4
        %v8421 = vadd.f32 %v7493, %v8420
        %v8422 = vrot.slane %v8421, 2
        %v8423 = vadd.f32 %v8421, %v8422
        %v8424 = vrot.slane %v8423, 1
        %v8425 = vadd.f32 %v8423, %v8424
        %v8426 = vrot.slane %v7494, 4
        %v8427 = vadd.f32 %v7494, %v8426
        %v8428 = vrot.slane %v8427, 2
        %v8429 = vadd.f32 %v8427, %v8428
        %v8430 = vrot.slane %v8429, 1
        %v8431 = vadd.f32 %v8429, %v8430
        %v8432 = vrot.slane %v7495, 4
        %v8433 = vadd.f32 %v7495, %v8432
        %v8434 = vrot.slane %v8433, 2
        %v8435 = vadd.f32 %v8433, %v8434
        %v8436 = vrot.slane %v8435, 1
        %v8437 = vadd.f32 %v8435, %v8436
        %v8438 = vrot.slane %v7496, 4
        %v8439 = vadd.f32 %v7496, %v8438
        %v8440 = vrot.slane %v8439, 2
        %v8441 = vadd.f32 %v8439, %v8440
        %v8442 = vrot.slane %v8441, 1
        %v8443 = vadd.f32 %v8441, %v8442
        %v8444 = vrot.slane %v7497, 4
        %v8445 = vadd.f32 %v7497, %v8444
        %v8446 = vrot.slane %v8445, 2
        %v8447 = vadd.f32 %v8445, %v8446
        %v8448 = vrot.slane %v8447, 1
        %v8449 = vadd.f32 %v8447, %v8448
        %v8450 = vrot.slane %v7498, 4
        %v8451 = vadd.f32 %v7498, %v8450
        %v8452 = vrot.slane %v8451, 2
        %v8453 = vadd.f32 %v8451, %v8452
        %v8454 = vrot.slane %v8453, 1
        %v8455 = vadd.f32 %v8453, %v8454
        %v8456 = vrot.slane %v7499, 4
        %v8457 = vadd.f32 %v7499, %v8456
        %v8458 = vrot.slane %v8457, 2
        %v8459 = vadd.f32 %v8457, %v8458
        %v8460 = vrot.slane %v8459, 1
        %v8461 = vadd.f32 %v8459, %v8460
        %v8462 = vrot.slane %v7500, 4
        %v8463 = vadd.f32 %v7500, %v8462
        %v8464 = vrot.slane %v8463, 2
        %v8465 = vadd.f32 %v8463, %v8464
        %v8466 = vrot.slane %v8465, 1
        %v8467 = vadd.f32 %v8465, %v8466
        %v8468 = vrot.slane %v7501, 4
        %v8469 = vadd.f32 %v7501, %v8468
        %v8470 = vrot.slane %v8469, 2
        %v8471 = vadd.f32 %v8469, %v8470
        %v8472 = vrot.slane %v8471, 1
        %v8473 = vadd.f32 %v8471, %v8472
        %v8474 = vrot.slane %v7502, 4
        %v8475 = vadd.f32 %v7502, %v8474
        %v8476 = vrot.slane %v8475, 2
        %v8477 = vadd.f32 %v8475, %v8476
        %v8478 = vrot.slane %v8477, 1
        %v8479 = vadd.f32 %v8477, %v8478
        %v8480 = vrot.slane %v7503, 4
        %v8481 = vadd.f32 %v7503, %v8480
        %v8482 = vrot.slane %v8481, 2
        %v8483 = vadd.f32 %v8481, %v8482
        %v8484 = vrot.slane %v8483, 1
        %v8485 = vadd.f32 %v8483, %v8484
        %v8486 = vrot.slane %v7504, 4
        %v8487 = vadd.f32 %v7504, %v8486
        %v8488 = vrot.slane %v8487, 2
        %v8489 = vadd.f32 %v8487, %v8488
        %v8490 = vrot.slane %v8489, 1
        %v8491 = vadd.f32 %v8489, %v8490
        %v8492 = vrot.slane %v7505, 4
        %v8493 = vadd.f32 %v7505, %v8492
        %v8494 = vrot.slane %v8493, 2
        %v8495 = vadd.f32 %v8493, %v8494
        %v8496 = vrot.slane %v8495, 1
        %v8497 = vadd.f32 %v8495, %v8496
        %v8498 = vrot.slane %v7506, 4
        %v8499 = vadd.f32 %v7506, %v8498
        %v8500 = vrot.slane %v8499, 2
        %v8501 = vadd.f32 %v8499, %v8500
        %v8502 = vrot.slane %v8501, 1
        %v8503 = vadd.f32 %v8501, %v8502
        %v8504 = vrot.slane %v7507, 4
        %v8505 = vadd.f32 %v7507, %v8504
        %v8506 = vrot.slane %v8505, 2
        %v8507 = vadd.f32 %v8505, %v8506
        %v8508 = vrot.slane %v8507, 1
        %v8509 = vadd.f32 %v8507, %v8508
        %v8510 = vrot.slane %v7508, 4
        %v8511 = vadd.f32 %v7508, %v8510
        %v8512 = vrot.slane %v8511, 2
        %v8513 = vadd.f32 %v8511, %v8512
        %v8514 = vrot.slane %v8513, 1
        %v8515 = vadd.f32 %v8513, %v8514
        %v8516 = vrot.slane %v7509, 4
        %v8517 = vadd.f32 %v7509, %v8516
        %v8518 = vrot.slane %v8517, 2
        %v8519 = vadd.f32 %v8517, %v8518
        %v8520 = vrot.slane %v8519, 1
        %v8521 = vadd.f32 %v8519, %v8520
        %v8522 = vrot.slane %v7510, 4
        %v8523 = vadd.f32 %v7510, %v8522
        %v8524 = vrot.slane %v8523, 2
        %v8525 = vadd.f32 %v8523, %v8524
        %v8526 = vrot.slane %v8525, 1
        %v8527 = vadd.f32 %v8525, %v8526
        %v8528 = vrot.slane %v7511, 4
        %v8529 = vadd.f32 %v7511, %v8528
        %v8530 = vrot.slane %v8529, 2
        %v8531 = vadd.f32 %v8529, %v8530
        %v8532 = vrot.slane %v8531, 1
        %v8533 = vadd.f32 %v8531, %v8532
        %v8534 = vrot.slane %v7512, 4
        %v8535 = vadd.f32 %v7512, %v8534
        %v8536 = vrot.slane %v8535, 2
        %v8537 = vadd.f32 %v8535, %v8536
        %v8538 = vrot.slane %v8537, 1
        %v8539 = vadd.f32 %v8537, %v8538
        %v8540 = vrot.slane %v7513, 4
        %v8541 = vadd.f32 %v7513, %v8540
        %v8542 = vrot.slane %v8541, 2
        %v8543 = vadd.f32 %v8541, %v8542
        %v8544 = vrot.slane %v8543, 1
        %v8545 = vadd.f32 %v8543, %v8544
        %v8546 = vrot.slane %v7514, 4
        %v8547 = vadd.f32 %v7514, %v8546
        %v8548 = vrot.slane %v8547, 2
        %v8549 = vadd.f32 %v8547, %v8548
        %v8550 = vrot.slane %v8549, 1
        %v8551 = vadd.f32 %v8549, %v8550
        %v8552 = vrot.slane %v7515, 4
        %v8553 = vadd.f32 %v7515, %v8552
        %v8554 = vrot.slane %v8553, 2
        %v8555 = vadd.f32 %v8553, %v8554
        %v8556 = vrot.slane %v8555, 1
        %v8557 = vadd.f32 %v8555, %v8556
        %v8558 = vrot.slane %v7516, 4
        %v8559 = vadd.f32 %v7516, %v8558
        %v8560 = vrot.slane %v8559, 2
        %v8561 = vadd.f32 %v8559, %v8560
        %v8562 = vrot.slane %v8561, 1
        %v8563 = vadd.f32 %v8561, %v8562
        %v8564 = vrot.slane %v7517, 4
        %v8565 = vadd.f32 %v7517, %v8564
        %v8566 = vrot.slane %v8565, 2
        %v8567 = vadd.f32 %v8565, %v8566
        %v8568 = vrot.slane %v8567, 1
        %v8569 = vadd.f32 %v8567, %v8568
        %v8570 = vrot.slane %v7518, 4
        %v8571 = vadd.f32 %v7518, %v8570
        %v8572 = vrot.slane %v8571, 2
        %v8573 = vadd.f32 %v8571, %v8572
        %v8574 = vrot.slane %v8573, 1
        %v8575 = vadd.f32 %v8573, %v8574
        %v8576 = vrot.slane %v7519, 4
        %v8577 = vadd.f32 %v7519, %v8576
        %v8578 = vrot.slane %v8577, 2
        %v8579 = vadd.f32 %v8577, %v8578
        %v8580 = vrot.slane %v8579, 1
        %v8581 = vadd.f32 %v8579, %v8580
        %v8582 = vrot.slane %v7520, 4
        %v8583 = vadd.f32 %v7520, %v8582
        %v8584 = vrot.slane %v8583, 2
        %v8585 = vadd.f32 %v8583, %v8584
        %v8586 = vrot.slane %v8585, 1
        %v8587 = vadd.f32 %v8585, %v8586
        %v8588 = vrot.slane %v7521, 4
        %v8589 = vadd.f32 %v7521, %v8588
        %v8590 = vrot.slane %v8589, 2
        %v8591 = vadd.f32 %v8589, %v8590
        %v8592 = vrot.slane %v8591, 1
        %v8593 = vadd.f32 %v8591, %v8592
        %v8594 = vrot.slane %v7522, 4
        %v8595 = vadd.f32 %v7522, %v8594
        %v8596 = vrot.slane %v8595, 2
        %v8597 = vadd.f32 %v8595, %v8596
        %v8598 = vrot.slane %v8597, 1
        %v8599 = vadd.f32 %v8597, %v8598
        %v8600 = vrot.slane %v7523, 4
        %v8601 = vadd.f32 %v7523, %v8600
        %v8602 = vrot.slane %v8601, 2
        %v8603 = vadd.f32 %v8601, %v8602
        %v8604 = vrot.slane %v8603, 1
        %v8605 = vadd.f32 %v8603, %v8604
        %v8606 = vrot.slane %v7524, 4
        %v8607 = vadd.f32 %v7524, %v8606
        %v8608 = vrot.slane %v8607, 2
        %v8609 = vadd.f32 %v8607, %v8608
        %v8610 = vrot.slane %v8609, 1
        %v8611 = vadd.f32 %v8609, %v8610
        %v8612 = vrot.slane %v7525, 4
        %v8613 = vadd.f32 %v7525, %v8612
        %v8614 = vrot.slane %v8613, 2
        %v8615 = vadd.f32 %v8613, %v8614
        %v8616 = vrot.slane %v8615, 1
        %v8617 = vadd.f32 %v8615, %v8616
        %v8618 = vrot.slane %v7526, 4
        %v8619 = vadd.f32 %v7526, %v8618
        %v8620 = vrot.slane %v8619, 2
        %v8621 = vadd.f32 %v8619, %v8620
        %v8622 = vrot.slane %v8621, 1
        %v8623 = vadd.f32 %v8621, %v8622
        %v8624 = vrot.slane %v7527, 4
        %v8625 = vadd.f32 %v7527, %v8624
        %v8626 = vrot.slane %v8625, 2
        %v8627 = vadd.f32 %v8625, %v8626
        %v8628 = vrot.slane %v8627, 1
        %v8629 = vadd.f32 %v8627, %v8628
        %v8630 = vrot.slane %v7528, 4
        %v8631 = vadd.f32 %v7528, %v8630
        %v8632 = vrot.slane %v8631, 2
        %v8633 = vadd.f32 %v8631, %v8632
        %v8634 = vrot.slane %v8633, 1
        %v8635 = vadd.f32 %v8633, %v8634
        %v8636 = vrot.slane %v7529, 4
        %v8637 = vadd.f32 %v7529, %v8636
        %v8638 = vrot.slane %v8637, 2
        %v8639 = vadd.f32 %v8637, %v8638
        %v8640 = vrot.slane %v8639, 1
        %v8641 = vadd.f32 %v8639, %v8640
        %v8642 = vrot.slane %v7530, 4
        %v8643 = vadd.f32 %v7530, %v8642
        %v8644 = vrot.slane %v8643, 2
        %v8645 = vadd.f32 %v8643, %v8644
        %v8646 = vrot.slane %v8645, 1
        %v8647 = vadd.f32 %v8645, %v8646
        %v8648 = vrot.slane %v7531, 4
        %v8649 = vadd.f32 %v7531, %v8648
        %v8650 = vrot.slane %v8649, 2
        %v8651 = vadd.f32 %v8649, %v8650
        %v8652 = vrot.slane %v8651, 1
        %v8653 = vadd.f32 %v8651, %v8652
        %v8654 = vrot.slane %v7532, 4
        %v8655 = vadd.f32 %v7532, %v8654
        %v8656 = vrot.slane %v8655, 2
        %v8657 = vadd.f32 %v8655, %v8656
        %v8658 = vrot.slane %v8657, 1
        %v8659 = vadd.f32 %v8657, %v8658
        %v8660 = vrot.slane %v7533, 4
        %v8661 = vadd.f32 %v7533, %v8660
        %v8662 = vrot.slane %v8661, 2
        %v8663 = vadd.f32 %v8661, %v8662
        %v8664 = vrot.slane %v8663, 1
        %v8665 = vadd.f32 %v8663, %v8664
        %v8666 = vrot.slane %v7534, 4
        %v8667 = vadd.f32 %v7534, %v8666
        %v8668 = vrot.slane %v8667, 2
        %v8669 = vadd.f32 %v8667, %v8668
        %v8670 = vrot.slane %v8669, 1
        %v8671 = vadd.f32 %v8669, %v8670
        %v8672 = vrot.slane %v7535, 4
        %v8673 = vadd.f32 %v7535, %v8672
        %v8674 = vrot.slane %v8673, 2
        %v8675 = vadd.f32 %v8673, %v8674
        %v8676 = vrot.slane %v8675, 1
        %v8677 = vadd.f32 %v8675, %v8676
        %v8678 = vrot.slane %v7536, 4
        %v8679 = vadd.f32 %v7536, %v8678
        %v8680 = vrot.slane %v8679, 2
        %v8681 = vadd.f32 %v8679, %v8680
        %v8682 = vrot.slane %v8681, 1
        %v8683 = vadd.f32 %v8681, %v8682
        %v8684 = vrot.slane %v7537, 4
        %v8685 = vadd.f32 %v7537, %v8684
        %v8686 = vrot.slane %v8685, 2
        %v8687 = vadd.f32 %v8685, %v8686
        %v8688 = vrot.slane %v8687, 1
        %v8689 = vadd.f32 %v8687, %v8688
        %v8690 = vrot.slane %v7538, 4
        %v8691 = vadd.f32 %v7538, %v8690
        %v8692 = vrot.slane %v8691, 2
        %v8693 = vadd.f32 %v8691, %v8692
        %v8694 = vrot.slane %v8693, 1
        %v8695 = vadd.f32 %v8693, %v8694
        %v8696 = vrot.slane %v7539, 4
        %v8697 = vadd.f32 %v7539, %v8696
        %v8698 = vrot.slane %v8697, 2
        %v8699 = vadd.f32 %v8697, %v8698
        %v8700 = vrot.slane %v8699, 1
        %v8701 = vadd.f32 %v8699, %v8700
        %v8702 = vrot.slane %v7540, 4
        %v8703 = vadd.f32 %v7540, %v8702
        %v8704 = vrot.slane %v8703, 2
        %v8705 = vadd.f32 %v8703, %v8704
        %v8706 = vrot.slane %v8705, 1
        %v8707 = vadd.f32 %v8705, %v8706
        %v8708 = vrot.slane %v7541, 4
        %v8709 = vadd.f32 %v7541, %v8708
        %v8710 = vrot.slane %v8709, 2
        %v8711 = vadd.f32 %v8709, %v8710
        %v8712 = vrot.slane %v8711, 1
        %v8713 = vadd.f32 %v8711, %v8712
        %v8714 = vrot.slane %v7542, 4
        %v8715 = vadd.f32 %v7542, %v8714
        %v8716 = vrot.slane %v8715, 2
        %v8717 = vadd.f32 %v8715, %v8716
        %v8718 = vrot.slane %v8717, 1
        %v8719 = vadd.f32 %v8717, %v8718
        %v8720 = vrot.slane %v7543, 4
        %v8721 = vadd.f32 %v7543, %v8720
        %v8722 = vrot.slane %v8721, 2
        %v8723 = vadd.f32 %v8721, %v8722
        %v8724 = vrot.slane %v8723, 1
        %v8725 = vadd.f32 %v8723, %v8724
        %v8726 = vrot.slane %v7544, 4
        %v8727 = vadd.f32 %v7544, %v8726
        %v8728 = vrot.slane %v8727, 2
        %v8729 = vadd.f32 %v8727, %v8728
        %v8730 = vrot.slane %v8729, 1
        %v8731 = vadd.f32 %v8729, %v8730
        %v8732 = vrot.slane %v7545, 4
        %v8733 = vadd.f32 %v7545, %v8732
        %v8734 = vrot.slane %v8733, 2
        %v8735 = vadd.f32 %v8733, %v8734
        %v8736 = vrot.slane %v8735, 1
        %v8737 = vadd.f32 %v8735, %v8736
        %v8738 = vrot.slane %v7546, 4
        %v8739 = vadd.f32 %v7546, %v8738
        %v8740 = vrot.slane %v8739, 2
        %v8741 = vadd.f32 %v8739, %v8740
        %v8742 = vrot.slane %v8741, 1
        %v8743 = vadd.f32 %v8741, %v8742
        %v8744 = vrot.slane %v7547, 4
        %v8745 = vadd.f32 %v7547, %v8744
        %v8746 = vrot.slane %v8745, 2
        %v8747 = vadd.f32 %v8745, %v8746
        %v8748 = vrot.slane %v8747, 1
        %v8749 = vadd.f32 %v8747, %v8748
        %v8750 = vrot.slane %v7548, 4
        %v8751 = vadd.f32 %v7548, %v8750
        %v8752 = vrot.slane %v8751, 2
        %v8753 = vadd.f32 %v8751, %v8752
        %v8754 = vrot.slane %v8753, 1
        %v8755 = vadd.f32 %v8753, %v8754
        %v8756 = vrot.slane %v7549, 4
        %v8757 = vadd.f32 %v7549, %v8756
        %v8758 = vrot.slane %v8757, 2
        %v8759 = vadd.f32 %v8757, %v8758
        %v8760 = vrot.slane %v8759, 1
        %v8761 = vadd.f32 %v8759, %v8760
        %v8762 = vrot.slane %v7550, 4
        %v8763 = vadd.f32 %v7550, %v8762
        %v8764 = vrot.slane %v8763, 2
        %v8765 = vadd.f32 %v8763, %v8764
        %v8766 = vrot.slane %v8765, 1
        %v8767 = vadd.f32 %v8765, %v8766
        %v8768 = vrot.slane %v7551, 4
        %v8769 = vadd.f32 %v7551, %v8768
        %v8770 = vrot.slane %v8769, 2
        %v8771 = vadd.f32 %v8769, %v8770
        %v8772 = vrot.slane %v8771, 1
        %v8773 = vadd.f32 %v8771, %v8772
        %v8774 = vrot.slane %v7552, 4
        %v8775 = vadd.f32 %v7552, %v8774
        %v8776 = vrot.slane %v8775, 2
        %v8777 = vadd.f32 %v8775, %v8776
        %v8778 = vrot.slane %v8777, 1
        %v8779 = vadd.f32 %v8777, %v8778
        %v8780 = vrot.slane %v7553, 4
        %v8781 = vadd.f32 %v7553, %v8780
        %v8782 = vrot.slane %v8781, 2
        %v8783 = vadd.f32 %v8781, %v8782
        %v8784 = vrot.slane %v8783, 1
        %v8785 = vadd.f32 %v8783, %v8784
        %v8786 = vrot.slane %v7554, 4
        %v8787 = vadd.f32 %v7554, %v8786
        %v8788 = vrot.slane %v8787, 2
        %v8789 = vadd.f32 %v8787, %v8788
        %v8790 = vrot.slane %v8789, 1
        %v8791 = vadd.f32 %v8789, %v8790
        %v8792 = vrot.slane %v7555, 4
        %v8793 = vadd.f32 %v7555, %v8792
        %v8794 = vrot.slane %v8793, 2
        %v8795 = vadd.f32 %v8793, %v8794
        %v8796 = vrot.slane %v8795, 1
        %v8797 = vadd.f32 %v8795, %v8796
        %v8798 = vrot.slane %v7556, 4
        %v8799 = vadd.f32 %v7556, %v8798
        %v8800 = vrot.slane %v8799, 2
        %v8801 = vadd.f32 %v8799, %v8800
        %v8802 = vrot.slane %v8801, 1
        %v8803 = vadd.f32 %v8801, %v8802
        %v8804 = vrot.slane %v7557, 4
        %v8805 = vadd.f32 %v7557, %v8804
        %v8806 = vrot.slane %v8805, 2
        %v8807 = vadd.f32 %v8805, %v8806
        %v8808 = vrot.slane %v8807, 1
        %v8809 = vadd.f32 %v8807, %v8808
        %v8810 = vrot.slane %v7558, 4
        %v8811 = vadd.f32 %v7558, %v8810
        %v8812 = vrot.slane %v8811, 2
        %v8813 = vadd.f32 %v8811, %v8812
        %v8814 = vrot.slane %v8813, 1
        %v8815 = vadd.f32 %v8813, %v8814
        %v8816 = vrot.slane %v7559, 4
        %v8817 = vadd.f32 %v7559, %v8816
        %v8818 = vrot.slane %v8817, 2
        %v8819 = vadd.f32 %v8817, %v8818
        %v8820 = vrot.slane %v8819, 1
        %v8821 = vadd.f32 %v8819, %v8820
        %v8822 = vrot.slane %v7560, 4
        %v8823 = vadd.f32 %v7560, %v8822
        %v8824 = vrot.slane %v8823, 2
        %v8825 = vadd.f32 %v8823, %v8824
        %v8826 = vrot.slane %v8825, 1
        %v8827 = vadd.f32 %v8825, %v8826
        %v8828 = vrot.slane %v7561, 4
        %v8829 = vadd.f32 %v7561, %v8828
        %v8830 = vrot.slane %v8829, 2
        %v8831 = vadd.f32 %v8829, %v8830
        %v8832 = vrot.slane %v8831, 1
        %v8833 = vadd.f32 %v8831, %v8832
        %v8834 = vrot.slane %v7562, 4
        %v8835 = vadd.f32 %v7562, %v8834
        %v8836 = vrot.slane %v8835, 2
        %v8837 = vadd.f32 %v8835, %v8836
        %v8838 = vrot.slane %v8837, 1
        %v8839 = vadd.f32 %v8837, %v8838
        %v8840 = vrot.slane %v7563, 4
        %v8841 = vadd.f32 %v7563, %v8840
        %v8842 = vrot.slane %v8841, 2
        %v8843 = vadd.f32 %v8841, %v8842
        %v8844 = vrot.slane %v8843, 1
        %v8845 = vadd.f32 %v8843, %v8844
        %v8846 = vrot.slane %v7564, 4
        %v8847 = vadd.f32 %v7564, %v8846
        %v8848 = vrot.slane %v8847, 2
        %v8849 = vadd.f32 %v8847, %v8848
        %v8850 = vrot.slane %v8849, 1
        %v8851 = vadd.f32 %v8849, %v8850
        %v8852 = vrot.slane %v7565, 4
        %v8853 = vadd.f32 %v7565, %v8852
        %v8854 = vrot.slane %v8853, 2
        %v8855 = vadd.f32 %v8853, %v8854
        %v8856 = vrot.slane %v8855, 1
        %v8857 = vadd.f32 %v8855, %v8856
        %v8858 = vrot.slane %v7566, 4
        %v8859 = vadd.f32 %v7566, %v8858
        %v8860 = vrot.slane %v8859, 2
        %v8861 = vadd.f32 %v8859, %v8860
        %v8862 = vrot.slane %v8861, 1
        %v8863 = vadd.f32 %v8861, %v8862
        %v8864 = vrot.slane %v7567, 4
        %v8865 = vadd.f32 %v7567, %v8864
        %v8866 = vrot.slane %v8865, 2
        %v8867 = vadd.f32 %v8865, %v8866
        %v8868 = vrot.slane %v8867, 1
        %v8869 = vadd.f32 %v8867, %v8868
        %v8870 = vrot.slane %v7568, 4
        %v8871 = vadd.f32 %v7568, %v8870
        %v8872 = vrot.slane %v8871, 2
        %v8873 = vadd.f32 %v8871, %v8872
        %v8874 = vrot.slane %v8873, 1
        %v8875 = vadd.f32 %v8873, %v8874
        %v8876 = vrot.slane %v7569, 4
        %v8877 = vadd.f32 %v7569, %v8876
        %v8878 = vrot.slane %v8877, 2
        %v8879 = vadd.f32 %v8877, %v8878
        %v8880 = vrot.slane %v8879, 1
        %v8881 = vadd.f32 %v8879, %v8880
        %v8882 = vrot.slane %v7570, 4
        %v8883 = vadd.f32 %v7570, %v8882
        %v8884 = vrot.slane %v8883, 2
        %v8885 = vadd.f32 %v8883, %v8884
        %v8886 = vrot.slane %v8885, 1
        %v8887 = vadd.f32 %v8885, %v8886
        %v8888 = vrot.slane %v7571, 4
        %v8889 = vadd.f32 %v7571, %v8888
        %v8890 = vrot.slane %v8889, 2
        %v8891 = vadd.f32 %v8889, %v8890
        %v8892 = vrot.slane %v8891, 1
        %v8893 = vadd.f32 %v8891, %v8892
        %v8894 = vrot.slane %v7572, 4
        %v8895 = vadd.f32 %v7572, %v8894
        %v8896 = vrot.slane %v8895, 2
        %v8897 = vadd.f32 %v8895, %v8896
        %v8898 = vrot.slane %v8897, 1
        %v8899 = vadd.f32 %v8897, %v8898
        %v8900 = vrot.slane %v7573, 4
        %v8901 = vadd.f32 %v7573, %v8900
        %v8902 = vrot.slane %v8901, 2
        %v8903 = vadd.f32 %v8901, %v8902
        %v8904 = vrot.slane %v8903, 1
        %v8905 = vadd.f32 %v8903, %v8904
        %v8906 = vrot.slane %v7574, 4
        %v8907 = vadd.f32 %v7574, %v8906
        %v8908 = vrot.slane %v8907, 2
        %v8909 = vadd.f32 %v8907, %v8908
        %v8910 = vrot.slane %v8909, 1
        %v8911 = vadd.f32 %v8909, %v8910
        %v8912 = vrot.slane %v7575, 4
        %v8913 = vadd.f32 %v7575, %v8912
        %v8914 = vrot.slane %v8913, 2
        %v8915 = vadd.f32 %v8913, %v8914
        %v8916 = vrot.slane %v8915, 1
        %v8917 = vadd.f32 %v8915, %v8916
        %v8918 = vrot.slane %v7576, 4
        %v8919 = vadd.f32 %v7576, %v8918
        %v8920 = vrot.slane %v8919, 2
        %v8921 = vadd.f32 %v8919, %v8920
        %v8922 = vrot.slane %v8921, 1
        %v8923 = vadd.f32 %v8921, %v8922
        %v8924 = vrot.slane %v7577, 4
        %v8925 = vadd.f32 %v7577, %v8924
        %v8926 = vrot.slane %v8925, 2
        %v8927 = vadd.f32 %v8925, %v8926
        %v8928 = vrot.slane %v8927, 1
        %v8929 = vadd.f32 %v8927, %v8928
        %v8930 = vrot.slane %v7578, 4
        %v8931 = vadd.f32 %v7578, %v8930
        %v8932 = vrot.slane %v8931, 2
        %v8933 = vadd.f32 %v8931, %v8932
        %v8934 = vrot.slane %v8933, 1
        %v8935 = vadd.f32 %v8933, %v8934
        %v8936 = vrot.slane %v7579, 4
        %v8937 = vadd.f32 %v7579, %v8936
        %v8938 = vrot.slane %v8937, 2
        %v8939 = vadd.f32 %v8937, %v8938
        %v8940 = vrot.slane %v8939, 1
        %v8941 = vadd.f32 %v8939, %v8940
        %v8942 = vrot.slane %v7580, 4
        %v8943 = vadd.f32 %v7580, %v8942
        %v8944 = vrot.slane %v8943, 2
        %v8945 = vadd.f32 %v8943, %v8944
        %v8946 = vrot.slane %v8945, 1
        %v8947 = vadd.f32 %v8945, %v8946
        %v8948 = vrot.slane %v7581, 4
        %v8949 = vadd.f32 %v7581, %v8948
        %v8950 = vrot.slane %v8949, 2
        %v8951 = vadd.f32 %v8949, %v8950
        %v8952 = vrot.slane %v8951, 1
        %v8953 = vadd.f32 %v8951, %v8952
        %v8954 = vrot.slane %v7582, 4
        %v8955 = vadd.f32 %v7582, %v8954
        %v8956 = vrot.slane %v8955, 2
        %v8957 = vadd.f32 %v8955, %v8956
        %v8958 = vrot.slane %v8957, 1
        %v8959 = vadd.f32 %v8957, %v8958
        %v8960 = vrot.slane %v7583, 4
        %v8961 = vadd.f32 %v7583, %v8960
        %v8962 = vrot.slane %v8961, 2
        %v8963 = vadd.f32 %v8961, %v8962
        %v8964 = vrot.slane %v8963, 1
        %v8965 = vadd.f32 %v8963, %v8964
        %v8966 = vrot.slane %v7584, 4
        %v8967 = vadd.f32 %v7584, %v8966
        %v8968 = vrot.slane %v8967, 2
        %v8969 = vadd.f32 %v8967, %v8968
        %v8970 = vrot.slane %v8969, 1
        %v8971 = vadd.f32 %v8969, %v8970
        %v8972 = vrot.slane %v7585, 4
        %v8973 = vadd.f32 %v7585, %v8972
        %v8974 = vrot.slane %v8973, 2
        %v8975 = vadd.f32 %v8973, %v8974
        %v8976 = vrot.slane %v8975, 1
        %v8977 = vadd.f32 %v8975, %v8976
        %v8978 = vrot.slane %v7586, 4
        %v8979 = vadd.f32 %v7586, %v8978
        %v8980 = vrot.slane %v8979, 2
        %v8981 = vadd.f32 %v8979, %v8980
        %v8982 = vrot.slane %v8981, 1
        %v8983 = vadd.f32 %v8981, %v8982
        %v8984 = vrot.slane %v7587, 4
        %v8985 = vadd.f32 %v7587, %v8984
        %v8986 = vrot.slane %v8985, 2
        %v8987 = vadd.f32 %v8985, %v8986
        %v8988 = vrot.slane %v8987, 1
        %v8989 = vadd.f32 %v8987, %v8988
        %v8990 = vrot.slane %v7588, 4
        %v8991 = vadd.f32 %v7588, %v8990
        %v8992 = vrot.slane %v8991, 2
        %v8993 = vadd.f32 %v8991, %v8992
        %v8994 = vrot.slane %v8993, 1
        %v8995 = vadd.f32 %v8993, %v8994
        %v8996 = vrot.slane %v7589, 4
        %v8997 = vadd.f32 %v7589, %v8996
        %v8998 = vrot.slane %v8997, 2
        %v8999 = vadd.f32 %v8997, %v8998
        %v9000 = vrot.slane %v8999, 1
        %v9001 = vadd.f32 %v8999, %v9000
        %v9002 = vrot.slane %v7590, 4
        %v9003 = vadd.f32 %v7590, %v9002
        %v9004 = vrot.slane %v9003, 2
        %v9005 = vadd.f32 %v9003, %v9004
        %v9006 = vrot.slane %v9005, 1
        %v9007 = vadd.f32 %v9005, %v9006
        %v9008 = vrot.slane %v7591, 4
        %v9009 = vadd.f32 %v7591, %v9008
        %v9010 = vrot.slane %v9009, 2
        %v9011 = vadd.f32 %v9009, %v9010
        %v9012 = vrot.slane %v9011, 1
        %v9013 = vadd.f32 %v9011, %v9012
        %v9014 = vrot.slane %v7592, 4
        %v9015 = vadd.f32 %v7592, %v9014
        %v9016 = vrot.slane %v9015, 2
        %v9017 = vadd.f32 %v9015, %v9016
        %v9018 = vrot.slane %v9017, 1
        %v9019 = vadd.f32 %v9017, %v9018
        %v9020 = vrot.slane %v7593, 4
        %v9021 = vadd.f32 %v7593, %v9020
        %v9022 = vrot.slane %v9021, 2
        %v9023 = vadd.f32 %v9021, %v9022
        %v9024 = vrot.slane %v9023, 1
        %v9025 = vadd.f32 %v9023, %v9024
        %v9026 = vrot.slane %v7594, 4
        %v9027 = vadd.f32 %v7594, %v9026
        %v9028 = vrot.slane %v9027, 2
        %v9029 = vadd.f32 %v9027, %v9028
        %v9030 = vrot.slane %v9029, 1
        %v9031 = vadd.f32 %v9029, %v9030
        %v9032 = vrot.slane %v7595, 4
        %v9033 = vadd.f32 %v7595, %v9032
        %v9034 = vrot.slane %v9033, 2
        %v9035 = vadd.f32 %v9033, %v9034
        %v9036 = vrot.slane %v9035, 1
        %v9037 = vadd.f32 %v9035, %v9036
        %v9038 = vrot.slane %v7596, 4
        %v9039 = vadd.f32 %v7596, %v9038
        %v9040 = vrot.slane %v9039, 2
        %v9041 = vadd.f32 %v9039, %v9040
        %v9042 = vrot.slane %v9041, 1
        %v9043 = vadd.f32 %v9041, %v9042
        %v9044 = vrot.slane %v7597, 4
        %v9045 = vadd.f32 %v7597, %v9044
        %v9046 = vrot.slane %v9045, 2
        %v9047 = vadd.f32 %v9045, %v9046
        %v9048 = vrot.slane %v9047, 1
        %v9049 = vadd.f32 %v9047, %v9048
        %v9050 = vrot.slane %v7598, 4
        %v9051 = vadd.f32 %v7598, %v9050
        %v9052 = vrot.slane %v9051, 2
        %v9053 = vadd.f32 %v9051, %v9052
        %v9054 = vrot.slane %v9053, 1
        %v9055 = vadd.f32 %v9053, %v9054
        %v9056 = vrot.slane %v7599, 4
        %v9057 = vadd.f32 %v7599, %v9056
        %v9058 = vrot.slane %v9057, 2
        %v9059 = vadd.f32 %v9057, %v9058
        %v9060 = vrot.slane %v9059, 1
        %v9061 = vadd.f32 %v9059, %v9060
        %v9062 = vrot.slane %v7600, 4
        %v9063 = vadd.f32 %v7600, %v9062
        %v9064 = vrot.slane %v9063, 2
        %v9065 = vadd.f32 %v9063, %v9064
        %v9066 = vrot.slane %v9065, 1
        %v9067 = vadd.f32 %v9065, %v9066
        %v9068 = vrot.slane %v7601, 4
        %v9069 = vadd.f32 %v7601, %v9068
        %v9070 = vrot.slane %v9069, 2
        %v9071 = vadd.f32 %v9069, %v9070
        %v9072 = vrot.slane %v9071, 1
        %v9073 = vadd.f32 %v9071, %v9072
        %v9074 = vrot.slane %v7602, 4
        %v9075 = vadd.f32 %v7602, %v9074
        %v9076 = vrot.slane %v9075, 2
        %v9077 = vadd.f32 %v9075, %v9076
        %v9078 = vrot.slane %v9077, 1
        %v9079 = vadd.f32 %v9077, %v9078
        %v9080 = vrot.slane %v7603, 4
        %v9081 = vadd.f32 %v7603, %v9080
        %v9082 = vrot.slane %v9081, 2
        %v9083 = vadd.f32 %v9081, %v9082
        %v9084 = vrot.slane %v9083, 1
        %v9085 = vadd.f32 %v9083, %v9084
        %v9086 = vrot.slane %v7604, 4
        %v9087 = vadd.f32 %v7604, %v9086
        %v9088 = vrot.slane %v9087, 2
        %v9089 = vadd.f32 %v9087, %v9088
        %v9090 = vrot.slane %v9089, 1
        %v9091 = vadd.f32 %v9089, %v9090
        %v9092 = vrot.slane %v7605, 4
        %v9093 = vadd.f32 %v7605, %v9092
        %v9094 = vrot.slane %v9093, 2
        %v9095 = vadd.f32 %v9093, %v9094
        %v9096 = vrot.slane %v9095, 1
        %v9097 = vadd.f32 %v9095, %v9096
        %v9098 = vrot.slane %v7606, 4
        %v9099 = vadd.f32 %v7606, %v9098
        %v9100 = vrot.slane %v9099, 2
        %v9101 = vadd.f32 %v9099, %v9100
        %v9102 = vrot.slane %v9101, 1
        %v9103 = vadd.f32 %v9101, %v9102
        %v9104 = vrot.slane %v7607, 4
        %v9105 = vadd.f32 %v7607, %v9104
        %v9106 = vrot.slane %v9105, 2
        %v9107 = vadd.f32 %v9105, %v9106
        %v9108 = vrot.slane %v9107, 1
        %v9109 = vadd.f32 %v9107, %v9108
        %v9110 = vrot.slane %v7608, 4
        %v9111 = vadd.f32 %v7608, %v9110
        %v9112 = vrot.slane %v9111, 2
        %v9113 = vadd.f32 %v9111, %v9112
        %v9114 = vrot.slane %v9113, 1
        %v9115 = vadd.f32 %v9113, %v9114
        %v9116 = vrot.slane %v7609, 4
        %v9117 = vadd.f32 %v7609, %v9116
        %v9118 = vrot.slane %v9117, 2
        %v9119 = vadd.f32 %v9117, %v9118
        %v9120 = vrot.slane %v9119, 1
        %v9121 = vadd.f32 %v9119, %v9120
        %v9122 = vrot.slane %v7610, 4
        %v9123 = vadd.f32 %v7610, %v9122
        %v9124 = vrot.slane %v9123, 2
        %v9125 = vadd.f32 %v9123, %v9124
        %v9126 = vrot.slane %v9125, 1
        %v9127 = vadd.f32 %v9125, %v9126
        %v9128 = vrot.slane %v7611, 4
        %v9129 = vadd.f32 %v7611, %v9128
        %v9130 = vrot.slane %v9129, 2
        %v9131 = vadd.f32 %v9129, %v9130
        %v9132 = vrot.slane %v9131, 1
        %v9133 = vadd.f32 %v9131, %v9132
        %v9134 = vrot.slane %v7612, 4
        %v9135 = vadd.f32 %v7612, %v9134
        %v9136 = vrot.slane %v9135, 2
        %v9137 = vadd.f32 %v9135, %v9136
        %v9138 = vrot.slane %v9137, 1
        %v9139 = vadd.f32 %v9137, %v9138
        %v9140 = vrot.slane %v7613, 4
        %v9141 = vadd.f32 %v7613, %v9140
        %v9142 = vrot.slane %v9141, 2
        %v9143 = vadd.f32 %v9141, %v9142
        %v9144 = vrot.slane %v9143, 1
        %v9145 = vadd.f32 %v9143, %v9144
        %v9146 = vrot.slane %v7614, 4
        %v9147 = vadd.f32 %v7614, %v9146
        %v9148 = vrot.slane %v9147, 2
        %v9149 = vadd.f32 %v9147, %v9148
        %v9150 = vrot.slane %v9149, 1
        %v9151 = vadd.f32 %v9149, %v9150
        %v9152 = vrot.slane %v7615, 4
        %v9153 = vadd.f32 %v7615, %v9152
        %v9154 = vrot.slane %v9153, 2
        %v9155 = vadd.f32 %v9153, %v9154
        %v9156 = vrot.slane %v9155, 1
        %v9157 = vadd.f32 %v9155, %v9156
        %v9158 = vrot.slane %v7616, 4
        %v9159 = vadd.f32 %v7616, %v9158
        %v9160 = vrot.slane %v9159, 2
        %v9161 = vadd.f32 %v9159, %v9160
        %v9162 = vrot.slane %v9161, 1
        %v9163 = vadd.f32 %v9161, %v9162
        %v9164 = vrot.slane %v7617, 4
        %v9165 = vadd.f32 %v7617, %v9164
        %v9166 = vrot.slane %v9165, 2
        %v9167 = vadd.f32 %v9165, %v9166
        %v9168 = vrot.slane %v9167, 1
        %v9169 = vadd.f32 %v9167, %v9168
        %v9170 = vrot.slane %v7618, 4
        %v9171 = vadd.f32 %v7618, %v9170
        %v9172 = vrot.slane %v9171, 2
        %v9173 = vadd.f32 %v9171, %v9172
        %v9174 = vrot.slane %v9173, 1
        %v9175 = vadd.f32 %v9173, %v9174
        %v9176 = vrot.slane %v7619, 4
        %v9177 = vadd.f32 %v7619, %v9176
        %v9178 = vrot.slane %v9177, 2
        %v9179 = vadd.f32 %v9177, %v9178
        %v9180 = vrot.slane %v9179, 1
        %v9181 = vadd.f32 %v9179, %v9180
        %v9182 = vrot.slane %v7620, 4
        %v9183 = vadd.f32 %v7620, %v9182
        %v9184 = vrot.slane %v9183, 2
        %v9185 = vadd.f32 %v9183, %v9184
        %v9186 = vrot.slane %v9185, 1
        %v9187 = vadd.f32 %v9185, %v9186
        %v9188 = vrot.slane %v7621, 4
        %v9189 = vadd.f32 %v7621, %v9188
        %v9190 = vrot.slane %v9189, 2
        %v9191 = vadd.f32 %v9189, %v9190
        %v9192 = vrot.slane %v9191, 1
        %v9193 = vadd.f32 %v9191, %v9192
        %v9194 = vrot.slane %v7622, 4
        %v9195 = vadd.f32 %v7622, %v9194
        %v9196 = vrot.slane %v9195, 2
        %v9197 = vadd.f32 %v9195, %v9196
        %v9198 = vrot.slane %v9197, 1
        %v9199 = vadd.f32 %v9197, %v9198
        %v9200 = vrot.slane %v7623, 4
        %v9201 = vadd.f32 %v7623, %v9200
        %v9202 = vrot.slane %v9201, 2
        %v9203 = vadd.f32 %v9201, %v9202
        %v9204 = vrot.slane %v9203, 1
        %v9205 = vadd.f32 %v9203, %v9204
        %v9206 = vrot.slane %v7624, 4
        %v9207 = vadd.f32 %v7624, %v9206
        %v9208 = vrot.slane %v9207, 2
        %v9209 = vadd.f32 %v9207, %v9208
        %v9210 = vrot.slane %v9209, 1
        %v9211 = vadd.f32 %v9209, %v9210
        %v9212 = vrot.slane %v7625, 4
        %v9213 = vadd.f32 %v7625, %v9212
        %v9214 = vrot.slane %v9213, 2
        %v9215 = vadd.f32 %v9213, %v9214
        %v9216 = vrot.slane %v9215, 1
        %v9217 = vadd.f32 %v9215, %v9216
        %v9218 = vrot.slane %v7626, 4
        %v9219 = vadd.f32 %v7626, %v9218
        %v9220 = vrot.slane %v9219, 2
        %v9221 = vadd.f32 %v9219, %v9220
        %v9222 = vrot.slane %v9221, 1
        %v9223 = vadd.f32 %v9221, %v9222
        %v9224 = vrot.slane %v7627, 4
        %v9225 = vadd.f32 %v7627, %v9224
        %v9226 = vrot.slane %v9225, 2
        %v9227 = vadd.f32 %v9225, %v9226
        %v9228 = vrot.slane %v9227, 1
        %v9229 = vadd.f32 %v9227, %v9228
        %v9230 = vrot.slane %v7628, 4
        %v9231 = vadd.f32 %v7628, %v9230
        %v9232 = vrot.slane %v9231, 2
        %v9233 = vadd.f32 %v9231, %v9232
        %v9234 = vrot.slane %v9233, 1
        %v9235 = vadd.f32 %v9233, %v9234
        %v9236 = vrot.slane %v7629, 4
        %v9237 = vadd.f32 %v7629, %v9236
        %v9238 = vrot.slane %v9237, 2
        %v9239 = vadd.f32 %v9237, %v9238
        %v9240 = vrot.slane %v9239, 1
        %v9241 = vadd.f32 %v9239, %v9240
        %v9242 = vrot.slane %v7630, 4
        %v9243 = vadd.f32 %v7630, %v9242
        %v9244 = vrot.slane %v9243, 2
        %v9245 = vadd.f32 %v9243, %v9244
        %v9246 = vrot.slane %v9245, 1
        %v9247 = vadd.f32 %v9245, %v9246
        %v9248 = vrot.slane %v7631, 4
        %v9249 = vadd.f32 %v7631, %v9248
        %v9250 = vrot.slane %v9249, 2
        %v9251 = vadd.f32 %v9249, %v9250
        %v9252 = vrot.slane %v9251, 1
        %v9253 = vadd.f32 %v9251, %v9252
        %v9254 = vrot.slane %v7632, 4
        %v9255 = vadd.f32 %v7632, %v9254
        %v9256 = vrot.slane %v9255, 2
        %v9257 = vadd.f32 %v9255, %v9256
        %v9258 = vrot.slane %v9257, 1
        %v9259 = vadd.f32 %v9257, %v9258
        %v9260 = vrot.slane %v7633, 4
        %v9261 = vadd.f32 %v7633, %v9260
        %v9262 = vrot.slane %v9261, 2
        %v9263 = vadd.f32 %v9261, %v9262
        %v9264 = vrot.slane %v9263, 1
        %v9265 = vadd.f32 %v9263, %v9264
        %v9266 = vrot.slane %v7634, 4
        %v9267 = vadd.f32 %v7634, %v9266
        %v9268 = vrot.slane %v9267, 2
        %v9269 = vadd.f32 %v9267, %v9268
        %v9270 = vrot.slane %v9269, 1
        %v9271 = vadd.f32 %v9269, %v9270
        %v9272 = vrot.slane %v7635, 4
        %v9273 = vadd.f32 %v7635, %v9272
        %v9274 = vrot.slane %v9273, 2
        %v9275 = vadd.f32 %v9273, %v9274
        %v9276 = vrot.slane %v9275, 1
        %v9277 = vadd.f32 %v9275, %v9276
        %v9278 = vrot.slane %v7636, 4
        %v9279 = vadd.f32 %v7636, %v9278
        %v9280 = vrot.slane %v9279, 2
        %v9281 = vadd.f32 %v9279, %v9280
        %v9282 = vrot.slane %v9281, 1
        %v9283 = vadd.f32 %v9281, %v9282
        %v9284 = vrot.slane %v7637, 4
        %v9285 = vadd.f32 %v7637, %v9284
        %v9286 = vrot.slane %v9285, 2
        %v9287 = vadd.f32 %v9285, %v9286
        %v9288 = vrot.slane %v9287, 1
        %v9289 = vadd.f32 %v9287, %v9288
        %v9290 = vrot.slane %v7638, 4
        %v9291 = vadd.f32 %v7638, %v9290
        %v9292 = vrot.slane %v9291, 2
        %v9293 = vadd.f32 %v9291, %v9292
        %v9294 = vrot.slane %v9293, 1
        %v9295 = vadd.f32 %v9293, %v9294
        %v9296 = vrot.slane %v7639, 4
        %v9297 = vadd.f32 %v7639, %v9296
        %v9298 = vrot.slane %v9297, 2
        %v9299 = vadd.f32 %v9297, %v9298
        %v9300 = vrot.slane %v9299, 1
        %v9301 = vadd.f32 %v9299, %v9300
        %v9302 = vrot.slane %v7640, 4
        %v9303 = vadd.f32 %v7640, %v9302
        %v9304 = vrot.slane %v9303, 2
        %v9305 = vadd.f32 %v9303, %v9304
        %v9306 = vrot.slane %v9305, 1
        %v9307 = vadd.f32 %v9305, %v9306
        %v9308 = vrot.slane %v7641, 4
        %v9309 = vadd.f32 %v7641, %v9308
        %v9310 = vrot.slane %v9309, 2
        %v9311 = vadd.f32 %v9309, %v9310
        %v9312 = vrot.slane %v9311, 1
        %v9313 = vadd.f32 %v9311, %v9312
        %v9314 = vrot.slane %v7642, 4
        %v9315 = vadd.f32 %v7642, %v9314
        %v9316 = vrot.slane %v9315, 2
        %v9317 = vadd.f32 %v9315, %v9316
        %v9318 = vrot.slane %v9317, 1
        %v9319 = vadd.f32 %v9317, %v9318
        %v9320 = vrot.slane %v7643, 4
        %v9321 = vadd.f32 %v7643, %v9320
        %v9322 = vrot.slane %v9321, 2
        %v9323 = vadd.f32 %v9321, %v9322
        %v9324 = vrot.slane %v9323, 1
        %v9325 = vadd.f32 %v9323, %v9324
        %v9326 = vrot.slane %v7644, 4
        %v9327 = vadd.f32 %v7644, %v9326
        %v9328 = vrot.slane %v9327, 2
        %v9329 = vadd.f32 %v9327, %v9328
        %v9330 = vrot.slane %v9329, 1
        %v9331 = vadd.f32 %v9329, %v9330
        %v9332 = vrot.slane %v7645, 4
        %v9333 = vadd.f32 %v7645, %v9332
        %v9334 = vrot.slane %v9333, 2
        %v9335 = vadd.f32 %v9333, %v9334
        %v9336 = vrot.slane %v9335, 1
        %v9337 = vadd.f32 %v9335, %v9336
        %v9338 = vrot.slane %v7646, 4
        %v9339 = vadd.f32 %v7646, %v9338
        %v9340 = vrot.slane %v9339, 2
        %v9341 = vadd.f32 %v9339, %v9340
        %v9342 = vrot.slane %v9341, 1
        %v9343 = vadd.f32 %v9341, %v9342
        %v9344 = vrot.slane %v7647, 4
        %v9345 = vadd.f32 %v7647, %v9344
        %v9346 = vrot.slane %v9345, 2
        %v9347 = vadd.f32 %v9345, %v9346
        %v9348 = vrot.slane %v9347, 1
        %v9349 = vadd.f32 %v9347, %v9348
        %v9350 = vrot.slane %v7648, 4
        %v9351 = vadd.f32 %v7648, %v9350
        %v9352 = vrot.slane %v9351, 2
        %v9353 = vadd.f32 %v9351, %v9352
        %v9354 = vrot.slane %v9353, 1
        %v9355 = vadd.f32 %v9353, %v9354
        %v9356 = vrot.slane %v7649, 4
        %v9357 = vadd.f32 %v7649, %v9356
        %v9358 = vrot.slane %v9357, 2
        %v9359 = vadd.f32 %v9357, %v9358
        %v9360 = vrot.slane %v9359, 1
        %v9361 = vadd.f32 %v9359, %v9360
        %v9362 = vrot.slane %v7650, 4
        %v9363 = vadd.f32 %v7650, %v9362
        %v9364 = vrot.slane %v9363, 2
        %v9365 = vadd.f32 %v9363, %v9364
        %v9366 = vrot.slane %v9365, 1
        %v9367 = vadd.f32 %v9365, %v9366
        %v9368 = vrot.slane %v7651, 4
        %v9369 = vadd.f32 %v7651, %v9368
        %v9370 = vrot.slane %v9369, 2
        %v9371 = vadd.f32 %v9369, %v9370
        %v9372 = vrot.slane %v9371, 1
        %v9373 = vadd.f32 %v9371, %v9372
        %v9374 = vrot.slane %v7652, 4
        %v9375 = vadd.f32 %v7652, %v9374
        %v9376 = vrot.slane %v9375, 2
        %v9377 = vadd.f32 %v9375, %v9376
        %v9378 = vrot.slane %v9377, 1
        %v9379 = vadd.f32 %v9377, %v9378
        %v9380 = vrot.slane %v7653, 4
        %v9381 = vadd.f32 %v7653, %v9380
        %v9382 = vrot.slane %v9381, 2
        %v9383 = vadd.f32 %v9381, %v9382
        %v9384 = vrot.slane %v9383, 1
        %v9385 = vadd.f32 %v9383, %v9384
        %v9386 = vrot.slane %v7654, 4
        %v9387 = vadd.f32 %v7654, %v9386
        %v9388 = vrot.slane %v9387, 2
        %v9389 = vadd.f32 %v9387, %v9388
        %v9390 = vrot.slane %v9389, 1
        %v9391 = vadd.f32 %v9389, %v9390
        %v9392 = vrot.slane %v7655, 4
        %v9393 = vadd.f32 %v7655, %v9392
        %v9394 = vrot.slane %v9393, 2
        %v9395 = vadd.f32 %v9393, %v9394
        %v9396 = vrot.slane %v9395, 1
        %v9397 = vadd.f32 %v9395, %v9396
        %v9398 = vrot.slane %v7656, 4
        %v9399 = vadd.f32 %v7656, %v9398
        %v9400 = vrot.slane %v9399, 2
        %v9401 = vadd.f32 %v9399, %v9400
        %v9402 = vrot.slane %v9401, 1
        %v9403 = vadd.f32 %v9401, %v9402
        %v9404 = vrot.slane %v7657, 4
        %v9405 = vadd.f32 %v7657, %v9404
        %v9406 = vrot.slane %v9405, 2
        %v9407 = vadd.f32 %v9405, %v9406
        %v9408 = vrot.slane %v9407, 1
        %v9409 = vadd.f32 %v9407, %v9408
        %v9410 = vrot.slane %v7658, 4
        %v9411 = vadd.f32 %v7658, %v9410
        %v9412 = vrot.slane %v9411, 2
        %v9413 = vadd.f32 %v9411, %v9412
        %v9414 = vrot.slane %v9413, 1
        %v9415 = vadd.f32 %v9413, %v9414
        %v9416 = vrot.slane %v7659, 4
        %v9417 = vadd.f32 %v7659, %v9416
        %v9418 = vrot.slane %v9417, 2
        %v9419 = vadd.f32 %v9417, %v9418
        %v9420 = vrot.slane %v9419, 1
        %v9421 = vadd.f32 %v9419, %v9420
        %v9422 = vrot.slane %v7660, 4
        %v9423 = vadd.f32 %v7660, %v9422
        %v9424 = vrot.slane %v9423, 2
        %v9425 = vadd.f32 %v9423, %v9424
        %v9426 = vrot.slane %v9425, 1
        %v9427 = vadd.f32 %v9425, %v9426
        %v9428 = vrot.slane %v7661, 4
        %v9429 = vadd.f32 %v7661, %v9428
        %v9430 = vrot.slane %v9429, 2
        %v9431 = vadd.f32 %v9429, %v9430
        %v9432 = vrot.slane %v9431, 1
        %v9433 = vadd.f32 %v9431, %v9432
        %v9434 = vrot.slane %v7662, 4
        %v9435 = vadd.f32 %v7662, %v9434
        %v9436 = vrot.slane %v9435, 2
        %v9437 = vadd.f32 %v9435, %v9436
        %v9438 = vrot.slane %v9437, 1
        %v9439 = vadd.f32 %v9437, %v9438
        %v9440 = vrot.slane %v7663, 4
        %v9441 = vadd.f32 %v7663, %v9440
        %v9442 = vrot.slane %v9441, 2
        %v9443 = vadd.f32 %v9441, %v9442
        %v9444 = vrot.slane %v9443, 1
        %v9445 = vadd.f32 %v9443, %v9444
        %v9446 = vrot.slane %v7664, 4
        %v9447 = vadd.f32 %v7664, %v9446
        %v9448 = vrot.slane %v9447, 2
        %v9449 = vadd.f32 %v9447, %v9448
        %v9450 = vrot.slane %v9449, 1
        %v9451 = vadd.f32 %v9449, %v9450
        %v9452 = vrot.slane %v7665, 4
        %v9453 = vadd.f32 %v7665, %v9452
        %v9454 = vrot.slane %v9453, 2
        %v9455 = vadd.f32 %v9453, %v9454
        %v9456 = vrot.slane %v9455, 1
        %v9457 = vadd.f32 %v9455, %v9456
        %v9458 = vrot.slane %v7666, 4
        %v9459 = vadd.f32 %v7666, %v9458
        %v9460 = vrot.slane %v9459, 2
        %v9461 = vadd.f32 %v9459, %v9460
        %v9462 = vrot.slane %v9461, 1
        %v9463 = vadd.f32 %v9461, %v9462
        %v9464 = vrot.slane %v7667, 4
        %v9465 = vadd.f32 %v7667, %v9464
        %v9466 = vrot.slane %v9465, 2
        %v9467 = vadd.f32 %v9465, %v9466
        %v9468 = vrot.slane %v9467, 1
        %v9469 = vadd.f32 %v9467, %v9468
        %v9470 = vrot.slane %v7668, 4
        %v9471 = vadd.f32 %v7668, %v9470
        %v9472 = vrot.slane %v9471, 2
        %v9473 = vadd.f32 %v9471, %v9472
        %v9474 = vrot.slane %v9473, 1
        %v9475 = vadd.f32 %v9473, %v9474
        %v9476 = vrot.slane %v7669, 4
        %v9477 = vadd.f32 %v7669, %v9476
        %v9478 = vrot.slane %v9477, 2
        %v9479 = vadd.f32 %v9477, %v9478
        %v9480 = vrot.slane %v9479, 1
        %v9481 = vadd.f32 %v9479, %v9480
        %v9482 = vrot.slane %v7670, 4
        %v9483 = vadd.f32 %v7670, %v9482
        %v9484 = vrot.slane %v9483, 2
        %v9485 = vadd.f32 %v9483, %v9484
        %v9486 = vrot.slane %v9485, 1
        %v9487 = vadd.f32 %v9485, %v9486
        %v9488 = vrot.slane %v7671, 4
        %v9489 = vadd.f32 %v7671, %v9488
        %v9490 = vrot.slane %v9489, 2
        %v9491 = vadd.f32 %v9489, %v9490
        %v9492 = vrot.slane %v9491, 1
        %v9493 = vadd.f32 %v9491, %v9492
        %v9494 = vrot.slane %v7672, 4
        %v9495 = vadd.f32 %v7672, %v9494
        %v9496 = vrot.slane %v9495, 2
        %v9497 = vadd.f32 %v9495, %v9496
        %v9498 = vrot.slane %v9497, 1
        %v9499 = vadd.f32 %v9497, %v9498
        %v9500 = vrot.slane %v7673, 4
        %v9501 = vadd.f32 %v7673, %v9500
        %v9502 = vrot.slane %v9501, 2
        %v9503 = vadd.f32 %v9501, %v9502
        %v9504 = vrot.slane %v9503, 1
        %v9505 = vadd.f32 %v9503, %v9504
        %v9506 = vrot.slane %v7674, 4
        %v9507 = vadd.f32 %v7674, %v9506
        %v9508 = vrot.slane %v9507, 2
        %v9509 = vadd.f32 %v9507, %v9508
        %v9510 = vrot.slane %v9509, 1
        %v9511 = vadd.f32 %v9509, %v9510
        %v9512 = vrot.slane %v7675, 4
        %v9513 = vadd.f32 %v7675, %v9512
        %v9514 = vrot.slane %v9513, 2
        %v9515 = vadd.f32 %v9513, %v9514
        %v9516 = vrot.slane %v9515, 1
        %v9517 = vadd.f32 %v9515, %v9516
        %v9518 = vrot.slane %v7676, 4
        %v9519 = vadd.f32 %v7676, %v9518
        %v9520 = vrot.slane %v9519, 2
        %v9521 = vadd.f32 %v9519, %v9520
        %v9522 = vrot.slane %v9521, 1
        %v9523 = vadd.f32 %v9521, %v9522
        %v9524 = vrot.slane %v7677, 4
        %v9525 = vadd.f32 %v7677, %v9524
        %v9526 = vrot.slane %v9525, 2
        %v9527 = vadd.f32 %v9525, %v9526
        %v9528 = vrot.slane %v9527, 1
        %v9529 = vadd.f32 %v9527, %v9528
        %v9530 = vrot.slane %v7678, 4
        %v9531 = vadd.f32 %v7678, %v9530
        %v9532 = vrot.slane %v9531, 2
        %v9533 = vadd.f32 %v9531, %v9532
        %v9534 = vrot.slane %v9533, 1
        %v9535 = vadd.f32 %v9533, %v9534
        %v9536 = vrot.slane %v7679, 4
        %v9537 = vadd.f32 %v7679, %v9536
        %v9538 = vrot.slane %v9537, 2
        %v9539 = vadd.f32 %v9537, %v9538
        %v9540 = vrot.slane %v9539, 1
        %v9541 = vadd.f32 %v9539, %v9540
        %v9542 = vrot.slane %v7680, 4
        %v9543 = vadd.f32 %v7680, %v9542
        %v9544 = vrot.slane %v9543, 2
        %v9545 = vadd.f32 %v9543, %v9544
        %v9546 = vrot.slane %v9545, 1
        %v9547 = vadd.f32 %v9545, %v9546
        %v9548 = vrot.slane %v7681, 4
        %v9549 = vadd.f32 %v7681, %v9548
        %v9550 = vrot.slane %v9549, 2
        %v9551 = vadd.f32 %v9549, %v9550
        %v9552 = vrot.slane %v9551, 1
        %v9553 = vadd.f32 %v9551, %v9552
        %v9554 = vrot.slane %v7682, 4
        %v9555 = vadd.f32 %v7682, %v9554
        %v9556 = vrot.slane %v9555, 2
        %v9557 = vadd.f32 %v9555, %v9556
        %v9558 = vrot.slane %v9557, 1
        %v9559 = vadd.f32 %v9557, %v9558
        %v9560 = vrot.slane %v7683, 4
        %v9561 = vadd.f32 %v7683, %v9560
        %v9562 = vrot.slane %v9561, 2
        %v9563 = vadd.f32 %v9561, %v9562
        %v9564 = vrot.slane %v9563, 1
        %v9565 = vadd.f32 %v9563, %v9564
        %v9566 = vrot.slane %v7684, 4
        %v9567 = vadd.f32 %v7684, %v9566
        %v9568 = vrot.slane %v9567, 2
        %v9569 = vadd.f32 %v9567, %v9568
        %v9570 = vrot.slane %v9569, 1
        %v9571 = vadd.f32 %v9569, %v9570
        %v9572 = vrot.slane %v7685, 4
        %v9573 = vadd.f32 %v7685, %v9572
        %v9574 = vrot.slane %v9573, 2
        %v9575 = vadd.f32 %v9573, %v9574
        %v9576 = vrot.slane %v9575, 1
        %v9577 = vadd.f32 %v9575, %v9576
        %v9578 = vrot.slane %v7686, 4
        %v9579 = vadd.f32 %v7686, %v9578
        %v9580 = vrot.slane %v9579, 2
        %v9581 = vadd.f32 %v9579, %v9580
        %v9582 = vrot.slane %v9581, 1
        %v9583 = vadd.f32 %v9581, %v9582
        %v9584 = vrot.slane %v7687, 4
        %v9585 = vadd.f32 %v7687, %v9584
        %v9586 = vrot.slane %v9585, 2
        %v9587 = vadd.f32 %v9585, %v9586
        %v9588 = vrot.slane %v9587, 1
        %v9589 = vadd.f32 %v9587, %v9588
        %v9590 = vrot.slane %v7688, 4
        %v9591 = vadd.f32 %v7688, %v9590
        %v9592 = vrot.slane %v9591, 2
        %v9593 = vadd.f32 %v9591, %v9592
        %v9594 = vrot.slane %v9593, 1
        %v9595 = vadd.f32 %v9593, %v9594
        %v9596 = vrot.slane %v7689, 4
        %v9597 = vadd.f32 %v7689, %v9596
        %v9598 = vrot.slane %v9597, 2
        %v9599 = vadd.f32 %v9597, %v9598
        %v9600 = vrot.slane %v9599, 1
        %v9601 = vadd.f32 %v9599, %v9600
        %v9602 = vrot.slane %v7690, 4
        %v9603 = vadd.f32 %v7690, %v9602
        %v9604 = vrot.slane %v9603, 2
        %v9605 = vadd.f32 %v9603, %v9604
        %v9606 = vrot.slane %v9605, 1
        %v9607 = vadd.f32 %v9605, %v9606
        %v9608 = vrot.slane %v7691, 4
        %v9609 = vadd.f32 %v7691, %v9608
        %v9610 = vrot.slane %v9609, 2
        %v9611 = vadd.f32 %v9609, %v9610
        %v9612 = vrot.slane %v9611, 1
        %v9613 = vadd.f32 %v9611, %v9612
        %v9614 = vrot.slane %v7692, 4
        %v9615 = vadd.f32 %v7692, %v9614
        %v9616 = vrot.slane %v9615, 2
        %v9617 = vadd.f32 %v9615, %v9616
        %v9618 = vrot.slane %v9617, 1
        %v9619 = vadd.f32 %v9617, %v9618
        %v9620 = vrot.slane %v7693, 4
        %v9621 = vadd.f32 %v7693, %v9620
        %v9622 = vrot.slane %v9621, 2
        %v9623 = vadd.f32 %v9621, %v9622
        %v9624 = vrot.slane %v9623, 1
        %v9625 = vadd.f32 %v9623, %v9624
        %v9626 = vrot.slane %v7694, 4
        %v9627 = vadd.f32 %v7694, %v9626
        %v9628 = vrot.slane %v9627, 2
        %v9629 = vadd.f32 %v9627, %v9628
        %v9630 = vrot.slane %v9629, 1
        %v9631 = vadd.f32 %v9629, %v9630
        %v9632 = vrot.slane %v7695, 4
        %v9633 = vadd.f32 %v7695, %v9632
        %v9634 = vrot.slane %v9633, 2
        %v9635 = vadd.f32 %v9633, %v9634
        %v9636 = vrot.slane %v9635, 1
        %v9637 = vadd.f32 %v9635, %v9636
        %v9638 = vrot.slane %v7696, 4
        %v9639 = vadd.f32 %v7696, %v9638
        %v9640 = vrot.slane %v9639, 2
        %v9641 = vadd.f32 %v9639, %v9640
        %v9642 = vrot.slane %v9641, 1
        %v9643 = vadd.f32 %v9641, %v9642
        %v9644 = vrot.slane %v7697, 4
        %v9645 = vadd.f32 %v7697, %v9644
        %v9646 = vrot.slane %v9645, 2
        %v9647 = vadd.f32 %v9645, %v9646
        %v9648 = vrot.slane %v9647, 1
        %v9649 = vadd.f32 %v9647, %v9648
        %v9650 = vrot.slane %v7698, 4
        %v9651 = vadd.f32 %v7698, %v9650
        %v9652 = vrot.slane %v9651, 2
        %v9653 = vadd.f32 %v9651, %v9652
        %v9654 = vrot.slane %v9653, 1
        %v9655 = vadd.f32 %v9653, %v9654
        %v9656 = vrot.slane %v7699, 4
        %v9657 = vadd.f32 %v7699, %v9656
        %v9658 = vrot.slane %v9657, 2
        %v9659 = vadd.f32 %v9657, %v9658
        %v9660 = vrot.slane %v9659, 1
        %v9661 = vadd.f32 %v9659, %v9660
        %v9662 = vrot.slane %v7700, 4
        %v9663 = vadd.f32 %v7700, %v9662
        %v9664 = vrot.slane %v9663, 2
        %v9665 = vadd.f32 %v9663, %v9664
        %v9666 = vrot.slane %v9665, 1
        %v9667 = vadd.f32 %v9665, %v9666
        %v9668 = vrot.slane %v7701, 4
        %v9669 = vadd.f32 %v7701, %v9668
        %v9670 = vrot.slane %v9669, 2
        %v9671 = vadd.f32 %v9669, %v9670
        %v9672 = vrot.slane %v9671, 1
        %v9673 = vadd.f32 %v9671, %v9672
        %v9674 = vrot.slane %v7702, 4
        %v9675 = vadd.f32 %v7702, %v9674
        %v9676 = vrot.slane %v9675, 2
        %v9677 = vadd.f32 %v9675, %v9676
        %v9678 = vrot.slane %v9677, 1
        %v9679 = vadd.f32 %v9677, %v9678
        %v9680 = vrot.slane %v7703, 4
        %v9681 = vadd.f32 %v7703, %v9680
        %v9682 = vrot.slane %v9681, 2
        %v9683 = vadd.f32 %v9681, %v9682
        %v9684 = vrot.slane %v9683, 1
        %v9685 = vadd.f32 %v9683, %v9684
        %v9686 = vrot.slane %v7704, 4
        %v9687 = vadd.f32 %v7704, %v9686
        %v9688 = vrot.slane %v9687, 2
        %v9689 = vadd.f32 %v9687, %v9688
        %v9690 = vrot.slane %v9689, 1
        %v9691 = vadd.f32 %v9689, %v9690
        %v9692 = vrot.slane %v7705, 4
        %v9693 = vadd.f32 %v7705, %v9692
        %v9694 = vrot.slane %v9693, 2
        %v9695 = vadd.f32 %v9693, %v9694
        %v9696 = vrot.slane %v9695, 1
        %v9697 = vadd.f32 %v9695, %v9696
        %v9698 = vrot.slane %v7706, 4
        %v9699 = vadd.f32 %v7706, %v9698
        %v9700 = vrot.slane %v9699, 2
        %v9701 = vadd.f32 %v9699, %v9700
        %v9702 = vrot.slane %v9701, 1
        %v9703 = vadd.f32 %v9701, %v9702
        %v9704 = vrot.slane %v7707, 4
        %v9705 = vadd.f32 %v7707, %v9704
        %v9706 = vrot.slane %v9705, 2
        %v9707 = vadd.f32 %v9705, %v9706
        %v9708 = vrot.slane %v9707, 1
        %v9709 = vadd.f32 %v9707, %v9708
        %v9710 = vrot.slane %v7708, 4
        %v9711 = vadd.f32 %v7708, %v9710
        %v9712 = vrot.slane %v9711, 2
        %v9713 = vadd.f32 %v9711, %v9712
        %v9714 = vrot.slane %v9713, 1
        %v9715 = vadd.f32 %v9713, %v9714
        %v9716 = vrot.slane %v7709, 4
        %v9717 = vadd.f32 %v7709, %v9716
        %v9718 = vrot.slane %v9717, 2
        %v9719 = vadd.f32 %v9717, %v9718
        %v9720 = vrot.slane %v9719, 1
        %v9721 = vadd.f32 %v9719, %v9720
        %v9722 = vrot.slane %v7710, 4
        %v9723 = vadd.f32 %v7710, %v9722
        %v9724 = vrot.slane %v9723, 2
        %v9725 = vadd.f32 %v9723, %v9724
        %v9726 = vrot.slane %v9725, 1
        %v9727 = vadd.f32 %v9725, %v9726
        %v9728 = vrot.slane %v7711, 4
        %v9729 = vadd.f32 %v7711, %v9728
        %v9730 = vrot.slane %v9729, 2
        %v9731 = vadd.f32 %v9729, %v9730
        %v9732 = vrot.slane %v9731, 1
        %v9733 = vadd.f32 %v9731, %v9732
        %v9734 = vrot.slane %v7712, 4
        %v9735 = vadd.f32 %v7712, %v9734
        %v9736 = vrot.slane %v9735, 2
        %v9737 = vadd.f32 %v9735, %v9736
        %v9738 = vrot.slane %v9737, 1
        %v9739 = vadd.f32 %v9737, %v9738
        %v9740 = vrot.slane %v7713, 4
        %v9741 = vadd.f32 %v7713, %v9740
        %v9742 = vrot.slane %v9741, 2
        %v9743 = vadd.f32 %v9741, %v9742
        %v9744 = vrot.slane %v9743, 1
        %v9745 = vadd.f32 %v9743, %v9744
        %v9746 = vrot.slane %v7714, 4
        %v9747 = vadd.f32 %v7714, %v9746
        %v9748 = vrot.slane %v9747, 2
        %v9749 = vadd.f32 %v9747, %v9748
        %v9750 = vrot.slane %v9749, 1
        %v9751 = vadd.f32 %v9749, %v9750
        %v9752 = vrot.slane %v7715, 4
        %v9753 = vadd.f32 %v7715, %v9752
        %v9754 = vrot.slane %v9753, 2
        %v9755 = vadd.f32 %v9753, %v9754
        %v9756 = vrot.slane %v9755, 1
        %v9757 = vadd.f32 %v9755, %v9756
        %v9758 = vrot.slane %v7716, 4
        %v9759 = vadd.f32 %v7716, %v9758
        %v9760 = vrot.slane %v9759, 2
        %v9761 = vadd.f32 %v9759, %v9760
        %v9762 = vrot.slane %v9761, 1
        %v9763 = vadd.f32 %v9761, %v9762
        %v9764 = vrot.slane %v7717, 4
        %v9765 = vadd.f32 %v7717, %v9764
        %v9766 = vrot.slane %v9765, 2
        %v9767 = vadd.f32 %v9765, %v9766
        %v9768 = vrot.slane %v9767, 1
        %v9769 = vadd.f32 %v9767, %v9768
        %v9770 = vrot.slane %v7718, 4
        %v9771 = vadd.f32 %v7718, %v9770
        %v9772 = vrot.slane %v9771, 2
        %v9773 = vadd.f32 %v9771, %v9772
        %v9774 = vrot.slane %v9773, 1
        %v9775 = vadd.f32 %v9773, %v9774
        %v9776 = vrot.slane %v7719, 4
        %v9777 = vadd.f32 %v7719, %v9776
        %v9778 = vrot.slane %v9777, 2
        %v9779 = vadd.f32 %v9777, %v9778
        %v9780 = vrot.slane %v9779, 1
        %v9781 = vadd.f32 %v9779, %v9780
        %v9782 = vrot.slane %v7720, 4
        %v9783 = vadd.f32 %v7720, %v9782
        %v9784 = vrot.slane %v9783, 2
        %v9785 = vadd.f32 %v9783, %v9784
        %v9786 = vrot.slane %v9785, 1
        %v9787 = vadd.f32 %v9785, %v9786
        %v9788 = vrot.slane %v7721, 4
        %v9789 = vadd.f32 %v7721, %v9788
        %v9790 = vrot.slane %v9789, 2
        %v9791 = vadd.f32 %v9789, %v9790
        %v9792 = vrot.slane %v9791, 1
        %v9793 = vadd.f32 %v9791, %v9792
        %v9794 = vrot.slane %v7722, 4
        %v9795 = vadd.f32 %v7722, %v9794
        %v9796 = vrot.slane %v9795, 2
        %v9797 = vadd.f32 %v9795, %v9796
        %v9798 = vrot.slane %v9797, 1
        %v9799 = vadd.f32 %v9797, %v9798
        %v9800 = vrot.slane %v7723, 4
        %v9801 = vadd.f32 %v7723, %v9800
        %v9802 = vrot.slane %v9801, 2
        %v9803 = vadd.f32 %v9801, %v9802
        %v9804 = vrot.slane %v9803, 1
        %v9805 = vadd.f32 %v9803, %v9804
        %v9806 = vrot.slane %v7724, 4
        %v9807 = vadd.f32 %v7724, %v9806
        %v9808 = vrot.slane %v9807, 2
        %v9809 = vadd.f32 %v9807, %v9808
        %v9810 = vrot.slane %v9809, 1
        %v9811 = vadd.f32 %v9809, %v9810
        %v9812 = vrot.slane %v7725, 4
        %v9813 = vadd.f32 %v7725, %v9812
        %v9814 = vrot.slane %v9813, 2
        %v9815 = vadd.f32 %v9813, %v9814
        %v9816 = vrot.slane %v9815, 1
        %v9817 = vadd.f32 %v9815, %v9816
        %v9818 = vrot.slane %v7726, 4
        %v9819 = vadd.f32 %v7726, %v9818
        %v9820 = vrot.slane %v9819, 2
        %v9821 = vadd.f32 %v9819, %v9820
        %v9822 = vrot.slane %v9821, 1
        %v9823 = vadd.f32 %v9821, %v9822
        %v9824 = vrot.slane %v7727, 4
        %v9825 = vadd.f32 %v7727, %v9824
        %v9826 = vrot.slane %v9825, 2
        %v9827 = vadd.f32 %v9825, %v9826
        %v9828 = vrot.slane %v9827, 1
        %v9829 = vadd.f32 %v9827, %v9828
        %v9830 = vrot.slane %v7728, 4
        %v9831 = vadd.f32 %v7728, %v9830
        %v9832 = vrot.slane %v9831, 2
        %v9833 = vadd.f32 %v9831, %v9832
        %v9834 = vrot.slane %v9833, 1
        %v9835 = vadd.f32 %v9833, %v9834
        %v9836 = vrot.slane %v7729, 4
        %v9837 = vadd.f32 %v7729, %v9836
        %v9838 = vrot.slane %v9837, 2
        %v9839 = vadd.f32 %v9837, %v9838
        %v9840 = vrot.slane %v9839, 1
        %v9841 = vadd.f32 %v9839, %v9840
        %v9842 = vrot.slane %v7730, 4
        %v9843 = vadd.f32 %v7730, %v9842
        %v9844 = vrot.slane %v9843, 2
        %v9845 = vadd.f32 %v9843, %v9844
        %v9846 = vrot.slane %v9845, 1
        %v9847 = vadd.f32 %v9845, %v9846
        %v9848 = vrot.slane %v7731, 4
        %v9849 = vadd.f32 %v7731, %v9848
        %v9850 = vrot.slane %v9849, 2
        %v9851 = vadd.f32 %v9849, %v9850
        %v9852 = vrot.slane %v9851, 1
        %v9853 = vadd.f32 %v9851, %v9852
        %v9854 = vrot.slane %v7732, 4
        %v9855 = vadd.f32 %v7732, %v9854
        %v9856 = vrot.slane %v9855, 2
        %v9857 = vadd.f32 %v9855, %v9856
        %v9858 = vrot.slane %v9857, 1
        %v9859 = vadd.f32 %v9857, %v9858
        %v9860 = vrot.slane %v7733, 4
        %v9861 = vadd.f32 %v7733, %v9860
        %v9862 = vrot.slane %v9861, 2
        %v9863 = vadd.f32 %v9861, %v9862
        %v9864 = vrot.slane %v9863, 1
        %v9865 = vadd.f32 %v9863, %v9864
        %v9866 = vrot.slane %v7734, 4
        %v9867 = vadd.f32 %v7734, %v9866
        %v9868 = vrot.slane %v9867, 2
        %v9869 = vadd.f32 %v9867, %v9868
        %v9870 = vrot.slane %v9869, 1
        %v9871 = vadd.f32 %v9869, %v9870
        %v9872 = vrot.slane %v7735, 4
        %v9873 = vadd.f32 %v7735, %v9872
        %v9874 = vrot.slane %v9873, 2
        %v9875 = vadd.f32 %v9873, %v9874
        %v9876 = vrot.slane %v9875, 1
        %v9877 = vadd.f32 %v9875, %v9876
        %v9878 = vrot.slane %v7736, 4
        %v9879 = vadd.f32 %v7736, %v9878
        %v9880 = vrot.slane %v9879, 2
        %v9881 = vadd.f32 %v9879, %v9880
        %v9882 = vrot.slane %v9881, 1
        %v9883 = vadd.f32 %v9881, %v9882
        %v9884 = vrot.slane %v7737, 4
        %v9885 = vadd.f32 %v7737, %v9884
        %v9886 = vrot.slane %v9885, 2
        %v9887 = vadd.f32 %v9885, %v9886
        %v9888 = vrot.slane %v9887, 1
        %v9889 = vadd.f32 %v9887, %v9888
        %v9890 = vrot.slane %v7738, 4
        %v9891 = vadd.f32 %v7738, %v9890
        %v9892 = vrot.slane %v9891, 2
        %v9893 = vadd.f32 %v9891, %v9892
        %v9894 = vrot.slane %v9893, 1
        %v9895 = vadd.f32 %v9893, %v9894
        %v9896 = vrot.slane %v7739, 4
        %v9897 = vadd.f32 %v7739, %v9896
        %v9898 = vrot.slane %v9897, 2
        %v9899 = vadd.f32 %v9897, %v9898
        %v9900 = vrot.slane %v9899, 1
        %v9901 = vadd.f32 %v9899, %v9900
        %v9902 = vrot.slane %v7740, 4
        %v9903 = vadd.f32 %v7740, %v9902
        %v9904 = vrot.slane %v9903, 2
        %v9905 = vadd.f32 %v9903, %v9904
        %v9906 = vrot.slane %v9905, 1
        %v9907 = vadd.f32 %v9905, %v9906
        %v9908 = vrot.slane %v7741, 4
        %v9909 = vadd.f32 %v7741, %v9908
        %v9910 = vrot.slane %v9909, 2
        %v9911 = vadd.f32 %v9909, %v9910
        %v9912 = vrot.slane %v9911, 1
        %v9913 = vadd.f32 %v9911, %v9912
        %v9914 = vrot.slane %v7742, 4
        %v9915 = vadd.f32 %v7742, %v9914
        %v9916 = vrot.slane %v9915, 2
        %v9917 = vadd.f32 %v9915, %v9916
        %v9918 = vrot.slane %v9917, 1
        %v9919 = vadd.f32 %v9917, %v9918
        %v9920 = vrot.slane %v7743, 4
        %v9921 = vadd.f32 %v7743, %v9920
        %v9922 = vrot.slane %v9921, 2
        %v9923 = vadd.f32 %v9921, %v9922
        %v9924 = vrot.slane %v9923, 1
        %v9925 = vadd.f32 %v9923, %v9924
        %v9926 = vrot.slane %v7744, 4
        %v9927 = vadd.f32 %v7744, %v9926
        %v9928 = vrot.slane %v9927, 2
        %v9929 = vadd.f32 %v9927, %v9928
        %v9930 = vrot.slane %v9929, 1
        %v9931 = vadd.f32 %v9929, %v9930
        %v9932 = vrot.slane %v7745, 4
        %v9933 = vadd.f32 %v7745, %v9932
        %v9934 = vrot.slane %v9933, 2
        %v9935 = vadd.f32 %v9933, %v9934
        %v9936 = vrot.slane %v9935, 1
        %v9937 = vadd.f32 %v9935, %v9936
        %v9938 = vrot.slane %v7746, 4
        %v9939 = vadd.f32 %v7746, %v9938
        %v9940 = vrot.slane %v9939, 2
        %v9941 = vadd.f32 %v9939, %v9940
        %v9942 = vrot.slane %v9941, 1
        %v9943 = vadd.f32 %v9941, %v9942
        %v9944 = vrot.slane %v7747, 4
        %v9945 = vadd.f32 %v7747, %v9944
        %v9946 = vrot.slane %v9945, 2
        %v9947 = vadd.f32 %v9945, %v9946
        %v9948 = vrot.slane %v9947, 1
        %v9949 = vadd.f32 %v9947, %v9948
        %v9950 = vrot.slane %v7748, 4
        %v9951 = vadd.f32 %v7748, %v9950
        %v9952 = vrot.slane %v9951, 2
        %v9953 = vadd.f32 %v9951, %v9952
        %v9954 = vrot.slane %v9953, 1
        %v9955 = vadd.f32 %v9953, %v9954
        %v9956 = vrot.slane %v7749, 4
        %v9957 = vadd.f32 %v7749, %v9956
        %v9958 = vrot.slane %v9957, 2
        %v9959 = vadd.f32 %v9957, %v9958
        %v9960 = vrot.slane %v9959, 1
        %v9961 = vadd.f32 %v9959, %v9960
        %v9962 = vrot.slane %v7750, 4
        %v9963 = vadd.f32 %v7750, %v9962
        %v9964 = vrot.slane %v9963, 2
        %v9965 = vadd.f32 %v9963, %v9964
        %v9966 = vrot.slane %v9965, 1
        %v9967 = vadd.f32 %v9965, %v9966
        %v9968 = vrot.slane %v7751, 4
        %v9969 = vadd.f32 %v7751, %v9968
        %v9970 = vrot.slane %v9969, 2
        %v9971 = vadd.f32 %v9969, %v9970
        %v9972 = vrot.slane %v9971, 1
        %v9973 = vadd.f32 %v9971, %v9972
        %v9974 = vrot.slane %v7752, 4
        %v9975 = vadd.f32 %v7752, %v9974
        %v9976 = vrot.slane %v9975, 2
        %v9977 = vadd.f32 %v9975, %v9976
        %v9978 = vrot.slane %v9977, 1
        %v9979 = vadd.f32 %v9977, %v9978
        %v9980 = vrot.slane %v7753, 4
        %v9981 = vadd.f32 %v7753, %v9980
        %v9982 = vrot.slane %v9981, 2
        %v9983 = vadd.f32 %v9981, %v9982
        %v9984 = vrot.slane %v9983, 1
        %v9985 = vadd.f32 %v9983, %v9984
        %v9986 = vrot.slane %v7754, 4
        %v9987 = vadd.f32 %v7754, %v9986
        %v9988 = vrot.slane %v9987, 2
        %v9989 = vadd.f32 %v9987, %v9988
        %v9990 = vrot.slane %v9989, 1
        %v9991 = vadd.f32 %v9989, %v9990
        %v9992 = vrot.slane %v7755, 4
        %v9993 = vadd.f32 %v7755, %v9992
        %v9994 = vrot.slane %v9993, 2
        %v9995 = vadd.f32 %v9993, %v9994
        %v9996 = vrot.slane %v9995, 1
        %v9997 = vadd.f32 %v9995, %v9996
        %v9998 = vrot.slane %v7756, 4
        %v9999 = vadd.f32 %v7756, %v9998
        %v10000 = vrot.slane %v9999, 2
        %v10001 = vadd.f32 %v9999, %v10000
        %v10002 = vrot.slane %v10001, 1
        %v10003 = vadd.f32 %v10001, %v10002
        %v10004 = vrot.slane %v7757, 4
        %v10005 = vadd.f32 %v7757, %v10004
        %v10006 = vrot.slane %v10005, 2
        %v10007 = vadd.f32 %v10005, %v10006
        %v10008 = vrot.slane %v10007, 1
        %v10009 = vadd.f32 %v10007, %v10008
        %v10010 = vrot.slane %v7758, 4
        %v10011 = vadd.f32 %v7758, %v10010
        %v10012 = vrot.slane %v10011, 2
        %v10013 = vadd.f32 %v10011, %v10012
        %v10014 = vrot.slane %v10013, 1
        %v10015 = vadd.f32 %v10013, %v10014
        %v10016 = vrot.slane %v7759, 4
        %v10017 = vadd.f32 %v7759, %v10016
        %v10018 = vrot.slane %v10017, 2
        %v10019 = vadd.f32 %v10017, %v10018
        %v10020 = vrot.slane %v10019, 1
        %v10021 = vadd.f32 %v10019, %v10020
        %v10022 = vrot.slane %v7760, 4
        %v10023 = vadd.f32 %v7760, %v10022
        %v10024 = vrot.slane %v10023, 2
        %v10025 = vadd.f32 %v10023, %v10024
        %v10026 = vrot.slane %v10025, 1
        %v10027 = vadd.f32 %v10025, %v10026
        %v10028 = vrot.slane %v7761, 4
        %v10029 = vadd.f32 %v7761, %v10028
        %v10030 = vrot.slane %v10029, 2
        %v10031 = vadd.f32 %v10029, %v10030
        %v10032 = vrot.slane %v10031, 1
        %v10033 = vadd.f32 %v10031, %v10032
        %v10034 = vrot.slane %v7762, 4
        %v10035 = vadd.f32 %v7762, %v10034
        %v10036 = vrot.slane %v10035, 2
        %v10037 = vadd.f32 %v10035, %v10036
        %v10038 = vrot.slane %v10037, 1
        %v10039 = vadd.f32 %v10037, %v10038
        %v10040 = vrot.slane %v7763, 4
        %v10041 = vadd.f32 %v7763, %v10040
        %v10042 = vrot.slane %v10041, 2
        %v10043 = vadd.f32 %v10041, %v10042
        %v10044 = vrot.slane %v10043, 1
        %v10045 = vadd.f32 %v10043, %v10044
        %v10046 = vrot.slane %v7764, 4
        %v10047 = vadd.f32 %v7764, %v10046
        %v10048 = vrot.slane %v10047, 2
        %v10049 = vadd.f32 %v10047, %v10048
        %v10050 = vrot.slane %v10049, 1
        %v10051 = vadd.f32 %v10049, %v10050
        %v10052 = vrot.slane %v7765, 4
        %v10053 = vadd.f32 %v7765, %v10052
        %v10054 = vrot.slane %v10053, 2
        %v10055 = vadd.f32 %v10053, %v10054
        %v10056 = vrot.slane %v10055, 1
        %v10057 = vadd.f32 %v10055, %v10056
        %v10058 = vrot.slane %v7766, 4
        %v10059 = vadd.f32 %v7766, %v10058
        %v10060 = vrot.slane %v10059, 2
        %v10061 = vadd.f32 %v10059, %v10060
        %v10062 = vrot.slane %v10061, 1
        %v10063 = vadd.f32 %v10061, %v10062
        %v10064 = vrot.slane %v7767, 4
        %v10065 = vadd.f32 %v7767, %v10064
        %v10066 = vrot.slane %v10065, 2
        %v10067 = vadd.f32 %v10065, %v10066
        %v10068 = vrot.slane %v10067, 1
        %v10069 = vadd.f32 %v10067, %v10068
        %v10070 = vrot.slane %v7768, 4
        %v10071 = vadd.f32 %v7768, %v10070
        %v10072 = vrot.slane %v10071, 2
        %v10073 = vadd.f32 %v10071, %v10072
        %v10074 = vrot.slane %v10073, 1
        %v10075 = vadd.f32 %v10073, %v10074
        %v10076 = vrot.slane %v7769, 4
        %v10077 = vadd.f32 %v7769, %v10076
        %v10078 = vrot.slane %v10077, 2
        %v10079 = vadd.f32 %v10077, %v10078
        %v10080 = vrot.slane %v10079, 1
        %v10081 = vadd.f32 %v10079, %v10080
        %v10082 = vrot.slane %v7770, 4
        %v10083 = vadd.f32 %v7770, %v10082
        %v10084 = vrot.slane %v10083, 2
        %v10085 = vadd.f32 %v10083, %v10084
        %v10086 = vrot.slane %v10085, 1
        %v10087 = vadd.f32 %v10085, %v10086
        %v10088 = vrot.slane %v7771, 4
        %v10089 = vadd.f32 %v7771, %v10088
        %v10090 = vrot.slane %v10089, 2
        %v10091 = vadd.f32 %v10089, %v10090
        %v10092 = vrot.slane %v10091, 1
        %v10093 = vadd.f32 %v10091, %v10092
        %v10094 = vrot.slane %v7772, 4
        %v10095 = vadd.f32 %v7772, %v10094
        %v10096 = vrot.slane %v10095, 2
        %v10097 = vadd.f32 %v10095, %v10096
        %v10098 = vrot.slane %v10097, 1
        %v10099 = vadd.f32 %v10097, %v10098
        %v10100 = vrot.slane %v7773, 4
        %v10101 = vadd.f32 %v7773, %v10100
        %v10102 = vrot.slane %v10101, 2
        %v10103 = vadd.f32 %v10101, %v10102
        %v10104 = vrot.slane %v10103, 1
        %v10105 = vadd.f32 %v10103, %v10104
        %v10106 = vrot.slane %v7774, 4
        %v10107 = vadd.f32 %v7774, %v10106
        %v10108 = vrot.slane %v10107, 2
        %v10109 = vadd.f32 %v10107, %v10108
        %v10110 = vrot.slane %v10109, 1
        %v10111 = vadd.f32 %v10109, %v10110
        %v10112 = vrot.slane %v7775, 4
        %v10113 = vadd.f32 %v7775, %v10112
        %v10114 = vrot.slane %v10113, 2
        %v10115 = vadd.f32 %v10113, %v10114
        %v10116 = vrot.slane %v10115, 1
        %v10117 = vadd.f32 %v10115, %v10116
        %v10118 = vrot.slane %v7776, 4
        %v10119 = vadd.f32 %v7776, %v10118
        %v10120 = vrot.slane %v10119, 2
        %v10121 = vadd.f32 %v10119, %v10120
        %v10122 = vrot.slane %v10121, 1
        %v10123 = vadd.f32 %v10121, %v10122
        %v10124 = vrot.slane %v7777, 4
        %v10125 = vadd.f32 %v7777, %v10124
        %v10126 = vrot.slane %v10125, 2
        %v10127 = vadd.f32 %v10125, %v10126
        %v10128 = vrot.slane %v10127, 1
        %v10129 = vadd.f32 %v10127, %v10128
        %v10130 = vrot.slane %v7778, 4
        %v10131 = vadd.f32 %v7778, %v10130
        %v10132 = vrot.slane %v10131, 2
        %v10133 = vadd.f32 %v10131, %v10132
        %v10134 = vrot.slane %v10133, 1
        %v10135 = vadd.f32 %v10133, %v10134
        %v10136 = vrot.slane %v7779, 4
        %v10137 = vadd.f32 %v7779, %v10136
        %v10138 = vrot.slane %v10137, 2
        %v10139 = vadd.f32 %v10137, %v10138
        %v10140 = vrot.slane %v10139, 1
        %v10141 = vadd.f32 %v10139, %v10140
        %v10142 = vrot.slane %v7780, 4
        %v10143 = vadd.f32 %v7780, %v10142
        %v10144 = vrot.slane %v10143, 2
        %v10145 = vadd.f32 %v10143, %v10144
        %v10146 = vrot.slane %v10145, 1
        %v10147 = vadd.f32 %v10145, %v10146
        %v10148 = vrot.slane %v7781, 4
        %v10149 = vadd.f32 %v7781, %v10148
        %v10150 = vrot.slane %v10149, 2
        %v10151 = vadd.f32 %v10149, %v10150
        %v10152 = vrot.slane %v10151, 1
        %v10153 = vadd.f32 %v10151, %v10152
        %v10154 = vrot.slane %v7782, 4
        %v10155 = vadd.f32 %v7782, %v10154
        %v10156 = vrot.slane %v10155, 2
        %v10157 = vadd.f32 %v10155, %v10156
        %v10158 = vrot.slane %v10157, 1
        %v10159 = vadd.f32 %v10157, %v10158
        %v10160 = vrot.slane %v7783, 4
        %v10161 = vadd.f32 %v7783, %v10160
        %v10162 = vrot.slane %v10161, 2
        %v10163 = vadd.f32 %v10161, %v10162
        %v10164 = vrot.slane %v10163, 1
        %v10165 = vadd.f32 %v10163, %v10164
        %v10166 = vrot.slane %v7784, 4
        %v10167 = vadd.f32 %v7784, %v10166
        %v10168 = vrot.slane %v10167, 2
        %v10169 = vadd.f32 %v10167, %v10168
        %v10170 = vrot.slane %v10169, 1
        %v10171 = vadd.f32 %v10169, %v10170
        %v10172 = vrot.slane %v7785, 4
        %v10173 = vadd.f32 %v7785, %v10172
        %v10174 = vrot.slane %v10173, 2
        %v10175 = vadd.f32 %v10173, %v10174
        %v10176 = vrot.slane %v10175, 1
        %v10177 = vadd.f32 %v10175, %v10176
        %v10178 = vrot.slane %v7786, 4
        %v10179 = vadd.f32 %v7786, %v10178
        %v10180 = vrot.slane %v10179, 2
        %v10181 = vadd.f32 %v10179, %v10180
        %v10182 = vrot.slane %v10181, 1
        %v10183 = vadd.f32 %v10181, %v10182
        %v10184 = vrot.slane %v7787, 4
        %v10185 = vadd.f32 %v7787, %v10184
        %v10186 = vrot.slane %v10185, 2
        %v10187 = vadd.f32 %v10185, %v10186
        %v10188 = vrot.slane %v10187, 1
        %v10189 = vadd.f32 %v10187, %v10188
        %v10190 = vrot.slane %v7788, 4
        %v10191 = vadd.f32 %v7788, %v10190
        %v10192 = vrot.slane %v10191, 2
        %v10193 = vadd.f32 %v10191, %v10192
        %v10194 = vrot.slane %v10193, 1
        %v10195 = vadd.f32 %v10193, %v10194
        %v10196 = vrot.slane %v7789, 4
        %v10197 = vadd.f32 %v7789, %v10196
        %v10198 = vrot.slane %v10197, 2
        %v10199 = vadd.f32 %v10197, %v10198
        %v10200 = vrot.slane %v10199, 1
        %v10201 = vadd.f32 %v10199, %v10200
        %v10202 = vrot.slane %v7790, 4
        %v10203 = vadd.f32 %v7790, %v10202
        %v10204 = vrot.slane %v10203, 2
        %v10205 = vadd.f32 %v10203, %v10204
        %v10206 = vrot.slane %v10205, 1
        %v10207 = vadd.f32 %v10205, %v10206
        %v10208 = vrot.slane %v7791, 4
        %v10209 = vadd.f32 %v7791, %v10208
        %v10210 = vrot.slane %v10209, 2
        %v10211 = vadd.f32 %v10209, %v10210
        %v10212 = vrot.slane %v10211, 1
        %v10213 = vadd.f32 %v10211, %v10212
        %v10214 = vrot.slane %v7792, 4
        %v10215 = vadd.f32 %v7792, %v10214
        %v10216 = vrot.slane %v10215, 2
        %v10217 = vadd.f32 %v10215, %v10216
        %v10218 = vrot.slane %v10217, 1
        %v10219 = vadd.f32 %v10217, %v10218
        %v10220 = vrot.slane %v7793, 4
        %v10221 = vadd.f32 %v7793, %v10220
        %v10222 = vrot.slane %v10221, 2
        %v10223 = vadd.f32 %v10221, %v10222
        %v10224 = vrot.slane %v10223, 1
        %v10225 = vadd.f32 %v10223, %v10224
        %v10226 = vrot.slane %v7794, 4
        %v10227 = vadd.f32 %v7794, %v10226
        %v10228 = vrot.slane %v10227, 2
        %v10229 = vadd.f32 %v10227, %v10228
        %v10230 = vrot.slane %v10229, 1
        %v10231 = vadd.f32 %v10229, %v10230
        %v10232 = vrot.slane %v7795, 4
        %v10233 = vadd.f32 %v7795, %v10232
        %v10234 = vrot.slane %v10233, 2
        %v10235 = vadd.f32 %v10233, %v10234
        %v10236 = vrot.slane %v10235, 1
        %v10237 = vadd.f32 %v10235, %v10236
        %v10238 = vrot.slane %v7796, 4
        %v10239 = vadd.f32 %v7796, %v10238
        %v10240 = vrot.slane %v10239, 2
        %v10241 = vadd.f32 %v10239, %v10240
        %v10242 = vrot.slane %v10241, 1
        %v10243 = vadd.f32 %v10241, %v10242
        %v10244 = vrot.slane %v7797, 4
        %v10245 = vadd.f32 %v7797, %v10244
        %v10246 = vrot.slane %v10245, 2
        %v10247 = vadd.f32 %v10245, %v10246
        %v10248 = vrot.slane %v10247, 1
        %v10249 = vadd.f32 %v10247, %v10248
        %v10250 = vrot.slane %v7798, 4
        %v10251 = vadd.f32 %v7798, %v10250
        %v10252 = vrot.slane %v10251, 2
        %v10253 = vadd.f32 %v10251, %v10252
        %v10254 = vrot.slane %v10253, 1
        %v10255 = vadd.f32 %v10253, %v10254
        %v10256 = vrot.slane %v7799, 4
        %v10257 = vadd.f32 %v7799, %v10256
        %v10258 = vrot.slane %v10257, 2
        %v10259 = vadd.f32 %v10257, %v10258
        %v10260 = vrot.slane %v10259, 1
        %v10261 = vadd.f32 %v10259, %v10260
        %v10262 = vrot.slane %v7800, 4
        %v10263 = vadd.f32 %v7800, %v10262
        %v10264 = vrot.slane %v10263, 2
        %v10265 = vadd.f32 %v10263, %v10264
        %v10266 = vrot.slane %v10265, 1
        %v10267 = vadd.f32 %v10265, %v10266
        %v10268 = vrot.slane %v7801, 4
        %v10269 = vadd.f32 %v7801, %v10268
        %v10270 = vrot.slane %v10269, 2
        %v10271 = vadd.f32 %v10269, %v10270
        %v10272 = vrot.slane %v10271, 1
        %v10273 = vadd.f32 %v10271, %v10272
        %v10274 = vrot.slane %v7802, 4
        %v10275 = vadd.f32 %v7802, %v10274
        %v10276 = vrot.slane %v10275, 2
        %v10277 = vadd.f32 %v10275, %v10276
        %v10278 = vrot.slane %v10277, 1
        %v10279 = vadd.f32 %v10277, %v10278
        %v10280 = vrot.slane %v7803, 4
        %v10281 = vadd.f32 %v7803, %v10280
        %v10282 = vrot.slane %v10281, 2
        %v10283 = vadd.f32 %v10281, %v10282
        %v10284 = vrot.slane %v10283, 1
        %v10285 = vadd.f32 %v10283, %v10284
        %v10286 = vrot.slane %v7804, 4
        %v10287 = vadd.f32 %v7804, %v10286
        %v10288 = vrot.slane %v10287, 2
        %v10289 = vadd.f32 %v10287, %v10288
        %v10290 = vrot.slane %v10289, 1
        %v10291 = vadd.f32 %v10289, %v10290
        %v10292 = vrot.slane %v7805, 4
        %v10293 = vadd.f32 %v7805, %v10292
        %v10294 = vrot.slane %v10293, 2
        %v10295 = vadd.f32 %v10293, %v10294
        %v10296 = vrot.slane %v10295, 1
        %v10297 = vadd.f32 %v10295, %v10296
        %v10298 = vrot.slane %v7806, 4
        %v10299 = vadd.f32 %v7806, %v10298
        %v10300 = vrot.slane %v10299, 2
        %v10301 = vadd.f32 %v10299, %v10300
        %v10302 = vrot.slane %v10301, 1
        %v10303 = vadd.f32 %v10301, %v10302
        %v10304 = vrot.slane %v7807, 4
        %v10305 = vadd.f32 %v7807, %v10304
        %v10306 = vrot.slane %v10305, 2
        %v10307 = vadd.f32 %v10305, %v10306
        %v10308 = vrot.slane %v10307, 1
        %v10309 = vadd.f32 %v10307, %v10308
        %v10310 = vrot.slane %v7808, 4
        %v10311 = vadd.f32 %v7808, %v10310
        %v10312 = vrot.slane %v10311, 2
        %v10313 = vadd.f32 %v10311, %v10312
        %v10314 = vrot.slane %v10313, 1
        %v10315 = vadd.f32 %v10313, %v10314
        %v10316 = vrot.slane %v7809, 4
        %v10317 = vadd.f32 %v7809, %v10316
        %v10318 = vrot.slane %v10317, 2
        %v10319 = vadd.f32 %v10317, %v10318
        %v10320 = vrot.slane %v10319, 1
        %v10321 = vadd.f32 %v10319, %v10320
        %v10322 = vrot.slane %v7810, 4
        %v10323 = vadd.f32 %v7810, %v10322
        %v10324 = vrot.slane %v10323, 2
        %v10325 = vadd.f32 %v10323, %v10324
        %v10326 = vrot.slane %v10325, 1
        %v10327 = vadd.f32 %v10325, %v10326
        %v10328 = vrot.slane %v7811, 4
        %v10329 = vadd.f32 %v7811, %v10328
        %v10330 = vrot.slane %v10329, 2
        %v10331 = vadd.f32 %v10329, %v10330
        %v10332 = vrot.slane %v10331, 1
        %v10333 = vadd.f32 %v10331, %v10332
        %v10334 = vrot.slane %v7812, 4
        %v10335 = vadd.f32 %v7812, %v10334
        %v10336 = vrot.slane %v10335, 2
        %v10337 = vadd.f32 %v10335, %v10336
        %v10338 = vrot.slane %v10337, 1
        %v10339 = vadd.f32 %v10337, %v10338
        %v10340 = vrot.slane %v7813, 4
        %v10341 = vadd.f32 %v7813, %v10340
        %v10342 = vrot.slane %v10341, 2
        %v10343 = vadd.f32 %v10341, %v10342
        %v10344 = vrot.slane %v10343, 1
        %v10345 = vadd.f32 %v10343, %v10344
        %v10346 = vrot.slane %v7814, 4
        %v10347 = vadd.f32 %v7814, %v10346
        %v10348 = vrot.slane %v10347, 2
        %v10349 = vadd.f32 %v10347, %v10348
        %v10350 = vrot.slane %v10349, 1
        %v10351 = vadd.f32 %v10349, %v10350
        %v10352 = vrot.slane %v7815, 4
        %v10353 = vadd.f32 %v7815, %v10352
        %v10354 = vrot.slane %v10353, 2
        %v10355 = vadd.f32 %v10353, %v10354
        %v10356 = vrot.slane %v10355, 1
        %v10357 = vadd.f32 %v10355, %v10356
        %v10358 = vrot.slane %v7816, 4
        %v10359 = vadd.f32 %v7816, %v10358
        %v10360 = vrot.slane %v10359, 2
        %v10361 = vadd.f32 %v10359, %v10360
        %v10362 = vrot.slane %v10361, 1
        %v10363 = vadd.f32 %v10361, %v10362
        %v10364 = vrot.slane %v7817, 4
        %v10365 = vadd.f32 %v7817, %v10364
        %v10366 = vrot.slane %v10365, 2
        %v10367 = vadd.f32 %v10365, %v10366
        %v10368 = vrot.slane %v10367, 1
        %v10369 = vadd.f32 %v10367, %v10368
        %v10370 = vrot.slane %v7818, 4
        %v10371 = vadd.f32 %v7818, %v10370
        %v10372 = vrot.slane %v10371, 2
        %v10373 = vadd.f32 %v10371, %v10372
        %v10374 = vrot.slane %v10373, 1
        %v10375 = vadd.f32 %v10373, %v10374
        %v10376 = vrot.slane %v7819, 4
        %v10377 = vadd.f32 %v7819, %v10376
        %v10378 = vrot.slane %v10377, 2
        %v10379 = vadd.f32 %v10377, %v10378
        %v10380 = vrot.slane %v10379, 1
        %v10381 = vadd.f32 %v10379, %v10380
        %v10382 = vrot.slane %v7820, 4
        %v10383 = vadd.f32 %v7820, %v10382
        %v10384 = vrot.slane %v10383, 2
        %v10385 = vadd.f32 %v10383, %v10384
        %v10386 = vrot.slane %v10385, 1
        %v10387 = vadd.f32 %v10385, %v10386
        %v10388 = vrot.slane %v7821, 4
        %v10389 = vadd.f32 %v7821, %v10388
        %v10390 = vrot.slane %v10389, 2
        %v10391 = vadd.f32 %v10389, %v10390
        %v10392 = vrot.slane %v10391, 1
        %v10393 = vadd.f32 %v10391, %v10392
        %v10394 = vrot.slane %v7822, 4
        %v10395 = vadd.f32 %v7822, %v10394
        %v10396 = vrot.slane %v10395, 2
        %v10397 = vadd.f32 %v10395, %v10396
        %v10398 = vrot.slane %v10397, 1
        %v10399 = vadd.f32 %v10397, %v10398
        %v10400 = vrot.slane %v7823, 4
        %v10401 = vadd.f32 %v7823, %v10400
        %v10402 = vrot.slane %v10401, 2
        %v10403 = vadd.f32 %v10401, %v10402
        %v10404 = vrot.slane %v10403, 1
        %v10405 = vadd.f32 %v10403, %v10404
        %v10406 = vrot.slane %v7824, 4
        %v10407 = vadd.f32 %v7824, %v10406
        %v10408 = vrot.slane %v10407, 2
        %v10409 = vadd.f32 %v10407, %v10408
        %v10410 = vrot.slane %v10409, 1
        %v10411 = vadd.f32 %v10409, %v10410
        %v10412 = vrot.slane %v7825, 4
        %v10413 = vadd.f32 %v7825, %v10412
        %v10414 = vrot.slane %v10413, 2
        %v10415 = vadd.f32 %v10413, %v10414
        %v10416 = vrot.slane %v10415, 1
        %v10417 = vadd.f32 %v10415, %v10416
        %v10418 = vrot.slane %v7826, 4
        %v10419 = vadd.f32 %v7826, %v10418
        %v10420 = vrot.slane %v10419, 2
        %v10421 = vadd.f32 %v10419, %v10420
        %v10422 = vrot.slane %v10421, 1
        %v10423 = vadd.f32 %v10421, %v10422
        %v10424 = vrot.slane %v7827, 4
        %v10425 = vadd.f32 %v7827, %v10424
        %v10426 = vrot.slane %v10425, 2
        %v10427 = vadd.f32 %v10425, %v10426
        %v10428 = vrot.slane %v10427, 1
        %v10429 = vadd.f32 %v10427, %v10428
        %v10430 = vrot.slane %v7828, 4
        %v10431 = vadd.f32 %v7828, %v10430
        %v10432 = vrot.slane %v10431, 2
        %v10433 = vadd.f32 %v10431, %v10432
        %v10434 = vrot.slane %v10433, 1
        %v10435 = vadd.f32 %v10433, %v10434
        %v10436 = vrot.slane %v7829, 4
        %v10437 = vadd.f32 %v7829, %v10436
        %v10438 = vrot.slane %v10437, 2
        %v10439 = vadd.f32 %v10437, %v10438
        %v10440 = vrot.slane %v10439, 1
        %v10441 = vadd.f32 %v10439, %v10440
        %v10442 = vrot.slane %v7830, 4
        %v10443 = vadd.f32 %v7830, %v10442
        %v10444 = vrot.slane %v10443, 2
        %v10445 = vadd.f32 %v10443, %v10444
        %v10446 = vrot.slane %v10445, 1
        %v10447 = vadd.f32 %v10445, %v10446
        %v10448 = vrot.slane %v7831, 4
        %v10449 = vadd.f32 %v7831, %v10448
        %v10450 = vrot.slane %v10449, 2
        %v10451 = vadd.f32 %v10449, %v10450
        %v10452 = vrot.slane %v10451, 1
        %v10453 = vadd.f32 %v10451, %v10452
        %v10454 = vrot.slane %v7832, 4
        %v10455 = vadd.f32 %v7832, %v10454
        %v10456 = vrot.slane %v10455, 2
        %v10457 = vadd.f32 %v10455, %v10456
        %v10458 = vrot.slane %v10457, 1
        %v10459 = vadd.f32 %v10457, %v10458
        %v10460 = vrot.slane %v7833, 4
        %v10461 = vadd.f32 %v7833, %v10460
        %v10462 = vrot.slane %v10461, 2
        %v10463 = vadd.f32 %v10461, %v10462
        %v10464 = vrot.slane %v10463, 1
        %v10465 = vadd.f32 %v10463, %v10464
        %v10466 = vrot.slane %v7834, 4
        %v10467 = vadd.f32 %v7834, %v10466
        %v10468 = vrot.slane %v10467, 2
        %v10469 = vadd.f32 %v10467, %v10468
        %v10470 = vrot.slane %v10469, 1
        %v10471 = vadd.f32 %v10469, %v10470
        %v10472 = vrot.slane %v7835, 4
        %v10473 = vadd.f32 %v7835, %v10472
        %v10474 = vrot.slane %v10473, 2
        %v10475 = vadd.f32 %v10473, %v10474
        %v10476 = vrot.slane %v10475, 1
        %v10477 = vadd.f32 %v10475, %v10476
        %v10478 = vrot.slane %v7836, 4
        %v10479 = vadd.f32 %v7836, %v10478
        %v10480 = vrot.slane %v10479, 2
        %v10481 = vadd.f32 %v10479, %v10480
        %v10482 = vrot.slane %v10481, 1
        %v10483 = vadd.f32 %v10481, %v10482
        %v10484 = vrot.slane %v7837, 4
        %v10485 = vadd.f32 %v7837, %v10484
        %v10486 = vrot.slane %v10485, 2
        %v10487 = vadd.f32 %v10485, %v10486
        %v10488 = vrot.slane %v10487, 1
        %v10489 = vadd.f32 %v10487, %v10488
        %v10490 = vrot.slane %v7838, 4
        %v10491 = vadd.f32 %v7838, %v10490
        %v10492 = vrot.slane %v10491, 2
        %v10493 = vadd.f32 %v10491, %v10492
        %v10494 = vrot.slane %v10493, 1
        %v10495 = vadd.f32 %v10493, %v10494
        %v10496 = vrot.slane %v7839, 4
        %v10497 = vadd.f32 %v7839, %v10496
        %v10498 = vrot.slane %v10497, 2
        %v10499 = vadd.f32 %v10497, %v10498
        %v10500 = vrot.slane %v10499, 1
        %v10501 = vadd.f32 %v10499, %v10500
        %v10502 = vrot.slane %v7840, 4
        %v10503 = vadd.f32 %v7840, %v10502
        %v10504 = vrot.slane %v10503, 2
        %v10505 = vadd.f32 %v10503, %v10504
        %v10506 = vrot.slane %v10505, 1
        %v10507 = vadd.f32 %v10505, %v10506
        %v10508 = vrot.slane %v7841, 4
        %v10509 = vadd.f32 %v7841, %v10508
        %v10510 = vrot.slane %v10509, 2
        %v10511 = vadd.f32 %v10509, %v10510
        %v10512 = vrot.slane %v10511, 1
        %v10513 = vadd.f32 %v10511, %v10512
        %v10514 = vrot.slane %v7842, 4
        %v10515 = vadd.f32 %v7842, %v10514
        %v10516 = vrot.slane %v10515, 2
        %v10517 = vadd.f32 %v10515, %v10516
        %v10518 = vrot.slane %v10517, 1
        %v10519 = vadd.f32 %v10517, %v10518
        %v10520 = vrot.slane %v7843, 4
        %v10521 = vadd.f32 %v7843, %v10520
        %v10522 = vrot.slane %v10521, 2
        %v10523 = vadd.f32 %v10521, %v10522
        %v10524 = vrot.slane %v10523, 1
        %v10525 = vadd.f32 %v10523, %v10524
        %v10526 = vrot.slane %v7844, 4
        %v10527 = vadd.f32 %v7844, %v10526
        %v10528 = vrot.slane %v10527, 2
        %v10529 = vadd.f32 %v10527, %v10528
        %v10530 = vrot.slane %v10529, 1
        %v10531 = vadd.f32 %v10529, %v10530
        %v10532 = vrot.slane %v7845, 4
        %v10533 = vadd.f32 %v7845, %v10532
        %v10534 = vrot.slane %v10533, 2
        %v10535 = vadd.f32 %v10533, %v10534
        %v10536 = vrot.slane %v10535, 1
        %v10537 = vadd.f32 %v10535, %v10536
        %v10538 = vrot.slane %v7846, 4
        %v10539 = vadd.f32 %v7846, %v10538
        %v10540 = vrot.slane %v10539, 2
        %v10541 = vadd.f32 %v10539, %v10540
        %v10542 = vrot.slane %v10541, 1
        %v10543 = vadd.f32 %v10541, %v10542
        %v10544 = vrot.slane %v7847, 4
        %v10545 = vadd.f32 %v7847, %v10544
        %v10546 = vrot.slane %v10545, 2
        %v10547 = vadd.f32 %v10545, %v10546
        %v10548 = vrot.slane %v10547, 1
        %v10549 = vadd.f32 %v10547, %v10548
        %v10550 = vrot.slane %v7848, 4
        %v10551 = vadd.f32 %v7848, %v10550
        %v10552 = vrot.slane %v10551, 2
        %v10553 = vadd.f32 %v10551, %v10552
        %v10554 = vrot.slane %v10553, 1
        %v10555 = vadd.f32 %v10553, %v10554
        %v10556 = vrot.slane %v7849, 4
        %v10557 = vadd.f32 %v7849, %v10556
        %v10558 = vrot.slane %v10557, 2
        %v10559 = vadd.f32 %v10557, %v10558
        %v10560 = vrot.slane %v10559, 1
        %v10561 = vadd.f32 %v10559, %v10560
        %v10562 = vrot.slane %v7850, 4
        %v10563 = vadd.f32 %v7850, %v10562
        %v10564 = vrot.slane %v10563, 2
        %v10565 = vadd.f32 %v10563, %v10564
        %v10566 = vrot.slane %v10565, 1
        %v10567 = vadd.f32 %v10565, %v10566
        %v10568 = vrot.slane %v7851, 4
        %v10569 = vadd.f32 %v7851, %v10568
        %v10570 = vrot.slane %v10569, 2
        %v10571 = vadd.f32 %v10569, %v10570
        %v10572 = vrot.slane %v10571, 1
        %v10573 = vadd.f32 %v10571, %v10572
        %v10574 = vrot.slane %v7852, 4
        %v10575 = vadd.f32 %v7852, %v10574
        %v10576 = vrot.slane %v10575, 2
        %v10577 = vadd.f32 %v10575, %v10576
        %v10578 = vrot.slane %v10577, 1
        %v10579 = vadd.f32 %v10577, %v10578
        %v10580 = vrot.slane %v7853, 4
        %v10581 = vadd.f32 %v7853, %v10580
        %v10582 = vrot.slane %v10581, 2
        %v10583 = vadd.f32 %v10581, %v10582
        %v10584 = vrot.slane %v10583, 1
        %v10585 = vadd.f32 %v10583, %v10584
        %v10586 = vrot.slane %v7854, 4
        %v10587 = vadd.f32 %v7854, %v10586
        %v10588 = vrot.slane %v10587, 2
        %v10589 = vadd.f32 %v10587, %v10588
        %v10590 = vrot.slane %v10589, 1
        %v10591 = vadd.f32 %v10589, %v10590
        %v10592 = vrot.slane %v7855, 4
        %v10593 = vadd.f32 %v7855, %v10592
        %v10594 = vrot.slane %v10593, 2
        %v10595 = vadd.f32 %v10593, %v10594
        %v10596 = vrot.slane %v10595, 1
        %v10597 = vadd.f32 %v10595, %v10596
        %v10598 = vrot.slane %v7856, 4
        %v10599 = vadd.f32 %v7856, %v10598
        %v10600 = vrot.slane %v10599, 2
        %v10601 = vadd.f32 %v10599, %v10600
        %v10602 = vrot.slane %v10601, 1
        %v10603 = vadd.f32 %v10601, %v10602
        %v10604 = vrot.slane %v7857, 4
        %v10605 = vadd.f32 %v7857, %v10604
        %v10606 = vrot.slane %v10605, 2
        %v10607 = vadd.f32 %v10605, %v10606
        %v10608 = vrot.slane %v10607, 1
        %v10609 = vadd.f32 %v10607, %v10608
        %v10610 = vrot.slane %v7858, 4
        %v10611 = vadd.f32 %v7858, %v10610
        %v10612 = vrot.slane %v10611, 2
        %v10613 = vadd.f32 %v10611, %v10612
        %v10614 = vrot.slane %v10613, 1
        %v10615 = vadd.f32 %v10613, %v10614
        %v10616 = vrot.slane %v7859, 4
        %v10617 = vadd.f32 %v7859, %v10616
        %v10618 = vrot.slane %v10617, 2
        %v10619 = vadd.f32 %v10617, %v10618
        %v10620 = vrot.slane %v10619, 1
        %v10621 = vadd.f32 %v10619, %v10620
        %v10622 = vrot.slane %v7860, 4
        %v10623 = vadd.f32 %v7860, %v10622
        %v10624 = vrot.slane %v10623, 2
        %v10625 = vadd.f32 %v10623, %v10624
        %v10626 = vrot.slane %v10625, 1
        %v10627 = vadd.f32 %v10625, %v10626
        %v10628 = vrot.slane %v7861, 4
        %v10629 = vadd.f32 %v7861, %v10628
        %v10630 = vrot.slane %v10629, 2
        %v10631 = vadd.f32 %v10629, %v10630
        %v10632 = vrot.slane %v10631, 1
        %v10633 = vadd.f32 %v10631, %v10632
        %v10634 = vrot.slane %v7862, 4
        %v10635 = vadd.f32 %v7862, %v10634
        %v10636 = vrot.slane %v10635, 2
        %v10637 = vadd.f32 %v10635, %v10636
        %v10638 = vrot.slane %v10637, 1
        %v10639 = vadd.f32 %v10637, %v10638
        %v10640 = vrot.slane %v7863, 4
        %v10641 = vadd.f32 %v7863, %v10640
        %v10642 = vrot.slane %v10641, 2
        %v10643 = vadd.f32 %v10641, %v10642
        %v10644 = vrot.slane %v10643, 1
        %v10645 = vadd.f32 %v10643, %v10644
        %v10646 = vrot.slane %v7864, 4
        %v10647 = vadd.f32 %v7864, %v10646
        %v10648 = vrot.slane %v10647, 2
        %v10649 = vadd.f32 %v10647, %v10648
        %v10650 = vrot.slane %v10649, 1
        %v10651 = vadd.f32 %v10649, %v10650
        %v10652 = vrot.slane %v7865, 4
        %v10653 = vadd.f32 %v7865, %v10652
        %v10654 = vrot.slane %v10653, 2
        %v10655 = vadd.f32 %v10653, %v10654
        %v10656 = vrot.slane %v10655, 1
        %v10657 = vadd.f32 %v10655, %v10656
        %v10658 = vrot.slane %v7866, 4
        %v10659 = vadd.f32 %v7866, %v10658
        %v10660 = vrot.slane %v10659, 2
        %v10661 = vadd.f32 %v10659, %v10660
        %v10662 = vrot.slane %v10661, 1
        %v10663 = vadd.f32 %v10661, %v10662
        %v10664 = vrot.slane %v7867, 4
        %v10665 = vadd.f32 %v7867, %v10664
        %v10666 = vrot.slane %v10665, 2
        %v10667 = vadd.f32 %v10665, %v10666
        %v10668 = vrot.slane %v10667, 1
        %v10669 = vadd.f32 %v10667, %v10668
        %v10670 = vrot.slane %v7868, 4
        %v10671 = vadd.f32 %v7868, %v10670
        %v10672 = vrot.slane %v10671, 2
        %v10673 = vadd.f32 %v10671, %v10672
        %v10674 = vrot.slane %v10673, 1
        %v10675 = vadd.f32 %v10673, %v10674
        %v10676 = vrot.slane %v7869, 4
        %v10677 = vadd.f32 %v7869, %v10676
        %v10678 = vrot.slane %v10677, 2
        %v10679 = vadd.f32 %v10677, %v10678
        %v10680 = vrot.slane %v10679, 1
        %v10681 = vadd.f32 %v10679, %v10680
        %v10682 = vrot.slane %v7870, 4
        %v10683 = vadd.f32 %v7870, %v10682
        %v10684 = vrot.slane %v10683, 2
        %v10685 = vadd.f32 %v10683, %v10684
        %v10686 = vrot.slane %v10685, 1
        %v10687 = vadd.f32 %v10685, %v10686
        %v10688 = vrot.slane %v7871, 4
        %v10689 = vadd.f32 %v7871, %v10688
        %v10690 = vrot.slane %v10689, 2
        %v10691 = vadd.f32 %v10689, %v10690
        %v10692 = vrot.slane %v10691, 1
        %v10693 = vadd.f32 %v10691, %v10692
        %v10694 = vrot.slane %v7872, 4
        %v10695 = vadd.f32 %v7872, %v10694
        %v10696 = vrot.slane %v10695, 2
        %v10697 = vadd.f32 %v10695, %v10696
        %v10698 = vrot.slane %v10697, 1
        %v10699 = vadd.f32 %v10697, %v10698
        %v10700 = vrot.slane %v7873, 4
        %v10701 = vadd.f32 %v7873, %v10700
        %v10702 = vrot.slane %v10701, 2
        %v10703 = vadd.f32 %v10701, %v10702
        %v10704 = vrot.slane %v10703, 1
        %v10705 = vadd.f32 %v10703, %v10704
        %v10706 = vrot.slane %v7874, 4
        %v10707 = vadd.f32 %v7874, %v10706
        %v10708 = vrot.slane %v10707, 2
        %v10709 = vadd.f32 %v10707, %v10708
        %v10710 = vrot.slane %v10709, 1
        %v10711 = vadd.f32 %v10709, %v10710
        %v10712 = vrot.slane %v7875, 4
        %v10713 = vadd.f32 %v7875, %v10712
        %v10714 = vrot.slane %v10713, 2
        %v10715 = vadd.f32 %v10713, %v10714
        %v10716 = vrot.slane %v10715, 1
        %v10717 = vadd.f32 %v10715, %v10716
        %v10718 = vrot.slane %v7876, 4
        %v10719 = vadd.f32 %v7876, %v10718
        %v10720 = vrot.slane %v10719, 2
        %v10721 = vadd.f32 %v10719, %v10720
        %v10722 = vrot.slane %v10721, 1
        %v10723 = vadd.f32 %v10721, %v10722
        %v10724 = vrot.slane %v7877, 4
        %v10725 = vadd.f32 %v7877, %v10724
        %v10726 = vrot.slane %v10725, 2
        %v10727 = vadd.f32 %v10725, %v10726
        %v10728 = vrot.slane %v10727, 1
        %v10729 = vadd.f32 %v10727, %v10728
        %v10730 = vrot.slane %v7878, 4
        %v10731 = vadd.f32 %v7878, %v10730
        %v10732 = vrot.slane %v10731, 2
        %v10733 = vadd.f32 %v10731, %v10732
        %v10734 = vrot.slane %v10733, 1
        %v10735 = vadd.f32 %v10733, %v10734
        %v10736 = vrot.slane %v7879, 4
        %v10737 = vadd.f32 %v7879, %v10736
        %v10738 = vrot.slane %v10737, 2
        %v10739 = vadd.f32 %v10737, %v10738
        %v10740 = vrot.slane %v10739, 1
        %v10741 = vadd.f32 %v10739, %v10740
        %v10742 = vrot.slane %v7880, 4
        %v10743 = vadd.f32 %v7880, %v10742
        %v10744 = vrot.slane %v10743, 2
        %v10745 = vadd.f32 %v10743, %v10744
        %v10746 = vrot.slane %v10745, 1
        %v10747 = vadd.f32 %v10745, %v10746
        %v10748 = vrot.slane %v7881, 4
        %v10749 = vadd.f32 %v7881, %v10748
        %v10750 = vrot.slane %v10749, 2
        %v10751 = vadd.f32 %v10749, %v10750
        %v10752 = vrot.slane %v10751, 1
        %v10753 = vadd.f32 %v10751, %v10752
        %v10754 = vrot.slane %v7882, 4
        %v10755 = vadd.f32 %v7882, %v10754
        %v10756 = vrot.slane %v10755, 2
        %v10757 = vadd.f32 %v10755, %v10756
        %v10758 = vrot.slane %v10757, 1
        %v10759 = vadd.f32 %v10757, %v10758
        %v10760 = vrot.slane %v7883, 4
        %v10761 = vadd.f32 %v7883, %v10760
        %v10762 = vrot.slane %v10761, 2
        %v10763 = vadd.f32 %v10761, %v10762
        %v10764 = vrot.slane %v10763, 1
        %v10765 = vadd.f32 %v10763, %v10764
        %v10766 = vrot.slane %v7884, 4
        %v10767 = vadd.f32 %v7884, %v10766
        %v10768 = vrot.slane %v10767, 2
        %v10769 = vadd.f32 %v10767, %v10768
        %v10770 = vrot.slane %v10769, 1
        %v10771 = vadd.f32 %v10769, %v10770
        %v10772 = vrot.slane %v7885, 4
        %v10773 = vadd.f32 %v7885, %v10772
        %v10774 = vrot.slane %v10773, 2
        %v10775 = vadd.f32 %v10773, %v10774
        %v10776 = vrot.slane %v10775, 1
        %v10777 = vadd.f32 %v10775, %v10776
        %v10778 = vrot.slane %v7886, 4
        %v10779 = vadd.f32 %v7886, %v10778
        %v10780 = vrot.slane %v10779, 2
        %v10781 = vadd.f32 %v10779, %v10780
        %v10782 = vrot.slane %v10781, 1
        %v10783 = vadd.f32 %v10781, %v10782
        %v10784 = vrot.slane %v7887, 4
        %v10785 = vadd.f32 %v7887, %v10784
        %v10786 = vrot.slane %v10785, 2
        %v10787 = vadd.f32 %v10785, %v10786
        %v10788 = vrot.slane %v10787, 1
        %v10789 = vadd.f32 %v10787, %v10788
        %v10790 = vrot.slane %v7888, 4
        %v10791 = vadd.f32 %v7888, %v10790
        %v10792 = vrot.slane %v10791, 2
        %v10793 = vadd.f32 %v10791, %v10792
        %v10794 = vrot.slane %v10793, 1
        %v10795 = vadd.f32 %v10793, %v10794
        %v10796 = vrot.slane %v7889, 4
        %v10797 = vadd.f32 %v7889, %v10796
        %v10798 = vrot.slane %v10797, 2
        %v10799 = vadd.f32 %v10797, %v10798
        %v10800 = vrot.slane %v10799, 1
        %v10801 = vadd.f32 %v10799, %v10800
        %v10802 = vrot.slane %v7890, 4
        %v10803 = vadd.f32 %v7890, %v10802
        %v10804 = vrot.slane %v10803, 2
        %v10805 = vadd.f32 %v10803, %v10804
        %v10806 = vrot.slane %v10805, 1
        %v10807 = vadd.f32 %v10805, %v10806
        %v10808 = vrot.slane %v7891, 4
        %v10809 = vadd.f32 %v7891, %v10808
        %v10810 = vrot.slane %v10809, 2
        %v10811 = vadd.f32 %v10809, %v10810
        %v10812 = vrot.slane %v10811, 1
        %v10813 = vadd.f32 %v10811, %v10812
        %v10814 = vrot.slane %v7892, 4
        %v10815 = vadd.f32 %v7892, %v10814
        %v10816 = vrot.slane %v10815, 2
        %v10817 = vadd.f32 %v10815, %v10816
        %v10818 = vrot.slane %v10817, 1
        %v10819 = vadd.f32 %v10817, %v10818
        %v10820 = vrot.slane %v7893, 4
        %v10821 = vadd.f32 %v7893, %v10820
        %v10822 = vrot.slane %v10821, 2
        %v10823 = vadd.f32 %v10821, %v10822
        %v10824 = vrot.slane %v10823, 1
        %v10825 = vadd.f32 %v10823, %v10824
        %v10826 = vrot.slane %v7894, 4
        %v10827 = vadd.f32 %v7894, %v10826
        %v10828 = vrot.slane %v10827, 2
        %v10829 = vadd.f32 %v10827, %v10828
        %v10830 = vrot.slane %v10829, 1
        %v10831 = vadd.f32 %v10829, %v10830
        %v10832 = vrot.slane %v7895, 4
        %v10833 = vadd.f32 %v7895, %v10832
        %v10834 = vrot.slane %v10833, 2
        %v10835 = vadd.f32 %v10833, %v10834
        %v10836 = vrot.slane %v10835, 1
        %v10837 = vadd.f32 %v10835, %v10836
        %v10838 = vrot.slane %v7896, 4
        %v10839 = vadd.f32 %v7896, %v10838
        %v10840 = vrot.slane %v10839, 2
        %v10841 = vadd.f32 %v10839, %v10840
        %v10842 = vrot.slane %v10841, 1
        %v10843 = vadd.f32 %v10841, %v10842
        %v10844 = vrot.slane %v7897, 4
        %v10845 = vadd.f32 %v7897, %v10844
        %v10846 = vrot.slane %v10845, 2
        %v10847 = vadd.f32 %v10845, %v10846
        %v10848 = vrot.slane %v10847, 1
        %v10849 = vadd.f32 %v10847, %v10848
        %v10850 = vrot.slane %v7898, 4
        %v10851 = vadd.f32 %v7898, %v10850
        %v10852 = vrot.slane %v10851, 2
        %v10853 = vadd.f32 %v10851, %v10852
        %v10854 = vrot.slane %v10853, 1
        %v10855 = vadd.f32 %v10853, %v10854
        %v10856 = vrot.slane %v7899, 4
        %v10857 = vadd.f32 %v7899, %v10856
        %v10858 = vrot.slane %v10857, 2
        %v10859 = vadd.f32 %v10857, %v10858
        %v10860 = vrot.slane %v10859, 1
        %v10861 = vadd.f32 %v10859, %v10860
        %v10862 = vrot.slane %v7900, 4
        %v10863 = vadd.f32 %v7900, %v10862
        %v10864 = vrot.slane %v10863, 2
        %v10865 = vadd.f32 %v10863, %v10864
        %v10866 = vrot.slane %v10865, 1
        %v10867 = vadd.f32 %v10865, %v10866
        %v10868 = vrot.slane %v7901, 4
        %v10869 = vadd.f32 %v7901, %v10868
        %v10870 = vrot.slane %v10869, 2
        %v10871 = vadd.f32 %v10869, %v10870
        %v10872 = vrot.slane %v10871, 1
        %v10873 = vadd.f32 %v10871, %v10872
        %v10874 = vrot.slane %v7902, 4
        %v10875 = vadd.f32 %v7902, %v10874
        %v10876 = vrot.slane %v10875, 2
        %v10877 = vadd.f32 %v10875, %v10876
        %v10878 = vrot.slane %v10877, 1
        %v10879 = vadd.f32 %v10877, %v10878
        %v10880 = vrot.slane %v7903, 4
        %v10881 = vadd.f32 %v7903, %v10880
        %v10882 = vrot.slane %v10881, 2
        %v10883 = vadd.f32 %v10881, %v10882
        %v10884 = vrot.slane %v10883, 1
        %v10885 = vadd.f32 %v10883, %v10884
        %v10886 = vrot.slane %v7904, 4
        %v10887 = vadd.f32 %v7904, %v10886
        %v10888 = vrot.slane %v10887, 2
        %v10889 = vadd.f32 %v10887, %v10888
        %v10890 = vrot.slane %v10889, 1
        %v10891 = vadd.f32 %v10889, %v10890
        %v10892 = vrot.slane %v7905, 4
        %v10893 = vadd.f32 %v7905, %v10892
        %v10894 = vrot.slane %v10893, 2
        %v10895 = vadd.f32 %v10893, %v10894
        %v10896 = vrot.slane %v10895, 1
        %v10897 = vadd.f32 %v10895, %v10896
        %v10898 = vrot.slane %v7906, 4
        %v10899 = vadd.f32 %v7906, %v10898
        %v10900 = vrot.slane %v10899, 2
        %v10901 = vadd.f32 %v10899, %v10900
        %v10902 = vrot.slane %v10901, 1
        %v10903 = vadd.f32 %v10901, %v10902
        %v10904 = vrot.slane %v7907, 4
        %v10905 = vadd.f32 %v7907, %v10904
        %v10906 = vrot.slane %v10905, 2
        %v10907 = vadd.f32 %v10905, %v10906
        %v10908 = vrot.slane %v10907, 1
        %v10909 = vadd.f32 %v10907, %v10908
        %v10910 = vrot.slane %v7908, 4
        %v10911 = vadd.f32 %v7908, %v10910
        %v10912 = vrot.slane %v10911, 2
        %v10913 = vadd.f32 %v10911, %v10912
        %v10914 = vrot.slane %v10913, 1
        %v10915 = vadd.f32 %v10913, %v10914
        %v10916 = vrot.slane %v7909, 4
        %v10917 = vadd.f32 %v7909, %v10916
        %v10918 = vrot.slane %v10917, 2
        %v10919 = vadd.f32 %v10917, %v10918
        %v10920 = vrot.slane %v10919, 1
        %v10921 = vadd.f32 %v10919, %v10920
        %v10922 = vrot.slane %v7910, 4
        %v10923 = vadd.f32 %v7910, %v10922
        %v10924 = vrot.slane %v10923, 2
        %v10925 = vadd.f32 %v10923, %v10924
        %v10926 = vrot.slane %v10925, 1
        %v10927 = vadd.f32 %v10925, %v10926
        %v10928 = vrot.slane %v7911, 4
        %v10929 = vadd.f32 %v7911, %v10928
        %v10930 = vrot.slane %v10929, 2
        %v10931 = vadd.f32 %v10929, %v10930
        %v10932 = vrot.slane %v10931, 1
        %v10933 = vadd.f32 %v10931, %v10932
        %v10934 = vrot.slane %v7912, 4
        %v10935 = vadd.f32 %v7912, %v10934
        %v10936 = vrot.slane %v10935, 2
        %v10937 = vadd.f32 %v10935, %v10936
        %v10938 = vrot.slane %v10937, 1
        %v10939 = vadd.f32 %v10937, %v10938
        %v10940 = vrot.slane %v7913, 4
        %v10941 = vadd.f32 %v7913, %v10940
        %v10942 = vrot.slane %v10941, 2
        %v10943 = vadd.f32 %v10941, %v10942
        %v10944 = vrot.slane %v10943, 1
        %v10945 = vadd.f32 %v10943, %v10944
        %v10946 = vrot.slane %v7914, 4
        %v10947 = vadd.f32 %v7914, %v10946
        %v10948 = vrot.slane %v10947, 2
        %v10949 = vadd.f32 %v10947, %v10948
        %v10950 = vrot.slane %v10949, 1
        %v10951 = vadd.f32 %v10949, %v10950
        %v10952 = vrot.slane %v7915, 4
        %v10953 = vadd.f32 %v7915, %v10952
        %v10954 = vrot.slane %v10953, 2
        %v10955 = vadd.f32 %v10953, %v10954
        %v10956 = vrot.slane %v10955, 1
        %v10957 = vadd.f32 %v10955, %v10956
        %v10958 = vrot.slane %v7916, 4
        %v10959 = vadd.f32 %v7916, %v10958
        %v10960 = vrot.slane %v10959, 2
        %v10961 = vadd.f32 %v10959, %v10960
        %v10962 = vrot.slane %v10961, 1
        %v10963 = vadd.f32 %v10961, %v10962
        %v10964 = vrot.slane %v7917, 4
        %v10965 = vadd.f32 %v7917, %v10964
        %v10966 = vrot.slane %v10965, 2
        %v10967 = vadd.f32 %v10965, %v10966
        %v10968 = vrot.slane %v10967, 1
        %v10969 = vadd.f32 %v10967, %v10968
        %v10970 = vrot.slane %v7918, 4
        %v10971 = vadd.f32 %v7918, %v10970
        %v10972 = vrot.slane %v10971, 2
        %v10973 = vadd.f32 %v10971, %v10972
        %v10974 = vrot.slane %v10973, 1
        %v10975 = vadd.f32 %v10973, %v10974
        %v10976 = vrot.slane %v7919, 4
        %v10977 = vadd.f32 %v7919, %v10976
        %v10978 = vrot.slane %v10977, 2
        %v10979 = vadd.f32 %v10977, %v10978
        %v10980 = vrot.slane %v10979, 1
        %v10981 = vadd.f32 %v10979, %v10980
        %v10982 = vrot.slane %v7920, 4
        %v10983 = vadd.f32 %v7920, %v10982
        %v10984 = vrot.slane %v10983, 2
        %v10985 = vadd.f32 %v10983, %v10984
        %v10986 = vrot.slane %v10985, 1
        %v10987 = vadd.f32 %v10985, %v10986
        %v10988 = vrot.slane %v7921, 4
        %v10989 = vadd.f32 %v7921, %v10988
        %v10990 = vrot.slane %v10989, 2
        %v10991 = vadd.f32 %v10989, %v10990
        %v10992 = vrot.slane %v10991, 1
        %v10993 = vadd.f32 %v10991, %v10992
        %v10994 = vld [vmem:[#allocation7] sm:$0xff]
        %v10995 = vld [vmem:[#allocation7 + $0x8] sm:$0xff]
        %v10996 = vld [vmem:[#allocation7 + $0x10] sm:$0xff]
        %v10997 = vld [vmem:[#allocation7 + $0x18] sm:$0xff]
        %v10998 = vld [vmem:[#allocation7 + $0x20] sm:$0xff]
        %v10999 = vld [vmem:[#allocation7 + $0x28] sm:$0xff]
        %v11000 = vld [vmem:[#allocation7 + $0x30] sm:$0xff]
        %v11001 = vld [vmem:[#allocation7 + $0x38] sm:$0xff]
        %v11002 = vld [vmem:[#allocation7 + $0x40] sm:$0xff]
        %v11003 = vld [vmem:[#allocation7 + $0x48] sm:$0xff]
        %v11004 = vld [vmem:[#allocation7 + $0x50] sm:$0xff]
        %v11005 = vld [vmem:[#allocation7 + $0x58] sm:$0xff]
        %v11006 = vld [vmem:[#allocation7 + $0x60] sm:$0xff]
        %v11007 = vld [vmem:[#allocation7 + $0x68] sm:$0xff]
        %v11008 = vld [vmem:[#allocation7 + $0x70] sm:$0xff]
        %v11009 = vld [vmem:[#allocation7 + $0x78] sm:$0xff]
        %v11010 = vld [vmem:[#allocation7 + $0x80] sm:$0xff]
        %v11011 = vld [vmem:[#allocation7 + $0x88] sm:$0xff]
        %v11012 = vld [vmem:[#allocation7 + $0x90] sm:$0xff]
        %v11013 = vld [vmem:[#allocation7 + $0x98] sm:$0xff]
        %v11014 = vld [vmem:[#allocation7 + $0xa0] sm:$0xff]
        %v11015 = vld [vmem:[#allocation7 + $0xa8] sm:$0xff]
        %v11016 = vld [vmem:[#allocation7 + $0xb0] sm:$0xff]
        %v11017 = vld [vmem:[#allocation7 + $0xb8] sm:$0xff]
        %v11018 = vld [vmem:[#allocation7 + $0xc0] sm:$0xff]
        %v11019 = vld [vmem:[#allocation7 + $0xc8] sm:$0xff]
        %v11020 = vld [vmem:[#allocation7 + $0xd0] sm:$0xff]
        %v11021 = vld [vmem:[#allocation7 + $0xd8] sm:$0xff]
        %v11022 = vld [vmem:[#allocation7 + $0xe0] sm:$0xff]
        %v11023 = vld [vmem:[#allocation7 + $0xe8] sm:$0xff]
        %v11024 = vld [vmem:[#allocation7 + $0xf0] sm:$0xff]
        %v11025 = vld [vmem:[#allocation7 + $0xf8] sm:$0xff]
        %v11026 = vld [vmem:[#allocation7 + $0x100] sm:$0xff]
        %v11027 = vld [vmem:[#allocation7 + $0x108] sm:$0xff]
        %v11028 = vld [vmem:[#allocation7 + $0x110] sm:$0xff]
        %v11029 = vld [vmem:[#allocation7 + $0x118] sm:$0xff]
        %v11030 = vld [vmem:[#allocation7 + $0x120] sm:$0xff]
        %v11031 = vld [vmem:[#allocation7 + $0x128] sm:$0xff]
        %v11032 = vld [vmem:[#allocation7 + $0x130] sm:$0xff]
        %v11033 = vld [vmem:[#allocation7 + $0x138] sm:$0xff]
        %v11034 = vld [vmem:[#allocation7 + $0x140] sm:$0xff]
        %v11035 = vld [vmem:[#allocation7 + $0x148] sm:$0xff]
        %v11036 = vld [vmem:[#allocation7 + $0x150] sm:$0xff]
        %v11037 = vld [vmem:[#allocation7 + $0x158] sm:$0xff]
        %v11038 = vld [vmem:[#allocation7 + $0x160] sm:$0xff]
        %v11039 = vld [vmem:[#allocation7 + $0x168] sm:$0xff]
        %v11040 = vld [vmem:[#allocation7 + $0x170] sm:$0xff]
        %v11041 = vld [vmem:[#allocation7 + $0x178] sm:$0xff]
        %v11042 = vld [vmem:[#allocation7 + $0x180] sm:$0xff]
        %v11043 = vld [vmem:[#allocation7 + $0x188] sm:$0xff]
        %v11044 = vld [vmem:[#allocation7 + $0x190] sm:$0xff]
        %v11045 = vld [vmem:[#allocation7 + $0x198] sm:$0xff]
        %v11046 = vld [vmem:[#allocation7 + $0x1a0] sm:$0xff]
        %v11047 = vld [vmem:[#allocation7 + $0x1a8] sm:$0xff]
        %v11048 = vld [vmem:[#allocation7 + $0x1b0] sm:$0xff]
        %v11049 = vld [vmem:[#allocation7 + $0x1b8] sm:$0xff]
        %v11050 = vld [vmem:[#allocation7 + $0x1c0] sm:$0xff]
        %v11051 = vld [vmem:[#allocation7 + $0x1c8] sm:$0xff]
        %v11052 = vld [vmem:[#allocation7 + $0x1d0] sm:$0xff]
        %v11053 = vld [vmem:[#allocation7 + $0x1d8] sm:$0xff]
        %v11054 = vld [vmem:[#allocation7 + $0x1e0] sm:$0xff]
        %v11055 = vld [vmem:[#allocation7 + $0x1e8] sm:$0xff]
        %v11056 = vld [vmem:[#allocation7 + $0x1f0] sm:$0xff]
        %v11057 = vld [vmem:[#allocation7 + $0x1f8] sm:$0xff]
        %vm11570 = vcmask 1041409
        %v11571 = vsel %vm11570, %v7939, %v7927
        %vm11572 = vcmask 1042434
        %v11573 = vsel %vm11572, %v7951, %v11571
        %vm11574 = vcmask 1043459
        %v11575 = vsel %vm11574, %v7963, %v11573
        %vm11576 = vcmask 1044484
        %v11577 = vsel %vm11576, %v7975, %v11575
        %vm11578 = vcmask 1045509
        %v11579 = vsel %vm11578, %v7987, %v11577
        %vm11580 = vcmask 1046534
        %v11581 = vsel %vm11580, %v7999, %v11579
        %vm11582 = vcmask 1047559
        %v11583 = vsel %vm11582, %v8011, %v11581
        %v11584 = vsel %vm11570, %v7945, %v7933
        %v11585 = vsel %vm11572, %v7957, %v11584
        %v11586 = vsel %vm11574, %v7969, %v11585
        %v11587 = vsel %vm11576, %v7981, %v11586
        %v11588 = vsel %vm11578, %v7993, %v11587
        %v11589 = vsel %vm11580, %v8005, %v11588
        %v11590 = vsel %vm11582, %v8017, %v11589
        %v11591 = vsel %vm11570, %v8035, %v8023
        %v11592 = vsel %vm11572, %v8047, %v11591
        %v11593 = vsel %vm11574, %v8059, %v11592
        %v11594 = vsel %vm11576, %v8071, %v11593
        %v11595 = vsel %vm11578, %v8083, %v11594
        %v11596 = vsel %vm11580, %v8095, %v11595
        %v11597 = vsel %vm11582, %v8107, %v11596
        %v11598 = vsel %vm11570, %v8041, %v8029
        %v11599 = vsel %vm11572, %v8053, %v11598
        %v11600 = vsel %vm11574, %v8065, %v11599
        %v11601 = vsel %vm11576, %v8077, %v11600
        %v11602 = vsel %vm11578, %v8089, %v11601
        %v11603 = vsel %vm11580, %v8101, %v11602
        %v11604 = vsel %vm11582, %v8113, %v11603
        %v11605 = vsel %vm11570, %v8131, %v8119
        %v11606 = vsel %vm11572, %v8143, %v11605
        %v11607 = vsel %vm11574, %v8155, %v11606
        %v11608 = vsel %vm11576, %v8167, %v11607
        %v11609 = vsel %vm11578, %v8179, %v11608
        %v11610 = vsel %vm11580, %v8191, %v11609
        %v11611 = vsel %vm11582, %v8203, %v11610
        %v11612 = vsel %vm11570, %v8137, %v8125
        %v11613 = vsel %vm11572, %v8149, %v11612
        %v11614 = vsel %vm11574, %v8161, %v11613
        %v11615 = vsel %vm11576, %v8173, %v11614
        %v11616 = vsel %vm11578, %v8185, %v11615
        %v11617 = vsel %vm11580, %v8197, %v11616
        %v11618 = vsel %vm11582, %v8209, %v11617
        %v11619 = vsel %vm11570, %v8227, %v8215
        %v11620 = vsel %vm11572, %v8239, %v11619
        %v11621 = vsel %vm11574, %v8251, %v11620
        %v11622 = vsel %vm11576, %v8263, %v11621
        %v11623 = vsel %vm11578, %v8275, %v11622
        %v11624 = vsel %vm11580, %v8287, %v11623
        %v11625 = vsel %vm11582, %v8299, %v11624
        %v11626 = vsel %vm11570, %v8233, %v8221
        %v11627 = vsel %vm11572, %v8245, %v11626
        %v11628 = vsel %vm11574, %v8257, %v11627
        %v11629 = vsel %vm11576, %v8269, %v11628
        %v11630 = vsel %vm11578, %v8281, %v11629
        %v11631 = vsel %vm11580, %v8293, %v11630
        %v11632 = vsel %vm11582, %v8305, %v11631
        %v11633 = vsel %vm11570, %v8323, %v8311
        %v11634 = vsel %vm11572, %v8335, %v11633
        %v11635 = vsel %vm11574, %v8347, %v11634
        %v11636 = vsel %vm11576, %v8359, %v11635
        %v11637 = vsel %vm11578, %v8371, %v11636
        %v11638 = vsel %vm11580, %v8383, %v11637
        %v11639 = vsel %vm11582, %v8395, %v11638
        %v11640 = vsel %vm11570, %v8329, %v8317
        %v11641 = vsel %vm11572, %v8341, %v11640
        %v11642 = vsel %vm11574, %v8353, %v11641
        %v11643 = vsel %vm11576, %v8365, %v11642
        %v11644 = vsel %vm11578, %v8377, %v11643
        %v11645 = vsel %vm11580, %v8389, %v11644
        %v11646 = vsel %vm11582, %v8401, %v11645
        %v11647 = vsel %vm11570, %v8419, %v8407
        %v11648 = vsel %vm11572, %v8431, %v11647
        %v11649 = vsel %vm11574, %v8443, %v11648
        %v11650 = vsel %vm11576, %v8455, %v11649
        %v11651 = vsel %vm11578, %v8467, %v11650
        %v11652 = vsel %vm11580, %v8479, %v11651
        %v11653 = vsel %vm11582, %v8491, %v11652
        %v11654 = vsel %vm11570, %v8425, %v8413
        %v11655 = vsel %vm11572, %v8437, %v11654
        %v11656 = vsel %vm11574, %v8449, %v11655
        %v11657 = vsel %vm11576, %v8461, %v11656
        %v11658 = vsel %vm11578, %v8473, %v11657
        %v11659 = vsel %vm11580, %v8485, %v11658
        %v11660 = vsel %vm11582, %v8497, %v11659
        %v11661 = vsel %vm11570, %v8515, %v8503
        %v11662 = vsel %vm11572, %v8527, %v11661
        %v11663 = vsel %vm11574, %v8539, %v11662
        %v11664 = vsel %vm11576, %v8551, %v11663
        %v11665 = vsel %vm11578, %v8563, %v11664
        %v11666 = vsel %vm11580, %v8575, %v11665
        %v11667 = vsel %vm11582, %v8587, %v11666
        %v11668 = vsel %vm11570, %v8521, %v8509
        %v11669 = vsel %vm11572, %v8533, %v11668
        %v11670 = vsel %vm11574, %v8545, %v11669
        %v11671 = vsel %vm11576, %v8557, %v11670
        %v11672 = vsel %vm11578, %v8569, %v11671
        %v11673 = vsel %vm11580, %v8581, %v11672
        %v11674 = vsel %vm11582, %v8593, %v11673
        %v11675 = vsel %vm11570, %v8611, %v8599
        %v11676 = vsel %vm11572, %v8623, %v11675
        %v11677 = vsel %vm11574, %v8635, %v11676
        %v11678 = vsel %vm11576, %v8647, %v11677
        %v11679 = vsel %vm11578, %v8659, %v11678
        %v11680 = vsel %vm11580, %v8671, %v11679
        %v11681 = vsel %vm11582, %v8683, %v11680
        %v11682 = vsel %vm11570, %v8617, %v8605
        %v11683 = vsel %vm11572, %v8629, %v11682
        %v11684 = vsel %vm11574, %v8641, %v11683
        %v11685 = vsel %vm11576, %v8653, %v11684
        %v11686 = vsel %vm11578, %v8665, %v11685
        %v11687 = vsel %vm11580, %v8677, %v11686
        %v11688 = vsel %vm11582, %v8689, %v11687
        %v11689 = vsel %vm11570, %v8707, %v8695
        %v11690 = vsel %vm11572, %v8719, %v11689
        %v11691 = vsel %vm11574, %v8731, %v11690
        %v11692 = vsel %vm11576, %v8743, %v11691
        %v11693 = vsel %vm11578, %v8755, %v11692
        %v11694 = vsel %vm11580, %v8767, %v11693
        %v11695 = vsel %vm11582, %v8779, %v11694
        %v11696 = vsel %vm11570, %v8713, %v8701
        %v11697 = vsel %vm11572, %v8725, %v11696
        %v11698 = vsel %vm11574, %v8737, %v11697
        %v11699 = vsel %vm11576, %v8749, %v11698
        %v11700 = vsel %vm11578, %v8761, %v11699
        %v11701 = vsel %vm11580, %v8773, %v11700
        %v11702 = vsel %vm11582, %v8785, %v11701
        %v11703 = vsel %vm11570, %v8803, %v8791
        %v11704 = vsel %vm11572, %v8815, %v11703
        %v11705 = vsel %vm11574, %v8827, %v11704
        %v11706 = vsel %vm11576, %v8839, %v11705
        %v11707 = vsel %vm11578, %v8851, %v11706
        %v11708 = vsel %vm11580, %v8863, %v11707
        %v11709 = vsel %vm11582, %v8875, %v11708
        %v11710 = vsel %vm11570, %v8809, %v8797
        %v11711 = vsel %vm11572, %v8821, %v11710
        %v11712 = vsel %vm11574, %v8833, %v11711
        %v11713 = vsel %vm11576, %v8845, %v11712
        %v11714 = vsel %vm11578, %v8857, %v11713
        %v11715 = vsel %vm11580, %v8869, %v11714
        %v11716 = vsel %vm11582, %v8881, %v11715
        %v11717 = vsel %vm11570, %v8899, %v8887
        %v11718 = vsel %vm11572, %v8911, %v11717
        %v11719 = vsel %vm11574, %v8923, %v11718
        %v11720 = vsel %vm11576, %v8935, %v11719
        %v11721 = vsel %vm11578, %v8947, %v11720
        %v11722 = vsel %vm11580, %v8959, %v11721
        %v11723 = vsel %vm11582, %v8971, %v11722
        %v11724 = vsel %vm11570, %v8905, %v8893
        %v11725 = vsel %vm11572, %v8917, %v11724
        %v11726 = vsel %vm11574, %v8929, %v11725
        %v11727 = vsel %vm11576, %v8941, %v11726
        %v11728 = vsel %vm11578, %v8953, %v11727
        %v11729 = vsel %vm11580, %v8965, %v11728
        %v11730 = vsel %vm11582, %v8977, %v11729
        %v11731 = vsel %vm11570, %v8995, %v8983
        %v11732 = vsel %vm11572, %v9007, %v11731
        %v11733 = vsel %vm11574, %v9019, %v11732
        %v11734 = vsel %vm11576, %v9031, %v11733
        %v11735 = vsel %vm11578, %v9043, %v11734
        %v11736 = vsel %vm11580, %v9055, %v11735
        %v11737 = vsel %vm11582, %v9067, %v11736
        %v11738 = vsel %vm11570, %v9001, %v8989
        %v11739 = vsel %vm11572, %v9013, %v11738
        %v11740 = vsel %vm11574, %v9025, %v11739
        %v11741 = vsel %vm11576, %v9037, %v11740
        %v11742 = vsel %vm11578, %v9049, %v11741
        %v11743 = vsel %vm11580, %v9061, %v11742
        %v11744 = vsel %vm11582, %v9073, %v11743
        %v11745 = vsel %vm11570, %v9091, %v9079
        %v11746 = vsel %vm11572, %v9103, %v11745
        %v11747 = vsel %vm11574, %v9115, %v11746
        %v11748 = vsel %vm11576, %v9127, %v11747
        %v11749 = vsel %vm11578, %v9139, %v11748
        %v11750 = vsel %vm11580, %v9151, %v11749
        %v11751 = vsel %vm11582, %v9163, %v11750
        %v11752 = vsel %vm11570, %v9097, %v9085
        %v11753 = vsel %vm11572, %v9109, %v11752
        %v11754 = vsel %vm11574, %v9121, %v11753
        %v11755 = vsel %vm11576, %v9133, %v11754
        %v11756 = vsel %vm11578, %v9145, %v11755
        %v11757 = vsel %vm11580, %v9157, %v11756
        %v11758 = vsel %vm11582, %v9169, %v11757
        %v11759 = vsel %vm11570, %v9187, %v9175
        %v11760 = vsel %vm11572, %v9199, %v11759
        %v11761 = vsel %vm11574, %v9211, %v11760
        %v11762 = vsel %vm11576, %v9223, %v11761
        %v11763 = vsel %vm11578, %v9235, %v11762
        %v11764 = vsel %vm11580, %v9247, %v11763
        %v11765 = vsel %vm11582, %v9259, %v11764
        %v11766 = vsel %vm11570, %v9193, %v9181
        %v11767 = vsel %vm11572, %v9205, %v11766
        %v11768 = vsel %vm11574, %v9217, %v11767
        %v11769 = vsel %vm11576, %v9229, %v11768
        %v11770 = vsel %vm11578, %v9241, %v11769
        %v11771 = vsel %vm11580, %v9253, %v11770
        %v11772 = vsel %vm11582, %v9265, %v11771
        %v11773 = vsel %vm11570, %v9283, %v9271
        %v11774 = vsel %vm11572, %v9295, %v11773
        %v11775 = vsel %vm11574, %v9307, %v11774
        %v11776 = vsel %vm11576, %v9319, %v11775
        %v11777 = vsel %vm11578, %v9331, %v11776
        %v11778 = vsel %vm11580, %v9343, %v11777
        %v11779 = vsel %vm11582, %v9355, %v11778
        %v11780 = vsel %vm11570, %v9289, %v9277
        %v11781 = vsel %vm11572, %v9301, %v11780
        %v11782 = vsel %vm11574, %v9313, %v11781
        %v11783 = vsel %vm11576, %v9325, %v11782
        %v11784 = vsel %vm11578, %v9337, %v11783
        %v11785 = vsel %vm11580, %v9349, %v11784
        %v11786 = vsel %vm11582, %v9361, %v11785
        %v11787 = vsel %vm11570, %v9379, %v9367
        %v11788 = vsel %vm11572, %v9391, %v11787
        %v11789 = vsel %vm11574, %v9403, %v11788
        %v11790 = vsel %vm11576, %v9415, %v11789
        %v11791 = vsel %vm11578, %v9427, %v11790
        %v11792 = vsel %vm11580, %v9439, %v11791
        %v11793 = vsel %vm11582, %v9451, %v11792
        %v11794 = vsel %vm11570, %v9385, %v9373
        %v11795 = vsel %vm11572, %v9397, %v11794
        %v11796 = vsel %vm11574, %v9409, %v11795
        %v11797 = vsel %vm11576, %v9421, %v11796
        %v11798 = vsel %vm11578, %v9433, %v11797
        %v11799 = vsel %vm11580, %v9445, %v11798
        %v11800 = vsel %vm11582, %v9457, %v11799
        %v11801 = vsel %vm11570, %v9475, %v9463
        %v11802 = vsel %vm11572, %v9487, %v11801
        %v11803 = vsel %vm11574, %v9499, %v11802
        %v11804 = vsel %vm11576, %v9511, %v11803
        %v11805 = vsel %vm11578, %v9523, %v11804
        %v11806 = vsel %vm11580, %v9535, %v11805
        %v11807 = vsel %vm11582, %v9547, %v11806
        %v11808 = vsel %vm11570, %v9481, %v9469
        %v11809 = vsel %vm11572, %v9493, %v11808
        %v11810 = vsel %vm11574, %v9505, %v11809
        %v11811 = vsel %vm11576, %v9517, %v11810
        %v11812 = vsel %vm11578, %v9529, %v11811
        %v11813 = vsel %vm11580, %v9541, %v11812
        %v11814 = vsel %vm11582, %v9553, %v11813
        %v11815 = vsel %vm11570, %v9571, %v9559
        %v11816 = vsel %vm11572, %v9583, %v11815
        %v11817 = vsel %vm11574, %v9595, %v11816
        %v11818 = vsel %vm11576, %v9607, %v11817
        %v11819 = vsel %vm11578, %v9619, %v11818
        %v11820 = vsel %vm11580, %v9631, %v11819
        %v11821 = vsel %vm11582, %v9643, %v11820
        %v11822 = vsel %vm11570, %v9577, %v9565
        %v11823 = vsel %vm11572, %v9589, %v11822
        %v11824 = vsel %vm11574, %v9601, %v11823
        %v11825 = vsel %vm11576, %v9613, %v11824
        %v11826 = vsel %vm11578, %v9625, %v11825
        %v11827 = vsel %vm11580, %v9637, %v11826
        %v11828 = vsel %vm11582, %v9649, %v11827
        %v11829 = vsel %vm11570, %v9667, %v9655
        %v11830 = vsel %vm11572, %v9679, %v11829
        %v11831 = vsel %vm11574, %v9691, %v11830
        %v11832 = vsel %vm11576, %v9703, %v11831
        %v11833 = vsel %vm11578, %v9715, %v11832
        %v11834 = vsel %vm11580, %v9727, %v11833
        %v11835 = vsel %vm11582, %v9739, %v11834
        %v11836 = vsel %vm11570, %v9673, %v9661
        %v11837 = vsel %vm11572, %v9685, %v11836
        %v11838 = vsel %vm11574, %v9697, %v11837
        %v11839 = vsel %vm11576, %v9709, %v11838
        %v11840 = vsel %vm11578, %v9721, %v11839
        %v11841 = vsel %vm11580, %v9733, %v11840
        %v11842 = vsel %vm11582, %v9745, %v11841
        %v11843 = vsel %vm11570, %v9763, %v9751
        %v11844 = vsel %vm11572, %v9775, %v11843
        %v11845 = vsel %vm11574, %v9787, %v11844
        %v11846 = vsel %vm11576, %v9799, %v11845
        %v11847 = vsel %vm11578, %v9811, %v11846
        %v11848 = vsel %vm11580, %v9823, %v11847
        %v11849 = vsel %vm11582, %v9835, %v11848
        %v11850 = vsel %vm11570, %v9769, %v9757
        %v11851 = vsel %vm11572, %v9781, %v11850
        %v11852 = vsel %vm11574, %v9793, %v11851
        %v11853 = vsel %vm11576, %v9805, %v11852
        %v11854 = vsel %vm11578, %v9817, %v11853
        %v11855 = vsel %vm11580, %v9829, %v11854
        %v11856 = vsel %vm11582, %v9841, %v11855
        %v11857 = vsel %vm11570, %v9859, %v9847
        %v11858 = vsel %vm11572, %v9871, %v11857
        %v11859 = vsel %vm11574, %v9883, %v11858
        %v11860 = vsel %vm11576, %v9895, %v11859
        %v11861 = vsel %vm11578, %v9907, %v11860
        %v11862 = vsel %vm11580, %v9919, %v11861
        %v11863 = vsel %vm11582, %v9931, %v11862
        %v11864 = vsel %vm11570, %v9865, %v9853
        %v11865 = vsel %vm11572, %v9877, %v11864
        %v11866 = vsel %vm11574, %v9889, %v11865
        %v11867 = vsel %vm11576, %v9901, %v11866
        %v11868 = vsel %vm11578, %v9913, %v11867
        %v11869 = vsel %vm11580, %v9925, %v11868
        %v11870 = vsel %vm11582, %v9937, %v11869
        %v11871 = vsel %vm11570, %v9955, %v9943
        %v11872 = vsel %vm11572, %v9967, %v11871
        %v11873 = vsel %vm11574, %v9979, %v11872
        %v11874 = vsel %vm11576, %v9991, %v11873
        %v11875 = vsel %vm11578, %v10003, %v11874
        %v11876 = vsel %vm11580, %v10015, %v11875
        %v11877 = vsel %vm11582, %v10027, %v11876
        %v11878 = vsel %vm11570, %v9961, %v9949
        %v11879 = vsel %vm11572, %v9973, %v11878
        %v11880 = vsel %vm11574, %v9985, %v11879
        %v11881 = vsel %vm11576, %v9997, %v11880
        %v11882 = vsel %vm11578, %v10009, %v11881
        %v11883 = vsel %vm11580, %v10021, %v11882
        %v11884 = vsel %vm11582, %v10033, %v11883
        %v11885 = vsel %vm11570, %v10051, %v10039
        %v11886 = vsel %vm11572, %v10063, %v11885
        %v11887 = vsel %vm11574, %v10075, %v11886
        %v11888 = vsel %vm11576, %v10087, %v11887
        %v11889 = vsel %vm11578, %v10099, %v11888
        %v11890 = vsel %vm11580, %v10111, %v11889
        %v11891 = vsel %vm11582, %v10123, %v11890
        %v11892 = vsel %vm11570, %v10057, %v10045
        %v11893 = vsel %vm11572, %v10069, %v11892
        %v11894 = vsel %vm11574, %v10081, %v11893
        %v11895 = vsel %vm11576, %v10093, %v11894
        %v11896 = vsel %vm11578, %v10105, %v11895
        %v11897 = vsel %vm11580, %v10117, %v11896
        %v11898 = vsel %vm11582, %v10129, %v11897
        %v11899 = vsel %vm11570, %v10147, %v10135
        %v11900 = vsel %vm11572, %v10159, %v11899
        %v11901 = vsel %vm11574, %v10171, %v11900
        %v11902 = vsel %vm11576, %v10183, %v11901
        %v11903 = vsel %vm11578, %v10195, %v11902
        %v11904 = vsel %vm11580, %v10207, %v11903
        %v11905 = vsel %vm11582, %v10219, %v11904
        %v11906 = vsel %vm11570, %v10153, %v10141
        %v11907 = vsel %vm11572, %v10165, %v11906
        %v11908 = vsel %vm11574, %v10177, %v11907
        %v11909 = vsel %vm11576, %v10189, %v11908
        %v11910 = vsel %vm11578, %v10201, %v11909
        %v11911 = vsel %vm11580, %v10213, %v11910
        %v11912 = vsel %vm11582, %v10225, %v11911
        %v11913 = vsel %vm11570, %v10243, %v10231
        %v11914 = vsel %vm11572, %v10255, %v11913
        %v11915 = vsel %vm11574, %v10267, %v11914
        %v11916 = vsel %vm11576, %v10279, %v11915
        %v11917 = vsel %vm11578, %v10291, %v11916
        %v11918 = vsel %vm11580, %v10303, %v11917
        %v11919 = vsel %vm11582, %v10315, %v11918
        %v11920 = vsel %vm11570, %v10249, %v10237
        %v11921 = vsel %vm11572, %v10261, %v11920
        %v11922 = vsel %vm11574, %v10273, %v11921
        %v11923 = vsel %vm11576, %v10285, %v11922
        %v11924 = vsel %vm11578, %v10297, %v11923
        %v11925 = vsel %vm11580, %v10309, %v11924
        %v11926 = vsel %vm11582, %v10321, %v11925
        %v11927 = vsel %vm11570, %v10339, %v10327
        %v11928 = vsel %vm11572, %v10351, %v11927
        %v11929 = vsel %vm11574, %v10363, %v11928
        %v11930 = vsel %vm11576, %v10375, %v11929
        %v11931 = vsel %vm11578, %v10387, %v11930
        %v11932 = vsel %vm11580, %v10399, %v11931
        %v11933 = vsel %vm11582, %v10411, %v11932
        %v11934 = vsel %vm11570, %v10345, %v10333
        %v11935 = vsel %vm11572, %v10357, %v11934
        %v11936 = vsel %vm11574, %v10369, %v11935
        %v11937 = vsel %vm11576, %v10381, %v11936
        %v11938 = vsel %vm11578, %v10393, %v11937
        %v11939 = vsel %vm11580, %v10405, %v11938
        %v11940 = vsel %vm11582, %v10417, %v11939
        %v11941 = vsel %vm11570, %v10435, %v10423
        %v11942 = vsel %vm11572, %v10447, %v11941
        %v11943 = vsel %vm11574, %v10459, %v11942
        %v11944 = vsel %vm11576, %v10471, %v11943
        %v11945 = vsel %vm11578, %v10483, %v11944
        %v11946 = vsel %vm11580, %v10495, %v11945
        %v11947 = vsel %vm11582, %v10507, %v11946
        %v11948 = vsel %vm11570, %v10441, %v10429
        %v11949 = vsel %vm11572, %v10453, %v11948
        %v11950 = vsel %vm11574, %v10465, %v11949
        %v11951 = vsel %vm11576, %v10477, %v11950
        %v11952 = vsel %vm11578, %v10489, %v11951
        %v11953 = vsel %vm11580, %v10501, %v11952
        %v11954 = vsel %vm11582, %v10513, %v11953
        %v11955 = vsel %vm11570, %v10531, %v10519
        %v11956 = vsel %vm11572, %v10543, %v11955
        %v11957 = vsel %vm11574, %v10555, %v11956
        %v11958 = vsel %vm11576, %v10567, %v11957
        %v11959 = vsel %vm11578, %v10579, %v11958
        %v11960 = vsel %vm11580, %v10591, %v11959
        %v11961 = vsel %vm11582, %v10603, %v11960
        %v11962 = vsel %vm11570, %v10537, %v10525
        %v11963 = vsel %vm11572, %v10549, %v11962
        %v11964 = vsel %vm11574, %v10561, %v11963
        %v11965 = vsel %vm11576, %v10573, %v11964
        %v11966 = vsel %vm11578, %v10585, %v11965
        %v11967 = vsel %vm11580, %v10597, %v11966
        %v11968 = vsel %vm11582, %v10609, %v11967
        %v11969 = vsel %vm11570, %v10627, %v10615
        %v11970 = vsel %vm11572, %v10639, %v11969
        %v11971 = vsel %vm11574, %v10651, %v11970
        %v11972 = vsel %vm11576, %v10663, %v11971
        %v11973 = vsel %vm11578, %v10675, %v11972
        %v11974 = vsel %vm11580, %v10687, %v11973
        %v11975 = vsel %vm11582, %v10699, %v11974
        %v11976 = vsel %vm11570, %v10633, %v10621
        %v11977 = vsel %vm11572, %v10645, %v11976
        %v11978 = vsel %vm11574, %v10657, %v11977
        %v11979 = vsel %vm11576, %v10669, %v11978
        %v11980 = vsel %vm11578, %v10681, %v11979
        %v11981 = vsel %vm11580, %v10693, %v11980
        %v11982 = vsel %vm11582, %v10705, %v11981
        %v11983 = vsel %vm11570, %v10723, %v10711
        %v11984 = vsel %vm11572, %v10735, %v11983
        %v11985 = vsel %vm11574, %v10747, %v11984
        %v11986 = vsel %vm11576, %v10759, %v11985
        %v11987 = vsel %vm11578, %v10771, %v11986
        %v11988 = vsel %vm11580, %v10783, %v11987
        %v11989 = vsel %vm11582, %v10795, %v11988
        %v11990 = vsel %vm11570, %v10729, %v10717
        %v11991 = vsel %vm11572, %v10741, %v11990
        %v11992 = vsel %vm11574, %v10753, %v11991
        %v11993 = vsel %vm11576, %v10765, %v11992
        %v11994 = vsel %vm11578, %v10777, %v11993
        %v11995 = vsel %vm11580, %v10789, %v11994
        %v11996 = vsel %vm11582, %v10801, %v11995
        %v11997 = vsel %vm11570, %v10819, %v10807
        %v11998 = vsel %vm11572, %v10831, %v11997
        %v11999 = vsel %vm11574, %v10843, %v11998
        %v12000 = vsel %vm11576, %v10855, %v11999
        %v12001 = vsel %vm11578, %v10867, %v12000
        %v12002 = vsel %vm11580, %v10879, %v12001
        %v12003 = vsel %vm11582, %v10891, %v12002
        %v12004 = vsel %vm11570, %v10825, %v10813
        %v12005 = vsel %vm11572, %v10837, %v12004
        %v12006 = vsel %vm11574, %v10849, %v12005
        %v12007 = vsel %vm11576, %v10861, %v12006
        %v12008 = vsel %vm11578, %v10873, %v12007
        %v12009 = vsel %vm11580, %v10885, %v12008
        %v12010 = vsel %vm11582, %v10897, %v12009
        %v12011 = vsel %vm11570, %v10915, %v10903
        %v12012 = vsel %vm11572, %v10927, %v12011
        %v12013 = vsel %vm11574, %v10939, %v12012
        %v12014 = vsel %vm11576, %v10951, %v12013
        %v12015 = vsel %vm11578, %v10963, %v12014
        %v12016 = vsel %vm11580, %v10975, %v12015
        %v12017 = vsel %vm11582, %v10987, %v12016
        %v12018 = vsel %vm11570, %v10921, %v10909
        %v12019 = vsel %vm11572, %v10933, %v12018
        %v12020 = vsel %vm11574, %v10945, %v12019
        %v12021 = vsel %vm11576, %v10957, %v12020
        %v12022 = vsel %vm11578, %v10969, %v12021
        %v12023 = vsel %vm11580, %v10981, %v12022
        %v12024 = vsel %vm11582, %v10993, %v12023
        %12089 = vmatprep.subr.mxu0 %v11590
        %12090 = vmatpush1.msra.mxu0 %v11583
        %12091 = vmatprep.subr.mxu0 %v11604
        %12092 = vmatpush1.msra.mxu0 %v11597
        %12093 = vmatprep.subr.mxu0 %v11618
        %12094 = vmatpush1.msra.mxu0 %v11611
        %12095 = vmatprep.subr.mxu0 %v11632
        %12096 = vmatpush1.msra.mxu0 %v11625
        %12097 = vmatprep.subr.mxu0 %v11646
        %12098 = vmatpush1.msra.mxu0 %v11639
        %12099 = vmatprep.subr.mxu0 %v11660
        %12100 = vmatpush1.msra.mxu0 %v11653
        %12101 = vmatprep.subr.mxu0 %v11674
        %12102 = vmatpush1.msra.mxu0 %v11667
        %12103 = vmatprep.subr.mxu0 %v11688
        %12104 = vmatpush1.msra.mxu0 %v11681
        %12105 = vmatprep.subr.mxu0 %v11702
        %12106 = vmatpush1.msra.mxu0 %v11695
        %12107 = vmatprep.subr.mxu0 %v11716
        %12108 = vmatpush1.msra.mxu0 %v11709
        %12109 = vmatprep.subr.mxu0 %v11730
        %12110 = vmatpush1.msra.mxu0 %v11723
        %12111 = vmatprep.subr.mxu0 %v11744
        %12112 = vmatpush1.msra.mxu0 %v11737
        %12113 = vmatprep.subr.mxu0 %v11758
        %12114 = vmatpush1.msra.mxu0 %v11751
        %12115 = vmatprep.subr.mxu0 %v11772
        %12116 = vmatpush1.msra.mxu0 %v11765
        %12117 = vmatprep.subr.mxu0 %v11786
        %12118 = vmatpush1.msra.mxu0 %v11779
        %12119 = vmatprep.subr.mxu0 %v11800
        %12120 = vmatpush1.msra.mxu0 %v11793
        %12121 = vmatprep.subr.mxu0 %v11814
        %12122 = vmatpush1.msra.mxu0 %v11807
        %12123 = vmatprep.subr.mxu0 %v11828
        %12124 = vmatpush1.msra.mxu0 %v11821
        %12125 = vmatprep.subr.mxu0 %v11842
        %12126 = vmatpush1.msra.mxu0 %v11835
        %12127 = vmatprep.subr.mxu0 %v11856
        %12128 = vmatpush1.msra.mxu0 %v11849
        %12129 = vmatprep.subr.mxu0 %v11870
        %12130 = vmatpush1.msra.mxu0 %v11863
        %12131 = vmatprep.subr.mxu0 %v11884
        %12132 = vmatpush1.msra.mxu0 %v11877
        %12133 = vmatprep.subr.mxu0 %v11898
        %12134 = vmatpush1.msra.mxu0 %v11891
        %12135 = vmatprep.subr.mxu0 %v11912
        %12136 = vmatpush1.msra.mxu0 %v11905
        %12137 = vmatprep.subr.mxu0 %v11926
        %12138 = vmatpush1.msra.mxu0 %v11919
        %12139 = vmatprep.subr.mxu0 %v11940
        %12140 = vmatpush1.msra.mxu0 %v11933
        %12141 = vmatprep.subr.mxu0 %v11954
        %12142 = vmatpush1.msra.mxu0 %v11947
        %12143 = vmatprep.subr.mxu0 %v11968
        %12144 = vmatpush1.msra.mxu0 %v11961
        %12145 = vmatprep.subr.mxu0 %v11982
        %12146 = vmatpush1.msra.mxu0 %v11975
        %12147 = vmatprep.subr.mxu0 %v11996
        %12148 = vmatpush1.msra.mxu0 %v11989
        %12149 = vmatprep.subr.mxu0 %v12010
        %12150 = vmatpush1.msra.mxu0 %v12003
        %12151 = vmatprep.subr.mxu0 %v12024
        %12152 = vmatpush1.msra.mxu0 %v12017
        %12153 = vmatprep.mubr.f32.mxu0 %v10995
        %12154 = vmatmul.mubr.f32.gmra.mrb[0].mxu0 %v10994
        %v12155 = vpop.f32.mrb[0].mxu0
        %v12156 = vadd.f32 0.0, %v12155
        %v12157 = vpop.f32.mrb[0].mxu0
        %v12158 = vadd.f32 0.0, %v12157
        %12159 = vmatprep.mubr.f32.mxu0 %v10997
        %12160 = vmatmul.mubr.f32.gmra.mrb[0].mxu0 %v10996
        %v12161 = vpop.f32.mrb[0].mxu0
        %v12162 = vadd.f32 0.0, %v12161
        %v12163 = vpop.f32.mrb[0].mxu0
        %v12164 = vadd.f32 0.0, %v12163
        %12165 = vmatprep.mubr.f32.mxu0 %v10999
        %12166 = vmatmul.mubr.f32.gmra.mrb[0].mxu0 %v10998
        %v12167 = vpop.f32.mrb[0].mxu0
        %v12168 = vadd.f32 0.0, %v12167
        %v12169 = vpop.f32.mrb[0].mxu0
        %v12170 = vadd.f32 0.0, %v12169
        %12171 = vmatprep.mubr.f32.mxu0 %v11001
        %12172 = vmatmul.mubr.f32.gmra.mrb[0].mxu0 %v11000
        %v12173 = vpop.f32.mrb[0].mxu0
        %v12174 = vadd.f32 0.0, %v12173
        %v12175 = vpop.f32.mrb[0].mxu0
        %v12176 = vadd.f32 0.0, %v12175
        %12177 = vmatprep.mubr.f32.mxu0 %v11003
        %12178 = vmatmul.mubr.f32.gmra.mrb[0].mxu0 %v11002
        %v12179 = vpop.f32.mrb[0].mxu0
        %v12180 = vadd.f32 0.0, %v12179
        %v12181 = vpop.f32.mrb[0].mxu0
        %v12182 = vadd.f32 0.0, %v12181
        %12183 = vmatprep.mubr.f32.mxu0 %v11005
        %12184 = vmatmul.mubr.f32.gmra.mrb[0].mxu0 %v11004
        %v12185 = vpop.f32.mrb[0].mxu0
        %v12186 = vadd.f32 0.0, %v12185
        %v12187 = vpop.f32.mrb[0].mxu0
        %v12188 = vadd.f32 0.0, %v12187
        %12189 = vmatprep.mubr.f32.mxu0 %v11007
        %12190 = vmatmul.mubr.f32.gmra.mrb[0].mxu0 %v11006
        %v12191 = vpop.f32.mrb[0].mxu0
        %v12192 = vadd.f32 0.0, %v12191
        %v12193 = vpop.f32.mrb[0].mxu0
        %v12194 = vadd.f32 0.0, %v12193
        %12195 = vmatprep.mubr.f32.mxu0 %v11009
        %12196 = vmatmul.mubr.f32.gmra.mrb[0].mxu0 %v11008
        %v12197 = vpop.f32.mrb[0].mxu0
        %v12198 = vadd.f32 0.0, %v12197
        %v12199 = vpop.f32.mrb[0].mxu0
        %v12200 = vadd.f32 0.0, %v12199
        %12201 = vmatprep.mubr.f32.mxu0 %v11011
        %12202 = vmatmul.mubr.f32.gmra.mrb[0].mxu0 %v11010
        %v12203 = vpop.f32.mrb[0].mxu0
        %v12204 = vadd.f32 0.0, %v12203
        %v12205 = vpop.f32.mrb[0].mxu0
        %v12206 = vadd.f32 0.0, %v12205
        %12207 = vmatprep.mubr.f32.mxu0 %v11013
        %12208 = vmatmul.mubr.f32.gmra.mrb[0].mxu0 %v11012
        %v12209 = vpop.f32.mrb[0].mxu0
        %v12210 = vadd.f32 0.0, %v12209
        %v12211 = vpop.f32.mrb[0].mxu0
        %v12212 = vadd.f32 0.0, %v12211
        %12213 = vmatprep.mubr.f32.mxu0 %v11015
        %12214 = vmatmul.mubr.f32.gmra.mrb[0].mxu0 %v11014
        %v12215 = vpop.f32.mrb[0].mxu0
        %v12216 = vadd.f32 0.0, %v12215
        %v12217 = vpop.f32.mrb[0].mxu0
        %v12218 = vadd.f32 0.0, %v12217
        %12219 = vmatprep.mubr.f32.mxu0 %v11017
        %12220 = vmatmul.mubr.f32.gmra.mrb[0].mxu0 %v11016
        %v12221 = vpop.f32.mrb[0].mxu0
        %v12222 = vadd.f32 0.0, %v12221
        %v12223 = vpop.f32.mrb[0].mxu0
        %v12224 = vadd.f32 0.0, %v12223
        %12225 = vmatprep.mubr.f32.mxu0 %v11019
        %12226 = vmatmul.mubr.f32.gmra.mrb[0].mxu0 %v11018
        %v12227 = vpop.f32.mrb[0].mxu0
        %v12228 = vadd.f32 0.0, %v12227
        %v12229 = vpop.f32.mrb[0].mxu0
        %v12230 = vadd.f32 0.0, %v12229
        %12231 = vmatprep.mubr.f32.mxu0 %v11021
        %12232 = vmatmul.mubr.f32.gmra.mrb[0].mxu0 %v11020
        %v12233 = vpop.f32.mrb[0].mxu0
        %v12234 = vadd.f32 0.0, %v12233
        %v12235 = vpop.f32.mrb[0].mxu0
        %v12236 = vadd.f32 0.0, %v12235
        %12237 = vmatprep.mubr.f32.mxu0 %v11023
        %12238 = vmatmul.mubr.f32.gmra.mrb[0].mxu0 %v11022
        %v12239 = vpop.f32.mrb[0].mxu0
        %v12240 = vadd.f32 0.0, %v12239
        %v12241 = vpop.f32.mrb[0].mxu0
        %v12242 = vadd.f32 0.0, %v12241
        %12243 = vmatprep.mubr.f32.mxu0 %v11025
        %12244 = vmatmul.mubr.f32.gmra.mrb[0].mxu0 %v11024
        %v12245 = vpop.f32.mrb[0].mxu0
        %v12246 = vadd.f32 0.0, %v12245
        %v12247 = vpop.f32.mrb[0].mxu0
        %v12248 = vadd.f32 0.0, %v12247
        %12249 = vmatprep.mubr.f32.mxu0 %v11027
        %12250 = vmatmul.mubr.f32.gmra.mrb[0].mxu0 %v11026
        %v12251 = vpop.f32.mrb[0].mxu0
        %v12252 = vadd.f32 0.0, %v12251
        %v12253 = vpop.f32.mrb[0].mxu0
        %v12254 = vadd.f32 0.0, %v12253
        %12255 = vmatprep.mubr.f32.mxu0 %v11029
        %12256 = vmatmul.mubr.f32.gmra.mrb[0].mxu0 %v11028
        %v12257 = vpop.f32.mrb[0].mxu0
        %v12258 = vadd.f32 0.0, %v12257
        %v12259 = vpop.f32.mrb[0].mxu0
        %v12260 = vadd.f32 0.0, %v12259
        %12261 = vmatprep.mubr.f32.mxu0 %v11031
        %12262 = vmatmul.mubr.f32.gmra.mrb[0].mxu0 %v11030
        %v12263 = vpop.f32.mrb[0].mxu0
        %v12264 = vadd.f32 0.0, %v12263
        %v12265 = vpop.f32.mrb[0].mxu0
        %v12266 = vadd.f32 0.0, %v12265
        %12267 = vmatprep.mubr.f32.mxu0 %v11033
        %12268 = vmatmul.mubr.f32.gmra.mrb[0].mxu0 %v11032
        %v12269 = vpop.f32.mrb[0].mxu0
        %v12270 = vadd.f32 0.0, %v12269
        %v12271 = vpop.f32.mrb[0].mxu0
        %v12272 = vadd.f32 0.0, %v12271
        %12273 = vmatprep.mubr.f32.mxu0 %v11035
        %12274 = vmatmul.mubr.f32.gmra.mrb[0].mxu0 %v11034
        %v12275 = vpop.f32.mrb[0].mxu0
        %v12276 = vadd.f32 0.0, %v12275
        %v12277 = vpop.f32.mrb[0].mxu0
        %v12278 = vadd.f32 0.0, %v12277
        %12279 = vmatprep.mubr.f32.mxu0 %v11037
        %12280 = vmatmul.mubr.f32.gmra.mrb[0].mxu0 %v11036
        %v12281 = vpop.f32.mrb[0].mxu0
        %v12282 = vadd.f32 0.0, %v12281
        %v12283 = vpop.f32.mrb[0].mxu0
        %v12284 = vadd.f32 0.0, %v12283
        %12285 = vmatprep.mubr.f32.mxu0 %v11039
        %12286 = vmatmul.mubr.f32.gmra.mrb[0].mxu0 %v11038
        %v12287 = vpop.f32.mrb[0].mxu0
        %v12288 = vadd.f32 0.0, %v12287
        %v12289 = vpop.f32.mrb[0].mxu0
        %v12290 = vadd.f32 0.0, %v12289
        %12291 = vmatprep.mubr.f32.mxu0 %v11041
        %12292 = vmatmul.mubr.f32.gmra.mrb[0].mxu0 %v11040
        %v12293 = vpop.f32.mrb[0].mxu0
        %v12294 = vadd.f32 0.0, %v12293
        %v12295 = vpop.f32.mrb[0].mxu0
        %v12296 = vadd.f32 0.0, %v12295
        %12297 = vmatprep.mubr.f32.mxu0 %v11043
        %12298 = vmatmul.mubr.f32.gmra.mrb[0].mxu0 %v11042
        %v12299 = vpop.f32.mrb[0].mxu0
        %v12300 = vadd.f32 0.0, %v12299
        %v12301 = vpop.f32.mrb[0].mxu0
        %v12302 = vadd.f32 0.0, %v12301
        %12303 = vmatprep.mubr.f32.mxu0 %v11045
        %12304 = vmatmul.mubr.f32.gmra.mrb[0].mxu0 %v11044
        %v12305 = vpop.f32.mrb[0].mxu0
        %v12306 = vadd.f32 0.0, %v12305
        %v12307 = vpop.f32.mrb[0].mxu0
        %v12308 = vadd.f32 0.0, %v12307
        %12309 = vmatprep.mubr.f32.mxu0 %v11047
        %12310 = vmatmul.mubr.f32.gmra.mrb[0].mxu0 %v11046
        %v12311 = vpop.f32.mrb[0].mxu0
        %v12312 = vadd.f32 0.0, %v12311
        %v12313 = vpop.f32.mrb[0].mxu0
        %v12314 = vadd.f32 0.0, %v12313
        %12315 = vmatprep.mubr.f32.mxu0 %v11049
        %12316 = vmatmul.mubr.f32.gmra.mrb[0].mxu0 %v11048
        %v12317 = vpop.f32.mrb[0].mxu0
        %v12318 = vadd.f32 0.0, %v12317
        %v12319 = vpop.f32.mrb[0].mxu0
        %v12320 = vadd.f32 0.0, %v12319
        %12321 = vmatprep.mubr.f32.mxu0 %v11051
        %12322 = vmatmul.mubr.f32.gmra.mrb[0].mxu0 %v11050
        %v12323 = vpop.f32.mrb[0].mxu0
        %v12324 = vadd.f32 0.0, %v12323
        %v12325 = vpop.f32.mrb[0].mxu0
        %v12326 = vadd.f32 0.0, %v12325
        %12327 = vmatprep.mubr.f32.mxu0 %v11053
        %12328 = vmatmul.mubr.f32.gmra.mrb[0].mxu0 %v11052
        %v12329 = vpop.f32.mrb[0].mxu0
        %v12330 = vadd.f32 0.0, %v12329
        %v12331 = vpop.f32.mrb[0].mxu0
        %v12332 = vadd.f32 0.0, %v12331
        %12333 = vmatprep.mubr.f32.mxu0 %v11055
        %12334 = vmatmul.mubr.f32.gmra.mrb[0].mxu0 %v11054
        %v12335 = vpop.f32.mrb[0].mxu0
        %v12336 = vadd.f32 0.0, %v12335
        %v12337 = vpop.f32.mrb[0].mxu0
        %v12338 = vadd.f32 0.0, %v12337
        %12339 = vmatprep.mubr.f32.mxu0 %v11057
        %12340 = vmatmul.mubr.f32.gmra.mrb[0].mxu0 %v11056
        %v12341 = vpop.f32.mrb[0].mxu0
        %v12342 = vadd.f32 0.0, %v12341
        %v12343 = vpop.f32.mrb[0].mxu0
        %v12344 = vadd.f32 0.0, %v12343
        %12345 = vdwg.mxu0
        %12346 = vst [vmem:[%s236] sm:$0xff] %v12156
        %12347 = vst [vmem:[%s236 + $0x8] sm:$0xff] %v12158
        %12348 = vst [vmem:[%s236 + $0x10] sm:$0xff] %v12162
        %12349 = vst [vmem:[%s236 + $0x18] sm:$0xff] %v12164
        %12350 = vst [vmem:[%s236 + $0x20] sm:$0xff] %v12168
        %12351 = vst [vmem:[%s236 + $0x28] sm:$0xff] %v12170
        %12352 = vst [vmem:[%s236 + $0x30] sm:$0xff] %v12174
        %12353 = vst [vmem:[%s236 + $0x38] sm:$0xff] %v12176
        %12354 = vst [vmem:[%s236 + $0x40] sm:$0xff] %v12180
        %12355 = vst [vmem:[%s236 + $0x48] sm:$0xff] %v12182
        %12356 = vst [vmem:[%s236 + $0x50] sm:$0xff] %v12186
        %12357 = vst [vmem:[%s236 + $0x58] sm:$0xff] %v12188
        %12358 = vst [vmem:[%s236 + $0x60] sm:$0xff] %v12192
        %12359 = vst [vmem:[%s236 + $0x68] sm:$0xff] %v12194
        %12360 = vst [vmem:[%s236 + $0x70] sm:$0xff] %v12198
        %12361 = vst [vmem:[%s236 + $0x78] sm:$0xff] %v12200
        %12362 = vst [vmem:[%s236 + $0x80] sm:$0xff] %v12204
        %12363 = vst [vmem:[%s236 + $0x88] sm:$0xff] %v12206
        %12364 = vst [vmem:[%s236 + $0x90] sm:$0xff] %v12210
        %12365 = vst [vmem:[%s236 + $0x98] sm:$0xff] %v12212
        %12366 = vst [vmem:[%s236 + $0xa0] sm:$0xff] %v12216
        %12367 = vst [vmem:[%s236 + $0xa8] sm:$0xff] %v12218
        %12368 = vst [vmem:[%s236 + $0xb0] sm:$0xff] %v12222
        %12369 = vst [vmem:[%s236 + $0xb8] sm:$0xff] %v12224
        %12370 = vst [vmem:[%s236 + $0xc0] sm:$0xff] %v12228
        %12371 = vst [vmem:[%s236 + $0xc8] sm:$0xff] %v12230
        %12372 = vst [vmem:[%s236 + $0xd0] sm:$0xff] %v12234
        %12373 = vst [vmem:[%s236 + $0xd8] sm:$0xff] %v12236
        %12374 = vst [vmem:[%s236 + $0xe0] sm:$0xff] %v12240
        %12375 = vst [vmem:[%s236 + $0xe8] sm:$0xff] %v12242
        %12376 = vst [vmem:[%s236 + $0xf0] sm:$0xff] %v12246
        %12377 = vst [vmem:[%s236 + $0xf8] sm:$0xff] %v12248
        %12378 = vst [vmem:[%s236 + $0x100] sm:$0xff] %v12252
        %12379 = vst [vmem:[%s236 + $0x108] sm:$0xff] %v12254
        %12380 = vst [vmem:[%s236 + $0x110] sm:$0xff] %v12258
        %12381 = vst [vmem:[%s236 + $0x118] sm:$0xff] %v12260
        %12382 = vst [vmem:[%s236 + $0x120] sm:$0xff] %v12264
        %12383 = vst [vmem:[%s236 + $0x128] sm:$0xff] %v12266
        %12384 = vst [vmem:[%s236 + $0x130] sm:$0xff] %v12270
        %12385 = vst [vmem:[%s236 + $0x138] sm:$0xff] %v12272
        %12386 = vst [vmem:[%s236 + $0x140] sm:$0xff] %v12276
        %12387 = vst [vmem:[%s236 + $0x148] sm:$0xff] %v12278
        %12388 = vst [vmem:[%s236 + $0x150] sm:$0xff] %v12282
        %12389 = vst [vmem:[%s236 + $0x158] sm:$0xff] %v12284
        %12390 = vst [vmem:[%s236 + $0x160] sm:$0xff] %v12288
        %12391 = vst [vmem:[%s236 + $0x168] sm:$0xff] %v12290
        %12392 = vst [vmem:[%s236 + $0x170] sm:$0xff] %v12294
        %12393 = vst [vmem:[%s236 + $0x178] sm:$0xff] %v12296
        %12394 = vst [vmem:[%s236 + $0x180] sm:$0xff] %v12300
        %12395 = vst [vmem:[%s236 + $0x188] sm:$0xff] %v12302
        %12396 = vst [vmem:[%s236 + $0x190] sm:$0xff] %v12306
        %12397 = vst [vmem:[%s236 + $0x198] sm:$0xff] %v12308
        %12398 = vst [vmem:[%s236 + $0x1a0] sm:$0xff] %v12312
        %12399 = vst [vmem:[%s236 + $0x1a8] sm:$0xff] %v12314
        %12400 = vst [vmem:[%s236 + $0x1b0] sm:$0xff] %v12318
        %12401 = vst [vmem:[%s236 + $0x1b8] sm:$0xff] %v12320
        %12402 = vst [vmem:[%s236 + $0x1c0] sm:$0xff] %v12324
        %12403 = vst [vmem:[%s236 + $0x1c8] sm:$0xff] %v12326
        %12404 = vst [vmem:[%s236 + $0x1d0] sm:$0xff] %v12330
        %12405 = vst [vmem:[%s236 + $0x1d8] sm:$0xff] %v12332
        %12406 = vst [vmem:[%s236 + $0x1e0] sm:$0xff] %v12336
        %12407 = vst [vmem:[%s236 + $0x1e8] sm:$0xff] %v12338
        %12408 = vst [vmem:[%s236 + $0x1f0] sm:$0xff] %v12342
        %12409 = vst [vmem:[%s236 + $0x1f8] sm:$0xff] %v12344
        %s12410 = sand.u32 %s113, 1
        %s12411 = scalar_lea.sflag [#allocation4], %s12410
        %s12412 = sand.u32 %s113, 1
        %s12413 = smul.addr %s12412, 512
        %s12414 = scalar_lea.vmem [#allocation8], %s12413
        // Predicated region
        $region45: #{tpu_custom_call.1} parent=31 // pred_check
          %p12415 = pneg %p123
        $region46: #{tpu_custom_call.1} parent=31 // pred_check_branch
          %12417 = sbr.rel (%p12415) target = $region48
        $region47: #{tpu_custom_call.1} parent=31 // pred_region
          %s12418 = smul.u32 32, %s25
          %s12419 = smul.u32 2, %s26
          %s12421 = ssub.s32 8192, 8192
          %12422 = vsyncadd %s12411, %s12421
          %s12423 = smul.addr %s12418, 2
          %s12424 = sadd.s32 %s12419, %s12423
          %s12425 = smul.addr %s12424, 128
          %s12426 = scalar_lea.hbm %s3, %s12425
          %s12427 = sshll.u32 %s12414, 4
          %s12428 = int_to_ptr.vmem [resolvable:$true] %s12427
          %12433 = dma.vmem_to_hbm [thread:$0]  %s12428, 8192, %s12426, %s12411, 256, 256, 16
        $region48: #{tpu_custom_call.1} parent=31 // pred_fallthru
          _
      $region32: #{tpu_custom_call.1} parent=5 // pred_fallthru
        _
      %p12434 = scmp.le.s32.totalorder 2, %s16
      // Predicated region
      $region49: #{tpu_custom_call.1} parent=5 // pred_check
        %p12435 = pneg %p12434
      $region50: #{tpu_custom_call.1} parent=5 // pred_check_branch
        %12437 = sbr.rel (%p12435) target = $region52
      $region51: #{tpu_custom_call.1} parent=5 // pred_region
        %s12438 = ssub.s32 %s16, 2
        // Predicated region
        $region53: #{tpu_custom_call.1} parent=51 // pred_check
          %p12439 = pneg %p129
        $region54: #{tpu_custom_call.1} parent=51 // pred_check_branch
          %12441 = sbr.rel (%p12439) target = $region56
        $region55: #{tpu_custom_call.1} parent=51 // pred_region
          %s12442 = sand.u32 %s114, 1
          %s12443 = scalar_lea.sflag [#allocation4], %s12442
          %s12444 = sand.u32 %s114, 1
          %s12445 = smul.addr %s12444, 512
          %s12446 = scalar_lea.vmem [#allocation8], %s12445
          %12447 = dma.done %s12443, 8192
        $region56: #{tpu_custom_call.1} parent=51 // pred_fallthru
          _
      $region52: #{tpu_custom_call.1} parent=5 // pred_fallthru
        _
    $region6: #{tpu_custom_call.1} parent=1 // loop_footer
      %s20 = sadd.s32 1, %s16
    $region7: #{tpu_custom_call.1} parent=1 // loop_footer_branch
      %15 = sbr.rel target = $region3
    $region8: #{tpu_custom_call.1} parent=1 // loop_exit
      _
    %12448 = vsyncpa [#allocation3], 1
    %s12449 = scalar_lea.sflag [#allocation3], 1
    %12450 = vsyncpa %s12449, 1
    %12451 = vsyncpa [#allocation6], 1
    %12452 = vsyncpa [#allocation4], 1
    %s12453 = scalar_lea.sflag [#allocation4], 1
    %12454 = vsyncpa %s12453, 1

</llo_original>
